<compile_context>
chip_gen: v7x
topology: tpu7x:2x2x1
jax: 0.10.0
libtpu: 0.0.40
codegen_flags: <defaults>
</compile_context>

<pallas_src>
import jax
import jax.numpy as jnp
from jax.experimental import pallas as pl
from jax.experimental.pallas import tpu as pltpu

jax.config.update("jax_default_matmul_precision", "highest")

# --- module hyperparameters (from the PyTorch file) ---
N_EMBD = 96
NUM_HEADS = 4
HEAD_SIZE = N_EMBD // NUM_HEADS   # 24
HIDDEN = 4 * N_EMBD               # 384 (already lane-aligned)
C_PAD = 128                       # lane-aligned channel dim inside the kernel
FUSED_N = 2 * C_PAD + NUM_HEADS * C_PAD   # [k | q | vp_0..vp_3] = 768
LN_EPS = 1e-5


def _layernorm_padded(x, gamma, beta):
    """LayerNorm over the real N_EMBD channels of a (M, C_PAD) slab.

    Padded input channels are zero, so sums over all C_PAD lanes equal the
    sums over the real 96 channels. gamma/beta are zero-padded, so the padded
    channels of the result are exactly zero again.
    """
    inv_n = 1.0 / N_EMBD
    s = jnp.sum(x, axis=-1, keepdims=True)
    ss = jnp.sum(x * x, axis=-1, keepdims=True)
    mean = s * inv_n
    var = ss * inv_n - mean * mean          # biased variance (PyTorch LayerNorm)
    inv = jax.lax.rsqrt(var + LN_EPS)
    return (x - mean) * inv * gamma + beta


def block_kernel(x_ref, g1_ref, be1_ref, wf_ref, bp_ref,
                 g2_ref, be2_ref, w1_ref, bf1_ref, w2_ref, bf2_ref, o_ref):
    """Bt batch elements per grid step; everything lives in VMEM/vregs.

    x_ref   : (Bt, T, C_PAD)   zero-padded input block
    g1/be1  : (1, C_PAD)       ln1 gamma/beta (zero on padded channels)
    wf      : (C_PAD, FUSED_N) fused [K | Q | wv_0@wp_0 | ... | wv_3@wp_3]
    bp      : (1, C_PAD)       attention output-projection bias
    g2/be2  : (1, C_PAD)       ln2 gamma/beta
    w1, bf1 : (C_PAD, HIDDEN), (1, HIDDEN) FFN first linear
    w2, bf2 : (HIDDEN, C_PAD), (1, C_PAD)  FFN second linear
    o_ref   : (Bt, T, C_PAD)
    """
    Bt, T, _ = x_ref.shape
    M = Bt * T
    x = x_ref[...].reshape(M, C_PAD)                        # (M, C_PAD) f32

    # ---------- ln1 + fused projection ----------
    xn1 = _layernorm_padded(x, g1_ref[...], be1_ref[...])
    kqvp = jnp.dot(xn1, wf_ref[...],
                   preferred_element_type=jnp.float32)      # (M, FUSED_N)
    k = kqvp[:, :C_PAD]
    q = kqvp[:, C_PAD:2 * C_PAD]
    vp = kqvp[:, 2 * C_PAD:]                                # (M, NUM_HEADS*C_PAD)

    # query-row tile: big enough to amortize, small enough to stay in vregs
    row_tile = 64 if (T % 64 == 0) else T

    bp_tile = jnp.broadcast_to(bp_ref[...], (row_tile, C_PAD))   # hoisted

    # ---------- multi-head additive self-attention ----------
    parts = []
    for b in range(Bt):
        sl = slice(b * T, (b + 1) * T)
        q_b = q[sl]                                          # (T, C_PAD)
        kT_b = k[sl].T                                       # (C_PAD, T), one XLU transpose
        vp_b = vp[sl]                                        # (T, NUM_HEADS*C_PAD)
        for r0 in range(0, T, row_tile):
            q_rows = q_b[r0:r0 + row_tile]                   # (row_tile, C_PAD)
            acc = bp_tile                                    # start at proj bias
            for h in range(NUM_HEADS):
                base = h * HEAD_SIZE
                # s[i, j] = sum_d tanh(q[i, d] + k[j, d]), accumulated over d
                # on lane-dense (row_tile, T) tiles (no (T,T,Dh) intermediate,
                # no per-(i,j) cross-lane reduce).
                scores = jnp.zeros((row_tile, T), jnp.float32)
                for d in range(HEAD_SIZE):
                    c = base + d
                    scores = scores + jnp.tanh(q_rows[:, c:c + 1]
                                               + kT_b[c:c + 1, :])
                # |scores| <= HEAD_SIZE = 24, so exp() is safe in f32 without
                # max-subtraction.  Exact reciprocal (correctness per review).
                p = jnp.exp(scores)
                p = p / jnp.sum(p, axis=-1, keepdims=True)
                # wp already folded into vp: one lane-dense (rows,T)x(T,128)
                acc = acc + jnp.dot(p, vp_b[:, h * C_PAD:(h + 1) * C_PAD],
                                    preferred_element_type=jnp.float32)
            parts.append(acc)
    y = parts[0] if len(parts) == 1 else jnp.concatenate(parts, axis=0)

    x1 = x + y                                               # residual 1

    # ---------- ln2 + feed-forward ----------
    xn2 = _layernorm_padded(x1, g2_ref[...], be2_ref[...])
    hdn = jnp.maximum(
        jnp.dot(xn2, w1_ref[...], preferred_element_type=jnp.float32)
        + bf1_ref[...], 0.0)                                 # (M, HIDDEN), ReLU
    ff = jnp.dot(hdn, w2_ref[...],
                 preferred_element_type=jnp.float32) + bf2_ref[...]

    o_ref[...] = (x1 + ff).reshape(Bt, T, C_PAD).astype(o_ref.dtype)


def _pad_to(a, shape):
    pads = [(0, s - d) for d, s in zip(a.shape, shape)]
    return jnp.pad(a, pads)


def prepare_params(params):
    """One-time weight padding / fusion (hoisted out of the per-call path)."""
    wk = _pad_to(params["wk"], (C_PAD, C_PAD))
    wq = _pad_to(params["wq"], (C_PAD, C_PAD))
    # fold the output projection into V per head (exact, by associativity)
    wvp = []
    for h in range(NUM_HEADS):
        lo = h * HEAD_SIZE
        wvp_h = params["wv"][:, lo:lo + HEAD_SIZE] @ params["wp"][lo:lo + HEAD_SIZE, :]
        wvp.append(_pad_to(wvp_h, (C_PAD, C_PAD)))
    wf = jnp.concatenate([wk, wq] + wvp, axis=1)             # (128, 768)
    return {
        "wf": wf,
        "bp": _pad_to(params["bp"][None, :], (1, C_PAD)),
        "g1": _pad_to(params["ln1_g"][None, :], (1, C_PAD)),
        "be1": _pad_to(params["ln1_b"][None, :], (1, C_PAD)),
        "g2": _pad_to(params["ln2_g"][None, :], (1, C_PAD)),
        "be2": _pad_to(params["ln2_b"][None, :], (1, C_PAD)),
        "w1": _pad_to(params["w1"], (C_PAD, HIDDEN)),
        "bf1": params["b1"][None, :],                        # (1, 384)
        "w2": _pad_to(params["w2"], (HIDDEN, C_PAD)),
        "bf2": _pad_to(params["b2"][None, :], (1, C_PAD)),
    }


def _pick_bt(B):
    """Batch elements per grid step: grid length stays >= 2 (v7x dual TC)."""
    best = 1
    for bt in range(1, min(B, 8) + 1):
        if B % bt == 0 and B // bt >= 2:
            best = bt
    return best


def block_forward(x, prepped):
    """Transformer Block forward: x (B, T, 96) -> (B, T, 96)."""
    B, T, C = x.shape
    assert C == N_EMBD
    assert T % 8 == 0, "sequence length must be sublane-aligned"
    Bt = _pick_bt(B)
    xp = _pad_to(x, (B, T, C_PAD))

    grid_spec = pltpu.PrefetchScalarGridSpec(
        num_scalar_prefetch=0,
        grid=(B // Bt,),
        in_specs=[
            pl.BlockSpec((Bt, T, C_PAD), lambda b: (b, 0, 0)),
            pl.BlockSpec((1, C_PAD), lambda b: (0, 0)),
            pl.BlockSpec((1, C_PAD), lambda b: (0, 0)),
            pl.BlockSpec((C_PAD, FUSED_N), lambda b: (0, 0)),
            pl.BlockSpec((1, C_PAD), lambda b: (0, 0)),
            pl.BlockSpec((1, C_PAD), lambda b: (0, 0)),
            pl.BlockSpec((1, C_PAD), lambda b: (0, 0)),
            pl.BlockSpec((C_PAD, HIDDEN), lambda b: (0, 0)),
            pl.BlockSpec((1, HIDDEN), lambda b: (0, 0)),
            pl.BlockSpec((HIDDEN, C_PAD), lambda b: (0, 0)),
            pl.BlockSpec((1, C_PAD), lambda b: (0, 0)),
        ],
        out_specs=pl.BlockSpec((Bt, T, C_PAD), lambda b: (b, 0, 0)),
    )

    out = pl.pallas_call(
        block_kernel,
        out_shape=jax.ShapeDtypeStruct((B, T, C_PAD), x.dtype),
        grid_spec=grid_spec,
        compiler_params=pltpu.CompilerParams(
            dimension_semantics=("parallel",)),
    )(xp, prepped["g1"], prepped["be1"], prepped["wf"], prepped["bp"],
      prepped["g2"], prepped["be2"], prepped["w1"], prepped["bf1"],
      prepped["w2"], prepped["bf2"])

    return out[..., :C]


def reference_block(x, params):
    """Plain-JAX reference of the full Block forward (eval semantics)."""
    def ln(z, g, b):
        mean = jnp.mean(z, axis=-1, keepdims=True)
        var = jnp.mean((z - mean) ** 2, axis=-1, keepdims=True)
        return (z - mean) / jnp.sqrt(var + LN_EPS) * g + b

    xn1 = ln(x, params["ln1_g"], params["ln1_b"])
    k = xn1 @ params["wk"]
    q = xn1 @ params["wq"]
    v = xn1 @ params["wv"]
    outs = []
    for h in range(NUM_HEADS):
        lo = h * HEAD_SIZE
        qh = q[..., lo:lo + HEAD_SIZE]
        kh = k[..., lo:lo + HEAD_SIZE]
        vh = v[..., lo:lo + HEAD_SIZE]
        scores = jnp.sum(jnp.tanh(qh[:, :, None, :] + kh[:, None, :, :]), axis=-1)
        p = jax.nn.softmax(scores, axis=-1)
        outs.append(jnp.einsum("btk,bkd->btd", p, vh))
    sa = jnp.concatenate(outs, axis=-1) @ params["wp"] + params["bp"]
    x1 = x + sa
    xn2 = ln(x1, params["ln2_g"], params["ln2_b"])
    ff = jnp.maximum(xn2 @ params["w1"] + params["b1"], 0.0) @ params["w2"] + params["b2"]
    return x1 + ff


def init_params(key):
    """Deterministic synthetic weights, stored as (in_features, out_features)."""
    ks = jax.random.split(key, 13)
    s = 0.08
    return {
        "wk": s * jax.random.normal(ks[0], (N_EMBD, N_EMBD), jnp.float32),
        "wq": s * jax.random.normal(ks[1], (N_EMBD, N_EMBD), jnp.float32),
        "wv": s * jax.random.normal(ks[2], (N_EMBD, N_EMBD), jnp.float32),
        "wp": s * jax.random.normal(ks[3], (N_EMBD, N_EMBD), jnp.float32),
        "bp": s * jax.random.normal(ks[4], (N_EMBD,), jnp.float32),
        "ln1_g": 1.0 + 0.1 * jax.random.normal(ks[5], (N_EMBD,), jnp.float32),
        "ln1_b": 0.1 * jax.random.normal(ks[6], (N_EMBD,), jnp.float32),
        "ln2_g": 1.0 + 0.1 * jax.random.normal(ks[7], (N_EMBD,), jnp.float32),
        "ln2_b": 0.1 * jax.random.normal(ks[8], (N_EMBD,), jnp.float32),
        "w1": s * jax.random.normal(ks[9], (N_EMBD, HIDDEN), jnp.float32),
        "b1": s * jax.random.normal(ks[10], (HIDDEN,), jnp.float32),
        "w2": s * jax.random.normal(ks[11], (HIDDEN, N_EMBD), jnp.float32),
        "b2": s * jax.random.normal(ks[12], (N_EMBD,), jnp.float32),
    }


if __name__ == "__main__":
    key = jax.random.PRNGKey(0)
    k_x, k_p = jax.random.split(key)

    B, T = 2, 8   # small seq (<= block_size=256), embedding fixed at n_embd=96
    x = jax.random.normal(k_x, (B, T, N_EMBD), jnp.float32)
    params = init_params(k_p)

    prepped = prepare_params(params)          # one-time padded/fused weights
    out = jax.block_until_ready(block_forward(x, prepped))
    ref = reference_block(x, params)

    assert out.shape == (B, T, N_EMBD)
    max_err = jnp.max(jnp.abs(out - ref))
    assert jnp.allclose(out, ref, atol=2e-3, rtol=2e-3), f"mismatch, max_err={max_err}"

    print("KERNEL_OK")
</pallas_src>

<mosaic_0001>
module attributes {stable_mosaic.version = 11 : i64} {
  func.func @block_kernel(%arg0: i32, %arg1: memref<1x8x128xf32, #tpu.memory_space<vmem>>, %arg2: memref<1x128xf32, #tpu.memory_space<vmem>>, %arg3: memref<1x128xf32, #tpu.memory_space<vmem>>, %arg4: memref<128x768xf32, #tpu.memory_space<vmem>>, %arg5: memref<1x128xf32, #tpu.memory_space<vmem>>, %arg6: memref<1x128xf32, #tpu.memory_space<vmem>>, %arg7: memref<1x128xf32, #tpu.memory_space<vmem>>, %arg8: memref<128x384xf32, #tpu.memory_space<vmem>>, %arg9: memref<1x384xf32, #tpu.memory_space<vmem>>, %arg10: memref<384x128xf32, #tpu.memory_space<vmem>>, %arg11: memref<1x128xf32, #tpu.memory_space<vmem>>, %arg12: memref<1x8x128xf32, #tpu.memory_space<vmem>>) attributes {dimension_semantics = [#tpu.dimension_semantics<parallel>], iteration_bounds = array<i64: 2>, scalar_prefetch = 0 : i64, scratch_operands = 0 : i64, tpu.core_type = #tpu.core_type<tc>, window_params = [{transform_indices = @transform_0, window_bounds = array<i64: 1, 8, 128>}, {pipeline_mode = #tpu.pipeline_mode<synchronous>, transform_indices = @transform_1, window_bounds = array<i64: 1, 128>}, {pipeline_mode = #tpu.pipeline_mode<synchronous>, transform_indices = @transform_2, window_bounds = array<i64: 1, 128>}, {pipeline_mode = #tpu.pipeline_mode<synchronous>, transform_indices = @transform_3, window_bounds = array<i64: 128, 768>}, {pipeline_mode = #tpu.pipeline_mode<synchronous>, transform_indices = @transform_4, window_bounds = array<i64: 1, 128>}, {pipeline_mode = #tpu.pipeline_mode<synchronous>, transform_indices = @transform_5, window_bounds = array<i64: 1, 128>}, {pipeline_mode = #tpu.pipeline_mode<synchronous>, transform_indices = @transform_6, window_bounds = array<i64: 1, 128>}, {pipeline_mode = #tpu.pipeline_mode<synchronous>, transform_indices = @transform_7, window_bounds = array<i64: 128, 384>}, {pipeline_mode = #tpu.pipeline_mode<synchronous>, transform_indices = @transform_8, window_bounds = array<i64: 1, 384>}, {pipeline_mode = #tpu.pipeline_mode<synchronous>, transform_indices = @transform_9, window_bounds = array<i64: 384, 128>}, {pipeline_mode = #tpu.pipeline_mode<synchronous>, transform_indices = @transform_10, window_bounds = array<i64: 1, 128>}, {transform_indices = @transform_11, window_bounds = array<i64: 1, 8, 128>}]} {
    %c0 = arith.constant 0 : index
    %c0_0 = arith.constant 0 : index
    %c0_1 = arith.constant 0 : index
    %0 = vector.load %arg1[%c0, %c0_0, %c0_1] : memref<1x8x128xf32, #tpu.memory_space<vmem>>, vector<1x8x128xf32>
    %1 = vector.shape_cast %0 : vector<1x8x128xf32> to vector<8x128xf32>
    %c0_2 = arith.constant 0 : index
    %c0_3 = arith.constant 0 : index
    %2 = vector.load %arg2[%c0_2, %c0_3] : memref<1x128xf32, #tpu.memory_space<vmem>>, vector<1x128xf32>
    %c0_4 = arith.constant 0 : index
    %c0_5 = arith.constant 0 : index
    %3 = vector.load %arg3[%c0_4, %c0_5] : memref<1x128xf32, #tpu.memory_space<vmem>>, vector<1x128xf32>
    %cst = arith.constant dense<0.000000e+00> : vector<8xf32>
    %4 = vector.multi_reduction <add>, %1, %cst [1] : vector<8x128xf32> to vector<8xf32>
    %5 = vector.shape_cast %4 : vector<8xf32> to vector<8x1xf32>
    %6 = arith.mulf %1, %1 : vector<8x128xf32>
    %cst_6 = arith.constant dense<0.000000e+00> : vector<8xf32>
    %7 = vector.multi_reduction <add>, %6, %cst_6 [1] : vector<8x128xf32> to vector<8xf32>
    %8 = vector.shape_cast %7 : vector<8xf32> to vector<8x1xf32>
    %cst_7 = arith.constant 0.010416667 : f32
    %9 = vector.broadcast %cst_7 : f32 to vector<8x1xf32>
    %10 = arith.mulf %5, %9 : vector<8x1xf32>
    %cst_8 = arith.constant 0.010416667 : f32
    %11 = vector.broadcast %cst_8 : f32 to vector<8x1xf32>
    %12 = arith.mulf %8, %11 : vector<8x1xf32>
    %13 = arith.mulf %10, %10 : vector<8x1xf32>
    %14 = arith.subf %12, %13 : vector<8x1xf32>
    %cst_9 = arith.constant 9.99999974E-6 : f32
    %15 = vector.broadcast %cst_9 : f32 to vector<8x1xf32>
    %16 = arith.addf %14, %15 : vector<8x1xf32>
    %17 = math.rsqrt %16 : vector<8x1xf32>
    %18 = vector.broadcast %10 : vector<8x1xf32> to vector<8x128xf32>
    %19 = arith.subf %1, %18 : vector<8x128xf32>
    %20 = vector.broadcast %17 : vector<8x1xf32> to vector<8x128xf32>
    %21 = arith.mulf %19, %20 : vector<8x128xf32>
    %22 = vector.broadcast %2 : vector<1x128xf32> to vector<8x128xf32>
    %23 = arith.mulf %21, %22 : vector<8x128xf32>
    %24 = vector.broadcast %3 : vector<1x128xf32> to vector<8x128xf32>
    %25 = arith.addf %23, %24 : vector<8x128xf32>
    %c0_10 = arith.constant 0 : index
    %c0_11 = arith.constant 0 : index
    %26 = vector.load %arg4[%c0_10, %c0_11] : memref<128x768xf32, #tpu.memory_space<vmem>>, vector<128x768xf32>
    %cst_12 = arith.constant dense<0.000000e+00> : vector<8x768xf32>
    %27 = tpu.matmul %25, %26, %cst_12 {dimension_numbers = #tpu.dot_dimension_numbers<[1], [0], [0], [1], [0, 0, 1, 1], [], []>, precision = #tpu.contract_precision<fp32>} : vector<8x128xf32>, vector<128x768xf32>, vector<8x768xf32> -> vector<8x768xf32>
    %28 = vector.extract_strided_slice %27 {offsets = [0, 0], sizes = [8, 128], strides = [1, 1]} : vector<8x768xf32> to vector<8x128xf32>
    %29 = vector.extract_strided_slice %27 {offsets = [0, 128], sizes = [8, 128], strides = [1, 1]} : vector<8x768xf32> to vector<8x128xf32>
    %30 = vector.extract_strided_slice %27 {offsets = [0, 256], sizes = [8, 512], strides = [1, 1]} : vector<8x768xf32> to vector<8x512xf32>
    %c0_13 = arith.constant 0 : index
    %c0_14 = arith.constant 0 : index
    %31 = vector.load %arg5[%c0_13, %c0_14] : memref<1x128xf32, #tpu.memory_space<vmem>>, vector<1x128xf32>
    %32 = vector.shape_cast %31 : vector<1x128xf32> to vector<1x128xf32>
    %33 = vector.broadcast %32 : vector<1x128xf32> to vector<8x128xf32>
    %34 = tpu.transpose %28, [1, 0] : vector<8x128xf32> -> vector<128x8xf32>
    %cst_15 = arith.constant 0.000000e+00 : f32
    %35 = vector.broadcast %cst_15 : f32 to vector<8x8xf32>
    %36 = vector.extract_strided_slice %29 {offsets = [0, 0], sizes = [8, 1], strides = [1, 1]} : vector<8x128xf32> to vector<8x1xf32>
    %37 = vector.extract_strided_slice %34 {offsets = [0, 0], sizes = [1, 8], strides = [1, 1]} : vector<128x8xf32> to vector<1x8xf32>
    %38 = vector.broadcast %36 : vector<8x1xf32> to vector<8x8xf32>
    %39 = vector.broadcast %37 : vector<1x8xf32> to vector<8x8xf32>
    %40 = arith.addf %38, %39 : vector<8x8xf32>
    %41 = math.tanh %40 : vector<8x8xf32>
    %42 = arith.addf %35, %41 : vector<8x8xf32>
    %43 = vector.extract_strided_slice %29 {offsets = [0, 1], sizes = [8, 1], strides = [1, 1]} : vector<8x128xf32> to vector<8x1xf32>
    %44 = vector.extract_strided_slice %34 {offsets = [1, 0], sizes = [1, 8], strides = [1, 1]} : vector<128x8xf32> to vector<1x8xf32>
    %45 = vector.broadcast %43 : vector<8x1xf32> to vector<8x8xf32>
    %46 = vector.broadcast %44 : vector<1x8xf32> to vector<8x8xf32>
    %47 = arith.addf %45, %46 : vector<8x8xf32>
    %48 = math.tanh %47 : vector<8x8xf32>
    %49 = arith.addf %42, %48 : vector<8x8xf32>
    %50 = vector.extract_strided_slice %29 {offsets = [0, 2], sizes = [8, 1], strides = [1, 1]} : vector<8x128xf32> to vector<8x1xf32>
    %51 = vector.extract_strided_slice %34 {offsets = [2, 0], sizes = [1, 8], strides = [1, 1]} : vector<128x8xf32> to vector<1x8xf32>
    %52 = vector.broadcast %50 : vector<8x1xf32> to vector<8x8xf32>
    %53 = vector.broadcast %51 : vector<1x8xf32> to vector<8x8xf32>
    %54 = arith.addf %52, %53 : vector<8x8xf32>
    %55 = math.tanh %54 : vector<8x8xf32>
    %56 = arith.addf %49, %55 : vector<8x8xf32>
    %57 = vector.extract_strided_slice %29 {offsets = [0, 3], sizes = [8, 1], strides = [1, 1]} : vector<8x128xf32> to vector<8x1xf32>
    %58 = vector.extract_strided_slice %34 {offsets = [3, 0], sizes = [1, 8], strides = [1, 1]} : vector<128x8xf32> to vector<1x8xf32>
    %59 = vector.broadcast %57 : vector<8x1xf32> to vector<8x8xf32>
    %60 = vector.broadcast %58 : vector<1x8xf32> to vector<8x8xf32>
    %61 = arith.addf %59, %60 : vector<8x8xf32>
    %62 = math.tanh %61 : vector<8x8xf32>
    %63 = arith.addf %56, %62 : vector<8x8xf32>
    %64 = vector.extract_strided_slice %29 {offsets = [0, 4], sizes = [8, 1], strides = [1, 1]} : vector<8x128xf32> to vector<8x1xf32>
    %65 = vector.extract_strided_slice %34 {offsets = [4, 0], sizes = [1, 8], strides = [1, 1]} : vector<128x8xf32> to vector<1x8xf32>
    %66 = vector.broadcast %64 : vector<8x1xf32> to vector<8x8xf32>
    %67 = vector.broadcast %65 : vector<1x8xf32> to vector<8x8xf32>
    %68 = arith.addf %66, %67 : vector<8x8xf32>
    %69 = math.tanh %68 : vector<8x8xf32>
    %70 = arith.addf %63, %69 : vector<8x8xf32>
    %71 = vector.extract_strided_slice %29 {offsets = [0, 5], sizes = [8, 1], strides = [1, 1]} : vector<8x128xf32> to vector<8x1xf32>
    %72 = vector.extract_strided_slice %34 {offsets = [5, 0], sizes = [1, 8], strides = [1, 1]} : vector<128x8xf32> to vector<1x8xf32>
    %73 = vector.broadcast %71 : vector<8x1xf32> to vector<8x8xf32>
    %74 = vector.broadcast %72 : vector<1x8xf32> to vector<8x8xf32>
    %75 = arith.addf %73, %74 : vector<8x8xf32>
    %76 = math.tanh %75 : vector<8x8xf32>
    %77 = arith.addf %70, %76 : vector<8x8xf32>
    %78 = vector.extract_strided_slice %29 {offsets = [0, 6], sizes = [8, 1], strides = [1, 1]} : vector<8x128xf32> to vector<8x1xf32>
    %79 = vector.extract_strided_slice %34 {offsets = [6, 0], sizes = [1, 8], strides = [1, 1]} : vector<128x8xf32> to vector<1x8xf32>
    %80 = vector.broadcast %78 : vector<8x1xf32> to vector<8x8xf32>
    %81 = vector.broadcast %79 : vector<1x8xf32> to vector<8x8xf32>
    %82 = arith.addf %80, %81 : vector<8x8xf32>
    %83 = math.tanh %82 : vector<8x8xf32>
    %84 = arith.addf %77, %83 : vector<8x8xf32>
    %85 = vector.extract_strided_slice %29 {offsets = [0, 7], sizes = [8, 1], strides = [1, 1]} : vector<8x128xf32> to vector<8x1xf32>
    %86 = vector.extract_strided_slice %34 {offsets = [7, 0], sizes = [1, 8], strides = [1, 1]} : vector<128x8xf32> to vector<1x8xf32>
    %87 = vector.broadcast %85 : vector<8x1xf32> to vector<8x8xf32>
    %88 = vector.broadcast %86 : vector<1x8xf32> to vector<8x8xf32>
    %89 = arith.addf %87, %88 : vector<8x8xf32>
    %90 = math.tanh %89 : vector<8x8xf32>
    %91 = arith.addf %84, %90 : vector<8x8xf32>
    %92 = vector.extract_strided_slice %29 {offsets = [0, 8], sizes = [8, 1], strides = [1, 1]} : vector<8x128xf32> to vector<8x1xf32>
    %93 = vector.extract_strided_slice %34 {offsets = [8, 0], sizes = [1, 8], strides = [1, 1]} : vector<128x8xf32> to vector<1x8xf32>
    %94 = vector.broadcast %92 : vector<8x1xf32> to vector<8x8xf32>
    %95 = vector.broadcast %93 : vector<1x8xf32> to vector<8x8xf32>
    %96 = arith.addf %94, %95 : vector<8x8xf32>
    %97 = math.tanh %96 : vector<8x8xf32>
    %98 = arith.addf %91, %97 : vector<8x8xf32>
    %99 = vector.extract_strided_slice %29 {offsets = [0, 9], sizes = [8, 1], strides = [1, 1]} : vector<8x128xf32> to vector<8x1xf32>
    %100 = vector.extract_strided_slice %34 {offsets = [9, 0], sizes = [1, 8], strides = [1, 1]} : vector<128x8xf32> to vector<1x8xf32>
    %101 = vector.broadcast %99 : vector<8x1xf32> to vector<8x8xf32>
    %102 = vector.broadcast %100 : vector<1x8xf32> to vector<8x8xf32>
    %103 = arith.addf %101, %102 : vector<8x8xf32>
    %104 = math.tanh %103 : vector<8x8xf32>
    %105 = arith.addf %98, %104 : vector<8x8xf32>
    %106 = vector.extract_strided_slice %29 {offsets = [0, 10], sizes = [8, 1], strides = [1, 1]} : vector<8x128xf32> to vector<8x1xf32>
    %107 = vector.extract_strided_slice %34 {offsets = [10, 0], sizes = [1, 8], strides = [1, 1]} : vector<128x8xf32> to vector<1x8xf32>
    %108 = vector.broadcast %106 : vector<8x1xf32> to vector<8x8xf32>
    %109 = vector.broadcast %107 : vector<1x8xf32> to vector<8x8xf32>
    %110 = arith.addf %108, %109 : vector<8x8xf32>
    %111 = math.tanh %110 : vector<8x8xf32>
    %112 = arith.addf %105, %111 : vector<8x8xf32>
    %113 = vector.extract_strided_slice %29 {offsets = [0, 11], sizes = [8, 1], strides = [1, 1]} : vector<8x128xf32> to vector<8x1xf32>
    %114 = vector.extract_strided_slice %34 {offsets = [11, 0], sizes = [1, 8], strides = [1, 1]} : vector<128x8xf32> to vector<1x8xf32>
    %115 = vector.broadcast %113 : vector<8x1xf32> to vector<8x8xf32>
    %116 = vector.broadcast %114 : vector<1x8xf32> to vector<8x8xf32>
    %117 = arith.addf %115, %116 : vector<8x8xf32>
    %118 = math.tanh %117 : vector<8x8xf32>
    %119 = arith.addf %112, %118 : vector<8x8xf32>
    %120 = vector.extract_strided_slice %29 {offsets = [0, 12], sizes = [8, 1], strides = [1, 1]} : vector<8x128xf32> to vector<8x1xf32>
    %121 = vector.extract_strided_slice %34 {offsets = [12, 0], sizes = [1, 8], strides = [1, 1]} : vector<128x8xf32> to vector<1x8xf32>
    %122 = vector.broadcast %120 : vector<8x1xf32> to vector<8x8xf32>
    %123 = vector.broadcast %121 : vector<1x8xf32> to vector<8x8xf32>
    %124 = arith.addf %122, %123 : vector<8x8xf32>
    %125 = math.tanh %124 : vector<8x8xf32>
    %126 = arith.addf %119, %125 : vector<8x8xf32>
    %127 = vector.extract_strided_slice %29 {offsets = [0, 13], sizes = [8, 1], strides = [1, 1]} : vector<8x128xf32> to vector<8x1xf32>
    %128 = vector.extract_strided_slice %34 {offsets = [13, 0], sizes = [1, 8], strides = [1, 1]} : vector<128x8xf32> to vector<1x8xf32>
    %129 = vector.broadcast %127 : vector<8x1xf32> to vector<8x8xf32>
    %130 = vector.broadcast %128 : vector<1x8xf32> to vector<8x8xf32>
    %131 = arith.addf %129, %130 : vector<8x8xf32>
    %132 = math.tanh %131 : vector<8x8xf32>
    %133 = arith.addf %126, %132 : vector<8x8xf32>
    %134 = vector.extract_strided_slice %29 {offsets = [0, 14], sizes = [8, 1], strides = [1, 1]} : vector<8x128xf32> to vector<8x1xf32>
    %135 = vector.extract_strided_slice %34 {offsets = [14, 0], sizes = [1, 8], strides = [1, 1]} : vector<128x8xf32> to vector<1x8xf32>
    %136 = vector.broadcast %134 : vector<8x1xf32> to vector<8x8xf32>
    %137 = vector.broadcast %135 : vector<1x8xf32> to vector<8x8xf32>
    %138 = arith.addf %136, %137 : vector<8x8xf32>
    %139 = math.tanh %138 : vector<8x8xf32>
    %140 = arith.addf %133, %139 : vector<8x8xf32>
    %141 = vector.extract_strided_slice %29 {offsets = [0, 15], sizes = [8, 1], strides = [1, 1]} : vector<8x128xf32> to vector<8x1xf32>
    %142 = vector.extract_strided_slice %34 {offsets = [15, 0], sizes = [1, 8], strides = [1, 1]} : vector<128x8xf32> to vector<1x8xf32>
    %143 = vector.broadcast %141 : vector<8x1xf32> to vector<8x8xf32>
    %144 = vector.broadcast %142 : vector<1x8xf32> to vector<8x8xf32>
    %145 = arith.addf %143, %144 : vector<8x8xf32>
    %146 = math.tanh %145 : vector<8x8xf32>
    %147 = arith.addf %140, %146 : vector<8x8xf32>
    %148 = vector.extract_strided_slice %29 {offsets = [0, 16], sizes = [8, 1], strides = [1, 1]} : vector<8x128xf32> to vector<8x1xf32>
    %149 = vector.extract_strided_slice %34 {offsets = [16, 0], sizes = [1, 8], strides = [1, 1]} : vector<128x8xf32> to vector<1x8xf32>
    %150 = vector.broadcast %148 : vector<8x1xf32> to vector<8x8xf32>
    %151 = vector.broadcast %149 : vector<1x8xf32> to vector<8x8xf32>
    %152 = arith.addf %150, %151 : vector<8x8xf32>
    %153 = math.tanh %152 : vector<8x8xf32>
    %154 = arith.addf %147, %153 : vector<8x8xf32>
    %155 = vector.extract_strided_slice %29 {offsets = [0, 17], sizes = [8, 1], strides = [1, 1]} : vector<8x128xf32> to vector<8x1xf32>
    %156 = vector.extract_strided_slice %34 {offsets = [17, 0], sizes = [1, 8], strides = [1, 1]} : vector<128x8xf32> to vector<1x8xf32>
    %157 = vector.broadcast %155 : vector<8x1xf32> to vector<8x8xf32>
    %158 = vector.broadcast %156 : vector<1x8xf32> to vector<8x8xf32>
    %159 = arith.addf %157, %158 : vector<8x8xf32>
    %160 = math.tanh %159 : vector<8x8xf32>
    %161 = arith.addf %154, %160 : vector<8x8xf32>
    %162 = vector.extract_strided_slice %29 {offsets = [0, 18], sizes = [8, 1], strides = [1, 1]} : vector<8x128xf32> to vector<8x1xf32>
    %163 = vector.extract_strided_slice %34 {offsets = [18, 0], sizes = [1, 8], strides = [1, 1]} : vector<128x8xf32> to vector<1x8xf32>
    %164 = vector.broadcast %162 : vector<8x1xf32> to vector<8x8xf32>
    %165 = vector.broadcast %163 : vector<1x8xf32> to vector<8x8xf32>
    %166 = arith.addf %164, %165 : vector<8x8xf32>
    %167 = math.tanh %166 : vector<8x8xf32>
    %168 = arith.addf %161, %167 : vector<8x8xf32>
    %169 = vector.extract_strided_slice %29 {offsets = [0, 19], sizes = [8, 1], strides = [1, 1]} : vector<8x128xf32> to vector<8x1xf32>
    %170 = vector.extract_strided_slice %34 {offsets = [19, 0], sizes = [1, 8], strides = [1, 1]} : vector<128x8xf32> to vector<1x8xf32>
    %171 = vector.broadcast %169 : vector<8x1xf32> to vector<8x8xf32>
    %172 = vector.broadcast %170 : vector<1x8xf32> to vector<8x8xf32>
    %173 = arith.addf %171, %172 : vector<8x8xf32>
    %174 = math.tanh %173 : vector<8x8xf32>
    %175 = arith.addf %168, %174 : vector<8x8xf32>
    %176 = vector.extract_strided_slice %29 {offsets = [0, 20], sizes = [8, 1], strides = [1, 1]} : vector<8x128xf32> to vector<8x1xf32>
    %177 = vector.extract_strided_slice %34 {offsets = [20, 0], sizes = [1, 8], strides = [1, 1]} : vector<128x8xf32> to vector<1x8xf32>
    %178 = vector.broadcast %176 : vector<8x1xf32> to vector<8x8xf32>
    %179 = vector.broadcast %177 : vector<1x8xf32> to vector<8x8xf32>
    %180 = arith.addf %178, %179 : vector<8x8xf32>
    %181 = math.tanh %180 : vector<8x8xf32>
    %182 = arith.addf %175, %181 : vector<8x8xf32>
    %183 = vector.extract_strided_slice %29 {offsets = [0, 21], sizes = [8, 1], strides = [1, 1]} : vector<8x128xf32> to vector<8x1xf32>
    %184 = vector.extract_strided_slice %34 {offsets = [21, 0], sizes = [1, 8], strides = [1, 1]} : vector<128x8xf32> to vector<1x8xf32>
    %185 = vector.broadcast %183 : vector<8x1xf32> to vector<8x8xf32>
    %186 = vector.broadcast %184 : vector<1x8xf32> to vector<8x8xf32>
    %187 = arith.addf %185, %186 : vector<8x8xf32>
    %188 = math.tanh %187 : vector<8x8xf32>
    %189 = arith.addf %182, %188 : vector<8x8xf32>
    %190 = vector.extract_strided_slice %29 {offsets = [0, 22], sizes = [8, 1], strides = [1, 1]} : vector<8x128xf32> to vector<8x1xf32>
    %191 = vector.extract_strided_slice %34 {offsets = [22, 0], sizes = [1, 8], strides = [1, 1]} : vector<128x8xf32> to vector<1x8xf32>
    %192 = vector.broadcast %190 : vector<8x1xf32> to vector<8x8xf32>
    %193 = vector.broadcast %191 : vector<1x8xf32> to vector<8x8xf32>
    %194 = arith.addf %192, %193 : vector<8x8xf32>
    %195 = math.tanh %194 : vector<8x8xf32>
    %196 = arith.addf %189, %195 : vector<8x8xf32>
    %197 = vector.extract_strided_slice %29 {offsets = [0, 23], sizes = [8, 1], strides = [1, 1]} : vector<8x128xf32> to vector<8x1xf32>
    %198 = vector.extract_strided_slice %34 {offsets = [23, 0], sizes = [1, 8], strides = [1, 1]} : vector<128x8xf32> to vector<1x8xf32>
    %199 = vector.broadcast %197 : vector<8x1xf32> to vector<8x8xf32>
    %200 = vector.broadcast %198 : vector<1x8xf32> to vector<8x8xf32>
    %201 = arith.addf %199, %200 : vector<8x8xf32>
    %202 = math.tanh %201 : vector<8x8xf32>
    %203 = arith.addf %196, %202 : vector<8x8xf32>
    %204 = math.exp %203 : vector<8x8xf32>
    %cst_16 = arith.constant dense<0.000000e+00> : vector<8xf32>
    %205 = vector.multi_reduction <add>, %204, %cst_16 [1] : vector<8x8xf32> to vector<8xf32>
    %206 = vector.shape_cast %205 : vector<8xf32> to vector<8x1xf32>
    %207 = vector.broadcast %206 : vector<8x1xf32> to vector<8x8xf32>
    %208 = arith.divf %204, %207 : vector<8x8xf32>
    %209 = vector.extract_strided_slice %30 {offsets = [0, 0], sizes = [8, 128], strides = [1, 1]} : vector<8x512xf32> to vector<8x128xf32>
    %cst_17 = arith.constant dense<0.000000e+00> : vector<8x128xf32>
    %210 = tpu.matmul %208, %209, %cst_17 {dimension_numbers = #tpu.dot_dimension_numbers<[1], [0], [0], [1], [0, 0, 1, 1], [], []>, precision = #tpu.contract_precision<fp32>} : vector<8x8xf32>, vector<8x128xf32>, vector<8x128xf32> -> vector<8x128xf32>
    %211 = arith.addf %33, %210 : vector<8x128xf32>
    %cst_18 = arith.constant 0.000000e+00 : f32
    %212 = vector.broadcast %cst_18 : f32 to vector<8x8xf32>
    %213 = vector.extract_strided_slice %29 {offsets = [0, 24], sizes = [8, 1], strides = [1, 1]} : vector<8x128xf32> to vector<8x1xf32>
    %214 = vector.extract_strided_slice %34 {offsets = [24, 0], sizes = [1, 8], strides = [1, 1]} : vector<128x8xf32> to vector<1x8xf32>
    %215 = vector.broadcast %213 : vector<8x1xf32> to vector<8x8xf32>
    %216 = vector.broadcast %214 : vector<1x8xf32> to vector<8x8xf32>
    %217 = arith.addf %215, %216 : vector<8x8xf32>
    %218 = math.tanh %217 : vector<8x8xf32>
    %219 = arith.addf %212, %218 : vector<8x8xf32>
    %220 = vector.extract_strided_slice %29 {offsets = [0, 25], sizes = [8, 1], strides = [1, 1]} : vector<8x128xf32> to vector<8x1xf32>
    %221 = vector.extract_strided_slice %34 {offsets = [25, 0], sizes = [1, 8], strides = [1, 1]} : vector<128x8xf32> to vector<1x8xf32>
    %222 = vector.broadcast %220 : vector<8x1xf32> to vector<8x8xf32>
    %223 = vector.broadcast %221 : vector<1x8xf32> to vector<8x8xf32>
    %224 = arith.addf %222, %223 : vector<8x8xf32>
    %225 = math.tanh %224 : vector<8x8xf32>
    %226 = arith.addf %219, %225 : vector<8x8xf32>
    %227 = vector.extract_strided_slice %29 {offsets = [0, 26], sizes = [8, 1], strides = [1, 1]} : vector<8x128xf32> to vector<8x1xf32>
    %228 = vector.extract_strided_slice %34 {offsets = [26, 0], sizes = [1, 8], strides = [1, 1]} : vector<128x8xf32> to vector<1x8xf32>
    %229 = vector.broadcast %227 : vector<8x1xf32> to vector<8x8xf32>
    %230 = vector.broadcast %228 : vector<1x8xf32> to vector<8x8xf32>
    %231 = arith.addf %229, %230 : vector<8x8xf32>
    %232 = math.tanh %231 : vector<8x8xf32>
    %233 = arith.addf %226, %232 : vector<8x8xf32>
    %234 = vector.extract_strided_slice %29 {offsets = [0, 27], sizes = [8, 1], strides = [1, 1]} : vector<8x128xf32> to vector<8x1xf32>
    %235 = vector.extract_strided_slice %34 {offsets = [27, 0], sizes = [1, 8], strides = [1, 1]} : vector<128x8xf32> to vector<1x8xf32>
    %236 = vector.broadcast %234 : vector<8x1xf32> to vector<8x8xf32>
    %237 = vector.broadcast %235 : vector<1x8xf32> to vector<8x8xf32>
    %238 = arith.addf %236, %237 : vector<8x8xf32>
    %239 = math.tanh %238 : vector<8x8xf32>
    %240 = arith.addf %233, %239 : vector<8x8xf32>
    %241 = vector.extract_strided_slice %29 {offsets = [0, 28], sizes = [8, 1], strides = [1, 1]} : vector<8x128xf32> to vector<8x1xf32>
    %242 = vector.extract_strided_slice %34 {offsets = [28, 0], sizes = [1, 8], strides = [1, 1]} : vector<128x8xf32> to vector<1x8xf32>
    %243 = vector.broadcast %241 : vector<8x1xf32> to vector<8x8xf32>
    %244 = vector.broadcast %242 : vector<1x8xf32> to vector<8x8xf32>
    %245 = arith.addf %243, %244 : vector<8x8xf32>
    %246 = math.tanh %245 : vector<8x8xf32>
    %247 = arith.addf %240, %246 : vector<8x8xf32>
    %248 = vector.extract_strided_slice %29 {offsets = [0, 29], sizes = [8, 1], strides = [1, 1]} : vector<8x128xf32> to vector<8x1xf32>
    %249 = vector.extract_strided_slice %34 {offsets = [29, 0], sizes = [1, 8], strides = [1, 1]} : vector<128x8xf32> to vector<1x8xf32>
    %250 = vector.broadcast %248 : vector<8x1xf32> to vector<8x8xf32>
    %251 = vector.broadcast %249 : vector<1x8xf32> to vector<8x8xf32>
    %252 = arith.addf %250, %251 : vector<8x8xf32>
    %253 = math.tanh %252 : vector<8x8xf32>
    %254 = arith.addf %247, %253 : vector<8x8xf32>
    %255 = vector.extract_strided_slice %29 {offsets = [0, 30], sizes = [8, 1], strides = [1, 1]} : vector<8x128xf32> to vector<8x1xf32>
    %256 = vector.extract_strided_slice %34 {offsets = [30, 0], sizes = [1, 8], strides = [1, 1]} : vector<128x8xf32> to vector<1x8xf32>
    %257 = vector.broadcast %255 : vector<8x1xf32> to vector<8x8xf32>
    %258 = vector.broadcast %256 : vector<1x8xf32> to vector<8x8xf32>
    %259 = arith.addf %257, %258 : vector<8x8xf32>
    %260 = math.tanh %259 : vector<8x8xf32>
    %261 = arith.addf %254, %260 : vector<8x8xf32>
    %262 = vector.extract_strided_slice %29 {offsets = [0, 31], sizes = [8, 1], strides = [1, 1]} : vector<8x128xf32> to vector<8x1xf32>
    %263 = vector.extract_strided_slice %34 {offsets = [31, 0], sizes = [1, 8], strides = [1, 1]} : vector<128x8xf32> to vector<1x8xf32>
    %264 = vector.broadcast %262 : vector<8x1xf32> to vector<8x8xf32>
    %265 = vector.broadcast %263 : vector<1x8xf32> to vector<8x8xf32>
    %266 = arith.addf %264, %265 : vector<8x8xf32>
    %267 = math.tanh %266 : vector<8x8xf32>
    %268 = arith.addf %261, %267 : vector<8x8xf32>
    %269 = vector.extract_strided_slice %29 {offsets = [0, 32], sizes = [8, 1], strides = [1, 1]} : vector<8x128xf32> to vector<8x1xf32>
    %270 = vector.extract_strided_slice %34 {offsets = [32, 0], sizes = [1, 8], strides = [1, 1]} : vector<128x8xf32> to vector<1x8xf32>
    %271 = vector.broadcast %269 : vector<8x1xf32> to vector<8x8xf32>
    %272 = vector.broadcast %270 : vector<1x8xf32> to vector<8x8xf32>
    %273 = arith.addf %271, %272 : vector<8x8xf32>
    %274 = math.tanh %273 : vector<8x8xf32>
    %275 = arith.addf %268, %274 : vector<8x8xf32>
    %276 = vector.extract_strided_slice %29 {offsets = [0, 33], sizes = [8, 1], strides = [1, 1]} : vector<8x128xf32> to vector<8x1xf32>
    %277 = vector.extract_strided_slice %34 {offsets = [33, 0], sizes = [1, 8], strides = [1, 1]} : vector<128x8xf32> to vector<1x8xf32>
    %278 = vector.broadcast %276 : vector<8x1xf32> to vector<8x8xf32>
    %279 = vector.broadcast %277 : vector<1x8xf32> to vector<8x8xf32>
    %280 = arith.addf %278, %279 : vector<8x8xf32>
    %281 = math.tanh %280 : vector<8x8xf32>
    %282 = arith.addf %275, %281 : vector<8x8xf32>
    %283 = vector.extract_strided_slice %29 {offsets = [0, 34], sizes = [8, 1], strides = [1, 1]} : vector<8x128xf32> to vector<8x1xf32>
    %284 = vector.extract_strided_slice %34 {offsets = [34, 0], sizes = [1, 8], strides = [1, 1]} : vector<128x8xf32> to vector<1x8xf32>
    %285 = vector.broadcast %283 : vector<8x1xf32> to vector<8x8xf32>
    %286 = vector.broadcast %284 : vector<1x8xf32> to vector<8x8xf32>
    %287 = arith.addf %285, %286 : vector<8x8xf32>
    %288 = math.tanh %287 : vector<8x8xf32>
    %289 = arith.addf %282, %288 : vector<8x8xf32>
    %290 = vector.extract_strided_slice %29 {offsets = [0, 35], sizes = [8, 1], strides = [1, 1]} : vector<8x128xf32> to vector<8x1xf32>
    %291 = vector.extract_strided_slice %34 {offsets = [35, 0], sizes = [1, 8], strides = [1, 1]} : vector<128x8xf32> to vector<1x8xf32>
    %292 = vector.broadcast %290 : vector<8x1xf32> to vector<8x8xf32>
    %293 = vector.broadcast %291 : vector<1x8xf32> to vector<8x8xf32>
    %294 = arith.addf %292, %293 : vector<8x8xf32>
    %295 = math.tanh %294 : vector<8x8xf32>
    %296 = arith.addf %289, %295 : vector<8x8xf32>
    %297 = vector.extract_strided_slice %29 {offsets = [0, 36], sizes = [8, 1], strides = [1, 1]} : vector<8x128xf32> to vector<8x1xf32>
    %298 = vector.extract_strided_slice %34 {offsets = [36, 0], sizes = [1, 8], strides = [1, 1]} : vector<128x8xf32> to vector<1x8xf32>
    %299 = vector.broadcast %297 : vector<8x1xf32> to vector<8x8xf32>
    %300 = vector.broadcast %298 : vector<1x8xf32> to vector<8x8xf32>
    %301 = arith.addf %299, %300 : vector<8x8xf32>
    %302 = math.tanh %301 : vector<8x8xf32>
    %303 = arith.addf %296, %302 : vector<8x8xf32>
    %304 = vector.extract_strided_slice %29 {offsets = [0, 37], sizes = [8, 1], strides = [1, 1]} : vector<8x128xf32> to vector<8x1xf32>
    %305 = vector.extract_strided_slice %34 {offsets = [37, 0], sizes = [1, 8], strides = [1, 1]} : vector<128x8xf32> to vector<1x8xf32>
    %306 = vector.broadcast %304 : vector<8x1xf32> to vector<8x8xf32>
    %307 = vector.broadcast %305 : vector<1x8xf32> to vector<8x8xf32>
    %308 = arith.addf %306, %307 : vector<8x8xf32>
    %309 = math.tanh %308 : vector<8x8xf32>
    %310 = arith.addf %303, %309 : vector<8x8xf32>
    %311 = vector.extract_strided_slice %29 {offsets = [0, 38], sizes = [8, 1], strides = [1, 1]} : vector<8x128xf32> to vector<8x1xf32>
    %312 = vector.extract_strided_slice %34 {offsets = [38, 0], sizes = [1, 8], strides = [1, 1]} : vector<128x8xf32> to vector<1x8xf32>
    %313 = vector.broadcast %311 : vector<8x1xf32> to vector<8x8xf32>
    %314 = vector.broadcast %312 : vector<1x8xf32> to vector<8x8xf32>
    %315 = arith.addf %313, %314 : vector<8x8xf32>
    %316 = math.tanh %315 : vector<8x8xf32>
    %317 = arith.addf %310, %316 : vector<8x8xf32>
    %318 = vector.extract_strided_slice %29 {offsets = [0, 39], sizes = [8, 1], strides = [1, 1]} : vector<8x128xf32> to vector<8x1xf32>
    %319 = vector.extract_strided_slice %34 {offsets = [39, 0], sizes = [1, 8], strides = [1, 1]} : vector<128x8xf32> to vector<1x8xf32>
    %320 = vector.broadcast %318 : vector<8x1xf32> to vector<8x8xf32>
    %321 = vector.broadcast %319 : vector<1x8xf32> to vector<8x8xf32>
    %322 = arith.addf %320, %321 : vector<8x8xf32>
    %323 = math.tanh %322 : vector<8x8xf32>
    %324 = arith.addf %317, %323 : vector<8x8xf32>
    %325 = vector.extract_strided_slice %29 {offsets = [0, 40], sizes = [8, 1], strides = [1, 1]} : vector<8x128xf32> to vector<8x1xf32>
    %326 = vector.extract_strided_slice %34 {offsets = [40, 0], sizes = [1, 8], strides = [1, 1]} : vector<128x8xf32> to vector<1x8xf32>
    %327 = vector.broadcast %325 : vector<8x1xf32> to vector<8x8xf32>
    %328 = vector.broadcast %326 : vector<1x8xf32> to vector<8x8xf32>
    %329 = arith.addf %327, %328 : vector<8x8xf32>
    %330 = math.tanh %329 : vector<8x8xf32>
    %331 = arith.addf %324, %330 : vector<8x8xf32>
    %332 = vector.extract_strided_slice %29 {offsets = [0, 41], sizes = [8, 1], strides = [1, 1]} : vector<8x128xf32> to vector<8x1xf32>
    %333 = vector.extract_strided_slice %34 {offsets = [41, 0], sizes = [1, 8], strides = [1, 1]} : vector<128x8xf32> to vector<1x8xf32>
    %334 = vector.broadcast %332 : vector<8x1xf32> to vector<8x8xf32>
    %335 = vector.broadcast %333 : vector<1x8xf32> to vector<8x8xf32>
    %336 = arith.addf %334, %335 : vector<8x8xf32>
    %337 = math.tanh %336 : vector<8x8xf32>
    %338 = arith.addf %331, %337 : vector<8x8xf32>
    %339 = vector.extract_strided_slice %29 {offsets = [0, 42], sizes = [8, 1], strides = [1, 1]} : vector<8x128xf32> to vector<8x1xf32>
    %340 = vector.extract_strided_slice %34 {offsets = [42, 0], sizes = [1, 8], strides = [1, 1]} : vector<128x8xf32> to vector<1x8xf32>
    %341 = vector.broadcast %339 : vector<8x1xf32> to vector<8x8xf32>
    %342 = vector.broadcast %340 : vector<1x8xf32> to vector<8x8xf32>
    %343 = arith.addf %341, %342 : vector<8x8xf32>
    %344 = math.tanh %343 : vector<8x8xf32>
    %345 = arith.addf %338, %344 : vector<8x8xf32>
    %346 = vector.extract_strided_slice %29 {offsets = [0, 43], sizes = [8, 1], strides = [1, 1]} : vector<8x128xf32> to vector<8x1xf32>
    %347 = vector.extract_strided_slice %34 {offsets = [43, 0], sizes = [1, 8], strides = [1, 1]} : vector<128x8xf32> to vector<1x8xf32>
    %348 = vector.broadcast %346 : vector<8x1xf32> to vector<8x8xf32>
    %349 = vector.broadcast %347 : vector<1x8xf32> to vector<8x8xf32>
    %350 = arith.addf %348, %349 : vector<8x8xf32>
    %351 = math.tanh %350 : vector<8x8xf32>
    %352 = arith.addf %345, %351 : vector<8x8xf32>
    %353 = vector.extract_strided_slice %29 {offsets = [0, 44], sizes = [8, 1], strides = [1, 1]} : vector<8x128xf32> to vector<8x1xf32>
    %354 = vector.extract_strided_slice %34 {offsets = [44, 0], sizes = [1, 8], strides = [1, 1]} : vector<128x8xf32> to vector<1x8xf32>
    %355 = vector.broadcast %353 : vector<8x1xf32> to vector<8x8xf32>
    %356 = vector.broadcast %354 : vector<1x8xf32> to vector<8x8xf32>
    %357 = arith.addf %355, %356 : vector<8x8xf32>
    %358 = math.tanh %357 : vector<8x8xf32>
    %359 = arith.addf %352, %358 : vector<8x8xf32>
    %360 = vector.extract_strided_slice %29 {offsets = [0, 45], sizes = [8, 1], strides = [1, 1]} : vector<8x128xf32> to vector<8x1xf32>
    %361 = vector.extract_strided_slice %34 {offsets = [45, 0], sizes = [1, 8], strides = [1, 1]} : vector<128x8xf32> to vector<1x8xf32>
    %362 = vector.broadcast %360 : vector<8x1xf32> to vector<8x8xf32>
    %363 = vector.broadcast %361 : vector<1x8xf32> to vector<8x8xf32>
    %364 = arith.addf %362, %363 : vector<8x8xf32>
    %365 = math.tanh %364 : vector<8x8xf32>
    %366 = arith.addf %359, %365 : vector<8x8xf32>
    %367 = vector.extract_strided_slice %29 {offsets = [0, 46], sizes = [8, 1], strides = [1, 1]} : vector<8x128xf32> to vector<8x1xf32>
    %368 = vector.extract_strided_slice %34 {offsets = [46, 0], sizes = [1, 8], strides = [1, 1]} : vector<128x8xf32> to vector<1x8xf32>
    %369 = vector.broadcast %367 : vector<8x1xf32> to vector<8x8xf32>
    %370 = vector.broadcast %368 : vector<1x8xf32> to vector<8x8xf32>
    %371 = arith.addf %369, %370 : vector<8x8xf32>
    %372 = math.tanh %371 : vector<8x8xf32>
    %373 = arith.addf %366, %372 : vector<8x8xf32>
    %374 = vector.extract_strided_slice %29 {offsets = [0, 47], sizes = [8, 1], strides = [1, 1]} : vector<8x128xf32> to vector<8x1xf32>
    %375 = vector.extract_strided_slice %34 {offsets = [47, 0], sizes = [1, 8], strides = [1, 1]} : vector<128x8xf32> to vector<1x8xf32>
    %376 = vector.broadcast %374 : vector<8x1xf32> to vector<8x8xf32>
    %377 = vector.broadcast %375 : vector<1x8xf32> to vector<8x8xf32>
    %378 = arith.addf %376, %377 : vector<8x8xf32>
    %379 = math.tanh %378 : vector<8x8xf32>
    %380 = arith.addf %373, %379 : vector<8x8xf32>
    %381 = math.exp %380 : vector<8x8xf32>
    %cst_19 = arith.constant dense<0.000000e+00> : vector<8xf32>
    %382 = vector.multi_reduction <add>, %381, %cst_19 [1] : vector<8x8xf32> to vector<8xf32>
    %383 = vector.shape_cast %382 : vector<8xf32> to vector<8x1xf32>
    %384 = vector.broadcast %383 : vector<8x1xf32> to vector<8x8xf32>
    %385 = arith.divf %381, %384 : vector<8x8xf32>
    %386 = vector.extract_strided_slice %30 {offsets = [0, 128], sizes = [8, 128], strides = [1, 1]} : vector<8x512xf32> to vector<8x128xf32>
    %cst_20 = arith.constant dense<0.000000e+00> : vector<8x128xf32>
    %387 = tpu.matmul %385, %386, %cst_20 {dimension_numbers = #tpu.dot_dimension_numbers<[1], [0], [0], [1], [0, 0, 1, 1], [], []>, precision = #tpu.contract_precision<fp32>} : vector<8x8xf32>, vector<8x128xf32>, vector<8x128xf32> -> vector<8x128xf32>
    %388 = arith.addf %211, %387 : vector<8x128xf32>
    %cst_21 = arith.constant 0.000000e+00 : f32
    %389 = vector.broadcast %cst_21 : f32 to vector<8x8xf32>
    %390 = vector.extract_strided_slice %29 {offsets = [0, 48], sizes = [8, 1], strides = [1, 1]} : vector<8x128xf32> to vector<8x1xf32>
    %391 = vector.extract_strided_slice %34 {offsets = [48, 0], sizes = [1, 8], strides = [1, 1]} : vector<128x8xf32> to vector<1x8xf32>
    %392 = vector.broadcast %390 : vector<8x1xf32> to vector<8x8xf32>
    %393 = vector.broadcast %391 : vector<1x8xf32> to vector<8x8xf32>
    %394 = arith.addf %392, %393 : vector<8x8xf32>
    %395 = math.tanh %394 : vector<8x8xf32>
    %396 = arith.addf %389, %395 : vector<8x8xf32>
    %397 = vector.extract_strided_slice %29 {offsets = [0, 49], sizes = [8, 1], strides = [1, 1]} : vector<8x128xf32> to vector<8x1xf32>
    %398 = vector.extract_strided_slice %34 {offsets = [49, 0], sizes = [1, 8], strides = [1, 1]} : vector<128x8xf32> to vector<1x8xf32>
    %399 = vector.broadcast %397 : vector<8x1xf32> to vector<8x8xf32>
    %400 = vector.broadcast %398 : vector<1x8xf32> to vector<8x8xf32>
    %401 = arith.addf %399, %400 : vector<8x8xf32>
    %402 = math.tanh %401 : vector<8x8xf32>
    %403 = arith.addf %396, %402 : vector<8x8xf32>
    %404 = vector.extract_strided_slice %29 {offsets = [0, 50], sizes = [8, 1], strides = [1, 1]} : vector<8x128xf32> to vector<8x1xf32>
    %405 = vector.extract_strided_slice %34 {offsets = [50, 0], sizes = [1, 8], strides = [1, 1]} : vector<128x8xf32> to vector<1x8xf32>
    %406 = vector.broadcast %404 : vector<8x1xf32> to vector<8x8xf32>
    %407 = vector.broadcast %405 : vector<1x8xf32> to vector<8x8xf32>
    %408 = arith.addf %406, %407 : vector<8x8xf32>
    %409 = math.tanh %408 : vector<8x8xf32>
    %410 = arith.addf %403, %409 : vector<8x8xf32>
    %411 = vector.extract_strided_slice %29 {offsets = [0, 51], sizes = [8, 1], strides = [1, 1]} : vector<8x128xf32> to vector<8x1xf32>
    %412 = vector.extract_strided_slice %34 {offsets = [51, 0], sizes = [1, 8], strides = [1, 1]} : vector<128x8xf32> to vector<1x8xf32>
    %413 = vector.broadcast %411 : vector<8x1xf32> to vector<8x8xf32>
    %414 = vector.broadcast %412 : vector<1x8xf32> to vector<8x8xf32>
    %415 = arith.addf %413, %414 : vector<8x8xf32>
    %416 = math.tanh %415 : vector<8x8xf32>
    %417 = arith.addf %410, %416 : vector<8x8xf32>
    %418 = vector.extract_strided_slice %29 {offsets = [0, 52], sizes = [8, 1], strides = [1, 1]} : vector<8x128xf32> to vector<8x1xf32>
    %419 = vector.extract_strided_slice %34 {offsets = [52, 0], sizes = [1, 8], strides = [1, 1]} : vector<128x8xf32> to vector<1x8xf32>
    %420 = vector.broadcast %418 : vector<8x1xf32> to vector<8x8xf32>
    %421 = vector.broadcast %419 : vector<1x8xf32> to vector<8x8xf32>
    %422 = arith.addf %420, %421 : vector<8x8xf32>
    %423 = math.tanh %422 : vector<8x8xf32>
    %424 = arith.addf %417, %423 : vector<8x8xf32>
    %425 = vector.extract_strided_slice %29 {offsets = [0, 53], sizes = [8, 1], strides = [1, 1]} : vector<8x128xf32> to vector<8x1xf32>
    %426 = vector.extract_strided_slice %34 {offsets = [53, 0], sizes = [1, 8], strides = [1, 1]} : vector<128x8xf32> to vector<1x8xf32>
    %427 = vector.broadcast %425 : vector<8x1xf32> to vector<8x8xf32>
    %428 = vector.broadcast %426 : vector<1x8xf32> to vector<8x8xf32>
    %429 = arith.addf %427, %428 : vector<8x8xf32>
    %430 = math.tanh %429 : vector<8x8xf32>
    %431 = arith.addf %424, %430 : vector<8x8xf32>
    %432 = vector.extract_strided_slice %29 {offsets = [0, 54], sizes = [8, 1], strides = [1, 1]} : vector<8x128xf32> to vector<8x1xf32>
    %433 = vector.extract_strided_slice %34 {offsets = [54, 0], sizes = [1, 8], strides = [1, 1]} : vector<128x8xf32> to vector<1x8xf32>
    %434 = vector.broadcast %432 : vector<8x1xf32> to vector<8x8xf32>
    %435 = vector.broadcast %433 : vector<1x8xf32> to vector<8x8xf32>
    %436 = arith.addf %434, %435 : vector<8x8xf32>
    %437 = math.tanh %436 : vector<8x8xf32>
    %438 = arith.addf %431, %437 : vector<8x8xf32>
    %439 = vector.extract_strided_slice %29 {offsets = [0, 55], sizes = [8, 1], strides = [1, 1]} : vector<8x128xf32> to vector<8x1xf32>
    %440 = vector.extract_strided_slice %34 {offsets = [55, 0], sizes = [1, 8], strides = [1, 1]} : vector<128x8xf32> to vector<1x8xf32>
    %441 = vector.broadcast %439 : vector<8x1xf32> to vector<8x8xf32>
    %442 = vector.broadcast %440 : vector<1x8xf32> to vector<8x8xf32>
    %443 = arith.addf %441, %442 : vector<8x8xf32>
    %444 = math.tanh %443 : vector<8x8xf32>
    %445 = arith.addf %438, %444 : vector<8x8xf32>
    %446 = vector.extract_strided_slice %29 {offsets = [0, 56], sizes = [8, 1], strides = [1, 1]} : vector<8x128xf32> to vector<8x1xf32>
    %447 = vector.extract_strided_slice %34 {offsets = [56, 0], sizes = [1, 8], strides = [1, 1]} : vector<128x8xf32> to vector<1x8xf32>
    %448 = vector.broadcast %446 : vector<8x1xf32> to vector<8x8xf32>
    %449 = vector.broadcast %447 : vector<1x8xf32> to vector<8x8xf32>
    %450 = arith.addf %448, %449 : vector<8x8xf32>
    %451 = math.tanh %450 : vector<8x8xf32>
    %452 = arith.addf %445, %451 : vector<8x8xf32>
    %453 = vector.extract_strided_slice %29 {offsets = [0, 57], sizes = [8, 1], strides = [1, 1]} : vector<8x128xf32> to vector<8x1xf32>
    %454 = vector.extract_strided_slice %34 {offsets = [57, 0], sizes = [1, 8], strides = [1, 1]} : vector<128x8xf32> to vector<1x8xf32>
    %455 = vector.broadcast %453 : vector<8x1xf32> to vector<8x8xf32>
    %456 = vector.broadcast %454 : vector<1x8xf32> to vector<8x8xf32>
    %457 = arith.addf %455, %456 : vector<8x8xf32>
    %458 = math.tanh %457 : vector<8x8xf32>
    %459 = arith.addf %452, %458 : vector<8x8xf32>
    %460 = vector.extract_strided_slice %29 {offsets = [0, 58], sizes = [8, 1], strides = [1, 1]} : vector<8x128xf32> to vector<8x1xf32>
    %461 = vector.extract_strided_slice %34 {offsets = [58, 0], sizes = [1, 8], strides = [1, 1]} : vector<128x8xf32> to vector<1x8xf32>
    %462 = vector.broadcast %460 : vector<8x1xf32> to vector<8x8xf32>
    %463 = vector.broadcast %461 : vector<1x8xf32> to vector<8x8xf32>
    %464 = arith.addf %462, %463 : vector<8x8xf32>
    %465 = math.tanh %464 : vector<8x8xf32>
    %466 = arith.addf %459, %465 : vector<8x8xf32>
    %467 = vector.extract_strided_slice %29 {offsets = [0, 59], sizes = [8, 1], strides = [1, 1]} : vector<8x128xf32> to vector<8x1xf32>
    %468 = vector.extract_strided_slice %34 {offsets = [59, 0], sizes = [1, 8], strides = [1, 1]} : vector<128x8xf32> to vector<1x8xf32>
    %469 = vector.broadcast %467 : vector<8x1xf32> to vector<8x8xf32>
    %470 = vector.broadcast %468 : vector<1x8xf32> to vector<8x8xf32>
    %471 = arith.addf %469, %470 : vector<8x8xf32>
    %472 = math.tanh %471 : vector<8x8xf32>
    %473 = arith.addf %466, %472 : vector<8x8xf32>
    %474 = vector.extract_strided_slice %29 {offsets = [0, 60], sizes = [8, 1], strides = [1, 1]} : vector<8x128xf32> to vector<8x1xf32>
    %475 = vector.extract_strided_slice %34 {offsets = [60, 0], sizes = [1, 8], strides = [1, 1]} : vector<128x8xf32> to vector<1x8xf32>
    %476 = vector.broadcast %474 : vector<8x1xf32> to vector<8x8xf32>
    %477 = vector.broadcast %475 : vector<1x8xf32> to vector<8x8xf32>
    %478 = arith.addf %476, %477 : vector<8x8xf32>
    %479 = math.tanh %478 : vector<8x8xf32>
    %480 = arith.addf %473, %479 : vector<8x8xf32>
    %481 = vector.extract_strided_slice %29 {offsets = [0, 61], sizes = [8, 1], strides = [1, 1]} : vector<8x128xf32> to vector<8x1xf32>
    %482 = vector.extract_strided_slice %34 {offsets = [61, 0], sizes = [1, 8], strides = [1, 1]} : vector<128x8xf32> to vector<1x8xf32>
    %483 = vector.broadcast %481 : vector<8x1xf32> to vector<8x8xf32>
    %484 = vector.broadcast %482 : vector<1x8xf32> to vector<8x8xf32>
    %485 = arith.addf %483, %484 : vector<8x8xf32>
    %486 = math.tanh %485 : vector<8x8xf32>
    %487 = arith.addf %480, %486 : vector<8x8xf32>
    %488 = vector.extract_strided_slice %29 {offsets = [0, 62], sizes = [8, 1], strides = [1, 1]} : vector<8x128xf32> to vector<8x1xf32>
    %489 = vector.extract_strided_slice %34 {offsets = [62, 0], sizes = [1, 8], strides = [1, 1]} : vector<128x8xf32> to vector<1x8xf32>
    %490 = vector.broadcast %488 : vector<8x1xf32> to vector<8x8xf32>
    %491 = vector.broadcast %489 : vector<1x8xf32> to vector<8x8xf32>
    %492 = arith.addf %490, %491 : vector<8x8xf32>
    %493 = math.tanh %492 : vector<8x8xf32>
    %494 = arith.addf %487, %493 : vector<8x8xf32>
    %495 = vector.extract_strided_slice %29 {offsets = [0, 63], sizes = [8, 1], strides = [1, 1]} : vector<8x128xf32> to vector<8x1xf32>
    %496 = vector.extract_strided_slice %34 {offsets = [63, 0], sizes = [1, 8], strides = [1, 1]} : vector<128x8xf32> to vector<1x8xf32>
    %497 = vector.broadcast %495 : vector<8x1xf32> to vector<8x8xf32>
    %498 = vector.broadcast %496 : vector<1x8xf32> to vector<8x8xf32>
    %499 = arith.addf %497, %498 : vector<8x8xf32>
    %500 = math.tanh %499 : vector<8x8xf32>
    %501 = arith.addf %494, %500 : vector<8x8xf32>
    %502 = vector.extract_strided_slice %29 {offsets = [0, 64], sizes = [8, 1], strides = [1, 1]} : vector<8x128xf32> to vector<8x1xf32>
    %503 = vector.extract_strided_slice %34 {offsets = [64, 0], sizes = [1, 8], strides = [1, 1]} : vector<128x8xf32> to vector<1x8xf32>
    %504 = vector.broadcast %502 : vector<8x1xf32> to vector<8x8xf32>
    %505 = vector.broadcast %503 : vector<1x8xf32> to vector<8x8xf32>
    %506 = arith.addf %504, %505 : vector<8x8xf32>
    %507 = math.tanh %506 : vector<8x8xf32>
    %508 = arith.addf %501, %507 : vector<8x8xf32>
    %509 = vector.extract_strided_slice %29 {offsets = [0, 65], sizes = [8, 1], strides = [1, 1]} : vector<8x128xf32> to vector<8x1xf32>
    %510 = vector.extract_strided_slice %34 {offsets = [65, 0], sizes = [1, 8], strides = [1, 1]} : vector<128x8xf32> to vector<1x8xf32>
    %511 = vector.broadcast %509 : vector<8x1xf32> to vector<8x8xf32>
    %512 = vector.broadcast %510 : vector<1x8xf32> to vector<8x8xf32>
    %513 = arith.addf %511, %512 : vector<8x8xf32>
    %514 = math.tanh %513 : vector<8x8xf32>
    %515 = arith.addf %508, %514 : vector<8x8xf32>
    %516 = vector.extract_strided_slice %29 {offsets = [0, 66], sizes = [8, 1], strides = [1, 1]} : vector<8x128xf32> to vector<8x1xf32>
    %517 = vector.extract_strided_slice %34 {offsets = [66, 0], sizes = [1, 8], strides = [1, 1]} : vector<128x8xf32> to vector<1x8xf32>
    %518 = vector.broadcast %516 : vector<8x1xf32> to vector<8x8xf32>
    %519 = vector.broadcast %517 : vector<1x8xf32> to vector<8x8xf32>
    %520 = arith.addf %518, %519 : vector<8x8xf32>
    %521 = math.tanh %520 : vector<8x8xf32>
    %522 = arith.addf %515, %521 : vector<8x8xf32>
    %523 = vector.extract_strided_slice %29 {offsets = [0, 67], sizes = [8, 1], strides = [1, 1]} : vector<8x128xf32> to vector<8x1xf32>
    %524 = vector.extract_strided_slice %34 {offsets = [67, 0], sizes = [1, 8], strides = [1, 1]} : vector<128x8xf32> to vector<1x8xf32>
    %525 = vector.broadcast %523 : vector<8x1xf32> to vector<8x8xf32>
    %526 = vector.broadcast %524 : vector<1x8xf32> to vector<8x8xf32>
    %527 = arith.addf %525, %526 : vector<8x8xf32>
    %528 = math.tanh %527 : vector<8x8xf32>
    %529 = arith.addf %522, %528 : vector<8x8xf32>
    %530 = vector.extract_strided_slice %29 {offsets = [0, 68], sizes = [8, 1], strides = [1, 1]} : vector<8x128xf32> to vector<8x1xf32>
    %531 = vector.extract_strided_slice %34 {offsets = [68, 0], sizes = [1, 8], strides = [1, 1]} : vector<128x8xf32> to vector<1x8xf32>
    %532 = vector.broadcast %530 : vector<8x1xf32> to vector<8x8xf32>
    %533 = vector.broadcast %531 : vector<1x8xf32> to vector<8x8xf32>
    %534 = arith.addf %532, %533 : vector<8x8xf32>
    %535 = math.tanh %534 : vector<8x8xf32>
    %536 = arith.addf %529, %535 : vector<8x8xf32>
    %537 = vector.extract_strided_slice %29 {offsets = [0, 69], sizes = [8, 1], strides = [1, 1]} : vector<8x128xf32> to vector<8x1xf32>
    %538 = vector.extract_strided_slice %34 {offsets = [69, 0], sizes = [1, 8], strides = [1, 1]} : vector<128x8xf32> to vector<1x8xf32>
    %539 = vector.broadcast %537 : vector<8x1xf32> to vector<8x8xf32>
    %540 = vector.broadcast %538 : vector<1x8xf32> to vector<8x8xf32>
    %541 = arith.addf %539, %540 : vector<8x8xf32>
    %542 = math.tanh %541 : vector<8x8xf32>
    %543 = arith.addf %536, %542 : vector<8x8xf32>
    %544 = vector.extract_strided_slice %29 {offsets = [0, 70], sizes = [8, 1], strides = [1, 1]} : vector<8x128xf32> to vector<8x1xf32>
    %545 = vector.extract_strided_slice %34 {offsets = [70, 0], sizes = [1, 8], strides = [1, 1]} : vector<128x8xf32> to vector<1x8xf32>
    %546 = vector.broadcast %544 : vector<8x1xf32> to vector<8x8xf32>
    %547 = vector.broadcast %545 : vector<1x8xf32> to vector<8x8xf32>
    %548 = arith.addf %546, %547 : vector<8x8xf32>
    %549 = math.tanh %548 : vector<8x8xf32>
    %550 = arith.addf %543, %549 : vector<8x8xf32>
    %551 = vector.extract_strided_slice %29 {offsets = [0, 71], sizes = [8, 1], strides = [1, 1]} : vector<8x128xf32> to vector<8x1xf32>
    %552 = vector.extract_strided_slice %34 {offsets = [71, 0], sizes = [1, 8], strides = [1, 1]} : vector<128x8xf32> to vector<1x8xf32>
    %553 = vector.broadcast %551 : vector<8x1xf32> to vector<8x8xf32>
    %554 = vector.broadcast %552 : vector<1x8xf32> to vector<8x8xf32>
    %555 = arith.addf %553, %554 : vector<8x8xf32>
    %556 = math.tanh %555 : vector<8x8xf32>
    %557 = arith.addf %550, %556 : vector<8x8xf32>
    %558 = math.exp %557 : vector<8x8xf32>
    %cst_22 = arith.constant dense<0.000000e+00> : vector<8xf32>
    %559 = vector.multi_reduction <add>, %558, %cst_22 [1] : vector<8x8xf32> to vector<8xf32>
    %560 = vector.shape_cast %559 : vector<8xf32> to vector<8x1xf32>
    %561 = vector.broadcast %560 : vector<8x1xf32> to vector<8x8xf32>
    %562 = arith.divf %558, %561 : vector<8x8xf32>
    %563 = vector.extract_strided_slice %30 {offsets = [0, 256], sizes = [8, 128], strides = [1, 1]} : vector<8x512xf32> to vector<8x128xf32>
    %cst_23 = arith.constant dense<0.000000e+00> : vector<8x128xf32>
    %564 = tpu.matmul %562, %563, %cst_23 {dimension_numbers = #tpu.dot_dimension_numbers<[1], [0], [0], [1], [0, 0, 1, 1], [], []>, precision = #tpu.contract_precision<fp32>} : vector<8x8xf32>, vector<8x128xf32>, vector<8x128xf32> -> vector<8x128xf32>
    %565 = arith.addf %388, %564 : vector<8x128xf32>
    %cst_24 = arith.constant 0.000000e+00 : f32
    %566 = vector.broadcast %cst_24 : f32 to vector<8x8xf32>
    %567 = vector.extract_strided_slice %29 {offsets = [0, 72], sizes = [8, 1], strides = [1, 1]} : vector<8x128xf32> to vector<8x1xf32>
    %568 = vector.extract_strided_slice %34 {offsets = [72, 0], sizes = [1, 8], strides = [1, 1]} : vector<128x8xf32> to vector<1x8xf32>
    %569 = vector.broadcast %567 : vector<8x1xf32> to vector<8x8xf32>
    %570 = vector.broadcast %568 : vector<1x8xf32> to vector<8x8xf32>
    %571 = arith.addf %569, %570 : vector<8x8xf32>
    %572 = math.tanh %571 : vector<8x8xf32>
    %573 = arith.addf %566, %572 : vector<8x8xf32>
    %574 = vector.extract_strided_slice %29 {offsets = [0, 73], sizes = [8, 1], strides = [1, 1]} : vector<8x128xf32> to vector<8x1xf32>
    %575 = vector.extract_strided_slice %34 {offsets = [73, 0], sizes = [1, 8], strides = [1, 1]} : vector<128x8xf32> to vector<1x8xf32>
    %576 = vector.broadcast %574 : vector<8x1xf32> to vector<8x8xf32>
    %577 = vector.broadcast %575 : vector<1x8xf32> to vector<8x8xf32>
    %578 = arith.addf %576, %577 : vector<8x8xf32>
    %579 = math.tanh %578 : vector<8x8xf32>
    %580 = arith.addf %573, %579 : vector<8x8xf32>
    %581 = vector.extract_strided_slice %29 {offsets = [0, 74], sizes = [8, 1], strides = [1, 1]} : vector<8x128xf32> to vector<8x1xf32>
    %582 = vector.extract_strided_slice %34 {offsets = [74, 0], sizes = [1, 8], strides = [1, 1]} : vector<128x8xf32> to vector<1x8xf32>
    %583 = vector.broadcast %581 : vector<8x1xf32> to vector<8x8xf32>
    %584 = vector.broadcast %582 : vector<1x8xf32> to vector<8x8xf32>
    %585 = arith.addf %583, %584 : vector<8x8xf32>
    %586 = math.tanh %585 : vector<8x8xf32>
    %587 = arith.addf %580, %586 : vector<8x8xf32>
    %588 = vector.extract_strided_slice %29 {offsets = [0, 75], sizes = [8, 1], strides = [1, 1]} : vector<8x128xf32> to vector<8x1xf32>
    %589 = vector.extract_strided_slice %34 {offsets = [75, 0], sizes = [1, 8], strides = [1, 1]} : vector<128x8xf32> to vector<1x8xf32>
    %590 = vector.broadcast %588 : vector<8x1xf32> to vector<8x8xf32>
    %591 = vector.broadcast %589 : vector<1x8xf32> to vector<8x8xf32>
    %592 = arith.addf %590, %591 : vector<8x8xf32>
    %593 = math.tanh %592 : vector<8x8xf32>
    %594 = arith.addf %587, %593 : vector<8x8xf32>
    %595 = vector.extract_strided_slice %29 {offsets = [0, 76], sizes = [8, 1], strides = [1, 1]} : vector<8x128xf32> to vector<8x1xf32>
    %596 = vector.extract_strided_slice %34 {offsets = [76, 0], sizes = [1, 8], strides = [1, 1]} : vector<128x8xf32> to vector<1x8xf32>
    %597 = vector.broadcast %595 : vector<8x1xf32> to vector<8x8xf32>
    %598 = vector.broadcast %596 : vector<1x8xf32> to vector<8x8xf32>
    %599 = arith.addf %597, %598 : vector<8x8xf32>
    %600 = math.tanh %599 : vector<8x8xf32>
    %601 = arith.addf %594, %600 : vector<8x8xf32>
    %602 = vector.extract_strided_slice %29 {offsets = [0, 77], sizes = [8, 1], strides = [1, 1]} : vector<8x128xf32> to vector<8x1xf32>
    %603 = vector.extract_strided_slice %34 {offsets = [77, 0], sizes = [1, 8], strides = [1, 1]} : vector<128x8xf32> to vector<1x8xf32>
    %604 = vector.broadcast %602 : vector<8x1xf32> to vector<8x8xf32>
    %605 = vector.broadcast %603 : vector<1x8xf32> to vector<8x8xf32>
    %606 = arith.addf %604, %605 : vector<8x8xf32>
    %607 = math.tanh %606 : vector<8x8xf32>
    %608 = arith.addf %601, %607 : vector<8x8xf32>
    %609 = vector.extract_strided_slice %29 {offsets = [0, 78], sizes = [8, 1], strides = [1, 1]} : vector<8x128xf32> to vector<8x1xf32>
    %610 = vector.extract_strided_slice %34 {offsets = [78, 0], sizes = [1, 8], strides = [1, 1]} : vector<128x8xf32> to vector<1x8xf32>
    %611 = vector.broadcast %609 : vector<8x1xf32> to vector<8x8xf32>
    %612 = vector.broadcast %610 : vector<1x8xf32> to vector<8x8xf32>
    %613 = arith.addf %611, %612 : vector<8x8xf32>
    %614 = math.tanh %613 : vector<8x8xf32>
    %615 = arith.addf %608, %614 : vector<8x8xf32>
    %616 = vector.extract_strided_slice %29 {offsets = [0, 79], sizes = [8, 1], strides = [1, 1]} : vector<8x128xf32> to vector<8x1xf32>
    %617 = vector.extract_strided_slice %34 {offsets = [79, 0], sizes = [1, 8], strides = [1, 1]} : vector<128x8xf32> to vector<1x8xf32>
    %618 = vector.broadcast %616 : vector<8x1xf32> to vector<8x8xf32>
    %619 = vector.broadcast %617 : vector<1x8xf32> to vector<8x8xf32>
    %620 = arith.addf %618, %619 : vector<8x8xf32>
    %621 = math.tanh %620 : vector<8x8xf32>
    %622 = arith.addf %615, %621 : vector<8x8xf32>
    %623 = vector.extract_strided_slice %29 {offsets = [0, 80], sizes = [8, 1], strides = [1, 1]} : vector<8x128xf32> to vector<8x1xf32>
    %624 = vector.extract_strided_slice %34 {offsets = [80, 0], sizes = [1, 8], strides = [1, 1]} : vector<128x8xf32> to vector<1x8xf32>
    %625 = vector.broadcast %623 : vector<8x1xf32> to vector<8x8xf32>
    %626 = vector.broadcast %624 : vector<1x8xf32> to vector<8x8xf32>
    %627 = arith.addf %625, %626 : vector<8x8xf32>
    %628 = math.tanh %627 : vector<8x8xf32>
    %629 = arith.addf %622, %628 : vector<8x8xf32>
    %630 = vector.extract_strided_slice %29 {offsets = [0, 81], sizes = [8, 1], strides = [1, 1]} : vector<8x128xf32> to vector<8x1xf32>
    %631 = vector.extract_strided_slice %34 {offsets = [81, 0], sizes = [1, 8], strides = [1, 1]} : vector<128x8xf32> to vector<1x8xf32>
    %632 = vector.broadcast %630 : vector<8x1xf32> to vector<8x8xf32>
    %633 = vector.broadcast %631 : vector<1x8xf32> to vector<8x8xf32>
    %634 = arith.addf %632, %633 : vector<8x8xf32>
    %635 = math.tanh %634 : vector<8x8xf32>
    %636 = arith.addf %629, %635 : vector<8x8xf32>
    %637 = vector.extract_strided_slice %29 {offsets = [0, 82], sizes = [8, 1], strides = [1, 1]} : vector<8x128xf32> to vector<8x1xf32>
    %638 = vector.extract_strided_slice %34 {offsets = [82, 0], sizes = [1, 8], strides = [1, 1]} : vector<128x8xf32> to vector<1x8xf32>
    %639 = vector.broadcast %637 : vector<8x1xf32> to vector<8x8xf32>
    %640 = vector.broadcast %638 : vector<1x8xf32> to vector<8x8xf32>
    %641 = arith.addf %639, %640 : vector<8x8xf32>
    %642 = math.tanh %641 : vector<8x8xf32>
    %643 = arith.addf %636, %642 : vector<8x8xf32>
    %644 = vector.extract_strided_slice %29 {offsets = [0, 83], sizes = [8, 1], strides = [1, 1]} : vector<8x128xf32> to vector<8x1xf32>
    %645 = vector.extract_strided_slice %34 {offsets = [83, 0], sizes = [1, 8], strides = [1, 1]} : vector<128x8xf32> to vector<1x8xf32>
    %646 = vector.broadcast %644 : vector<8x1xf32> to vector<8x8xf32>
    %647 = vector.broadcast %645 : vector<1x8xf32> to vector<8x8xf32>
    %648 = arith.addf %646, %647 : vector<8x8xf32>
    %649 = math.tanh %648 : vector<8x8xf32>
    %650 = arith.addf %643, %649 : vector<8x8xf32>
    %651 = vector.extract_strided_slice %29 {offsets = [0, 84], sizes = [8, 1], strides = [1, 1]} : vector<8x128xf32> to vector<8x1xf32>
    %652 = vector.extract_strided_slice %34 {offsets = [84, 0], sizes = [1, 8], strides = [1, 1]} : vector<128x8xf32> to vector<1x8xf32>
    %653 = vector.broadcast %651 : vector<8x1xf32> to vector<8x8xf32>
    %654 = vector.broadcast %652 : vector<1x8xf32> to vector<8x8xf32>
    %655 = arith.addf %653, %654 : vector<8x8xf32>
    %656 = math.tanh %655 : vector<8x8xf32>
    %657 = arith.addf %650, %656 : vector<8x8xf32>
    %658 = vector.extract_strided_slice %29 {offsets = [0, 85], sizes = [8, 1], strides = [1, 1]} : vector<8x128xf32> to vector<8x1xf32>
    %659 = vector.extract_strided_slice %34 {offsets = [85, 0], sizes = [1, 8], strides = [1, 1]} : vector<128x8xf32> to vector<1x8xf32>
    %660 = vector.broadcast %658 : vector<8x1xf32> to vector<8x8xf32>
    %661 = vector.broadcast %659 : vector<1x8xf32> to vector<8x8xf32>
    %662 = arith.addf %660, %661 : vector<8x8xf32>
    %663 = math.tanh %662 : vector<8x8xf32>
    %664 = arith.addf %657, %663 : vector<8x8xf32>
    %665 = vector.extract_strided_slice %29 {offsets = [0, 86], sizes = [8, 1], strides = [1, 1]} : vector<8x128xf32> to vector<8x1xf32>
    %666 = vector.extract_strided_slice %34 {offsets = [86, 0], sizes = [1, 8], strides = [1, 1]} : vector<128x8xf32> to vector<1x8xf32>
    %667 = vector.broadcast %665 : vector<8x1xf32> to vector<8x8xf32>
    %668 = vector.broadcast %666 : vector<1x8xf32> to vector<8x8xf32>
    %669 = arith.addf %667, %668 : vector<8x8xf32>
    %670 = math.tanh %669 : vector<8x8xf32>
    %671 = arith.addf %664, %670 : vector<8x8xf32>
    %672 = vector.extract_strided_slice %29 {offsets = [0, 87], sizes = [8, 1], strides = [1, 1]} : vector<8x128xf32> to vector<8x1xf32>
    %673 = vector.extract_strided_slice %34 {offsets = [87, 0], sizes = [1, 8], strides = [1, 1]} : vector<128x8xf32> to vector<1x8xf32>
    %674 = vector.broadcast %672 : vector<8x1xf32> to vector<8x8xf32>
    %675 = vector.broadcast %673 : vector<1x8xf32> to vector<8x8xf32>
    %676 = arith.addf %674, %675 : vector<8x8xf32>
    %677 = math.tanh %676 : vector<8x8xf32>
    %678 = arith.addf %671, %677 : vector<8x8xf32>
    %679 = vector.extract_strided_slice %29 {offsets = [0, 88], sizes = [8, 1], strides = [1, 1]} : vector<8x128xf32> to vector<8x1xf32>
    %680 = vector.extract_strided_slice %34 {offsets = [88, 0], sizes = [1, 8], strides = [1, 1]} : vector<128x8xf32> to vector<1x8xf32>
    %681 = vector.broadcast %679 : vector<8x1xf32> to vector<8x8xf32>
    %682 = vector.broadcast %680 : vector<1x8xf32> to vector<8x8xf32>
    %683 = arith.addf %681, %682 : vector<8x8xf32>
    %684 = math.tanh %683 : vector<8x8xf32>
    %685 = arith.addf %678, %684 : vector<8x8xf32>
    %686 = vector.extract_strided_slice %29 {offsets = [0, 89], sizes = [8, 1], strides = [1, 1]} : vector<8x128xf32> to vector<8x1xf32>
    %687 = vector.extract_strided_slice %34 {offsets = [89, 0], sizes = [1, 8], strides = [1, 1]} : vector<128x8xf32> to vector<1x8xf32>
    %688 = vector.broadcast %686 : vector<8x1xf32> to vector<8x8xf32>
    %689 = vector.broadcast %687 : vector<1x8xf32> to vector<8x8xf32>
    %690 = arith.addf %688, %689 : vector<8x8xf32>
    %691 = math.tanh %690 : vector<8x8xf32>
    %692 = arith.addf %685, %691 : vector<8x8xf32>
    %693 = vector.extract_strided_slice %29 {offsets = [0, 90], sizes = [8, 1], strides = [1, 1]} : vector<8x128xf32> to vector<8x1xf32>
    %694 = vector.extract_strided_slice %34 {offsets = [90, 0], sizes = [1, 8], strides = [1, 1]} : vector<128x8xf32> to vector<1x8xf32>
    %695 = vector.broadcast %693 : vector<8x1xf32> to vector<8x8xf32>
    %696 = vector.broadcast %694 : vector<1x8xf32> to vector<8x8xf32>
    %697 = arith.addf %695, %696 : vector<8x8xf32>
    %698 = math.tanh %697 : vector<8x8xf32>
    %699 = arith.addf %692, %698 : vector<8x8xf32>
    %700 = vector.extract_strided_slice %29 {offsets = [0, 91], sizes = [8, 1], strides = [1, 1]} : vector<8x128xf32> to vector<8x1xf32>
    %701 = vector.extract_strided_slice %34 {offsets = [91, 0], sizes = [1, 8], strides = [1, 1]} : vector<128x8xf32> to vector<1x8xf32>
    %702 = vector.broadcast %700 : vector<8x1xf32> to vector<8x8xf32>
    %703 = vector.broadcast %701 : vector<1x8xf32> to vector<8x8xf32>
    %704 = arith.addf %702, %703 : vector<8x8xf32>
    %705 = math.tanh %704 : vector<8x8xf32>
    %706 = arith.addf %699, %705 : vector<8x8xf32>
    %707 = vector.extract_strided_slice %29 {offsets = [0, 92], sizes = [8, 1], strides = [1, 1]} : vector<8x128xf32> to vector<8x1xf32>
    %708 = vector.extract_strided_slice %34 {offsets = [92, 0], sizes = [1, 8], strides = [1, 1]} : vector<128x8xf32> to vector<1x8xf32>
    %709 = vector.broadcast %707 : vector<8x1xf32> to vector<8x8xf32>
    %710 = vector.broadcast %708 : vector<1x8xf32> to vector<8x8xf32>
    %711 = arith.addf %709, %710 : vector<8x8xf32>
    %712 = math.tanh %711 : vector<8x8xf32>
    %713 = arith.addf %706, %712 : vector<8x8xf32>
    %714 = vector.extract_strided_slice %29 {offsets = [0, 93], sizes = [8, 1], strides = [1, 1]} : vector<8x128xf32> to vector<8x1xf32>
    %715 = vector.extract_strided_slice %34 {offsets = [93, 0], sizes = [1, 8], strides = [1, 1]} : vector<128x8xf32> to vector<1x8xf32>
    %716 = vector.broadcast %714 : vector<8x1xf32> to vector<8x8xf32>
    %717 = vector.broadcast %715 : vector<1x8xf32> to vector<8x8xf32>
    %718 = arith.addf %716, %717 : vector<8x8xf32>
    %719 = math.tanh %718 : vector<8x8xf32>
    %720 = arith.addf %713, %719 : vector<8x8xf32>
    %721 = vector.extract_strided_slice %29 {offsets = [0, 94], sizes = [8, 1], strides = [1, 1]} : vector<8x128xf32> to vector<8x1xf32>
    %722 = vector.extract_strided_slice %34 {offsets = [94, 0], sizes = [1, 8], strides = [1, 1]} : vector<128x8xf32> to vector<1x8xf32>
    %723 = vector.broadcast %721 : vector<8x1xf32> to vector<8x8xf32>
    %724 = vector.broadcast %722 : vector<1x8xf32> to vector<8x8xf32>
    %725 = arith.addf %723, %724 : vector<8x8xf32>
    %726 = math.tanh %725 : vector<8x8xf32>
    %727 = arith.addf %720, %726 : vector<8x8xf32>
    %728 = vector.extract_strided_slice %29 {offsets = [0, 95], sizes = [8, 1], strides = [1, 1]} : vector<8x128xf32> to vector<8x1xf32>
    %729 = vector.extract_strided_slice %34 {offsets = [95, 0], sizes = [1, 8], strides = [1, 1]} : vector<128x8xf32> to vector<1x8xf32>
    %730 = vector.broadcast %728 : vector<8x1xf32> to vector<8x8xf32>
    %731 = vector.broadcast %729 : vector<1x8xf32> to vector<8x8xf32>
    %732 = arith.addf %730, %731 : vector<8x8xf32>
    %733 = math.tanh %732 : vector<8x8xf32>
    %734 = arith.addf %727, %733 : vector<8x8xf32>
    %735 = math.exp %734 : vector<8x8xf32>
    %cst_25 = arith.constant dense<0.000000e+00> : vector<8xf32>
    %736 = vector.multi_reduction <add>, %735, %cst_25 [1] : vector<8x8xf32> to vector<8xf32>
    %737 = vector.shape_cast %736 : vector<8xf32> to vector<8x1xf32>
    %738 = vector.broadcast %737 : vector<8x1xf32> to vector<8x8xf32>
    %739 = arith.divf %735, %738 : vector<8x8xf32>
    %740 = vector.extract_strided_slice %30 {offsets = [0, 384], sizes = [8, 128], strides = [1, 1]} : vector<8x512xf32> to vector<8x128xf32>
    %cst_26 = arith.constant dense<0.000000e+00> : vector<8x128xf32>
    %741 = tpu.matmul %739, %740, %cst_26 {dimension_numbers = #tpu.dot_dimension_numbers<[1], [0], [0], [1], [0, 0, 1, 1], [], []>, precision = #tpu.contract_precision<fp32>} : vector<8x8xf32>, vector<8x128xf32>, vector<8x128xf32> -> vector<8x128xf32>
    %742 = arith.addf %565, %741 : vector<8x128xf32>
    %743 = arith.addf %1, %742 : vector<8x128xf32>
    %c0_27 = arith.constant 0 : index
    %c0_28 = arith.constant 0 : index
    %744 = vector.load %arg6[%c0_27, %c0_28] : memref<1x128xf32, #tpu.memory_space<vmem>>, vector<1x128xf32>
    %c0_29 = arith.constant 0 : index
    %c0_30 = arith.constant 0 : index
    %745 = vector.load %arg7[%c0_29, %c0_30] : memref<1x128xf32, #tpu.memory_space<vmem>>, vector<1x128xf32>
    %cst_31 = arith.constant dense<0.000000e+00> : vector<8xf32>
    %746 = vector.multi_reduction <add>, %743, %cst_31 [1] : vector<8x128xf32> to vector<8xf32>
    %747 = vector.shape_cast %746 : vector<8xf32> to vector<8x1xf32>
    %748 = arith.mulf %743, %743 : vector<8x128xf32>
    %cst_32 = arith.constant dense<0.000000e+00> : vector<8xf32>
    %749 = vector.multi_reduction <add>, %748, %cst_32 [1] : vector<8x128xf32> to vector<8xf32>
    %750 = vector.shape_cast %749 : vector<8xf32> to vector<8x1xf32>
    %cst_33 = arith.constant 0.010416667 : f32
    %751 = vector.broadcast %cst_33 : f32 to vector<8x1xf32>
    %752 = arith.mulf %747, %751 : vector<8x1xf32>
    %cst_34 = arith.constant 0.010416667 : f32
    %753 = vector.broadcast %cst_34 : f32 to vector<8x1xf32>
    %754 = arith.mulf %750, %753 : vector<8x1xf32>
    %755 = arith.mulf %752, %752 : vector<8x1xf32>
    %756 = arith.subf %754, %755 : vector<8x1xf32>
    %cst_35 = arith.constant 9.99999974E-6 : f32
    %757 = vector.broadcast %cst_35 : f32 to vector<8x1xf32>
    %758 = arith.addf %756, %757 : vector<8x1xf32>
    %759 = math.rsqrt %758 : vector<8x1xf32>
    %760 = vector.broadcast %752 : vector<8x1xf32> to vector<8x128xf32>
    %761 = arith.subf %743, %760 : vector<8x128xf32>
    %762 = vector.broadcast %759 : vector<8x1xf32> to vector<8x128xf32>
    %763 = arith.mulf %761, %762 : vector<8x128xf32>
    %764 = vector.broadcast %744 : vector<1x128xf32> to vector<8x128xf32>
    %765 = arith.mulf %763, %764 : vector<8x128xf32>
    %766 = vector.broadcast %745 : vector<1x128xf32> to vector<8x128xf32>
    %767 = arith.addf %765, %766 : vector<8x128xf32>
    %c0_36 = arith.constant 0 : index
    %c0_37 = arith.constant 0 : index
    %768 = vector.load %arg8[%c0_36, %c0_37] : memref<128x384xf32, #tpu.memory_space<vmem>>, vector<128x384xf32>
    %cst_38 = arith.constant dense<0.000000e+00> : vector<8x384xf32>
    %769 = tpu.matmul %767, %768, %cst_38 {dimension_numbers = #tpu.dot_dimension_numbers<[1], [0], [0], [1], [0, 0, 1, 1], [], []>, precision = #tpu.contract_precision<fp32>} : vector<8x128xf32>, vector<128x384xf32>, vector<8x384xf32> -> vector<8x384xf32>
    %c0_39 = arith.constant 0 : index
    %c0_40 = arith.constant 0 : index
    %770 = vector.load %arg9[%c0_39, %c0_40] : memref<1x384xf32, #tpu.memory_space<vmem>>, vector<1x384xf32>
    %771 = vector.broadcast %770 : vector<1x384xf32> to vector<8x384xf32>
    %772 = arith.addf %769, %771 : vector<8x384xf32>
    %cst_41 = arith.constant 0.000000e+00 : f32
    %773 = vector.broadcast %cst_41 : f32 to vector<8x384xf32>
    %774 = arith.maximumf %772, %773 : vector<8x384xf32>
    %c0_42 = arith.constant 0 : index
    %c0_43 = arith.constant 0 : index
    %775 = vector.load %arg10[%c0_42, %c0_43] : memref<384x128xf32, #tpu.memory_space<vmem>>, vector<384x128xf32>
    %cst_44 = arith.constant dense<0.000000e+00> : vector<8x128xf32>
    %776 = tpu.matmul %774, %775, %cst_44 {dimension_numbers = #tpu.dot_dimension_numbers<[1], [0], [0], [1], [0, 0, 1, 1], [], []>, precision = #tpu.contract_precision<fp32>} : vector<8x384xf32>, vector<384x128xf32>, vector<8x128xf32> -> vector<8x128xf32>
    %c0_45 = arith.constant 0 : index
    %c0_46 = arith.constant 0 : index
    %777 = vector.load %arg11[%c0_45, %c0_46] : memref<1x128xf32, #tpu.memory_space<vmem>>, vector<1x128xf32>
    %778 = vector.broadcast %777 : vector<1x128xf32> to vector<8x128xf32>
    %779 = arith.addf %776, %778 : vector<8x128xf32>
    %780 = arith.addf %743, %779 : vector<8x128xf32>
    %781 = vector.shape_cast %780 : vector<8x128xf32> to vector<1x8x128xf32>
    %c0_47 = arith.constant 0 : index
    %c0_48 = arith.constant 0 : index
    %c0_49 = arith.constant 0 : index
    %782 = vector.load %arg12[%c0_47, %c0_48, %c0_49] : memref<1x8x128xf32, #tpu.memory_space<vmem>>, vector<1x8x128xf32>
    tpu.vector_store %arg12[%c0_47, %c0_48, %c0_49], %781 {strides = array<i32>} : memref<1x8x128xf32, #tpu.memory_space<vmem>>, vector<1x8x128xf32>,
    return
  }
  func.func @transform_0(%arg0: i32) -> (i32, i32, i32) {
    %c0_i32 = arith.constant 0 : i32
    %c0_i32_0 = arith.constant 0 : i32
    %c0_i32_1 = arith.constant 0 : i32
    return %arg0, %c0_i32, %c0_i32_0 : i32, i32, i32
  }
  func.func @transform_1(%arg0: i32) -> (i32, i32) {
    %c0_i32 = arith.constant 0 : i32
    %c0_i32_0 = arith.constant 0 : i32
    %c0_i32_1 = arith.constant 0 : i32
    return %c0_i32, %c0_i32_0 : i32, i32
  }
  func.func @transform_2(%arg0: i32) -> (i32, i32) {
    %c0_i32 = arith.constant 0 : i32
    %c0_i32_0 = arith.constant 0 : i32
    %c0_i32_1 = arith.constant 0 : i32
    return %c0_i32, %c0_i32_0 : i32, i32
  }
  func.func @transform_3(%arg0: i32) -> (i32, i32) {
    %c0_i32 = arith.constant 0 : i32
    %c0_i32_0 = arith.constant 0 : i32
    %c0_i32_1 = arith.constant 0 : i32
    return %c0_i32, %c0_i32_0 : i32, i32
  }
  func.func @transform_4(%arg0: i32) -> (i32, i32) {
    %c0_i32 = arith.constant 0 : i32
    %c0_i32_0 = arith.constant 0 : i32
    %c0_i32_1 = arith.constant 0 : i32
    return %c0_i32, %c0_i32_0 : i32, i32
  }
  func.func @transform_5(%arg0: i32) -> (i32, i32) {
    %c0_i32 = arith.constant 0 : i32
    %c0_i32_0 = arith.constant 0 : i32
    %c0_i32_1 = arith.constant 0 : i32
    return %c0_i32, %c0_i32_0 : i32, i32
  }
  func.func @transform_6(%arg0: i32) -> (i32, i32) {
    %c0_i32 = arith.constant 0 : i32
    %c0_i32_0 = arith.constant 0 : i32
    %c0_i32_1 = arith.constant 0 : i32
    return %c0_i32, %c0_i32_0 : i32, i32
  }
  func.func @transform_7(%arg0: i32) -> (i32, i32) {
    %c0_i32 = arith.constant 0 : i32
    %c0_i32_0 = arith.constant 0 : i32
    %c0_i32_1 = arith.constant 0 : i32
    return %c0_i32, %c0_i32_0 : i32, i32
  }
  func.func @transform_8(%arg0: i32) -> (i32, i32) {
    %c0_i32 = arith.constant 0 : i32
    %c0_i32_0 = arith.constant 0 : i32
    %c0_i32_1 = arith.constant 0 : i32
    return %c0_i32, %c0_i32_0 : i32, i32
  }
  func.func @transform_9(%arg0: i32) -> (i32, i32) {
    %c0_i32 = arith.constant 0 : i32
    %c0_i32_0 = arith.constant 0 : i32
    %c0_i32_1 = arith.constant 0 : i32
    return %c0_i32, %c0_i32_0 : i32, i32
  }
  func.func @transform_10(%arg0: i32) -> (i32, i32) {
    %c0_i32 = arith.constant 0 : i32
    %c0_i32_0 = arith.constant 0 : i32
    %c0_i32_1 = arith.constant 0 : i32
    return %c0_i32, %c0_i32_0 : i32, i32
  }
  func.func @transform_11(%arg0: i32) -> (i32, i32, i32) {
    %c0_i32 = arith.constant 0 : i32
    %c0_i32_0 = arith.constant 0 : i32
    %c0_i32_1 = arith.constant 0 : i32
    return %arg0, %c0_i32, %c0_i32_0 : i32, i32, i32
  }
}

</mosaic_0001>

<llo_original>
// kernel: tpu_custom_call.1
$region0: #{tpu_custom_call.1}
  #allocation0 [shape = 'u32[]', space=smem, size = 0x4, offset = 0x4, fixed_abs, tag = 'smem constant byte address 0x4 - core index']
  #allocation1 [shape = 'u32[144,128]{1,0:T(1,128)}', space=vmem, size = 0x12000, scoped, tag = 'internal scratch']
  %s0 = inlined_call_operand.hbm [shape: f32[2,8,128], index: 0, kind: input, shape index: {}]
  %s1 = inlined_call_operand.vmem [shape: f32[1,128], index: 1, kind: input, shape index: {}]
  %s2 = inlined_call_operand.vmem [shape: f32[1,128], index: 2, kind: input, shape index: {}]
  %s3 = inlined_call_operand.hbm [shape: f32[128,768], index: 3, kind: input, shape index: {}]
  %s4 = inlined_call_operand.vmem [shape: f32[1,128], index: 4, kind: input, shape index: {}]
  %s5 = inlined_call_operand.vmem [shape: f32[1,128], index: 5, kind: input, shape index: {}]
  %s6 = inlined_call_operand.vmem [shape: f32[1,128], index: 6, kind: input, shape index: {}]
  %s7 = inlined_call_operand.hbm [shape: f32[128,384], index: 7, kind: input, shape index: {}]
  %s8 = inlined_call_operand.vmem [shape: f32[1,384], index: 8, kind: input, shape index: {}]
  %s9 = inlined_call_operand.hbm [shape: f32[384,128], index: 9, kind: input, shape index: {}]
  %s10 = inlined_call_operand.vmem [shape: f32[1,128], index: 10, kind: input, shape index: {}]
  %s11 = inlined_call_operand.hbm [shape: f32[2,8,128], index: 11, kind: output, shape index: {}]
  %s12 = sld [smem:[#allocation0]]
  $region93: #{tpu_custom_call.1} parent=0
    _
  %s14 = ssub.s32 1, %s12
  %s15 = scalar_select 0, %s14, %s12
  $region1: #{tpu_custom_call.1} parent=0
    #allocation2 [shape = 'u8[8192]{0}', space=vmem, size = 0x2000, scoped, tag = 'input window, operand 0']
    #allocation3 [shape = 's32[2]{0}', space=sflag, size = 0x8, scoped, tag = 'scoped memory for tpu_custom_call.1']
    #allocation4 [shape = 's32[2]{0}', space=sflag, size = 0x8, scoped, tag = 'scoped memory for tpu_custom_call.1']
    #allocation5 [shape = 'u8[393216]{0}', space=vmem, size = 0x60000, scoped, tag = 'input window, operand 3, single buffered']
    #allocation6 [shape = 's32[1]{0}', space=sflag, size = 0x4, scoped, tag = 'scoped memory for tpu_custom_call.1']
    #allocation7 [shape = 'u8[196608]{0}', space=vmem, size = 0x30000, scoped, tag = 'input window, operand 7, single buffered']
    #allocation8 [shape = 'u8[196608]{0}', space=vmem, size = 0x30000, scoped, tag = 'input window, operand 9, single buffered']
    #allocation9 [shape = 's32[1]{0}', space=sflag, size = 0x4, scoped, tag = 'scoped memory for tpu_custom_call.1']
    #allocation10 [shape = 'u8[8192]{0}', space=vmem, size = 0x2000, scoped, tag = 'output window, operand 0']
    %16 = vsyncpa [#allocation3], 0
    %s17 = scalar_lea.sflag [#allocation3], 1
    %18 = vsyncpa %s17, 0
    %19 = vsyncpa [#allocation6], 0
    %20 = vsyncpa [#allocation9], 0
    %21 = vsyncpa [#allocation4], 0
    %s22 = scalar_lea.sflag [#allocation4], 1
    %23 = vsyncpa %s22, 0
    loop: start=0, step=1, limit=4
    $region2: #{tpu_custom_call.1} parent=1 // loop_pre_header
      _
    $region3: #{tpu_custom_call.1} parent=1 // loop_header
      %s25 = sphi 0, %s29
      %p26 = scmp.ge.s32.totalorder %s25, 4
      %s35 = sphi 0, %s37
      %s38 = sphi 0, %s35
      %s39 = sphi 0, %s38
      %s55 = sphi 0, %s39
      %s59 = sphi 0, %s59
      %s61 = sphi 0, %s59
      %s62 = sphi 0, %s61
      %s76 = sphi 0, %s62
      %s80 = sphi 0, %s80
      %s82 = sphi 0, %s80
      %s83 = sphi 0, %s82
      %s97 = sphi 0, %s83
      %s101 = sphi 0, %s101
      %s103 = sphi 0, %s101
      %s104 = sphi 0, %s103
      %s118 = sphi 0, %s104
      %s122 = sphi 0, %s122
      %s124 = sphi 0, %s122
      %s125 = sphi 0, %s124
      %s139 = sphi 0, %s125
      %s143 = sphi 0, %s143
      %s145 = sphi 0, %s143
      %s146 = sphi 0, %s145
      %s160 = sphi 0, %s146
      %s164 = sphi 0, %s164
      %s166 = sphi 0, %s164
      %s167 = sphi 0, %s166
      %s181 = sphi 0, %s167
      %s185 = sphi 0, %s185
      %s187 = sphi 0, %s185
      %s188 = sphi 0, %s187
      %s202 = sphi 0, %s188
      %s206 = sphi 0, %s206
      %s208 = sphi 0, %s206
      %s209 = sphi 0, %s208
      %s223 = sphi 0, %s209
      %s227 = sphi 0, %s227
      %s229 = sphi 0, %s227
      %s230 = sphi 0, %s229
      %s244 = sphi 0, %s230
      %s248 = sphi 0, %s248
      %s250 = sphi 0, %s248
      %s251 = sphi 0, %s250
      %s265 = sphi 0, %s251
      %s271 = sphi 0, %s273
      %s274 = sphi 0, %s271
      %s275 = sphi 0, %s274
      %s291 = sphi 0, %s275
    $region4: #{tpu_custom_call.1} parent=1 // loop_header_branch
      %28 = sbr.rel (%p26) target = $region8
    $region5: #{tpu_custom_call.1} parent=1 // loop_body
      %s30 = ssub.s32 %s25, 1
      %s31 = ssub.s32 %s25, 2
      %s32 = sadd.s32 %s25, 1
      %s33 = ssub.s32 %s25, %s32
      %p34 = scmp.eq.s32.totalorder %s33, 0
      %s36 = sadd.s32 %s35, 1
      %s37 = scalar_select %p34, %s35, %s36
      %p40 = pneg %p34
      %p41 = scmp.eq.s32.totalorder %s25, 1
      %p42 = por %p40, %p41
      %p43 = scmp.ne.s32.totalorder %s35, %s38
      %p44 = scmp.eq.s32.totalorder %s25, 0
      %p45 = por %p43, %p44
      %p46 = scmp.ne.s32.totalorder %s35, %s38
      %p47 = scmp.eq.s32.totalorder %s30, 1
      %p48 = por %p46, %p47
      %p49 = scmp.ne.s32.totalorder %s38, %s39
      %p50 = scmp.eq.s32.totalorder %s30, 0
      %p51 = por %p49, %p50
      %p52 = scmp.ne.s32.totalorder %s38, %s39
      %p53 = scmp.eq.s32.totalorder %s31, 1
      %p54 = por %p52, %p53
      %p56 = scmp.ne.s32.totalorder %s39, %s55
      %p57 = scmp.eq.s32.totalorder %s31, 0
      %p58 = por %p56, %p57
      %s60 = sadd.s32 %s59, 1
      %p63 = scmp.eq.s32.totalorder %s25, 1
      %p64 = scmp.ne.s32.totalorder %s59, %s61
      %p65 = scmp.eq.s32.totalorder %s25, 0
      %p66 = por %p64, %p65
      %p67 = scmp.ne.s32.totalorder %s59, %s61
      %p68 = scmp.eq.s32.totalorder %s30, 1
      %p69 = por %p67, %p68
      %p70 = scmp.ne.s32.totalorder %s61, %s62
      %p71 = scmp.eq.s32.totalorder %s30, 0
      %p72 = por %p70, %p71
      %p73 = scmp.ne.s32.totalorder %s61, %s62
      %p74 = scmp.eq.s32.totalorder %s31, 1
      %p75 = por %p73, %p74
      %p77 = scmp.ne.s32.totalorder %s62, %s76
      %p78 = scmp.eq.s32.totalorder %s31, 0
      %p79 = por %p77, %p78
      %s81 = sadd.s32 %s80, 1
      %p84 = scmp.eq.s32.totalorder %s25, 1
      %p85 = scmp.ne.s32.totalorder %s80, %s82
      %p86 = scmp.eq.s32.totalorder %s25, 0
      %p87 = por %p85, %p86
      %p88 = scmp.ne.s32.totalorder %s80, %s82
      %p89 = scmp.eq.s32.totalorder %s30, 1
      %p90 = por %p88, %p89
      %p91 = scmp.ne.s32.totalorder %s82, %s83
      %p92 = scmp.eq.s32.totalorder %s30, 0
      %p93 = por %p91, %p92
      %p94 = scmp.ne.s32.totalorder %s82, %s83
      %p95 = scmp.eq.s32.totalorder %s31, 1
      %p96 = por %p94, %p95
      %p98 = scmp.ne.s32.totalorder %s83, %s97
      %p99 = scmp.eq.s32.totalorder %s31, 0
      %p100 = por %p98, %p99
      %s102 = sadd.s32 %s101, 1
      %p105 = scmp.eq.s32.totalorder %s25, 1
      %p106 = scmp.ne.s32.totalorder %s101, %s103
      %p107 = scmp.eq.s32.totalorder %s25, 0
      %p108 = por %p106, %p107
      %p109 = scmp.ne.s32.totalorder %s101, %s103
      %p110 = scmp.eq.s32.totalorder %s30, 1
      %p111 = por %p109, %p110
      %p112 = scmp.ne.s32.totalorder %s103, %s104
      %p113 = scmp.eq.s32.totalorder %s30, 0
      %p114 = por %p112, %p113
      %p115 = scmp.ne.s32.totalorder %s103, %s104
      %p116 = scmp.eq.s32.totalorder %s31, 1
      %p117 = por %p115, %p116
      %p119 = scmp.ne.s32.totalorder %s104, %s118
      %p120 = scmp.eq.s32.totalorder %s31, 0
      %p121 = por %p119, %p120
      %s123 = sadd.s32 %s122, 1
      %p126 = scmp.eq.s32.totalorder %s25, 1
      %p127 = scmp.ne.s32.totalorder %s122, %s124
      %p128 = scmp.eq.s32.totalorder %s25, 0
      %p129 = por %p127, %p128
      %p130 = scmp.ne.s32.totalorder %s122, %s124
      %p131 = scmp.eq.s32.totalorder %s30, 1
      %p132 = por %p130, %p131
      %p133 = scmp.ne.s32.totalorder %s124, %s125
      %p134 = scmp.eq.s32.totalorder %s30, 0
      %p135 = por %p133, %p134
      %p136 = scmp.ne.s32.totalorder %s124, %s125
      %p137 = scmp.eq.s32.totalorder %s31, 1
      %p138 = por %p136, %p137
      %p140 = scmp.ne.s32.totalorder %s125, %s139
      %p141 = scmp.eq.s32.totalorder %s31, 0
      %p142 = por %p140, %p141
      %s144 = sadd.s32 %s143, 1
      %p147 = scmp.eq.s32.totalorder %s25, 1
      %p148 = scmp.ne.s32.totalorder %s143, %s145
      %p149 = scmp.eq.s32.totalorder %s25, 0
      %p150 = por %p148, %p149
      %p151 = scmp.ne.s32.totalorder %s143, %s145
      %p152 = scmp.eq.s32.totalorder %s30, 1
      %p153 = por %p151, %p152
      %p154 = scmp.ne.s32.totalorder %s145, %s146
      %p155 = scmp.eq.s32.totalorder %s30, 0
      %p156 = por %p154, %p155
      %p157 = scmp.ne.s32.totalorder %s145, %s146
      %p158 = scmp.eq.s32.totalorder %s31, 1
      %p159 = por %p157, %p158
      %p161 = scmp.ne.s32.totalorder %s146, %s160
      %p162 = scmp.eq.s32.totalorder %s31, 0
      %p163 = por %p161, %p162
      %s165 = sadd.s32 %s164, 1
      %p168 = scmp.eq.s32.totalorder %s25, 1
      %p169 = scmp.ne.s32.totalorder %s164, %s166
      %p170 = scmp.eq.s32.totalorder %s25, 0
      %p171 = por %p169, %p170
      %p172 = scmp.ne.s32.totalorder %s164, %s166
      %p173 = scmp.eq.s32.totalorder %s30, 1
      %p174 = por %p172, %p173
      %p175 = scmp.ne.s32.totalorder %s166, %s167
      %p176 = scmp.eq.s32.totalorder %s30, 0
      %p177 = por %p175, %p176
      %p178 = scmp.ne.s32.totalorder %s166, %s167
      %p179 = scmp.eq.s32.totalorder %s31, 1
      %p180 = por %p178, %p179
      %p182 = scmp.ne.s32.totalorder %s167, %s181
      %p183 = scmp.eq.s32.totalorder %s31, 0
      %p184 = por %p182, %p183
      %s186 = sadd.s32 %s185, 1
      %p189 = scmp.eq.s32.totalorder %s25, 1
      %p190 = scmp.ne.s32.totalorder %s185, %s187
      %p191 = scmp.eq.s32.totalorder %s25, 0
      %p192 = por %p190, %p191
      %p193 = scmp.ne.s32.totalorder %s185, %s187
      %p194 = scmp.eq.s32.totalorder %s30, 1
      %p195 = por %p193, %p194
      %p196 = scmp.ne.s32.totalorder %s187, %s188
      %p197 = scmp.eq.s32.totalorder %s30, 0
      %p198 = por %p196, %p197
      %p199 = scmp.ne.s32.totalorder %s187, %s188
      %p200 = scmp.eq.s32.totalorder %s31, 1
      %p201 = por %p199, %p200
      %p203 = scmp.ne.s32.totalorder %s188, %s202
      %p204 = scmp.eq.s32.totalorder %s31, 0
      %p205 = por %p203, %p204
      %s207 = sadd.s32 %s206, 1
      %p210 = scmp.eq.s32.totalorder %s25, 1
      %p211 = scmp.ne.s32.totalorder %s206, %s208
      %p212 = scmp.eq.s32.totalorder %s25, 0
      %p213 = por %p211, %p212
      %p214 = scmp.ne.s32.totalorder %s206, %s208
      %p215 = scmp.eq.s32.totalorder %s30, 1
      %p216 = por %p214, %p215
      %p217 = scmp.ne.s32.totalorder %s208, %s209
      %p218 = scmp.eq.s32.totalorder %s30, 0
      %p219 = por %p217, %p218
      %p220 = scmp.ne.s32.totalorder %s208, %s209
      %p221 = scmp.eq.s32.totalorder %s31, 1
      %p222 = por %p220, %p221
      %p224 = scmp.ne.s32.totalorder %s209, %s223
      %p225 = scmp.eq.s32.totalorder %s31, 0
      %p226 = por %p224, %p225
      %s228 = sadd.s32 %s227, 1
      %p231 = scmp.eq.s32.totalorder %s25, 1
      %p232 = scmp.ne.s32.totalorder %s227, %s229
      %p233 = scmp.eq.s32.totalorder %s25, 0
      %p234 = por %p232, %p233
      %p235 = scmp.ne.s32.totalorder %s227, %s229
      %p236 = scmp.eq.s32.totalorder %s30, 1
      %p237 = por %p235, %p236
      %p238 = scmp.ne.s32.totalorder %s229, %s230
      %p239 = scmp.eq.s32.totalorder %s30, 0
      %p240 = por %p238, %p239
      %p241 = scmp.ne.s32.totalorder %s229, %s230
      %p242 = scmp.eq.s32.totalorder %s31, 1
      %p243 = por %p241, %p242
      %p245 = scmp.ne.s32.totalorder %s230, %s244
      %p246 = scmp.eq.s32.totalorder %s31, 0
      %p247 = por %p245, %p246
      %s249 = sadd.s32 %s248, 1
      %p252 = scmp.eq.s32.totalorder %s25, 1
      %p253 = scmp.ne.s32.totalorder %s248, %s250
      %p254 = scmp.eq.s32.totalorder %s25, 0
      %p255 = por %p253, %p254
      %p256 = scmp.ne.s32.totalorder %s248, %s250
      %p257 = scmp.eq.s32.totalorder %s30, 1
      %p258 = por %p256, %p257
      %p259 = scmp.ne.s32.totalorder %s250, %s251
      %p260 = scmp.eq.s32.totalorder %s30, 0
      %p261 = por %p259, %p260
      %p262 = scmp.ne.s32.totalorder %s250, %s251
      %p263 = scmp.eq.s32.totalorder %s31, 1
      %p264 = por %p262, %p263
      %p266 = scmp.ne.s32.totalorder %s251, %s265
      %p267 = scmp.eq.s32.totalorder %s31, 0
      %p268 = por %p266, %p267
      %s269 = ssub.s32 %s25, %s32
      %p270 = scmp.eq.s32.totalorder %s269, 0
      %s272 = sadd.s32 %s271, 1
      %s273 = scalar_select %p270, %s271, %s272
      %p276 = pneg %p270
      %p277 = scmp.eq.s32.totalorder %s25, 1
      %p278 = por %p276, %p277
      %p279 = scmp.ne.s32.totalorder %s271, %s274
      %p280 = scmp.eq.s32.totalorder %s25, 0
      %p281 = por %p279, %p280
      %p282 = scmp.ne.s32.totalorder %s271, %s274
      %p283 = scmp.eq.s32.totalorder %s30, 1
      %p284 = por %p282, %p283
      %p285 = scmp.ne.s32.totalorder %s274, %s275
      %p286 = scmp.eq.s32.totalorder %s30, 0
      %p287 = por %p285, %p286
      %p288 = scmp.ne.s32.totalorder %s274, %s275
      %p289 = scmp.eq.s32.totalorder %s31, 1
      %p290 = por %p288, %p289
      %p292 = scmp.ne.s32.totalorder %s275, %s291
      %p293 = scmp.eq.s32.totalorder %s31, 0
      %p294 = por %p292, %p293
      %p295 = scmp.le.s32.totalorder 1, %s25
      %p296 = scmp.lt.s32.totalorder %s25, 3
      %p297 = pnand %p295, %p296
      %p298 = pneg %p297
      // Predicated region
      $region9: #{tpu_custom_call.1} parent=5 // pred_check
        _
      $region10: #{tpu_custom_call.1} parent=5 // pred_check_branch
        %300 = sbr.rel (%p297) target = $region12
      $region11: #{tpu_custom_call.1} parent=5 // pred_region
        %s301 = ssub.s32 %s25, 1
        // Predicated region
        $region13: #{tpu_custom_call.1} parent=11 // pred_check
          %p302 = pneg %p72
        $region14: #{tpu_custom_call.1} parent=11 // pred_check_branch
          %304 = sbr.rel (%p302) target = $region16
        $region15: #{tpu_custom_call.1} parent=11 // pred_region
          _
        $region16: #{tpu_custom_call.1} parent=11 // pred_fallthru
          _
        // Predicated region
        $region17: #{tpu_custom_call.1} parent=11 // pred_check
          %p305 = pneg %p93
        $region18: #{tpu_custom_call.1} parent=11 // pred_check_branch
          %307 = sbr.rel (%p305) target = $region20
        $region19: #{tpu_custom_call.1} parent=11 // pred_region
          _
        $region20: #{tpu_custom_call.1} parent=11 // pred_fallthru
          _
        // Predicated region
        $region21: #{tpu_custom_call.1} parent=11 // pred_check
          %p308 = pneg %p114
        $region22: #{tpu_custom_call.1} parent=11 // pred_check_branch
          %310 = sbr.rel (%p308) target = $region24
        $region23: #{tpu_custom_call.1} parent=11 // pred_region
          %s312 = ssub.s32 12288, 12288
          %313 = vsyncadd [#allocation6], %s312
          %s314 = sshll.u32 [#allocation5], 4
          %s315 = int_to_ptr.vmem [resolvable:$true] %s314
          %320 = dma.hbm_to_vmem [thread:$0]  %s3, 12288, %s315, [#allocation6], 768, 768, 48
        $region24: #{tpu_custom_call.1} parent=11 // pred_fallthru
          _
        // Predicated region
        $region25: #{tpu_custom_call.1} parent=11 // pred_check
          %p321 = pneg %p135
        $region26: #{tpu_custom_call.1} parent=11 // pred_check_branch
          %323 = sbr.rel (%p321) target = $region28
        $region27: #{tpu_custom_call.1} parent=11 // pred_region
          _
        $region28: #{tpu_custom_call.1} parent=11 // pred_fallthru
          _
        // Predicated region
        $region29: #{tpu_custom_call.1} parent=11 // pred_check
          %p324 = pneg %p156
        $region30: #{tpu_custom_call.1} parent=11 // pred_check_branch
          %326 = sbr.rel (%p324) target = $region32
        $region31: #{tpu_custom_call.1} parent=11 // pred_region
          _
        $region32: #{tpu_custom_call.1} parent=11 // pred_fallthru
          _
        // Predicated region
        $region33: #{tpu_custom_call.1} parent=11 // pred_check
          %p327 = pneg %p177
        $region34: #{tpu_custom_call.1} parent=11 // pred_check_branch
          %329 = sbr.rel (%p327) target = $region36
        $region35: #{tpu_custom_call.1} parent=11 // pred_region
          _
        $region36: #{tpu_custom_call.1} parent=11 // pred_fallthru
          _
        // Predicated region
        $region37: #{tpu_custom_call.1} parent=11 // pred_check
          %p330 = pneg %p198
        $region38: #{tpu_custom_call.1} parent=11 // pred_check_branch
          %332 = sbr.rel (%p330) target = $region40
        $region39: #{tpu_custom_call.1} parent=11 // pred_region
          %s334 = ssub.s32 6144, 6144
          %335 = vsyncadd [#allocation6], %s334
          %s336 = sshll.u32 [#allocation7], 4
          %s337 = int_to_ptr.vmem [resolvable:$true] %s336
          %342 = dma.hbm_to_vmem [thread:$0]  %s7, 6144, %s337, [#allocation6], 384, 384, 24
        $region40: #{tpu_custom_call.1} parent=11 // pred_fallthru
          _
        // Predicated region
        $region41: #{tpu_custom_call.1} parent=11 // pred_check
          %p343 = pneg %p219
        $region42: #{tpu_custom_call.1} parent=11 // pred_check_branch
          %345 = sbr.rel (%p343) target = $region44
        $region43: #{tpu_custom_call.1} parent=11 // pred_region
          _
        $region44: #{tpu_custom_call.1} parent=11 // pred_fallthru
          _
        // Predicated region
        $region45: #{tpu_custom_call.1} parent=11 // pred_check
          %p346 = pneg %p240
        $region46: #{tpu_custom_call.1} parent=11 // pred_check_branch
          %348 = sbr.rel (%p346) target = $region48
        $region47: #{tpu_custom_call.1} parent=11 // pred_region
          %s350 = ssub.s32 6144, 6144
          %351 = vsyncadd [#allocation9], %s350
          %s352 = sshll.u32 [#allocation8], 4
          %s353 = int_to_ptr.vmem [resolvable:$true] %s352
          %358 = dma.hbm_to_vmem [thread:$0]  %s9, 6144, %s353, [#allocation9], 128, 128, 8
        $region48: #{tpu_custom_call.1} parent=11 // pred_fallthru
          _
        // Predicated region
        $region49: #{tpu_custom_call.1} parent=11 // pred_check
          %p359 = pneg %p261
        $region50: #{tpu_custom_call.1} parent=11 // pred_check_branch
          %361 = sbr.rel (%p359) target = $region52
        $region51: #{tpu_custom_call.1} parent=11 // pred_region
          _
        $region52: #{tpu_custom_call.1} parent=11 // pred_fallthru
          _
      $region12: #{tpu_custom_call.1} parent=5 // pred_fallthru
        _
      %p362 = scmp.lt.s32.totalorder %s25, 2
      // Predicated region
      $region53: #{tpu_custom_call.1} parent=5 // pred_check
        %p363 = pneg %p362
      $region54: #{tpu_custom_call.1} parent=5 // pred_check_branch
        %365 = sbr.rel (%p363) target = $region56
      $region55: #{tpu_custom_call.1} parent=5 // pred_region
        // Predicated region
        $region57: #{tpu_custom_call.1} parent=55 // pred_check
          %p366 = pneg %p45
        $region58: #{tpu_custom_call.1} parent=55 // pred_check_branch
          %368 = sbr.rel (%p366) target = $region60
        $region59: #{tpu_custom_call.1} parent=55 // pred_region
          %s369 = sand.u32 %s35, 1
          %s370 = scalar_lea.sflag [#allocation3], %s369
          %s371 = sand.u32 %s35, 1
          %s372 = smul.addr %s371, 8
          %s373 = scalar_lea.vmem [#allocation2], %s372
          %s375 = ssub.s32 128, 128
          %376 = vsyncadd %s370, %s375
          %s377 = smul.addr %s25, 128
          %s378 = scalar_lea.hbm %s0, %s377
          %s380 = sshll.u32 %s373, 4
          %s381 = int_to_ptr.vmem [resolvable:$true] %s380
          %383 = dma.hbm_to_vmem [thread:$0]  %s378, 128, %s381, %s370
        $region60: #{tpu_custom_call.1} parent=55 // pred_fallthru
          _
      $region56: #{tpu_custom_call.1} parent=5 // pred_fallthru
        _
      %p384 = scmp.le.s32.totalorder 1, %s25
      %p385 = scmp.lt.s32.totalorder %s25, 3
      %p386 = pnand %p384, %p385
      %p387 = pneg %p386
      // Predicated region
      $region61: #{tpu_custom_call.1} parent=5 // pred_check
        _
      $region62: #{tpu_custom_call.1} parent=5 // pred_check_branch
        %389 = sbr.rel (%p386) target = $region64
      $region63: #{tpu_custom_call.1} parent=5 // pred_region
        %s390 = ssub.s32 %s25, 1
        %s391 = sand.u32 %s38, 1
        %s392 = scalar_lea.sflag [#allocation3], %s391
        %s393 = sand.u32 %s38, 1
        %s394 = smul.addr %s393, 8
        %s395 = scalar_lea.vmem [#allocation2], %s394
        // Predicated region
        $region65: #{tpu_custom_call.1} parent=63 // pred_check
          %p396 = pneg %p51
        $region66: #{tpu_custom_call.1} parent=63 // pred_check_branch
          %398 = sbr.rel (%p396) target = $region68
        $region67: #{tpu_custom_call.1} parent=63 // pred_region
          %399 = dma.done %s392, 128
        $region68: #{tpu_custom_call.1} parent=63 // pred_fallthru
          _
        // Predicated region
        $region69: #{tpu_custom_call.1} parent=63 // pred_check
          %p400 = pneg %p114
        $region70: #{tpu_custom_call.1} parent=63 // pred_check_branch
          %402 = sbr.rel (%p400) target = $region72
        $region71: #{tpu_custom_call.1} parent=63 // pred_region
          %403 = dma.done [#allocation6], 12288
        $region72: #{tpu_custom_call.1} parent=63 // pred_fallthru
          _
        // Predicated region
        $region73: #{tpu_custom_call.1} parent=63 // pred_check
          %p404 = pneg %p198
        $region74: #{tpu_custom_call.1} parent=63 // pred_check_branch
          %406 = sbr.rel (%p404) target = $region76
        $region75: #{tpu_custom_call.1} parent=63 // pred_region
          %407 = dma.done [#allocation6], 6144
        $region76: #{tpu_custom_call.1} parent=63 // pred_fallthru
          _
        // Predicated region
        $region77: #{tpu_custom_call.1} parent=63 // pred_check
          %p408 = pneg %p240
        $region78: #{tpu_custom_call.1} parent=63 // pred_check_branch
          %410 = sbr.rel (%p408) target = $region80
        $region79: #{tpu_custom_call.1} parent=63 // pred_region
          %411 = dma.done [#allocation9], 6144
        $region80: #{tpu_custom_call.1} parent=63 // pred_fallthru
          _
        %s412 = sand.u32 %s38, 1
        %s413 = scalar_lea.sflag [#allocation3], %s412
        %s414 = sand.u32 %s38, 1
        %s415 = smul.addr %s414, 8
        %s416 = scalar_lea.vmem [#allocation2], %s415
        %p417 = pneg %p51
        %p418 = pneg %p48
        %p419 = pneg %p72
        %p420 = pneg %p69
        %p421 = pneg %p93
        %p422 = pneg %p90
        %p423 = pneg %p114
        %p424 = pneg %p111
        %p425 = pneg %p135
        %p426 = pneg %p132
        %p427 = pneg %p156
        %p428 = pneg %p153
        %p429 = pneg %p177
        %p430 = pneg %p174
        %p431 = pneg %p198
        %p432 = pneg %p195
        %p433 = pneg %p219
        %p434 = pneg %p216
        %p435 = pneg %p240
        %p436 = pneg %p237
        %p437 = pneg %p261
        %p438 = pneg %p258
        %p439 = pneg %p287
        %p440 = pneg %p284
        %s441 = sand.u32 %s274, 1
        %s442 = scalar_lea.sflag [#allocation4], %s441
        %s443 = sand.u32 %s274, 1
        %s444 = smul.addr %s443, 8
        %s445 = scalar_lea.vmem [#allocation10], %s444
        %v446 = vld [vmem:[%s395] sm:$0xff]
        %v447 = vld [vmem:[%s1] sm:$0x1]
        %v448 = vld [vmem:[%s2] sm:$0x1]
        %449 = vadd.xlane.f32.xlu0 %v446
        %v450 = vpop.xlane.xlu0 %449
        %v451 = vmul.f32 %v446, %v446
        %452 = vadd.xlane.f32.xlu0 %v451
        %v453 = vpop.xlane.xlu0 %452
        %v454 = vmul.f32 %v450, 0.010416667
        %v455 = vmul.f32 %v453, 0.010416667
        %v456 = vmul.f32 %v454, %v454
        %v457 = vsub.f32 %v455, %v456
        %v458 = vadd.f32 %v457, 1e-05
        %v459 = vrsqrt.pop %v458
        %v460 = vsub.f32 %v446, %v454
        %v461 = vmul.f32 %v460, %v459
        %v463 = vlaneseq
        %v464 = vshrl.u32 %v463, 7
        %v465 = vsub.s32 0, %v464
        %v466 = vrot.slane %v447, %v465
        %v468 = vmul.f32 %v461, %v466
        %v470 = vlaneseq
        %v471 = vshrl.u32 %v470, 7
        %v472 = vsub.s32 0, %v471
        %v473 = vrot.slane %v448, %v472
        %v475 = vadd.f32 %v468, %v473
        %v476 = vld [vmem:[#allocation5] sm:$0xff]
        %v477 = vld [vmem:[#allocation5 + $0x8] sm:$0xff]
        %v478 = vld [vmem:[#allocation5 + $0x10] sm:$0xff]
        %v479 = vld [vmem:[#allocation5 + $0x18] sm:$0xff]
        %v480 = vld [vmem:[#allocation5 + $0x20] sm:$0xff]
        %v481 = vld [vmem:[#allocation5 + $0x28] sm:$0xff]
        %v482 = vld [vmem:[#allocation5 + $0x30] sm:$0xff]
        %v483 = vld [vmem:[#allocation5 + $0x38] sm:$0xff]
        %v484 = vld [vmem:[#allocation5 + $0x40] sm:$0xff]
        %v485 = vld [vmem:[#allocation5 + $0x48] sm:$0xff]
        %v486 = vld [vmem:[#allocation5 + $0x50] sm:$0xff]
        %v487 = vld [vmem:[#allocation5 + $0x58] sm:$0xff]
        %v488 = vld [vmem:[#allocation5 + $0x60] sm:$0xff]
        %v489 = vld [vmem:[#allocation5 + $0x68] sm:$0xff]
        %v490 = vld [vmem:[#allocation5 + $0x70] sm:$0xff]
        %v491 = vld [vmem:[#allocation5 + $0x78] sm:$0xff]
        %v492 = vld [vmem:[#allocation5 + $0x80] sm:$0xff]
        %v493 = vld [vmem:[#allocation5 + $0x88] sm:$0xff]
        %v494 = vld [vmem:[#allocation5 + $0x90] sm:$0xff]
        %v495 = vld [vmem:[#allocation5 + $0x98] sm:$0xff]
        %v496 = vld [vmem:[#allocation5 + $0xa0] sm:$0xff]
        %v497 = vld [vmem:[#allocation5 + $0xa8] sm:$0xff]
        %v498 = vld [vmem:[#allocation5 + $0xb0] sm:$0xff]
        %v499 = vld [vmem:[#allocation5 + $0xb8] sm:$0xff]
        %v500 = vld [vmem:[#allocation5 + $0xc0] sm:$0xff]
        %v501 = vld [vmem:[#allocation5 + $0xc8] sm:$0xff]
        %v502 = vld [vmem:[#allocation5 + $0xd0] sm:$0xff]
        %v503 = vld [vmem:[#allocation5 + $0xd8] sm:$0xff]
        %v504 = vld [vmem:[#allocation5 + $0xe0] sm:$0xff]
        %v505 = vld [vmem:[#allocation5 + $0xe8] sm:$0xff]
        %v506 = vld [vmem:[#allocation5 + $0xf0] sm:$0xff]
        %v507 = vld [vmem:[#allocation5 + $0xf8] sm:$0xff]
        %v508 = vld [vmem:[#allocation5 + $0x100] sm:$0xff]
        %v509 = vld [vmem:[#allocation5 + $0x108] sm:$0xff]
        %v510 = vld [vmem:[#allocation5 + $0x110] sm:$0xff]
        %v511 = vld [vmem:[#allocation5 + $0x118] sm:$0xff]
        %v512 = vld [vmem:[#allocation5 + $0x120] sm:$0xff]
        %v513 = vld [vmem:[#allocation5 + $0x128] sm:$0xff]
        %v514 = vld [vmem:[#allocation5 + $0x130] sm:$0xff]
        %v515 = vld [vmem:[#allocation5 + $0x138] sm:$0xff]
        %v516 = vld [vmem:[#allocation5 + $0x140] sm:$0xff]
        %v517 = vld [vmem:[#allocation5 + $0x148] sm:$0xff]
        %v518 = vld [vmem:[#allocation5 + $0x150] sm:$0xff]
        %v519 = vld [vmem:[#allocation5 + $0x158] sm:$0xff]
        %v520 = vld [vmem:[#allocation5 + $0x160] sm:$0xff]
        %v521 = vld [vmem:[#allocation5 + $0x168] sm:$0xff]
        %v522 = vld [vmem:[#allocation5 + $0x170] sm:$0xff]
        %v523 = vld [vmem:[#allocation5 + $0x178] sm:$0xff]
        %v524 = vld [vmem:[#allocation5 + $0x180] sm:$0xff]
        %v525 = vld [vmem:[#allocation5 + $0x188] sm:$0xff]
        %v526 = vld [vmem:[#allocation5 + $0x190] sm:$0xff]
        %v527 = vld [vmem:[#allocation5 + $0x198] sm:$0xff]
        %v528 = vld [vmem:[#allocation5 + $0x1a0] sm:$0xff]
        %v529 = vld [vmem:[#allocation5 + $0x1a8] sm:$0xff]
        %v530 = vld [vmem:[#allocation5 + $0x1b0] sm:$0xff]
        %v531 = vld [vmem:[#allocation5 + $0x1b8] sm:$0xff]
        %v532 = vld [vmem:[#allocation5 + $0x1c0] sm:$0xff]
        %v533 = vld [vmem:[#allocation5 + $0x1c8] sm:$0xff]
        %v534 = vld [vmem:[#allocation5 + $0x1d0] sm:$0xff]
        %v535 = vld [vmem:[#allocation5 + $0x1d8] sm:$0xff]
        %v536 = vld [vmem:[#allocation5 + $0x1e0] sm:$0xff]
        %v537 = vld [vmem:[#allocation5 + $0x1e8] sm:$0xff]
        %v538 = vld [vmem:[#allocation5 + $0x1f0] sm:$0xff]
        %v539 = vld [vmem:[#allocation5 + $0x1f8] sm:$0xff]
        %v540 = vld [vmem:[#allocation5 + $0x200] sm:$0xff]
        %v541 = vld [vmem:[#allocation5 + $0x208] sm:$0xff]
        %v542 = vld [vmem:[#allocation5 + $0x210] sm:$0xff]
        %v543 = vld [vmem:[#allocation5 + $0x218] sm:$0xff]
        %v544 = vld [vmem:[#allocation5 + $0x220] sm:$0xff]
        %v545 = vld [vmem:[#allocation5 + $0x228] sm:$0xff]
        %v546 = vld [vmem:[#allocation5 + $0x230] sm:$0xff]
        %v547 = vld [vmem:[#allocation5 + $0x238] sm:$0xff]
        %v548 = vld [vmem:[#allocation5 + $0x240] sm:$0xff]
        %v549 = vld [vmem:[#allocation5 + $0x248] sm:$0xff]
        %v550 = vld [vmem:[#allocation5 + $0x250] sm:$0xff]
        %v551 = vld [vmem:[#allocation5 + $0x258] sm:$0xff]
        %v552 = vld [vmem:[#allocation5 + $0x260] sm:$0xff]
        %v553 = vld [vmem:[#allocation5 + $0x268] sm:$0xff]
        %v554 = vld [vmem:[#allocation5 + $0x270] sm:$0xff]
        %v555 = vld [vmem:[#allocation5 + $0x278] sm:$0xff]
        %v556 = vld [vmem:[#allocation5 + $0x280] sm:$0xff]
        %v557 = vld [vmem:[#allocation5 + $0x288] sm:$0xff]
        %v558 = vld [vmem:[#allocation5 + $0x290] sm:$0xff]
        %v559 = vld [vmem:[#allocation5 + $0x298] sm:$0xff]
        %v560 = vld [vmem:[#allocation5 + $0x2a0] sm:$0xff]
        %v561 = vld [vmem:[#allocation5 + $0x2a8] sm:$0xff]
        %v562 = vld [vmem:[#allocation5 + $0x2b0] sm:$0xff]
        %v563 = vld [vmem:[#allocation5 + $0x2b8] sm:$0xff]
        %v564 = vld [vmem:[#allocation5 + $0x2c0] sm:$0xff]
        %v565 = vld [vmem:[#allocation5 + $0x2c8] sm:$0xff]
        %v566 = vld [vmem:[#allocation5 + $0x2d0] sm:$0xff]
        %v567 = vld [vmem:[#allocation5 + $0x2d8] sm:$0xff]
        %v568 = vld [vmem:[#allocation5 + $0x2e0] sm:$0xff]
        %v569 = vld [vmem:[#allocation5 + $0x2e8] sm:$0xff]
        %v570 = vld [vmem:[#allocation5 + $0x2f0] sm:$0xff]
        %v571 = vld [vmem:[#allocation5 + $0x2f8] sm:$0xff]
        %v572 = vand.u32 %v477, 4294901760
        %573 = vmatprep.subr.mxu0 %v572
        %v574 = vand.u32 %v476, 4294901760
        %575 = vmatpush1.msra.mxu0 %v574
        %v576 = vand.u32 %v483, 4294901760
        %577 = vmatprep.subr.mxu0 %v576
        %v578 = vand.u32 %v482, 4294901760
        %579 = vmatpush1.msra.mxu0 %v578
        %v580 = vand.u32 %v489, 4294901760
        %581 = vmatprep.subr.mxu0 %v580
        %v582 = vand.u32 %v488, 4294901760
        %583 = vmatpush1.msra.mxu0 %v582
        %v584 = vand.u32 %v495, 4294901760
        %585 = vmatprep.subr.mxu0 %v584
        %v586 = vand.u32 %v494, 4294901760
        %587 = vmatpush1.msra.mxu0 %v586
        %v588 = vand.u32 %v501, 4294901760
        %589 = vmatprep.subr.mxu0 %v588
        %v590 = vand.u32 %v500, 4294901760
        %591 = vmatpush1.msra.mxu0 %v590
        %v592 = vand.u32 %v507, 4294901760
        %593 = vmatprep.subr.mxu0 %v592
        %v594 = vand.u32 %v506, 4294901760
        %595 = vmatpush1.msra.mxu0 %v594
        %v596 = vand.u32 %v513, 4294901760
        %597 = vmatprep.subr.mxu0 %v596
        %v598 = vand.u32 %v512, 4294901760
        %599 = vmatpush1.msra.mxu0 %v598
        %v600 = vand.u32 %v519, 4294901760
        %601 = vmatprep.subr.mxu0 %v600
        %v602 = vand.u32 %v518, 4294901760
        %603 = vmatpush1.msra.mxu0 %v602
        %v604 = vand.u32 %v525, 4294901760
        %605 = vmatprep.subr.mxu0 %v604
        %v606 = vand.u32 %v524, 4294901760
        %607 = vmatpush1.msra.mxu0 %v606
        %v608 = vand.u32 %v531, 4294901760
        %609 = vmatprep.subr.mxu0 %v608
        %v610 = vand.u32 %v530, 4294901760
        %611 = vmatpush1.msra.mxu0 %v610
        %v612 = vand.u32 %v537, 4294901760
        %613 = vmatprep.subr.mxu0 %v612
        %v614 = vand.u32 %v536, 4294901760
        %615 = vmatpush1.msra.mxu0 %v614
        %v616 = vand.u32 %v543, 4294901760
        %617 = vmatprep.subr.mxu0 %v616
        %v618 = vand.u32 %v542, 4294901760
        %619 = vmatpush1.msra.mxu0 %v618
        %v620 = vand.u32 %v549, 4294901760
        %621 = vmatprep.subr.mxu0 %v620
        %v622 = vand.u32 %v548, 4294901760
        %623 = vmatpush1.msra.mxu0 %v622
        %v624 = vand.u32 %v555, 4294901760
        %625 = vmatprep.subr.mxu0 %v624
        %v626 = vand.u32 %v554, 4294901760
        %627 = vmatpush1.msra.mxu0 %v626
        %v628 = vand.u32 %v561, 4294901760
        %629 = vmatprep.subr.mxu0 %v628
        %v630 = vand.u32 %v560, 4294901760
        %631 = vmatpush1.msra.mxu0 %v630
        %v632 = vand.u32 %v567, 4294901760
        %633 = vmatprep.subr.mxu0 %v632
        %v634 = vand.u32 %v566, 4294901760
        %635 = vmatpush1.msra.mxu0 %v634
        %636 = vmatprep.subr.mxu0 0.0
        %637 = vmatpush1.msra.mxu0 0.0
        %638 = vmatprep.subr.mxu0 0.0
        %639 = vmatpush1.msra.mxu0 0.0
        %640 = vmatprep.subr.mxu0 0.0
        %641 = vmatpush1.msra.mxu0 0.0
        %642 = vmatprep.subr.mxu0 0.0
        %643 = vmatpush1.msra.mxu0 0.0
        %644 = vmatprep.subr.mxu0 0.0
        %645 = vmatpush1.msra.mxu0 0.0
        %646 = vmatprep.subr.mxu0 0.0
        %647 = vmatpush1.msra.mxu0 0.0
        %648 = vmatprep.subr.mxu0 0.0
        %649 = vmatpush1.msra.mxu0 0.0
        %650 = vmatprep.subr.mxu0 0.0
        %651 = vmatpush1.msra.mxu0 0.0
        %652 = vmatprep.subr.mxu0 0.0
        %653 = vmatpush1.msra.mxu0 0.0
        %654 = vmatprep.subr.mxu0 0.0
        %655 = vmatpush1.msra.mxu0 0.0
        %656 = vmatprep.subr.mxu0 0.0
        %657 = vmatpush1.msra.mxu0 0.0
        %658 = vmatprep.subr.mxu0 0.0
        %659 = vmatpush1.msra.mxu0 0.0
        %660 = vmatprep.subr.mxu0 0.0
        %661 = vmatpush1.msra.mxu0 0.0
        %662 = vmatprep.subr.mxu0 0.0
        %663 = vmatpush1.msra.mxu0 0.0
        %664 = vmatprep.subr.mxu0 0.0
        %665 = vmatpush1.msra.mxu0 0.0
        %666 = vmatprep.subr.mxu0 0.0
        %667 = vmatpush1.msra.mxu0 0.0
        %668 = vmatprep.mubr.f32.mxu0 0.0
        %v669 = vand.u32 %v475, 4294901760
        %v670 = vsub.f32 %v475, %v669
        %v671 = vand.u32 %v670, 4294901760
        %v672 = vsub.f32 %v670, %v671
        %v673 = vand.u32 %v672, 4294901760
        %674 = vmatmul.mubr.f32.gmra.mrb[0].mxu0 %v673
        %v675 = vpop.f32.mrb[0].mxu0
        %v676 = vadd.f32 0.0, %v675
        %v677 = vpop.f32.mrb[0].mxu0
        %v678 = vadd.f32 0.0, %v677
        %679 = vdwg.mxu0
        %v680 = vand.u32 %v477, 4294901760
        %v681 = vsub.f32 %v477, %v680
        %v682 = vand.u32 %v681, 4294901760
        %v683 = vsub.f32 %v681, %v682
        %v684 = vand.u32 %v683, 4294901760
        %685 = vmatprep.subr.mxu0 %v684
        %v686 = vand.u32 %v476, 4294901760
        %v687 = vsub.f32 %v476, %v686
        %v688 = vand.u32 %v687, 4294901760
        %v689 = vsub.f32 %v687, %v688
        %v690 = vand.u32 %v689, 4294901760
        %691 = vmatpush1.msra.mxu0 %v690
        %v692 = vand.u32 %v483, 4294901760
        %v693 = vsub.f32 %v483, %v692
        %v694 = vand.u32 %v693, 4294901760
        %v695 = vsub.f32 %v693, %v694
        %v696 = vand.u32 %v695, 4294901760
        %697 = vmatprep.subr.mxu0 %v696
        %v698 = vand.u32 %v482, 4294901760
        %v699 = vsub.f32 %v482, %v698
        %v700 = vand.u32 %v699, 4294901760
        %v701 = vsub.f32 %v699, %v700
        %v702 = vand.u32 %v701, 4294901760
        %703 = vmatpush1.msra.mxu0 %v702
        %v704 = vand.u32 %v489, 4294901760
        %v705 = vsub.f32 %v489, %v704
        %v706 = vand.u32 %v705, 4294901760
        %v707 = vsub.f32 %v705, %v706
        %v708 = vand.u32 %v707, 4294901760
        %709 = vmatprep.subr.mxu0 %v708
        %v710 = vand.u32 %v488, 4294901760
        %v711 = vsub.f32 %v488, %v710
        %v712 = vand.u32 %v711, 4294901760
        %v713 = vsub.f32 %v711, %v712
        %v714 = vand.u32 %v713, 4294901760
        %715 = vmatpush1.msra.mxu0 %v714
        %v716 = vand.u32 %v495, 4294901760
        %v717 = vsub.f32 %v495, %v716
        %v718 = vand.u32 %v717, 4294901760
        %v719 = vsub.f32 %v717, %v718
        %v720 = vand.u32 %v719, 4294901760
        %721 = vmatprep.subr.mxu0 %v720
        %v722 = vand.u32 %v494, 4294901760
        %v723 = vsub.f32 %v494, %v722
        %v724 = vand.u32 %v723, 4294901760
        %v725 = vsub.f32 %v723, %v724
        %v726 = vand.u32 %v725, 4294901760
        %727 = vmatpush1.msra.mxu0 %v726
        %v728 = vand.u32 %v501, 4294901760
        %v729 = vsub.f32 %v501, %v728
        %v730 = vand.u32 %v729, 4294901760
        %v731 = vsub.f32 %v729, %v730
        %v732 = vand.u32 %v731, 4294901760
        %733 = vmatprep.subr.mxu0 %v732
        %v734 = vand.u32 %v500, 4294901760
        %v735 = vsub.f32 %v500, %v734
        %v736 = vand.u32 %v735, 4294901760
        %v737 = vsub.f32 %v735, %v736
        %v738 = vand.u32 %v737, 4294901760
        %739 = vmatpush1.msra.mxu0 %v738
        %v740 = vand.u32 %v507, 4294901760
        %v741 = vsub.f32 %v507, %v740
        %v742 = vand.u32 %v741, 4294901760
        %v743 = vsub.f32 %v741, %v742
        %v744 = vand.u32 %v743, 4294901760
        %745 = vmatprep.subr.mxu0 %v744
        %v746 = vand.u32 %v506, 4294901760
        %v747 = vsub.f32 %v506, %v746
        %v748 = vand.u32 %v747, 4294901760
        %v749 = vsub.f32 %v747, %v748
        %v750 = vand.u32 %v749, 4294901760
        %751 = vmatpush1.msra.mxu0 %v750
        %v752 = vand.u32 %v513, 4294901760
        %v753 = vsub.f32 %v513, %v752
        %v754 = vand.u32 %v753, 4294901760
        %v755 = vsub.f32 %v753, %v754
        %v756 = vand.u32 %v755, 4294901760
        %757 = vmatprep.subr.mxu0 %v756
        %v758 = vand.u32 %v512, 4294901760
        %v759 = vsub.f32 %v512, %v758
        %v760 = vand.u32 %v759, 4294901760
        %v761 = vsub.f32 %v759, %v760
        %v762 = vand.u32 %v761, 4294901760
        %763 = vmatpush1.msra.mxu0 %v762
        %v764 = vand.u32 %v519, 4294901760
        %v765 = vsub.f32 %v519, %v764
        %v766 = vand.u32 %v765, 4294901760
        %v767 = vsub.f32 %v765, %v766
        %v768 = vand.u32 %v767, 4294901760
        %769 = vmatprep.subr.mxu0 %v768
        %v770 = vand.u32 %v518, 4294901760
        %v771 = vsub.f32 %v518, %v770
        %v772 = vand.u32 %v771, 4294901760
        %v773 = vsub.f32 %v771, %v772
        %v774 = vand.u32 %v773, 4294901760
        %775 = vmatpush1.msra.mxu0 %v774
        %v776 = vand.u32 %v525, 4294901760
        %v777 = vsub.f32 %v525, %v776
        %v778 = vand.u32 %v777, 4294901760
        %v779 = vsub.f32 %v777, %v778
        %v780 = vand.u32 %v779, 4294901760
        %781 = vmatprep.subr.mxu0 %v780
        %v782 = vand.u32 %v524, 4294901760
        %v783 = vsub.f32 %v524, %v782
        %v784 = vand.u32 %v783, 4294901760
        %v785 = vsub.f32 %v783, %v784
        %v786 = vand.u32 %v785, 4294901760
        %787 = vmatpush1.msra.mxu0 %v786
        %v788 = vand.u32 %v531, 4294901760
        %v789 = vsub.f32 %v531, %v788
        %v790 = vand.u32 %v789, 4294901760
        %v791 = vsub.f32 %v789, %v790
        %v792 = vand.u32 %v791, 4294901760
        %793 = vmatprep.subr.mxu0 %v792
        %v794 = vand.u32 %v530, 4294901760
        %v795 = vsub.f32 %v530, %v794
        %v796 = vand.u32 %v795, 4294901760
        %v797 = vsub.f32 %v795, %v796
        %v798 = vand.u32 %v797, 4294901760
        %799 = vmatpush1.msra.mxu0 %v798
        %v800 = vand.u32 %v537, 4294901760
        %v801 = vsub.f32 %v537, %v800
        %v802 = vand.u32 %v801, 4294901760
        %v803 = vsub.f32 %v801, %v802
        %v804 = vand.u32 %v803, 4294901760
        %805 = vmatprep.subr.mxu0 %v804
        %v806 = vand.u32 %v536, 4294901760
        %v807 = vsub.f32 %v536, %v806
        %v808 = vand.u32 %v807, 4294901760
        %v809 = vsub.f32 %v807, %v808
        %v810 = vand.u32 %v809, 4294901760
        %811 = vmatpush1.msra.mxu0 %v810
        %v812 = vand.u32 %v543, 4294901760
        %v813 = vsub.f32 %v543, %v812
        %v814 = vand.u32 %v813, 4294901760
        %v815 = vsub.f32 %v813, %v814
        %v816 = vand.u32 %v815, 4294901760
        %817 = vmatprep.subr.mxu0 %v816
        %v818 = vand.u32 %v542, 4294901760
        %v819 = vsub.f32 %v542, %v818
        %v820 = vand.u32 %v819, 4294901760
        %v821 = vsub.f32 %v819, %v820
        %v822 = vand.u32 %v821, 4294901760
        %823 = vmatpush1.msra.mxu0 %v822
        %v824 = vand.u32 %v549, 4294901760
        %v825 = vsub.f32 %v549, %v824
        %v826 = vand.u32 %v825, 4294901760
        %v827 = vsub.f32 %v825, %v826
        %v828 = vand.u32 %v827, 4294901760
        %829 = vmatprep.subr.mxu0 %v828
        %v830 = vand.u32 %v548, 4294901760
        %v831 = vsub.f32 %v548, %v830
        %v832 = vand.u32 %v831, 4294901760
        %v833 = vsub.f32 %v831, %v832
        %v834 = vand.u32 %v833, 4294901760
        %835 = vmatpush1.msra.mxu0 %v834
        %v836 = vand.u32 %v555, 4294901760
        %v837 = vsub.f32 %v555, %v836
        %v838 = vand.u32 %v837, 4294901760
        %v839 = vsub.f32 %v837, %v838
        %v840 = vand.u32 %v839, 4294901760
        %841 = vmatprep.subr.mxu0 %v840
        %v842 = vand.u32 %v554, 4294901760
        %v843 = vsub.f32 %v554, %v842
        %v844 = vand.u32 %v843, 4294901760
        %v845 = vsub.f32 %v843, %v844
        %v846 = vand.u32 %v845, 4294901760
        %847 = vmatpush1.msra.mxu0 %v846
        %v848 = vand.u32 %v561, 4294901760
        %v849 = vsub.f32 %v561, %v848
        %v850 = vand.u32 %v849, 4294901760
        %v851 = vsub.f32 %v849, %v850
        %v852 = vand.u32 %v851, 4294901760
        %853 = vmatprep.subr.mxu0 %v852
        %v854 = vand.u32 %v560, 4294901760
        %v855 = vsub.f32 %v560, %v854
        %v856 = vand.u32 %v855, 4294901760
        %v857 = vsub.f32 %v855, %v856
        %v858 = vand.u32 %v857, 4294901760
        %859 = vmatpush1.msra.mxu0 %v858
        %v860 = vand.u32 %v567, 4294901760
        %v861 = vsub.f32 %v567, %v860
        %v862 = vand.u32 %v861, 4294901760
        %v863 = vsub.f32 %v861, %v862
        %v864 = vand.u32 %v863, 4294901760
        %865 = vmatprep.subr.mxu0 %v864
        %v866 = vand.u32 %v566, 4294901760
        %v867 = vsub.f32 %v566, %v866
        %v868 = vand.u32 %v867, 4294901760
        %v869 = vsub.f32 %v867, %v868
        %v870 = vand.u32 %v869, 4294901760
        %871 = vmatpush1.msra.mxu0 %v870
        %872 = vmatprep.subr.mxu0 0.0
        %873 = vmatpush1.msra.mxu0 0.0
        %874 = vmatprep.subr.mxu0 0.0
        %875 = vmatpush1.msra.mxu0 0.0
        %876 = vmatprep.subr.mxu0 0.0
        %877 = vmatpush1.msra.mxu0 0.0
        %878 = vmatprep.subr.mxu0 0.0
        %879 = vmatpush1.msra.mxu0 0.0
        %880 = vmatprep.subr.mxu0 0.0
        %881 = vmatpush1.msra.mxu0 0.0
        %882 = vmatprep.subr.mxu0 0.0
        %883 = vmatpush1.msra.mxu0 0.0
        %884 = vmatprep.subr.mxu0 0.0
        %885 = vmatpush1.msra.mxu0 0.0
        %886 = vmatprep.subr.mxu0 0.0
        %887 = vmatpush1.msra.mxu0 0.0
        %888 = vmatprep.subr.mxu0 0.0
        %889 = vmatpush1.msra.mxu0 0.0
        %890 = vmatprep.subr.mxu0 0.0
        %891 = vmatpush1.msra.mxu0 0.0
        %892 = vmatprep.subr.mxu0 0.0
        %893 = vmatpush1.msra.mxu0 0.0
        %894 = vmatprep.subr.mxu0 0.0
        %895 = vmatpush1.msra.mxu0 0.0
        %896 = vmatprep.subr.mxu0 0.0
        %897 = vmatpush1.msra.mxu0 0.0
        %898 = vmatprep.subr.mxu0 0.0
        %899 = vmatpush1.msra.mxu0 0.0
        %900 = vmatprep.subr.mxu0 0.0
        %901 = vmatpush1.msra.mxu0 0.0
        %902 = vmatprep.subr.mxu0 0.0
        %903 = vmatpush1.msra.mxu0 0.0
        %904 = vmatprep.mubr.f32.mxu0 0.0
        %v905 = vand.u32 %v475, 4294901760
        %906 = vmatmul.mubr.f32.gmra.mrb[0].mxu0 %v905
        %v907 = vpop.f32.mrb[0].mxu0
        %v908 = vadd.f32 %v676, %v907
        %v909 = vpop.f32.mrb[0].mxu0
        %v910 = vadd.f32 %v678, %v909
        %911 = vdwg.mxu0
        %v912 = vand.u32 %v477, 4294901760
        %v913 = vsub.f32 %v477, %v912
        %914 = vmatprep.subr.mxu0 %v913
        %v915 = vand.u32 %v476, 4294901760
        %v916 = vsub.f32 %v476, %v915
        %917 = vmatpush1.msra.mxu0 %v916
        %v918 = vand.u32 %v483, 4294901760
        %v919 = vsub.f32 %v483, %v918
        %920 = vmatprep.subr.mxu0 %v919
        %v921 = vand.u32 %v482, 4294901760
        %v922 = vsub.f32 %v482, %v921
        %923 = vmatpush1.msra.mxu0 %v922
        %v924 = vand.u32 %v489, 4294901760
        %v925 = vsub.f32 %v489, %v924
        %926 = vmatprep.subr.mxu0 %v925
        %v927 = vand.u32 %v488, 4294901760
        %v928 = vsub.f32 %v488, %v927
        %929 = vmatpush1.msra.mxu0 %v928
        %v930 = vand.u32 %v495, 4294901760
        %v931 = vsub.f32 %v495, %v930
        %932 = vmatprep.subr.mxu0 %v931
        %v933 = vand.u32 %v494, 4294901760
        %v934 = vsub.f32 %v494, %v933
        %935 = vmatpush1.msra.mxu0 %v934
        %v936 = vand.u32 %v501, 4294901760
        %v937 = vsub.f32 %v501, %v936
        %938 = vmatprep.subr.mxu0 %v937
        %v939 = vand.u32 %v500, 4294901760
        %v940 = vsub.f32 %v500, %v939
        %941 = vmatpush1.msra.mxu0 %v940
        %v942 = vand.u32 %v507, 4294901760
        %v943 = vsub.f32 %v507, %v942
        %944 = vmatprep.subr.mxu0 %v943
        %v945 = vand.u32 %v506, 4294901760
        %v946 = vsub.f32 %v506, %v945
        %947 = vmatpush1.msra.mxu0 %v946
        %v948 = vand.u32 %v513, 4294901760
        %v949 = vsub.f32 %v513, %v948
        %950 = vmatprep.subr.mxu0 %v949
        %v951 = vand.u32 %v512, 4294901760
        %v952 = vsub.f32 %v512, %v951
        %953 = vmatpush1.msra.mxu0 %v952
        %v954 = vand.u32 %v519, 4294901760
        %v955 = vsub.f32 %v519, %v954
        %956 = vmatprep.subr.mxu0 %v955
        %v957 = vand.u32 %v518, 4294901760
        %v958 = vsub.f32 %v518, %v957
        %959 = vmatpush1.msra.mxu0 %v958
        %v960 = vand.u32 %v525, 4294901760
        %v961 = vsub.f32 %v525, %v960
        %962 = vmatprep.subr.mxu0 %v961
        %v963 = vand.u32 %v524, 4294901760
        %v964 = vsub.f32 %v524, %v963
        %965 = vmatpush1.msra.mxu0 %v964
        %v966 = vand.u32 %v531, 4294901760
        %v967 = vsub.f32 %v531, %v966
        %968 = vmatprep.subr.mxu0 %v967
        %v969 = vand.u32 %v530, 4294901760
        %v970 = vsub.f32 %v530, %v969
        %971 = vmatpush1.msra.mxu0 %v970
        %v972 = vand.u32 %v537, 4294901760
        %v973 = vsub.f32 %v537, %v972
        %974 = vmatprep.subr.mxu0 %v973
        %v975 = vand.u32 %v536, 4294901760
        %v976 = vsub.f32 %v536, %v975
        %977 = vmatpush1.msra.mxu0 %v976
        %v978 = vand.u32 %v543, 4294901760
        %v979 = vsub.f32 %v543, %v978
        %980 = vmatprep.subr.mxu0 %v979
        %v981 = vand.u32 %v542, 4294901760
        %v982 = vsub.f32 %v542, %v981
        %983 = vmatpush1.msra.mxu0 %v982
        %v984 = vand.u32 %v549, 4294901760
        %v985 = vsub.f32 %v549, %v984
        %986 = vmatprep.subr.mxu0 %v985
        %v987 = vand.u32 %v548, 4294901760
        %v988 = vsub.f32 %v548, %v987
        %989 = vmatpush1.msra.mxu0 %v988
        %v990 = vand.u32 %v555, 4294901760
        %v991 = vsub.f32 %v555, %v990
        %992 = vmatprep.subr.mxu0 %v991
        %v993 = vand.u32 %v554, 4294901760
        %v994 = vsub.f32 %v554, %v993
        %995 = vmatpush1.msra.mxu0 %v994
        %v996 = vand.u32 %v561, 4294901760
        %v997 = vsub.f32 %v561, %v996
        %998 = vmatprep.subr.mxu0 %v997
        %v999 = vand.u32 %v560, 4294901760
        %v1000 = vsub.f32 %v560, %v999
        %1001 = vmatpush1.msra.mxu0 %v1000
        %v1002 = vand.u32 %v567, 4294901760
        %v1003 = vsub.f32 %v567, %v1002
        %1004 = vmatprep.subr.mxu0 %v1003
        %v1005 = vand.u32 %v566, 4294901760
        %v1006 = vsub.f32 %v566, %v1005
        %1007 = vmatpush1.msra.mxu0 %v1006
        %1008 = vmatprep.subr.mxu0 0.0
        %1009 = vmatpush1.msra.mxu0 0.0
        %1010 = vmatprep.subr.mxu0 0.0
        %1011 = vmatpush1.msra.mxu0 0.0
        %1012 = vmatprep.subr.mxu0 0.0
        %1013 = vmatpush1.msra.mxu0 0.0
        %1014 = vmatprep.subr.mxu0 0.0
        %1015 = vmatpush1.msra.mxu0 0.0
        %1016 = vmatprep.subr.mxu0 0.0
        %1017 = vmatpush1.msra.mxu0 0.0
        %1018 = vmatprep.subr.mxu0 0.0
        %1019 = vmatpush1.msra.mxu0 0.0
        %1020 = vmatprep.subr.mxu0 0.0
        %1021 = vmatpush1.msra.mxu0 0.0
        %1022 = vmatprep.subr.mxu0 0.0
        %1023 = vmatpush1.msra.mxu0 0.0
        %1024 = vmatprep.subr.mxu0 0.0
        %1025 = vmatpush1.msra.mxu0 0.0
        %1026 = vmatprep.subr.mxu0 0.0
        %1027 = vmatpush1.msra.mxu0 0.0
        %1028 = vmatprep.subr.mxu0 0.0
        %1029 = vmatpush1.msra.mxu0 0.0
        %1030 = vmatprep.subr.mxu0 0.0
        %1031 = vmatpush1.msra.mxu0 0.0
        %1032 = vmatprep.subr.mxu0 0.0
        %1033 = vmatpush1.msra.mxu0 0.0
        %1034 = vmatprep.subr.mxu0 0.0
        %1035 = vmatpush1.msra.mxu0 0.0
        %1036 = vmatprep.subr.mxu0 0.0
        %1037 = vmatpush1.msra.mxu0 0.0
        %1038 = vmatprep.subr.mxu0 0.0
        %1039 = vmatpush1.msra.mxu0 0.0
        %1040 = vmatprep.mubr.f32.mxu0 0.0
        %v1041 = vand.u32 %v475, 4294901760
        %v1042 = vsub.f32 %v475, %v1041
        %1043 = vmatmul.mubr.f32.gmra.mrb[0].mxu0 %v1042
        %v1044 = vpop.f32.mrb[0].mxu0
        %v1045 = vadd.f32 %v908, %v1044
        %v1046 = vpop.f32.mrb[0].mxu0
        %v1047 = vadd.f32 %v910, %v1046
        %1048 = vdwg.mxu0
        %v1049 = vand.u32 %v477, 4294901760
        %1050 = vmatprep.subr.mxu0 %v1049
        %v1051 = vand.u32 %v476, 4294901760
        %1052 = vmatpush1.msra.mxu0 %v1051
        %v1053 = vand.u32 %v483, 4294901760
        %1054 = vmatprep.subr.mxu0 %v1053
        %v1055 = vand.u32 %v482, 4294901760
        %1056 = vmatpush1.msra.mxu0 %v1055
        %v1057 = vand.u32 %v489, 4294901760
        %1058 = vmatprep.subr.mxu0 %v1057
        %v1059 = vand.u32 %v488, 4294901760
        %1060 = vmatpush1.msra.mxu0 %v1059
        %v1061 = vand.u32 %v495, 4294901760
        %1062 = vmatprep.subr.mxu0 %v1061
        %v1063 = vand.u32 %v494, 4294901760
        %1064 = vmatpush1.msra.mxu0 %v1063
        %v1065 = vand.u32 %v501, 4294901760
        %1066 = vmatprep.subr.mxu0 %v1065
        %v1067 = vand.u32 %v500, 4294901760
        %1068 = vmatpush1.msra.mxu0 %v1067
        %v1069 = vand.u32 %v507, 4294901760
        %1070 = vmatprep.subr.mxu0 %v1069
        %v1071 = vand.u32 %v506, 4294901760
        %1072 = vmatpush1.msra.mxu0 %v1071
        %v1073 = vand.u32 %v513, 4294901760
        %1074 = vmatprep.subr.mxu0 %v1073
        %v1075 = vand.u32 %v512, 4294901760
        %1076 = vmatpush1.msra.mxu0 %v1075
        %v1077 = vand.u32 %v519, 4294901760
        %1078 = vmatprep.subr.mxu0 %v1077
        %v1079 = vand.u32 %v518, 4294901760
        %1080 = vmatpush1.msra.mxu0 %v1079
        %v1081 = vand.u32 %v525, 4294901760
        %1082 = vmatprep.subr.mxu0 %v1081
        %v1083 = vand.u32 %v524, 4294901760
        %1084 = vmatpush1.msra.mxu0 %v1083
        %v1085 = vand.u32 %v531, 4294901760
        %1086 = vmatprep.subr.mxu0 %v1085
        %v1087 = vand.u32 %v530, 4294901760
        %1088 = vmatpush1.msra.mxu0 %v1087
        %v1089 = vand.u32 %v537, 4294901760
        %1090 = vmatprep.subr.mxu0 %v1089
        %v1091 = vand.u32 %v536, 4294901760
        %1092 = vmatpush1.msra.mxu0 %v1091
        %v1093 = vand.u32 %v543, 4294901760
        %1094 = vmatprep.subr.mxu0 %v1093
        %v1095 = vand.u32 %v542, 4294901760
        %1096 = vmatpush1.msra.mxu0 %v1095
        %v1097 = vand.u32 %v549, 4294901760
        %1098 = vmatprep.subr.mxu0 %v1097
        %v1099 = vand.u32 %v548, 4294901760
        %1100 = vmatpush1.msra.mxu0 %v1099
        %v1101 = vand.u32 %v555, 4294901760
        %1102 = vmatprep.subr.mxu0 %v1101
        %v1103 = vand.u32 %v554, 4294901760
        %1104 = vmatpush1.msra.mxu0 %v1103
        %v1105 = vand.u32 %v561, 4294901760
        %1106 = vmatprep.subr.mxu0 %v1105
        %v1107 = vand.u32 %v560, 4294901760
        %1108 = vmatpush1.msra.mxu0 %v1107
        %v1109 = vand.u32 %v567, 4294901760
        %1110 = vmatprep.subr.mxu0 %v1109
        %v1111 = vand.u32 %v566, 4294901760
        %1112 = vmatpush1.msra.mxu0 %v1111
        %1113 = vmatprep.subr.mxu0 0.0
        %1114 = vmatpush1.msra.mxu0 0.0
        %1115 = vmatprep.subr.mxu0 0.0
        %1116 = vmatpush1.msra.mxu0 0.0
        %1117 = vmatprep.subr.mxu0 0.0
        %1118 = vmatpush1.msra.mxu0 0.0
        %1119 = vmatprep.subr.mxu0 0.0
        %1120 = vmatpush1.msra.mxu0 0.0
        %1121 = vmatprep.subr.mxu0 0.0
        %1122 = vmatpush1.msra.mxu0 0.0
        %1123 = vmatprep.subr.mxu0 0.0
        %1124 = vmatpush1.msra.mxu0 0.0
        %1125 = vmatprep.subr.mxu0 0.0
        %1126 = vmatpush1.msra.mxu0 0.0
        %1127 = vmatprep.subr.mxu0 0.0
        %1128 = vmatpush1.msra.mxu0 0.0
        %1129 = vmatprep.subr.mxu0 0.0
        %1130 = vmatpush1.msra.mxu0 0.0
        %1131 = vmatprep.subr.mxu0 0.0
        %1132 = vmatpush1.msra.mxu0 0.0
        %1133 = vmatprep.subr.mxu0 0.0
        %1134 = vmatpush1.msra.mxu0 0.0
        %1135 = vmatprep.subr.mxu0 0.0
        %1136 = vmatpush1.msra.mxu0 0.0
        %1137 = vmatprep.subr.mxu0 0.0
        %1138 = vmatpush1.msra.mxu0 0.0
        %1139 = vmatprep.subr.mxu0 0.0
        %1140 = vmatpush1.msra.mxu0 0.0
        %1141 = vmatprep.subr.mxu0 0.0
        %1142 = vmatpush1.msra.mxu0 0.0
        %1143 = vmatprep.subr.mxu0 0.0
        %1144 = vmatpush1.msra.mxu0 0.0
        %1145 = vmatprep.mubr.f32.mxu0 0.0
        %v1146 = vand.u32 %v475, 4294901760
        %v1147 = vsub.f32 %v475, %v1146
        %v1148 = vand.u32 %v1147, 4294901760
        %1149 = vmatmul.mubr.f32.gmra.mrb[0].mxu0 %v1148
        %v1150 = vpop.f32.mrb[0].mxu0
        %v1151 = vadd.f32 %v1045, %v1150
        %v1152 = vpop.f32.mrb[0].mxu0
        %v1153 = vadd.f32 %v1047, %v1152
        %1154 = vdwg.mxu0
        %v1155 = vand.u32 %v477, 4294901760
        %v1156 = vsub.f32 %v477, %v1155
        %v1157 = vand.u32 %v1156, 4294901760
        %1158 = vmatprep.subr.mxu0 %v1157
        %v1159 = vand.u32 %v476, 4294901760
        %v1160 = vsub.f32 %v476, %v1159
        %v1161 = vand.u32 %v1160, 4294901760
        %1162 = vmatpush1.msra.mxu0 %v1161
        %v1163 = vand.u32 %v483, 4294901760
        %v1164 = vsub.f32 %v483, %v1163
        %v1165 = vand.u32 %v1164, 4294901760
        %1166 = vmatprep.subr.mxu0 %v1165
        %v1167 = vand.u32 %v482, 4294901760
        %v1168 = vsub.f32 %v482, %v1167
        %v1169 = vand.u32 %v1168, 4294901760
        %1170 = vmatpush1.msra.mxu0 %v1169
        %v1171 = vand.u32 %v489, 4294901760
        %v1172 = vsub.f32 %v489, %v1171
        %v1173 = vand.u32 %v1172, 4294901760
        %1174 = vmatprep.subr.mxu0 %v1173
        %v1175 = vand.u32 %v488, 4294901760
        %v1176 = vsub.f32 %v488, %v1175
        %v1177 = vand.u32 %v1176, 4294901760
        %1178 = vmatpush1.msra.mxu0 %v1177
        %v1179 = vand.u32 %v495, 4294901760
        %v1180 = vsub.f32 %v495, %v1179
        %v1181 = vand.u32 %v1180, 4294901760
        %1182 = vmatprep.subr.mxu0 %v1181
        %v1183 = vand.u32 %v494, 4294901760
        %v1184 = vsub.f32 %v494, %v1183
        %v1185 = vand.u32 %v1184, 4294901760
        %1186 = vmatpush1.msra.mxu0 %v1185
        %v1187 = vand.u32 %v501, 4294901760
        %v1188 = vsub.f32 %v501, %v1187
        %v1189 = vand.u32 %v1188, 4294901760
        %1190 = vmatprep.subr.mxu0 %v1189
        %v1191 = vand.u32 %v500, 4294901760
        %v1192 = vsub.f32 %v500, %v1191
        %v1193 = vand.u32 %v1192, 4294901760
        %1194 = vmatpush1.msra.mxu0 %v1193
        %v1195 = vand.u32 %v507, 4294901760
        %v1196 = vsub.f32 %v507, %v1195
        %v1197 = vand.u32 %v1196, 4294901760
        %1198 = vmatprep.subr.mxu0 %v1197
        %v1199 = vand.u32 %v506, 4294901760
        %v1200 = vsub.f32 %v506, %v1199
        %v1201 = vand.u32 %v1200, 4294901760
        %1202 = vmatpush1.msra.mxu0 %v1201
        %v1203 = vand.u32 %v513, 4294901760
        %v1204 = vsub.f32 %v513, %v1203
        %v1205 = vand.u32 %v1204, 4294901760
        %1206 = vmatprep.subr.mxu0 %v1205
        %v1207 = vand.u32 %v512, 4294901760
        %v1208 = vsub.f32 %v512, %v1207
        %v1209 = vand.u32 %v1208, 4294901760
        %1210 = vmatpush1.msra.mxu0 %v1209
        %v1211 = vand.u32 %v519, 4294901760
        %v1212 = vsub.f32 %v519, %v1211
        %v1213 = vand.u32 %v1212, 4294901760
        %1214 = vmatprep.subr.mxu0 %v1213
        %v1215 = vand.u32 %v518, 4294901760
        %v1216 = vsub.f32 %v518, %v1215
        %v1217 = vand.u32 %v1216, 4294901760
        %1218 = vmatpush1.msra.mxu0 %v1217
        %v1219 = vand.u32 %v525, 4294901760
        %v1220 = vsub.f32 %v525, %v1219
        %v1221 = vand.u32 %v1220, 4294901760
        %1222 = vmatprep.subr.mxu0 %v1221
        %v1223 = vand.u32 %v524, 4294901760
        %v1224 = vsub.f32 %v524, %v1223
        %v1225 = vand.u32 %v1224, 4294901760
        %1226 = vmatpush1.msra.mxu0 %v1225
        %v1227 = vand.u32 %v531, 4294901760
        %v1228 = vsub.f32 %v531, %v1227
        %v1229 = vand.u32 %v1228, 4294901760
        %1230 = vmatprep.subr.mxu0 %v1229
        %v1231 = vand.u32 %v530, 4294901760
        %v1232 = vsub.f32 %v530, %v1231
        %v1233 = vand.u32 %v1232, 4294901760
        %1234 = vmatpush1.msra.mxu0 %v1233
        %v1235 = vand.u32 %v537, 4294901760
        %v1236 = vsub.f32 %v537, %v1235
        %v1237 = vand.u32 %v1236, 4294901760
        %1238 = vmatprep.subr.mxu0 %v1237
        %v1239 = vand.u32 %v536, 4294901760
        %v1240 = vsub.f32 %v536, %v1239
        %v1241 = vand.u32 %v1240, 4294901760
        %1242 = vmatpush1.msra.mxu0 %v1241
        %v1243 = vand.u32 %v543, 4294901760
        %v1244 = vsub.f32 %v543, %v1243
        %v1245 = vand.u32 %v1244, 4294901760
        %1246 = vmatprep.subr.mxu0 %v1245
        %v1247 = vand.u32 %v542, 4294901760
        %v1248 = vsub.f32 %v542, %v1247
        %v1249 = vand.u32 %v1248, 4294901760
        %1250 = vmatpush1.msra.mxu0 %v1249
        %v1251 = vand.u32 %v549, 4294901760
        %v1252 = vsub.f32 %v549, %v1251
        %v1253 = vand.u32 %v1252, 4294901760
        %1254 = vmatprep.subr.mxu0 %v1253
        %v1255 = vand.u32 %v548, 4294901760
        %v1256 = vsub.f32 %v548, %v1255
        %v1257 = vand.u32 %v1256, 4294901760
        %1258 = vmatpush1.msra.mxu0 %v1257
        %v1259 = vand.u32 %v555, 4294901760
        %v1260 = vsub.f32 %v555, %v1259
        %v1261 = vand.u32 %v1260, 4294901760
        %1262 = vmatprep.subr.mxu0 %v1261
        %v1263 = vand.u32 %v554, 4294901760
        %v1264 = vsub.f32 %v554, %v1263
        %v1265 = vand.u32 %v1264, 4294901760
        %1266 = vmatpush1.msra.mxu0 %v1265
        %v1267 = vand.u32 %v561, 4294901760
        %v1268 = vsub.f32 %v561, %v1267
        %v1269 = vand.u32 %v1268, 4294901760
        %1270 = vmatprep.subr.mxu0 %v1269
        %v1271 = vand.u32 %v560, 4294901760
        %v1272 = vsub.f32 %v560, %v1271
        %v1273 = vand.u32 %v1272, 4294901760
        %1274 = vmatpush1.msra.mxu0 %v1273
        %v1275 = vand.u32 %v567, 4294901760
        %v1276 = vsub.f32 %v567, %v1275
        %v1277 = vand.u32 %v1276, 4294901760
        %1278 = vmatprep.subr.mxu0 %v1277
        %v1279 = vand.u32 %v566, 4294901760
        %v1280 = vsub.f32 %v566, %v1279
        %v1281 = vand.u32 %v1280, 4294901760
        %1282 = vmatpush1.msra.mxu0 %v1281
        %1283 = vmatprep.subr.mxu0 0.0
        %1284 = vmatpush1.msra.mxu0 0.0
        %1285 = vmatprep.subr.mxu0 0.0
        %1286 = vmatpush1.msra.mxu0 0.0
        %1287 = vmatprep.subr.mxu0 0.0
        %1288 = vmatpush1.msra.mxu0 0.0
        %1289 = vmatprep.subr.mxu0 0.0
        %1290 = vmatpush1.msra.mxu0 0.0
        %1291 = vmatprep.subr.mxu0 0.0
        %1292 = vmatpush1.msra.mxu0 0.0
        %1293 = vmatprep.subr.mxu0 0.0
        %1294 = vmatpush1.msra.mxu0 0.0
        %1295 = vmatprep.subr.mxu0 0.0
        %1296 = vmatpush1.msra.mxu0 0.0
        %1297 = vmatprep.subr.mxu0 0.0
        %1298 = vmatpush1.msra.mxu0 0.0
        %1299 = vmatprep.subr.mxu0 0.0
        %1300 = vmatpush1.msra.mxu0 0.0
        %1301 = vmatprep.subr.mxu0 0.0
        %1302 = vmatpush1.msra.mxu0 0.0
        %1303 = vmatprep.subr.mxu0 0.0
        %1304 = vmatpush1.msra.mxu0 0.0
        %1305 = vmatprep.subr.mxu0 0.0
        %1306 = vmatpush1.msra.mxu0 0.0
        %1307 = vmatprep.subr.mxu0 0.0
        %1308 = vmatpush1.msra.mxu0 0.0
        %1309 = vmatprep.subr.mxu0 0.0
        %1310 = vmatpush1.msra.mxu0 0.0
        %1311 = vmatprep.subr.mxu0 0.0
        %1312 = vmatpush1.msra.mxu0 0.0
        %1313 = vmatprep.subr.mxu0 0.0
        %1314 = vmatpush1.msra.mxu0 0.0
        %1315 = vmatprep.mubr.f32.mxu0 0.0
        %v1316 = vand.u32 %v475, 4294901760
        %1317 = vmatmul.mubr.f32.gmra.mrb[0].mxu0 %v1316
        %v1318 = vpop.f32.mrb[0].mxu0
        %v1319 = vadd.f32 %v1151, %v1318
        %v1320 = vpop.f32.mrb[0].mxu0
        %v1321 = vadd.f32 %v1153, %v1320
        %1322 = vdwg.mxu0
        %v1323 = vand.u32 %v477, 4294901760
        %1324 = vmatprep.subr.mxu0 %v1323
        %v1325 = vand.u32 %v476, 4294901760
        %1326 = vmatpush1.msra.mxu0 %v1325
        %v1327 = vand.u32 %v483, 4294901760
        %1328 = vmatprep.subr.mxu0 %v1327
        %v1329 = vand.u32 %v482, 4294901760
        %1330 = vmatpush1.msra.mxu0 %v1329
        %v1331 = vand.u32 %v489, 4294901760
        %1332 = vmatprep.subr.mxu0 %v1331
        %v1333 = vand.u32 %v488, 4294901760
        %1334 = vmatpush1.msra.mxu0 %v1333
        %v1335 = vand.u32 %v495, 4294901760
        %1336 = vmatprep.subr.mxu0 %v1335
        %v1337 = vand.u32 %v494, 4294901760
        %1338 = vmatpush1.msra.mxu0 %v1337
        %v1339 = vand.u32 %v501, 4294901760
        %1340 = vmatprep.subr.mxu0 %v1339
        %v1341 = vand.u32 %v500, 4294901760
        %1342 = vmatpush1.msra.mxu0 %v1341
        %v1343 = vand.u32 %v507, 4294901760
        %1344 = vmatprep.subr.mxu0 %v1343
        %v1345 = vand.u32 %v506, 4294901760
        %1346 = vmatpush1.msra.mxu0 %v1345
        %v1347 = vand.u32 %v513, 4294901760
        %1348 = vmatprep.subr.mxu0 %v1347
        %v1349 = vand.u32 %v512, 4294901760
        %1350 = vmatpush1.msra.mxu0 %v1349
        %v1351 = vand.u32 %v519, 4294901760
        %1352 = vmatprep.subr.mxu0 %v1351
        %v1353 = vand.u32 %v518, 4294901760
        %1354 = vmatpush1.msra.mxu0 %v1353
        %v1355 = vand.u32 %v525, 4294901760
        %1356 = vmatprep.subr.mxu0 %v1355
        %v1357 = vand.u32 %v524, 4294901760
        %1358 = vmatpush1.msra.mxu0 %v1357
        %v1359 = vand.u32 %v531, 4294901760
        %1360 = vmatprep.subr.mxu0 %v1359
        %v1361 = vand.u32 %v530, 4294901760
        %1362 = vmatpush1.msra.mxu0 %v1361
        %v1363 = vand.u32 %v537, 4294901760
        %1364 = vmatprep.subr.mxu0 %v1363
        %v1365 = vand.u32 %v536, 4294901760
        %1366 = vmatpush1.msra.mxu0 %v1365
        %v1367 = vand.u32 %v543, 4294901760
        %1368 = vmatprep.subr.mxu0 %v1367
        %v1369 = vand.u32 %v542, 4294901760
        %1370 = vmatpush1.msra.mxu0 %v1369
        %v1371 = vand.u32 %v549, 4294901760
        %1372 = vmatprep.subr.mxu0 %v1371
        %v1373 = vand.u32 %v548, 4294901760
        %1374 = vmatpush1.msra.mxu0 %v1373
        %v1375 = vand.u32 %v555, 4294901760
        %1376 = vmatprep.subr.mxu0 %v1375
        %v1377 = vand.u32 %v554, 4294901760
        %1378 = vmatpush1.msra.mxu0 %v1377
        %v1379 = vand.u32 %v561, 4294901760
        %1380 = vmatprep.subr.mxu0 %v1379
        %v1381 = vand.u32 %v560, 4294901760
        %1382 = vmatpush1.msra.mxu0 %v1381
        %v1383 = vand.u32 %v567, 4294901760
        %1384 = vmatprep.subr.mxu0 %v1383
        %v1385 = vand.u32 %v566, 4294901760
        %1386 = vmatpush1.msra.mxu0 %v1385
        %1387 = vmatprep.subr.mxu0 0.0
        %1388 = vmatpush1.msra.mxu0 0.0
        %1389 = vmatprep.subr.mxu0 0.0
        %1390 = vmatpush1.msra.mxu0 0.0
        %1391 = vmatprep.subr.mxu0 0.0
        %1392 = vmatpush1.msra.mxu0 0.0
        %1393 = vmatprep.subr.mxu0 0.0
        %1394 = vmatpush1.msra.mxu0 0.0
        %1395 = vmatprep.subr.mxu0 0.0
        %1396 = vmatpush1.msra.mxu0 0.0
        %1397 = vmatprep.subr.mxu0 0.0
        %1398 = vmatpush1.msra.mxu0 0.0
        %1399 = vmatprep.subr.mxu0 0.0
        %1400 = vmatpush1.msra.mxu0 0.0
        %1401 = vmatprep.subr.mxu0 0.0
        %1402 = vmatpush1.msra.mxu0 0.0
        %1403 = vmatprep.subr.mxu0 0.0
        %1404 = vmatpush1.msra.mxu0 0.0
        %1405 = vmatprep.subr.mxu0 0.0
        %1406 = vmatpush1.msra.mxu0 0.0
        %1407 = vmatprep.subr.mxu0 0.0
        %1408 = vmatpush1.msra.mxu0 0.0
        %1409 = vmatprep.subr.mxu0 0.0
        %1410 = vmatpush1.msra.mxu0 0.0
        %1411 = vmatprep.subr.mxu0 0.0
        %1412 = vmatpush1.msra.mxu0 0.0
        %1413 = vmatprep.subr.mxu0 0.0
        %1414 = vmatpush1.msra.mxu0 0.0
        %1415 = vmatprep.subr.mxu0 0.0
        %1416 = vmatpush1.msra.mxu0 0.0
        %1417 = vmatprep.subr.mxu0 0.0
        %1418 = vmatpush1.msra.mxu0 0.0
        %1419 = vmatprep.mubr.f32.mxu0 0.0
        %v1420 = vand.u32 %v475, 4294901760
        %1421 = vmatmul.mubr.f32.gmra.mrb[0].mxu0 %v1420
        %v1422 = vpop.f32.mrb[0].mxu0
        %v1423 = vadd.f32 %v1319, %v1422
        %v1424 = vpop.f32.mrb[0].mxu0
        %v1425 = vadd.f32 %v1321, %v1424
        %1426 = vdwg.mxu0
        %v1427 = vand.u32 %v479, 4294901760
        %1428 = vmatprep.subr.mxu0 %v1427
        %v1429 = vand.u32 %v478, 4294901760
        %1430 = vmatpush1.msra.mxu0 %v1429
        %v1431 = vand.u32 %v485, 4294901760
        %1432 = vmatprep.subr.mxu0 %v1431
        %v1433 = vand.u32 %v484, 4294901760
        %1434 = vmatpush1.msra.mxu0 %v1433
        %v1435 = vand.u32 %v491, 4294901760
        %1436 = vmatprep.subr.mxu0 %v1435
        %v1437 = vand.u32 %v490, 4294901760
        %1438 = vmatpush1.msra.mxu0 %v1437
        %v1439 = vand.u32 %v497, 4294901760
        %1440 = vmatprep.subr.mxu0 %v1439
        %v1441 = vand.u32 %v496, 4294901760
        %1442 = vmatpush1.msra.mxu0 %v1441
        %v1443 = vand.u32 %v503, 4294901760
        %1444 = vmatprep.subr.mxu0 %v1443
        %v1445 = vand.u32 %v502, 4294901760
        %1446 = vmatpush1.msra.mxu0 %v1445
        %v1447 = vand.u32 %v509, 4294901760
        %1448 = vmatprep.subr.mxu0 %v1447
        %v1449 = vand.u32 %v508, 4294901760
        %1450 = vmatpush1.msra.mxu0 %v1449
        %v1451 = vand.u32 %v515, 4294901760
        %1452 = vmatprep.subr.mxu0 %v1451
        %v1453 = vand.u32 %v514, 4294901760
        %1454 = vmatpush1.msra.mxu0 %v1453
        %v1455 = vand.u32 %v521, 4294901760
        %1456 = vmatprep.subr.mxu0 %v1455
        %v1457 = vand.u32 %v520, 4294901760
        %1458 = vmatpush1.msra.mxu0 %v1457
        %v1459 = vand.u32 %v527, 4294901760
        %1460 = vmatprep.subr.mxu0 %v1459
        %v1461 = vand.u32 %v526, 4294901760
        %1462 = vmatpush1.msra.mxu0 %v1461
        %v1463 = vand.u32 %v533, 4294901760
        %1464 = vmatprep.subr.mxu0 %v1463
        %v1465 = vand.u32 %v532, 4294901760
        %1466 = vmatpush1.msra.mxu0 %v1465
        %v1467 = vand.u32 %v539, 4294901760
        %1468 = vmatprep.subr.mxu0 %v1467
        %v1469 = vand.u32 %v538, 4294901760
        %1470 = vmatpush1.msra.mxu0 %v1469
        %v1471 = vand.u32 %v545, 4294901760
        %1472 = vmatprep.subr.mxu0 %v1471
        %v1473 = vand.u32 %v544, 4294901760
        %1474 = vmatpush1.msra.mxu0 %v1473
        %v1475 = vand.u32 %v551, 4294901760
        %1476 = vmatprep.subr.mxu0 %v1475
        %v1477 = vand.u32 %v550, 4294901760
        %1478 = vmatpush1.msra.mxu0 %v1477
        %v1479 = vand.u32 %v557, 4294901760
        %1480 = vmatprep.subr.mxu0 %v1479
        %v1481 = vand.u32 %v556, 4294901760
        %1482 = vmatpush1.msra.mxu0 %v1481
        %v1483 = vand.u32 %v563, 4294901760
        %1484 = vmatprep.subr.mxu0 %v1483
        %v1485 = vand.u32 %v562, 4294901760
        %1486 = vmatpush1.msra.mxu0 %v1485
        %v1487 = vand.u32 %v569, 4294901760
        %1488 = vmatprep.subr.mxu0 %v1487
        %v1489 = vand.u32 %v568, 4294901760
        %1490 = vmatpush1.msra.mxu0 %v1489
        %1491 = vmatprep.subr.mxu0 0.0
        %1492 = vmatpush1.msra.mxu0 0.0
        %1493 = vmatprep.subr.mxu0 0.0
        %1494 = vmatpush1.msra.mxu0 0.0
        %1495 = vmatprep.subr.mxu0 0.0
        %1496 = vmatpush1.msra.mxu0 0.0
        %1497 = vmatprep.subr.mxu0 0.0
        %1498 = vmatpush1.msra.mxu0 0.0
        %1499 = vmatprep.subr.mxu0 0.0
        %1500 = vmatpush1.msra.mxu0 0.0
        %1501 = vmatprep.subr.mxu0 0.0
        %1502 = vmatpush1.msra.mxu0 0.0
        %1503 = vmatprep.subr.mxu0 0.0
        %1504 = vmatpush1.msra.mxu0 0.0
        %1505 = vmatprep.subr.mxu0 0.0
        %1506 = vmatpush1.msra.mxu0 0.0
        %1507 = vmatprep.subr.mxu0 0.0
        %1508 = vmatpush1.msra.mxu0 0.0
        %1509 = vmatprep.subr.mxu0 0.0
        %1510 = vmatpush1.msra.mxu0 0.0
        %1511 = vmatprep.subr.mxu0 0.0
        %1512 = vmatpush1.msra.mxu0 0.0
        %1513 = vmatprep.subr.mxu0 0.0
        %1514 = vmatpush1.msra.mxu0 0.0
        %1515 = vmatprep.subr.mxu0 0.0
        %1516 = vmatpush1.msra.mxu0 0.0
        %1517 = vmatprep.subr.mxu0 0.0
        %1518 = vmatpush1.msra.mxu0 0.0
        %1519 = vmatprep.subr.mxu0 0.0
        %1520 = vmatpush1.msra.mxu0 0.0
        %1521 = vmatprep.subr.mxu0 0.0
        %1522 = vmatpush1.msra.mxu0 0.0
        %1523 = vmatprep.mubr.f32.mxu0 0.0
        %v1524 = vand.u32 %v475, 4294901760
        %v1525 = vsub.f32 %v475, %v1524
        %v1526 = vand.u32 %v1525, 4294901760
        %v1527 = vsub.f32 %v1525, %v1526
        %v1528 = vand.u32 %v1527, 4294901760
        %1529 = vmatmul.mubr.f32.gmra.mrb[0].mxu0 %v1528
        %v1530 = vpop.f32.mrb[0].mxu0
        %v1531 = vadd.f32 0.0, %v1530
        %v1532 = vpop.f32.mrb[0].mxu0
        %v1533 = vadd.f32 0.0, %v1532
        %1534 = vdwg.mxu0
        %v1535 = vand.u32 %v479, 4294901760
        %v1536 = vsub.f32 %v479, %v1535
        %v1537 = vand.u32 %v1536, 4294901760
        %v1538 = vsub.f32 %v1536, %v1537
        %v1539 = vand.u32 %v1538, 4294901760
        %1540 = vmatprep.subr.mxu0 %v1539
        %v1541 = vand.u32 %v478, 4294901760
        %v1542 = vsub.f32 %v478, %v1541
        %v1543 = vand.u32 %v1542, 4294901760
        %v1544 = vsub.f32 %v1542, %v1543
        %v1545 = vand.u32 %v1544, 4294901760
        %1546 = vmatpush1.msra.mxu0 %v1545
        %v1547 = vand.u32 %v485, 4294901760
        %v1548 = vsub.f32 %v485, %v1547
        %v1549 = vand.u32 %v1548, 4294901760
        %v1550 = vsub.f32 %v1548, %v1549
        %v1551 = vand.u32 %v1550, 4294901760
        %1552 = vmatprep.subr.mxu0 %v1551
        %v1553 = vand.u32 %v484, 4294901760
        %v1554 = vsub.f32 %v484, %v1553
        %v1555 = vand.u32 %v1554, 4294901760
        %v1556 = vsub.f32 %v1554, %v1555
        %v1557 = vand.u32 %v1556, 4294901760
        %1558 = vmatpush1.msra.mxu0 %v1557
        %v1559 = vand.u32 %v491, 4294901760
        %v1560 = vsub.f32 %v491, %v1559
        %v1561 = vand.u32 %v1560, 4294901760
        %v1562 = vsub.f32 %v1560, %v1561
        %v1563 = vand.u32 %v1562, 4294901760
        %1564 = vmatprep.subr.mxu0 %v1563
        %v1565 = vand.u32 %v490, 4294901760
        %v1566 = vsub.f32 %v490, %v1565
        %v1567 = vand.u32 %v1566, 4294901760
        %v1568 = vsub.f32 %v1566, %v1567
        %v1569 = vand.u32 %v1568, 4294901760
        %1570 = vmatpush1.msra.mxu0 %v1569
        %v1571 = vand.u32 %v497, 4294901760
        %v1572 = vsub.f32 %v497, %v1571
        %v1573 = vand.u32 %v1572, 4294901760
        %v1574 = vsub.f32 %v1572, %v1573
        %v1575 = vand.u32 %v1574, 4294901760
        %1576 = vmatprep.subr.mxu0 %v1575
        %v1577 = vand.u32 %v496, 4294901760
        %v1578 = vsub.f32 %v496, %v1577
        %v1579 = vand.u32 %v1578, 4294901760
        %v1580 = vsub.f32 %v1578, %v1579
        %v1581 = vand.u32 %v1580, 4294901760
        %1582 = vmatpush1.msra.mxu0 %v1581
        %v1583 = vand.u32 %v503, 4294901760
        %v1584 = vsub.f32 %v503, %v1583
        %v1585 = vand.u32 %v1584, 4294901760
        %v1586 = vsub.f32 %v1584, %v1585
        %v1587 = vand.u32 %v1586, 4294901760
        %1588 = vmatprep.subr.mxu0 %v1587
        %v1589 = vand.u32 %v502, 4294901760
        %v1590 = vsub.f32 %v502, %v1589
        %v1591 = vand.u32 %v1590, 4294901760
        %v1592 = vsub.f32 %v1590, %v1591
        %v1593 = vand.u32 %v1592, 4294901760
        %1594 = vmatpush1.msra.mxu0 %v1593
        %v1595 = vand.u32 %v509, 4294901760
        %v1596 = vsub.f32 %v509, %v1595
        %v1597 = vand.u32 %v1596, 4294901760
        %v1598 = vsub.f32 %v1596, %v1597
        %v1599 = vand.u32 %v1598, 4294901760
        %1600 = vmatprep.subr.mxu0 %v1599
        %v1601 = vand.u32 %v508, 4294901760
        %v1602 = vsub.f32 %v508, %v1601
        %v1603 = vand.u32 %v1602, 4294901760
        %v1604 = vsub.f32 %v1602, %v1603
        %v1605 = vand.u32 %v1604, 4294901760
        %1606 = vmatpush1.msra.mxu0 %v1605
        %v1607 = vand.u32 %v515, 4294901760
        %v1608 = vsub.f32 %v515, %v1607
        %v1609 = vand.u32 %v1608, 4294901760
        %v1610 = vsub.f32 %v1608, %v1609
        %v1611 = vand.u32 %v1610, 4294901760
        %1612 = vmatprep.subr.mxu0 %v1611
        %v1613 = vand.u32 %v514, 4294901760
        %v1614 = vsub.f32 %v514, %v1613
        %v1615 = vand.u32 %v1614, 4294901760
        %v1616 = vsub.f32 %v1614, %v1615
        %v1617 = vand.u32 %v1616, 4294901760
        %1618 = vmatpush1.msra.mxu0 %v1617
        %v1619 = vand.u32 %v521, 4294901760
        %v1620 = vsub.f32 %v521, %v1619
        %v1621 = vand.u32 %v1620, 4294901760
        %v1622 = vsub.f32 %v1620, %v1621
        %v1623 = vand.u32 %v1622, 4294901760
        %1624 = vmatprep.subr.mxu0 %v1623
        %v1625 = vand.u32 %v520, 4294901760
        %v1626 = vsub.f32 %v520, %v1625
        %v1627 = vand.u32 %v1626, 4294901760
        %v1628 = vsub.f32 %v1626, %v1627
        %v1629 = vand.u32 %v1628, 4294901760
        %1630 = vmatpush1.msra.mxu0 %v1629
        %v1631 = vand.u32 %v527, 4294901760
        %v1632 = vsub.f32 %v527, %v1631
        %v1633 = vand.u32 %v1632, 4294901760
        %v1634 = vsub.f32 %v1632, %v1633
        %v1635 = vand.u32 %v1634, 4294901760
        %1636 = vmatprep.subr.mxu0 %v1635
        %v1637 = vand.u32 %v526, 4294901760
        %v1638 = vsub.f32 %v526, %v1637
        %v1639 = vand.u32 %v1638, 4294901760
        %v1640 = vsub.f32 %v1638, %v1639
        %v1641 = vand.u32 %v1640, 4294901760
        %1642 = vmatpush1.msra.mxu0 %v1641
        %v1643 = vand.u32 %v533, 4294901760
        %v1644 = vsub.f32 %v533, %v1643
        %v1645 = vand.u32 %v1644, 4294901760
        %v1646 = vsub.f32 %v1644, %v1645
        %v1647 = vand.u32 %v1646, 4294901760
        %1648 = vmatprep.subr.mxu0 %v1647
        %v1649 = vand.u32 %v532, 4294901760
        %v1650 = vsub.f32 %v532, %v1649
        %v1651 = vand.u32 %v1650, 4294901760
        %v1652 = vsub.f32 %v1650, %v1651
        %v1653 = vand.u32 %v1652, 4294901760
        %1654 = vmatpush1.msra.mxu0 %v1653
        %v1655 = vand.u32 %v539, 4294901760
        %v1656 = vsub.f32 %v539, %v1655
        %v1657 = vand.u32 %v1656, 4294901760
        %v1658 = vsub.f32 %v1656, %v1657
        %v1659 = vand.u32 %v1658, 4294901760
        %1660 = vmatprep.subr.mxu0 %v1659
        %v1661 = vand.u32 %v538, 4294901760
        %v1662 = vsub.f32 %v538, %v1661
        %v1663 = vand.u32 %v1662, 4294901760
        %v1664 = vsub.f32 %v1662, %v1663
        %v1665 = vand.u32 %v1664, 4294901760
        %1666 = vmatpush1.msra.mxu0 %v1665
        %v1667 = vand.u32 %v545, 4294901760
        %v1668 = vsub.f32 %v545, %v1667
        %v1669 = vand.u32 %v1668, 4294901760
        %v1670 = vsub.f32 %v1668, %v1669
        %v1671 = vand.u32 %v1670, 4294901760
        %1672 = vmatprep.subr.mxu0 %v1671
        %v1673 = vand.u32 %v544, 4294901760
        %v1674 = vsub.f32 %v544, %v1673
        %v1675 = vand.u32 %v1674, 4294901760
        %v1676 = vsub.f32 %v1674, %v1675
        %v1677 = vand.u32 %v1676, 4294901760
        %1678 = vmatpush1.msra.mxu0 %v1677
        %v1679 = vand.u32 %v551, 4294901760
        %v1680 = vsub.f32 %v551, %v1679
        %v1681 = vand.u32 %v1680, 4294901760
        %v1682 = vsub.f32 %v1680, %v1681
        %v1683 = vand.u32 %v1682, 4294901760
        %1684 = vmatprep.subr.mxu0 %v1683
        %v1685 = vand.u32 %v550, 4294901760
        %v1686 = vsub.f32 %v550, %v1685
        %v1687 = vand.u32 %v1686, 4294901760
        %v1688 = vsub.f32 %v1686, %v1687
        %v1689 = vand.u32 %v1688, 4294901760
        %1690 = vmatpush1.msra.mxu0 %v1689
        %v1691 = vand.u32 %v557, 4294901760
        %v1692 = vsub.f32 %v557, %v1691
        %v1693 = vand.u32 %v1692, 4294901760
        %v1694 = vsub.f32 %v1692, %v1693
        %v1695 = vand.u32 %v1694, 4294901760
        %1696 = vmatprep.subr.mxu0 %v1695
        %v1697 = vand.u32 %v556, 4294901760
        %v1698 = vsub.f32 %v556, %v1697
        %v1699 = vand.u32 %v1698, 4294901760
        %v1700 = vsub.f32 %v1698, %v1699
        %v1701 = vand.u32 %v1700, 4294901760
        %1702 = vmatpush1.msra.mxu0 %v1701
        %v1703 = vand.u32 %v563, 4294901760
        %v1704 = vsub.f32 %v563, %v1703
        %v1705 = vand.u32 %v1704, 4294901760
        %v1706 = vsub.f32 %v1704, %v1705
        %v1707 = vand.u32 %v1706, 4294901760
        %1708 = vmatprep.subr.mxu0 %v1707
        %v1709 = vand.u32 %v562, 4294901760
        %v1710 = vsub.f32 %v562, %v1709
        %v1711 = vand.u32 %v1710, 4294901760
        %v1712 = vsub.f32 %v1710, %v1711
        %v1713 = vand.u32 %v1712, 4294901760
        %1714 = vmatpush1.msra.mxu0 %v1713
        %v1715 = vand.u32 %v569, 4294901760
        %v1716 = vsub.f32 %v569, %v1715
        %v1717 = vand.u32 %v1716, 4294901760
        %v1718 = vsub.f32 %v1716, %v1717
        %v1719 = vand.u32 %v1718, 4294901760
        %1720 = vmatprep.subr.mxu0 %v1719
        %v1721 = vand.u32 %v568, 4294901760
        %v1722 = vsub.f32 %v568, %v1721
        %v1723 = vand.u32 %v1722, 4294901760
        %v1724 = vsub.f32 %v1722, %v1723
        %v1725 = vand.u32 %v1724, 4294901760
        %1726 = vmatpush1.msra.mxu0 %v1725
        %1727 = vmatprep.subr.mxu0 0.0
        %1728 = vmatpush1.msra.mxu0 0.0
        %1729 = vmatprep.subr.mxu0 0.0
        %1730 = vmatpush1.msra.mxu0 0.0
        %1731 = vmatprep.subr.mxu0 0.0
        %1732 = vmatpush1.msra.mxu0 0.0
        %1733 = vmatprep.subr.mxu0 0.0
        %1734 = vmatpush1.msra.mxu0 0.0
        %1735 = vmatprep.subr.mxu0 0.0
        %1736 = vmatpush1.msra.mxu0 0.0
        %1737 = vmatprep.subr.mxu0 0.0
        %1738 = vmatpush1.msra.mxu0 0.0
        %1739 = vmatprep.subr.mxu0 0.0
        %1740 = vmatpush1.msra.mxu0 0.0
        %1741 = vmatprep.subr.mxu0 0.0
        %1742 = vmatpush1.msra.mxu0 0.0
        %1743 = vmatprep.subr.mxu0 0.0
        %1744 = vmatpush1.msra.mxu0 0.0
        %1745 = vmatprep.subr.mxu0 0.0
        %1746 = vmatpush1.msra.mxu0 0.0
        %1747 = vmatprep.subr.mxu0 0.0
        %1748 = vmatpush1.msra.mxu0 0.0
        %1749 = vmatprep.subr.mxu0 0.0
        %1750 = vmatpush1.msra.mxu0 0.0
        %1751 = vmatprep.subr.mxu0 0.0
        %1752 = vmatpush1.msra.mxu0 0.0
        %1753 = vmatprep.subr.mxu0 0.0
        %1754 = vmatpush1.msra.mxu0 0.0
        %1755 = vmatprep.subr.mxu0 0.0
        %1756 = vmatpush1.msra.mxu0 0.0
        %1757 = vmatprep.subr.mxu0 0.0
        %1758 = vmatpush1.msra.mxu0 0.0
        %1759 = vmatprep.mubr.f32.mxu0 0.0
        %v1760 = vand.u32 %v475, 4294901760
        %1761 = vmatmul.mubr.f32.gmra.mrb[0].mxu0 %v1760
        %v1762 = vpop.f32.mrb[0].mxu0
        %v1763 = vadd.f32 %v1531, %v1762
        %v1764 = vpop.f32.mrb[0].mxu0
        %v1765 = vadd.f32 %v1533, %v1764
        %1766 = vdwg.mxu0
        %v1767 = vand.u32 %v479, 4294901760
        %v1768 = vsub.f32 %v479, %v1767
        %1769 = vmatprep.subr.mxu0 %v1768
        %v1770 = vand.u32 %v478, 4294901760
        %v1771 = vsub.f32 %v478, %v1770
        %1772 = vmatpush1.msra.mxu0 %v1771
        %v1773 = vand.u32 %v485, 4294901760
        %v1774 = vsub.f32 %v485, %v1773
        %1775 = vmatprep.subr.mxu0 %v1774
        %v1776 = vand.u32 %v484, 4294901760
        %v1777 = vsub.f32 %v484, %v1776
        %1778 = vmatpush1.msra.mxu0 %v1777
        %v1779 = vand.u32 %v491, 4294901760
        %v1780 = vsub.f32 %v491, %v1779
        %1781 = vmatprep.subr.mxu0 %v1780
        %v1782 = vand.u32 %v490, 4294901760
        %v1783 = vsub.f32 %v490, %v1782
        %1784 = vmatpush1.msra.mxu0 %v1783
        %v1785 = vand.u32 %v497, 4294901760
        %v1786 = vsub.f32 %v497, %v1785
        %1787 = vmatprep.subr.mxu0 %v1786
        %v1788 = vand.u32 %v496, 4294901760
        %v1789 = vsub.f32 %v496, %v1788
        %1790 = vmatpush1.msra.mxu0 %v1789
        %v1791 = vand.u32 %v503, 4294901760
        %v1792 = vsub.f32 %v503, %v1791
        %1793 = vmatprep.subr.mxu0 %v1792
        %v1794 = vand.u32 %v502, 4294901760
        %v1795 = vsub.f32 %v502, %v1794
        %1796 = vmatpush1.msra.mxu0 %v1795
        %v1797 = vand.u32 %v509, 4294901760
        %v1798 = vsub.f32 %v509, %v1797
        %1799 = vmatprep.subr.mxu0 %v1798
        %v1800 = vand.u32 %v508, 4294901760
        %v1801 = vsub.f32 %v508, %v1800
        %1802 = vmatpush1.msra.mxu0 %v1801
        %v1803 = vand.u32 %v515, 4294901760
        %v1804 = vsub.f32 %v515, %v1803
        %1805 = vmatprep.subr.mxu0 %v1804
        %v1806 = vand.u32 %v514, 4294901760
        %v1807 = vsub.f32 %v514, %v1806
        %1808 = vmatpush1.msra.mxu0 %v1807
        %v1809 = vand.u32 %v521, 4294901760
        %v1810 = vsub.f32 %v521, %v1809
        %1811 = vmatprep.subr.mxu0 %v1810
        %v1812 = vand.u32 %v520, 4294901760
        %v1813 = vsub.f32 %v520, %v1812
        %1814 = vmatpush1.msra.mxu0 %v1813
        %v1815 = vand.u32 %v527, 4294901760
        %v1816 = vsub.f32 %v527, %v1815
        %1817 = vmatprep.subr.mxu0 %v1816
        %v1818 = vand.u32 %v526, 4294901760
        %v1819 = vsub.f32 %v526, %v1818
        %1820 = vmatpush1.msra.mxu0 %v1819
        %v1821 = vand.u32 %v533, 4294901760
        %v1822 = vsub.f32 %v533, %v1821
        %1823 = vmatprep.subr.mxu0 %v1822
        %v1824 = vand.u32 %v532, 4294901760
        %v1825 = vsub.f32 %v532, %v1824
        %1826 = vmatpush1.msra.mxu0 %v1825
        %v1827 = vand.u32 %v539, 4294901760
        %v1828 = vsub.f32 %v539, %v1827
        %1829 = vmatprep.subr.mxu0 %v1828
        %v1830 = vand.u32 %v538, 4294901760
        %v1831 = vsub.f32 %v538, %v1830
        %1832 = vmatpush1.msra.mxu0 %v1831
        %v1833 = vand.u32 %v545, 4294901760
        %v1834 = vsub.f32 %v545, %v1833
        %1835 = vmatprep.subr.mxu0 %v1834
        %v1836 = vand.u32 %v544, 4294901760
        %v1837 = vsub.f32 %v544, %v1836
        %1838 = vmatpush1.msra.mxu0 %v1837
        %v1839 = vand.u32 %v551, 4294901760
        %v1840 = vsub.f32 %v551, %v1839
        %1841 = vmatprep.subr.mxu0 %v1840
        %v1842 = vand.u32 %v550, 4294901760
        %v1843 = vsub.f32 %v550, %v1842
        %1844 = vmatpush1.msra.mxu0 %v1843
        %v1845 = vand.u32 %v557, 4294901760
        %v1846 = vsub.f32 %v557, %v1845
        %1847 = vmatprep.subr.mxu0 %v1846
        %v1848 = vand.u32 %v556, 4294901760
        %v1849 = vsub.f32 %v556, %v1848
        %1850 = vmatpush1.msra.mxu0 %v1849
        %v1851 = vand.u32 %v563, 4294901760
        %v1852 = vsub.f32 %v563, %v1851
        %1853 = vmatprep.subr.mxu0 %v1852
        %v1854 = vand.u32 %v562, 4294901760
        %v1855 = vsub.f32 %v562, %v1854
        %1856 = vmatpush1.msra.mxu0 %v1855
        %v1857 = vand.u32 %v569, 4294901760
        %v1858 = vsub.f32 %v569, %v1857
        %1859 = vmatprep.subr.mxu0 %v1858
        %v1860 = vand.u32 %v568, 4294901760
        %v1861 = vsub.f32 %v568, %v1860
        %1862 = vmatpush1.msra.mxu0 %v1861
        %1863 = vmatprep.subr.mxu0 0.0
        %1864 = vmatpush1.msra.mxu0 0.0
        %1865 = vmatprep.subr.mxu0 0.0
        %1866 = vmatpush1.msra.mxu0 0.0
        %1867 = vmatprep.subr.mxu0 0.0
        %1868 = vmatpush1.msra.mxu0 0.0
        %1869 = vmatprep.subr.mxu0 0.0
        %1870 = vmatpush1.msra.mxu0 0.0
        %1871 = vmatprep.subr.mxu0 0.0
        %1872 = vmatpush1.msra.mxu0 0.0
        %1873 = vmatprep.subr.mxu0 0.0
        %1874 = vmatpush1.msra.mxu0 0.0
        %1875 = vmatprep.subr.mxu0 0.0
        %1876 = vmatpush1.msra.mxu0 0.0
        %1877 = vmatprep.subr.mxu0 0.0
        %1878 = vmatpush1.msra.mxu0 0.0
        %1879 = vmatprep.subr.mxu0 0.0
        %1880 = vmatpush1.msra.mxu0 0.0
        %1881 = vmatprep.subr.mxu0 0.0
        %1882 = vmatpush1.msra.mxu0 0.0
        %1883 = vmatprep.subr.mxu0 0.0
        %1884 = vmatpush1.msra.mxu0 0.0
        %1885 = vmatprep.subr.mxu0 0.0
        %1886 = vmatpush1.msra.mxu0 0.0
        %1887 = vmatprep.subr.mxu0 0.0
        %1888 = vmatpush1.msra.mxu0 0.0
        %1889 = vmatprep.subr.mxu0 0.0
        %1890 = vmatpush1.msra.mxu0 0.0
        %1891 = vmatprep.subr.mxu0 0.0
        %1892 = vmatpush1.msra.mxu0 0.0
        %1893 = vmatprep.subr.mxu0 0.0
        %1894 = vmatpush1.msra.mxu0 0.0
        %1895 = vmatprep.mubr.f32.mxu0 0.0
        %v1896 = vand.u32 %v475, 4294901760
        %v1897 = vsub.f32 %v475, %v1896
        %1898 = vmatmul.mubr.f32.gmra.mrb[0].mxu0 %v1897
        %v1899 = vpop.f32.mrb[0].mxu0
        %v1900 = vadd.f32 %v1763, %v1899
        %v1901 = vpop.f32.mrb[0].mxu0
        %v1902 = vadd.f32 %v1765, %v1901
        %1903 = vdwg.mxu0
        %v1904 = vand.u32 %v479, 4294901760
        %1905 = vmatprep.subr.mxu0 %v1904
        %v1906 = vand.u32 %v478, 4294901760
        %1907 = vmatpush1.msra.mxu0 %v1906
        %v1908 = vand.u32 %v485, 4294901760
        %1909 = vmatprep.subr.mxu0 %v1908
        %v1910 = vand.u32 %v484, 4294901760
        %1911 = vmatpush1.msra.mxu0 %v1910
        %v1912 = vand.u32 %v491, 4294901760
        %1913 = vmatprep.subr.mxu0 %v1912
        %v1914 = vand.u32 %v490, 4294901760
        %1915 = vmatpush1.msra.mxu0 %v1914
        %v1916 = vand.u32 %v497, 4294901760
        %1917 = vmatprep.subr.mxu0 %v1916
        %v1918 = vand.u32 %v496, 4294901760
        %1919 = vmatpush1.msra.mxu0 %v1918
        %v1920 = vand.u32 %v503, 4294901760
        %1921 = vmatprep.subr.mxu0 %v1920
        %v1922 = vand.u32 %v502, 4294901760
        %1923 = vmatpush1.msra.mxu0 %v1922
        %v1924 = vand.u32 %v509, 4294901760
        %1925 = vmatprep.subr.mxu0 %v1924
        %v1926 = vand.u32 %v508, 4294901760
        %1927 = vmatpush1.msra.mxu0 %v1926
        %v1928 = vand.u32 %v515, 4294901760
        %1929 = vmatprep.subr.mxu0 %v1928
        %v1930 = vand.u32 %v514, 4294901760
        %1931 = vmatpush1.msra.mxu0 %v1930
        %v1932 = vand.u32 %v521, 4294901760
        %1933 = vmatprep.subr.mxu0 %v1932
        %v1934 = vand.u32 %v520, 4294901760
        %1935 = vmatpush1.msra.mxu0 %v1934
        %v1936 = vand.u32 %v527, 4294901760
        %1937 = vmatprep.subr.mxu0 %v1936
        %v1938 = vand.u32 %v526, 4294901760
        %1939 = vmatpush1.msra.mxu0 %v1938
        %v1940 = vand.u32 %v533, 4294901760
        %1941 = vmatprep.subr.mxu0 %v1940
        %v1942 = vand.u32 %v532, 4294901760
        %1943 = vmatpush1.msra.mxu0 %v1942
        %v1944 = vand.u32 %v539, 4294901760
        %1945 = vmatprep.subr.mxu0 %v1944
        %v1946 = vand.u32 %v538, 4294901760
        %1947 = vmatpush1.msra.mxu0 %v1946
        %v1948 = vand.u32 %v545, 4294901760
        %1949 = vmatprep.subr.mxu0 %v1948
        %v1950 = vand.u32 %v544, 4294901760
        %1951 = vmatpush1.msra.mxu0 %v1950
        %v1952 = vand.u32 %v551, 4294901760
        %1953 = vmatprep.subr.mxu0 %v1952
        %v1954 = vand.u32 %v550, 4294901760
        %1955 = vmatpush1.msra.mxu0 %v1954
        %v1956 = vand.u32 %v557, 4294901760
        %1957 = vmatprep.subr.mxu0 %v1956
        %v1958 = vand.u32 %v556, 4294901760
        %1959 = vmatpush1.msra.mxu0 %v1958
        %v1960 = vand.u32 %v563, 4294901760
        %1961 = vmatprep.subr.mxu0 %v1960
        %v1962 = vand.u32 %v562, 4294901760
        %1963 = vmatpush1.msra.mxu0 %v1962
        %v1964 = vand.u32 %v569, 4294901760
        %1965 = vmatprep.subr.mxu0 %v1964
        %v1966 = vand.u32 %v568, 4294901760
        %1967 = vmatpush1.msra.mxu0 %v1966
        %1968 = vmatprep.subr.mxu0 0.0
        %1969 = vmatpush1.msra.mxu0 0.0
        %1970 = vmatprep.subr.mxu0 0.0
        %1971 = vmatpush1.msra.mxu0 0.0
        %1972 = vmatprep.subr.mxu0 0.0
        %1973 = vmatpush1.msra.mxu0 0.0
        %1974 = vmatprep.subr.mxu0 0.0
        %1975 = vmatpush1.msra.mxu0 0.0
        %1976 = vmatprep.subr.mxu0 0.0
        %1977 = vmatpush1.msra.mxu0 0.0
        %1978 = vmatprep.subr.mxu0 0.0
        %1979 = vmatpush1.msra.mxu0 0.0
        %1980 = vmatprep.subr.mxu0 0.0
        %1981 = vmatpush1.msra.mxu0 0.0
        %1982 = vmatprep.subr.mxu0 0.0
        %1983 = vmatpush1.msra.mxu0 0.0
        %1984 = vmatprep.subr.mxu0 0.0
        %1985 = vmatpush1.msra.mxu0 0.0
        %1986 = vmatprep.subr.mxu0 0.0
        %1987 = vmatpush1.msra.mxu0 0.0
        %1988 = vmatprep.subr.mxu0 0.0
        %1989 = vmatpush1.msra.mxu0 0.0
        %1990 = vmatprep.subr.mxu0 0.0
        %1991 = vmatpush1.msra.mxu0 0.0
        %1992 = vmatprep.subr.mxu0 0.0
        %1993 = vmatpush1.msra.mxu0 0.0
        %1994 = vmatprep.subr.mxu0 0.0
        %1995 = vmatpush1.msra.mxu0 0.0
        %1996 = vmatprep.subr.mxu0 0.0
        %1997 = vmatpush1.msra.mxu0 0.0
        %1998 = vmatprep.subr.mxu0 0.0
        %1999 = vmatpush1.msra.mxu0 0.0
        %2000 = vmatprep.mubr.f32.mxu0 0.0
        %v2001 = vand.u32 %v475, 4294901760
        %v2002 = vsub.f32 %v475, %v2001
        %v2003 = vand.u32 %v2002, 4294901760
        %2004 = vmatmul.mubr.f32.gmra.mrb[0].mxu0 %v2003
        %v2005 = vpop.f32.mrb[0].mxu0
        %v2006 = vadd.f32 %v1900, %v2005
        %v2007 = vpop.f32.mrb[0].mxu0
        %v2008 = vadd.f32 %v1902, %v2007
        %2009 = vdwg.mxu0
        %v2010 = vand.u32 %v479, 4294901760
        %v2011 = vsub.f32 %v479, %v2010
        %v2012 = vand.u32 %v2011, 4294901760
        %2013 = vmatprep.subr.mxu0 %v2012
        %v2014 = vand.u32 %v478, 4294901760
        %v2015 = vsub.f32 %v478, %v2014
        %v2016 = vand.u32 %v2015, 4294901760
        %2017 = vmatpush1.msra.mxu0 %v2016
        %v2018 = vand.u32 %v485, 4294901760
        %v2019 = vsub.f32 %v485, %v2018
        %v2020 = vand.u32 %v2019, 4294901760
        %2021 = vmatprep.subr.mxu0 %v2020
        %v2022 = vand.u32 %v484, 4294901760
        %v2023 = vsub.f32 %v484, %v2022
        %v2024 = vand.u32 %v2023, 4294901760
        %2025 = vmatpush1.msra.mxu0 %v2024
        %v2026 = vand.u32 %v491, 4294901760
        %v2027 = vsub.f32 %v491, %v2026
        %v2028 = vand.u32 %v2027, 4294901760
        %2029 = vmatprep.subr.mxu0 %v2028
        %v2030 = vand.u32 %v490, 4294901760
        %v2031 = vsub.f32 %v490, %v2030
        %v2032 = vand.u32 %v2031, 4294901760
        %2033 = vmatpush1.msra.mxu0 %v2032
        %v2034 = vand.u32 %v497, 4294901760
        %v2035 = vsub.f32 %v497, %v2034
        %v2036 = vand.u32 %v2035, 4294901760
        %2037 = vmatprep.subr.mxu0 %v2036
        %v2038 = vand.u32 %v496, 4294901760
        %v2039 = vsub.f32 %v496, %v2038
        %v2040 = vand.u32 %v2039, 4294901760
        %2041 = vmatpush1.msra.mxu0 %v2040
        %v2042 = vand.u32 %v503, 4294901760
        %v2043 = vsub.f32 %v503, %v2042
        %v2044 = vand.u32 %v2043, 4294901760
        %2045 = vmatprep.subr.mxu0 %v2044
        %v2046 = vand.u32 %v502, 4294901760
        %v2047 = vsub.f32 %v502, %v2046
        %v2048 = vand.u32 %v2047, 4294901760
        %2049 = vmatpush1.msra.mxu0 %v2048
        %v2050 = vand.u32 %v509, 4294901760
        %v2051 = vsub.f32 %v509, %v2050
        %v2052 = vand.u32 %v2051, 4294901760
        %2053 = vmatprep.subr.mxu0 %v2052
        %v2054 = vand.u32 %v508, 4294901760
        %v2055 = vsub.f32 %v508, %v2054
        %v2056 = vand.u32 %v2055, 4294901760
        %2057 = vmatpush1.msra.mxu0 %v2056
        %v2058 = vand.u32 %v515, 4294901760
        %v2059 = vsub.f32 %v515, %v2058
        %v2060 = vand.u32 %v2059, 4294901760
        %2061 = vmatprep.subr.mxu0 %v2060
        %v2062 = vand.u32 %v514, 4294901760
        %v2063 = vsub.f32 %v514, %v2062
        %v2064 = vand.u32 %v2063, 4294901760
        %2065 = vmatpush1.msra.mxu0 %v2064
        %v2066 = vand.u32 %v521, 4294901760
        %v2067 = vsub.f32 %v521, %v2066
        %v2068 = vand.u32 %v2067, 4294901760
        %2069 = vmatprep.subr.mxu0 %v2068
        %v2070 = vand.u32 %v520, 4294901760
        %v2071 = vsub.f32 %v520, %v2070
        %v2072 = vand.u32 %v2071, 4294901760
        %2073 = vmatpush1.msra.mxu0 %v2072
        %v2074 = vand.u32 %v527, 4294901760
        %v2075 = vsub.f32 %v527, %v2074
        %v2076 = vand.u32 %v2075, 4294901760
        %2077 = vmatprep.subr.mxu0 %v2076
        %v2078 = vand.u32 %v526, 4294901760
        %v2079 = vsub.f32 %v526, %v2078
        %v2080 = vand.u32 %v2079, 4294901760
        %2081 = vmatpush1.msra.mxu0 %v2080
        %v2082 = vand.u32 %v533, 4294901760
        %v2083 = vsub.f32 %v533, %v2082
        %v2084 = vand.u32 %v2083, 4294901760
        %2085 = vmatprep.subr.mxu0 %v2084
        %v2086 = vand.u32 %v532, 4294901760
        %v2087 = vsub.f32 %v532, %v2086
        %v2088 = vand.u32 %v2087, 4294901760
        %2089 = vmatpush1.msra.mxu0 %v2088
        %v2090 = vand.u32 %v539, 4294901760
        %v2091 = vsub.f32 %v539, %v2090
        %v2092 = vand.u32 %v2091, 4294901760
        %2093 = vmatprep.subr.mxu0 %v2092
        %v2094 = vand.u32 %v538, 4294901760
        %v2095 = vsub.f32 %v538, %v2094
        %v2096 = vand.u32 %v2095, 4294901760
        %2097 = vmatpush1.msra.mxu0 %v2096
        %v2098 = vand.u32 %v545, 4294901760
        %v2099 = vsub.f32 %v545, %v2098
        %v2100 = vand.u32 %v2099, 4294901760
        %2101 = vmatprep.subr.mxu0 %v2100
        %v2102 = vand.u32 %v544, 4294901760
        %v2103 = vsub.f32 %v544, %v2102
        %v2104 = vand.u32 %v2103, 4294901760
        %2105 = vmatpush1.msra.mxu0 %v2104
        %v2106 = vand.u32 %v551, 4294901760
        %v2107 = vsub.f32 %v551, %v2106
        %v2108 = vand.u32 %v2107, 4294901760
        %2109 = vmatprep.subr.mxu0 %v2108
        %v2110 = vand.u32 %v550, 4294901760
        %v2111 = vsub.f32 %v550, %v2110
        %v2112 = vand.u32 %v2111, 4294901760
        %2113 = vmatpush1.msra.mxu0 %v2112
        %v2114 = vand.u32 %v557, 4294901760
        %v2115 = vsub.f32 %v557, %v2114
        %v2116 = vand.u32 %v2115, 4294901760
        %2117 = vmatprep.subr.mxu0 %v2116
        %v2118 = vand.u32 %v556, 4294901760
        %v2119 = vsub.f32 %v556, %v2118
        %v2120 = vand.u32 %v2119, 4294901760
        %2121 = vmatpush1.msra.mxu0 %v2120
        %v2122 = vand.u32 %v563, 4294901760
        %v2123 = vsub.f32 %v563, %v2122
        %v2124 = vand.u32 %v2123, 4294901760
        %2125 = vmatprep.subr.mxu0 %v2124
        %v2126 = vand.u32 %v562, 4294901760
        %v2127 = vsub.f32 %v562, %v2126
        %v2128 = vand.u32 %v2127, 4294901760
        %2129 = vmatpush1.msra.mxu0 %v2128
        %v2130 = vand.u32 %v569, 4294901760
        %v2131 = vsub.f32 %v569, %v2130
        %v2132 = vand.u32 %v2131, 4294901760
        %2133 = vmatprep.subr.mxu0 %v2132
        %v2134 = vand.u32 %v568, 4294901760
        %v2135 = vsub.f32 %v568, %v2134
        %v2136 = vand.u32 %v2135, 4294901760
        %2137 = vmatpush1.msra.mxu0 %v2136
        %2138 = vmatprep.subr.mxu0 0.0
        %2139 = vmatpush1.msra.mxu0 0.0
        %2140 = vmatprep.subr.mxu0 0.0
        %2141 = vmatpush1.msra.mxu0 0.0
        %2142 = vmatprep.subr.mxu0 0.0
        %2143 = vmatpush1.msra.mxu0 0.0
        %2144 = vmatprep.subr.mxu0 0.0
        %2145 = vmatpush1.msra.mxu0 0.0
        %2146 = vmatprep.subr.mxu0 0.0
        %2147 = vmatpush1.msra.mxu0 0.0
        %2148 = vmatprep.subr.mxu0 0.0
        %2149 = vmatpush1.msra.mxu0 0.0
        %2150 = vmatprep.subr.mxu0 0.0
        %2151 = vmatpush1.msra.mxu0 0.0
        %2152 = vmatprep.subr.mxu0 0.0
        %2153 = vmatpush1.msra.mxu0 0.0
        %2154 = vmatprep.subr.mxu0 0.0
        %2155 = vmatpush1.msra.mxu0 0.0
        %2156 = vmatprep.subr.mxu0 0.0
        %2157 = vmatpush1.msra.mxu0 0.0
        %2158 = vmatprep.subr.mxu0 0.0
        %2159 = vmatpush1.msra.mxu0 0.0
        %2160 = vmatprep.subr.mxu0 0.0
        %2161 = vmatpush1.msra.mxu0 0.0
        %2162 = vmatprep.subr.mxu0 0.0
        %2163 = vmatpush1.msra.mxu0 0.0
        %2164 = vmatprep.subr.mxu0 0.0
        %2165 = vmatpush1.msra.mxu0 0.0
        %2166 = vmatprep.subr.mxu0 0.0
        %2167 = vmatpush1.msra.mxu0 0.0
        %2168 = vmatprep.subr.mxu0 0.0
        %2169 = vmatpush1.msra.mxu0 0.0
        %2170 = vmatprep.mubr.f32.mxu0 0.0
        %v2171 = vand.u32 %v475, 4294901760
        %2172 = vmatmul.mubr.f32.gmra.mrb[0].mxu0 %v2171
        %v2173 = vpop.f32.mrb[0].mxu0
        %v2174 = vadd.f32 %v2006, %v2173
        %v2175 = vpop.f32.mrb[0].mxu0
        %v2176 = vadd.f32 %v2008, %v2175
        %2177 = vdwg.mxu0
        %v2178 = vand.u32 %v479, 4294901760
        %2179 = vmatprep.subr.mxu0 %v2178
        %v2180 = vand.u32 %v478, 4294901760
        %2181 = vmatpush1.msra.mxu0 %v2180
        %v2182 = vand.u32 %v485, 4294901760
        %2183 = vmatprep.subr.mxu0 %v2182
        %v2184 = vand.u32 %v484, 4294901760
        %2185 = vmatpush1.msra.mxu0 %v2184
        %v2186 = vand.u32 %v491, 4294901760
        %2187 = vmatprep.subr.mxu0 %v2186
        %v2188 = vand.u32 %v490, 4294901760
        %2189 = vmatpush1.msra.mxu0 %v2188
        %v2190 = vand.u32 %v497, 4294901760
        %2191 = vmatprep.subr.mxu0 %v2190
        %v2192 = vand.u32 %v496, 4294901760
        %2193 = vmatpush1.msra.mxu0 %v2192
        %v2194 = vand.u32 %v503, 4294901760
        %2195 = vmatprep.subr.mxu0 %v2194
        %v2196 = vand.u32 %v502, 4294901760
        %2197 = vmatpush1.msra.mxu0 %v2196
        %v2198 = vand.u32 %v509, 4294901760
        %2199 = vmatprep.subr.mxu0 %v2198
        %v2200 = vand.u32 %v508, 4294901760
        %2201 = vmatpush1.msra.mxu0 %v2200
        %v2202 = vand.u32 %v515, 4294901760
        %2203 = vmatprep.subr.mxu0 %v2202
        %v2204 = vand.u32 %v514, 4294901760
        %2205 = vmatpush1.msra.mxu0 %v2204
        %v2206 = vand.u32 %v521, 4294901760
        %2207 = vmatprep.subr.mxu0 %v2206
        %v2208 = vand.u32 %v520, 4294901760
        %2209 = vmatpush1.msra.mxu0 %v2208
        %v2210 = vand.u32 %v527, 4294901760
        %2211 = vmatprep.subr.mxu0 %v2210
        %v2212 = vand.u32 %v526, 4294901760
        %2213 = vmatpush1.msra.mxu0 %v2212
        %v2214 = vand.u32 %v533, 4294901760
        %2215 = vmatprep.subr.mxu0 %v2214
        %v2216 = vand.u32 %v532, 4294901760
        %2217 = vmatpush1.msra.mxu0 %v2216
        %v2218 = vand.u32 %v539, 4294901760
        %2219 = vmatprep.subr.mxu0 %v2218
        %v2220 = vand.u32 %v538, 4294901760
        %2221 = vmatpush1.msra.mxu0 %v2220
        %v2222 = vand.u32 %v545, 4294901760
        %2223 = vmatprep.subr.mxu0 %v2222
        %v2224 = vand.u32 %v544, 4294901760
        %2225 = vmatpush1.msra.mxu0 %v2224
        %v2226 = vand.u32 %v551, 4294901760
        %2227 = vmatprep.subr.mxu0 %v2226
        %v2228 = vand.u32 %v550, 4294901760
        %2229 = vmatpush1.msra.mxu0 %v2228
        %v2230 = vand.u32 %v557, 4294901760
        %2231 = vmatprep.subr.mxu0 %v2230
        %v2232 = vand.u32 %v556, 4294901760
        %2233 = vmatpush1.msra.mxu0 %v2232
        %v2234 = vand.u32 %v563, 4294901760
        %2235 = vmatprep.subr.mxu0 %v2234
        %v2236 = vand.u32 %v562, 4294901760
        %2237 = vmatpush1.msra.mxu0 %v2236
        %v2238 = vand.u32 %v569, 4294901760
        %2239 = vmatprep.subr.mxu0 %v2238
        %v2240 = vand.u32 %v568, 4294901760
        %2241 = vmatpush1.msra.mxu0 %v2240
        %2242 = vmatprep.subr.mxu0 0.0
        %2243 = vmatpush1.msra.mxu0 0.0
        %2244 = vmatprep.subr.mxu0 0.0
        %2245 = vmatpush1.msra.mxu0 0.0
        %2246 = vmatprep.subr.mxu0 0.0
        %2247 = vmatpush1.msra.mxu0 0.0
        %2248 = vmatprep.subr.mxu0 0.0
        %2249 = vmatpush1.msra.mxu0 0.0
        %2250 = vmatprep.subr.mxu0 0.0
        %2251 = vmatpush1.msra.mxu0 0.0
        %2252 = vmatprep.subr.mxu0 0.0
        %2253 = vmatpush1.msra.mxu0 0.0
        %2254 = vmatprep.subr.mxu0 0.0
        %2255 = vmatpush1.msra.mxu0 0.0
        %2256 = vmatprep.subr.mxu0 0.0
        %2257 = vmatpush1.msra.mxu0 0.0
        %2258 = vmatprep.subr.mxu0 0.0
        %2259 = vmatpush1.msra.mxu0 0.0
        %2260 = vmatprep.subr.mxu0 0.0
        %2261 = vmatpush1.msra.mxu0 0.0
        %2262 = vmatprep.subr.mxu0 0.0
        %2263 = vmatpush1.msra.mxu0 0.0
        %2264 = vmatprep.subr.mxu0 0.0
        %2265 = vmatpush1.msra.mxu0 0.0
        %2266 = vmatprep.subr.mxu0 0.0
        %2267 = vmatpush1.msra.mxu0 0.0
        %2268 = vmatprep.subr.mxu0 0.0
        %2269 = vmatpush1.msra.mxu0 0.0
        %2270 = vmatprep.subr.mxu0 0.0
        %2271 = vmatpush1.msra.mxu0 0.0
        %2272 = vmatprep.subr.mxu0 0.0
        %2273 = vmatpush1.msra.mxu0 0.0
        %2274 = vmatprep.mubr.f32.mxu0 0.0
        %v2275 = vand.u32 %v475, 4294901760
        %2276 = vmatmul.mubr.f32.gmra.mrb[0].mxu0 %v2275
        %v2277 = vpop.f32.mrb[0].mxu0
        %v2278 = vadd.f32 %v2174, %v2277
        %v2279 = vpop.f32.mrb[0].mxu0
        %v2280 = vadd.f32 %v2176, %v2279
        %2281 = vdwg.mxu0
        %v2282 = vand.u32 %v481, 4294901760
        %2283 = vmatprep.subr.mxu0 %v2282
        %v2284 = vand.u32 %v480, 4294901760
        %2285 = vmatpush1.msra.mxu0 %v2284
        %v2286 = vand.u32 %v487, 4294901760
        %2287 = vmatprep.subr.mxu0 %v2286
        %v2288 = vand.u32 %v486, 4294901760
        %2289 = vmatpush1.msra.mxu0 %v2288
        %v2290 = vand.u32 %v493, 4294901760
        %2291 = vmatprep.subr.mxu0 %v2290
        %v2292 = vand.u32 %v492, 4294901760
        %2293 = vmatpush1.msra.mxu0 %v2292
        %v2294 = vand.u32 %v499, 4294901760
        %2295 = vmatprep.subr.mxu0 %v2294
        %v2296 = vand.u32 %v498, 4294901760
        %2297 = vmatpush1.msra.mxu0 %v2296
        %v2298 = vand.u32 %v505, 4294901760
        %2299 = vmatprep.subr.mxu0 %v2298
        %v2300 = vand.u32 %v504, 4294901760
        %2301 = vmatpush1.msra.mxu0 %v2300
        %v2302 = vand.u32 %v511, 4294901760
        %2303 = vmatprep.subr.mxu0 %v2302
        %v2304 = vand.u32 %v510, 4294901760
        %2305 = vmatpush1.msra.mxu0 %v2304
        %v2306 = vand.u32 %v517, 4294901760
        %2307 = vmatprep.subr.mxu0 %v2306
        %v2308 = vand.u32 %v516, 4294901760
        %2309 = vmatpush1.msra.mxu0 %v2308
        %v2310 = vand.u32 %v523, 4294901760
        %2311 = vmatprep.subr.mxu0 %v2310
        %v2312 = vand.u32 %v522, 4294901760
        %2313 = vmatpush1.msra.mxu0 %v2312
        %v2314 = vand.u32 %v529, 4294901760
        %2315 = vmatprep.subr.mxu0 %v2314
        %v2316 = vand.u32 %v528, 4294901760
        %2317 = vmatpush1.msra.mxu0 %v2316
        %v2318 = vand.u32 %v535, 4294901760
        %2319 = vmatprep.subr.mxu0 %v2318
        %v2320 = vand.u32 %v534, 4294901760
        %2321 = vmatpush1.msra.mxu0 %v2320
        %v2322 = vand.u32 %v541, 4294901760
        %2323 = vmatprep.subr.mxu0 %v2322
        %v2324 = vand.u32 %v540, 4294901760
        %2325 = vmatpush1.msra.mxu0 %v2324
        %v2326 = vand.u32 %v547, 4294901760
        %2327 = vmatprep.subr.mxu0 %v2326
        %v2328 = vand.u32 %v546, 4294901760
        %2329 = vmatpush1.msra.mxu0 %v2328
        %v2330 = vand.u32 %v553, 4294901760
        %2331 = vmatprep.subr.mxu0 %v2330
        %v2332 = vand.u32 %v552, 4294901760
        %2333 = vmatpush1.msra.mxu0 %v2332
        %v2334 = vand.u32 %v559, 4294901760
        %2335 = vmatprep.subr.mxu0 %v2334
        %v2336 = vand.u32 %v558, 4294901760
        %2337 = vmatpush1.msra.mxu0 %v2336
        %v2338 = vand.u32 %v565, 4294901760
        %2339 = vmatprep.subr.mxu0 %v2338
        %v2340 = vand.u32 %v564, 4294901760
        %2341 = vmatpush1.msra.mxu0 %v2340
        %v2342 = vand.u32 %v571, 4294901760
        %2343 = vmatprep.subr.mxu0 %v2342
        %v2344 = vand.u32 %v570, 4294901760
        %2345 = vmatpush1.msra.mxu0 %v2344
        %2346 = vmatprep.subr.mxu0 0.0
        %2347 = vmatpush1.msra.mxu0 0.0
        %2348 = vmatprep.subr.mxu0 0.0
        %2349 = vmatpush1.msra.mxu0 0.0
        %2350 = vmatprep.subr.mxu0 0.0
        %2351 = vmatpush1.msra.mxu0 0.0
        %2352 = vmatprep.subr.mxu0 0.0
        %2353 = vmatpush1.msra.mxu0 0.0
        %2354 = vmatprep.subr.mxu0 0.0
        %2355 = vmatpush1.msra.mxu0 0.0
        %2356 = vmatprep.subr.mxu0 0.0
        %2357 = vmatpush1.msra.mxu0 0.0
        %2358 = vmatprep.subr.mxu0 0.0
        %2359 = vmatpush1.msra.mxu0 0.0
        %2360 = vmatprep.subr.mxu0 0.0
        %2361 = vmatpush1.msra.mxu0 0.0
        %2362 = vmatprep.subr.mxu0 0.0
        %2363 = vmatpush1.msra.mxu0 0.0
        %2364 = vmatprep.subr.mxu0 0.0
        %2365 = vmatpush1.msra.mxu0 0.0
        %2366 = vmatprep.subr.mxu0 0.0
        %2367 = vmatpush1.msra.mxu0 0.0
        %2368 = vmatprep.subr.mxu0 0.0
        %2369 = vmatpush1.msra.mxu0 0.0
        %2370 = vmatprep.subr.mxu0 0.0
        %2371 = vmatpush1.msra.mxu0 0.0
        %2372 = vmatprep.subr.mxu0 0.0
        %2373 = vmatpush1.msra.mxu0 0.0
        %2374 = vmatprep.subr.mxu0 0.0
        %2375 = vmatpush1.msra.mxu0 0.0
        %2376 = vmatprep.subr.mxu0 0.0
        %2377 = vmatpush1.msra.mxu0 0.0
        %2378 = vmatprep.mubr.f32.mxu0 0.0
        %v2379 = vand.u32 %v475, 4294901760
        %v2380 = vsub.f32 %v475, %v2379
        %v2381 = vand.u32 %v2380, 4294901760
        %v2382 = vsub.f32 %v2380, %v2381
        %v2383 = vand.u32 %v2382, 4294901760
        %2384 = vmatmul.mubr.f32.gmra.mrb[0].mxu0 %v2383
        %v2385 = vpop.f32.mrb[0].mxu0
        %v2386 = vadd.f32 0.0, %v2385
        %v2387 = vpop.f32.mrb[0].mxu0
        %v2388 = vadd.f32 0.0, %v2387
        %2389 = vdwg.mxu0
        %v2390 = vand.u32 %v481, 4294901760
        %v2391 = vsub.f32 %v481, %v2390
        %v2392 = vand.u32 %v2391, 4294901760
        %v2393 = vsub.f32 %v2391, %v2392
        %v2394 = vand.u32 %v2393, 4294901760
        %2395 = vmatprep.subr.mxu0 %v2394
        %v2396 = vand.u32 %v480, 4294901760
        %v2397 = vsub.f32 %v480, %v2396
        %v2398 = vand.u32 %v2397, 4294901760
        %v2399 = vsub.f32 %v2397, %v2398
        %v2400 = vand.u32 %v2399, 4294901760
        %2401 = vmatpush1.msra.mxu0 %v2400
        %v2402 = vand.u32 %v487, 4294901760
        %v2403 = vsub.f32 %v487, %v2402
        %v2404 = vand.u32 %v2403, 4294901760
        %v2405 = vsub.f32 %v2403, %v2404
        %v2406 = vand.u32 %v2405, 4294901760
        %2407 = vmatprep.subr.mxu0 %v2406
        %v2408 = vand.u32 %v486, 4294901760
        %v2409 = vsub.f32 %v486, %v2408
        %v2410 = vand.u32 %v2409, 4294901760
        %v2411 = vsub.f32 %v2409, %v2410
        %v2412 = vand.u32 %v2411, 4294901760
        %2413 = vmatpush1.msra.mxu0 %v2412
        %v2414 = vand.u32 %v493, 4294901760
        %v2415 = vsub.f32 %v493, %v2414
        %v2416 = vand.u32 %v2415, 4294901760
        %v2417 = vsub.f32 %v2415, %v2416
        %v2418 = vand.u32 %v2417, 4294901760
        %2419 = vmatprep.subr.mxu0 %v2418
        %v2420 = vand.u32 %v492, 4294901760
        %v2421 = vsub.f32 %v492, %v2420
        %v2422 = vand.u32 %v2421, 4294901760
        %v2423 = vsub.f32 %v2421, %v2422
        %v2424 = vand.u32 %v2423, 4294901760
        %2425 = vmatpush1.msra.mxu0 %v2424
        %v2426 = vand.u32 %v499, 4294901760
        %v2427 = vsub.f32 %v499, %v2426
        %v2428 = vand.u32 %v2427, 4294901760
        %v2429 = vsub.f32 %v2427, %v2428
        %v2430 = vand.u32 %v2429, 4294901760
        %2431 = vmatprep.subr.mxu0 %v2430
        %v2432 = vand.u32 %v498, 4294901760
        %v2433 = vsub.f32 %v498, %v2432
        %v2434 = vand.u32 %v2433, 4294901760
        %v2435 = vsub.f32 %v2433, %v2434
        %v2436 = vand.u32 %v2435, 4294901760
        %2437 = vmatpush1.msra.mxu0 %v2436
        %v2438 = vand.u32 %v505, 4294901760
        %v2439 = vsub.f32 %v505, %v2438
        %v2440 = vand.u32 %v2439, 4294901760
        %v2441 = vsub.f32 %v2439, %v2440
        %v2442 = vand.u32 %v2441, 4294901760
        %2443 = vmatprep.subr.mxu0 %v2442
        %v2444 = vand.u32 %v504, 4294901760
        %v2445 = vsub.f32 %v504, %v2444
        %v2446 = vand.u32 %v2445, 4294901760
        %v2447 = vsub.f32 %v2445, %v2446
        %v2448 = vand.u32 %v2447, 4294901760
        %2449 = vmatpush1.msra.mxu0 %v2448
        %v2450 = vand.u32 %v511, 4294901760
        %v2451 = vsub.f32 %v511, %v2450
        %v2452 = vand.u32 %v2451, 4294901760
        %v2453 = vsub.f32 %v2451, %v2452
        %v2454 = vand.u32 %v2453, 4294901760
        %2455 = vmatprep.subr.mxu0 %v2454
        %v2456 = vand.u32 %v510, 4294901760
        %v2457 = vsub.f32 %v510, %v2456
        %v2458 = vand.u32 %v2457, 4294901760
        %v2459 = vsub.f32 %v2457, %v2458
        %v2460 = vand.u32 %v2459, 4294901760
        %2461 = vmatpush1.msra.mxu0 %v2460
        %v2462 = vand.u32 %v517, 4294901760
        %v2463 = vsub.f32 %v517, %v2462
        %v2464 = vand.u32 %v2463, 4294901760
        %v2465 = vsub.f32 %v2463, %v2464
        %v2466 = vand.u32 %v2465, 4294901760
        %2467 = vmatprep.subr.mxu0 %v2466
        %v2468 = vand.u32 %v516, 4294901760
        %v2469 = vsub.f32 %v516, %v2468
        %v2470 = vand.u32 %v2469, 4294901760
        %v2471 = vsub.f32 %v2469, %v2470
        %v2472 = vand.u32 %v2471, 4294901760
        %2473 = vmatpush1.msra.mxu0 %v2472
        %v2474 = vand.u32 %v523, 4294901760
        %v2475 = vsub.f32 %v523, %v2474
        %v2476 = vand.u32 %v2475, 4294901760
        %v2477 = vsub.f32 %v2475, %v2476
        %v2478 = vand.u32 %v2477, 4294901760
        %2479 = vmatprep.subr.mxu0 %v2478
        %v2480 = vand.u32 %v522, 4294901760
        %v2481 = vsub.f32 %v522, %v2480
        %v2482 = vand.u32 %v2481, 4294901760
        %v2483 = vsub.f32 %v2481, %v2482
        %v2484 = vand.u32 %v2483, 4294901760
        %2485 = vmatpush1.msra.mxu0 %v2484
        %v2486 = vand.u32 %v529, 4294901760
        %v2487 = vsub.f32 %v529, %v2486
        %v2488 = vand.u32 %v2487, 4294901760
        %v2489 = vsub.f32 %v2487, %v2488
        %v2490 = vand.u32 %v2489, 4294901760
        %2491 = vmatprep.subr.mxu0 %v2490
        %v2492 = vand.u32 %v528, 4294901760
        %v2493 = vsub.f32 %v528, %v2492
        %v2494 = vand.u32 %v2493, 4294901760
        %v2495 = vsub.f32 %v2493, %v2494
        %v2496 = vand.u32 %v2495, 4294901760
        %2497 = vmatpush1.msra.mxu0 %v2496
        %v2498 = vand.u32 %v535, 4294901760
        %v2499 = vsub.f32 %v535, %v2498
        %v2500 = vand.u32 %v2499, 4294901760
        %v2501 = vsub.f32 %v2499, %v2500
        %v2502 = vand.u32 %v2501, 4294901760
        %2503 = vmatprep.subr.mxu0 %v2502
        %v2504 = vand.u32 %v534, 4294901760
        %v2505 = vsub.f32 %v534, %v2504
        %v2506 = vand.u32 %v2505, 4294901760
        %v2507 = vsub.f32 %v2505, %v2506
        %v2508 = vand.u32 %v2507, 4294901760
        %2509 = vmatpush1.msra.mxu0 %v2508
        %v2510 = vand.u32 %v541, 4294901760
        %v2511 = vsub.f32 %v541, %v2510
        %v2512 = vand.u32 %v2511, 4294901760
        %v2513 = vsub.f32 %v2511, %v2512
        %v2514 = vand.u32 %v2513, 4294901760
        %2515 = vmatprep.subr.mxu0 %v2514
        %v2516 = vand.u32 %v540, 4294901760
        %v2517 = vsub.f32 %v540, %v2516
        %v2518 = vand.u32 %v2517, 4294901760
        %v2519 = vsub.f32 %v2517, %v2518
        %v2520 = vand.u32 %v2519, 4294901760
        %2521 = vmatpush1.msra.mxu0 %v2520
        %v2522 = vand.u32 %v547, 4294901760
        %v2523 = vsub.f32 %v547, %v2522
        %v2524 = vand.u32 %v2523, 4294901760
        %v2525 = vsub.f32 %v2523, %v2524
        %v2526 = vand.u32 %v2525, 4294901760
        %2527 = vmatprep.subr.mxu0 %v2526
        %v2528 = vand.u32 %v546, 4294901760
        %v2529 = vsub.f32 %v546, %v2528
        %v2530 = vand.u32 %v2529, 4294901760
        %v2531 = vsub.f32 %v2529, %v2530
        %v2532 = vand.u32 %v2531, 4294901760
        %2533 = vmatpush1.msra.mxu0 %v2532
        %v2534 = vand.u32 %v553, 4294901760
        %v2535 = vsub.f32 %v553, %v2534
        %v2536 = vand.u32 %v2535, 4294901760
        %v2537 = vsub.f32 %v2535, %v2536
        %v2538 = vand.u32 %v2537, 4294901760
        %2539 = vmatprep.subr.mxu0 %v2538
        %v2540 = vand.u32 %v552, 4294901760
        %v2541 = vsub.f32 %v552, %v2540
        %v2542 = vand.u32 %v2541, 4294901760
        %v2543 = vsub.f32 %v2541, %v2542
        %v2544 = vand.u32 %v2543, 4294901760
        %2545 = vmatpush1.msra.mxu0 %v2544
        %v2546 = vand.u32 %v559, 4294901760
        %v2547 = vsub.f32 %v559, %v2546
        %v2548 = vand.u32 %v2547, 4294901760
        %v2549 = vsub.f32 %v2547, %v2548
        %v2550 = vand.u32 %v2549, 4294901760
        %2551 = vmatprep.subr.mxu0 %v2550
        %v2552 = vand.u32 %v558, 4294901760
        %v2553 = vsub.f32 %v558, %v2552
        %v2554 = vand.u32 %v2553, 4294901760
        %v2555 = vsub.f32 %v2553, %v2554
        %v2556 = vand.u32 %v2555, 4294901760
        %2557 = vmatpush1.msra.mxu0 %v2556
        %v2558 = vand.u32 %v565, 4294901760
        %v2559 = vsub.f32 %v565, %v2558
        %v2560 = vand.u32 %v2559, 4294901760
        %v2561 = vsub.f32 %v2559, %v2560
        %v2562 = vand.u32 %v2561, 4294901760
        %2563 = vmatprep.subr.mxu0 %v2562
        %v2564 = vand.u32 %v564, 4294901760
        %v2565 = vsub.f32 %v564, %v2564
        %v2566 = vand.u32 %v2565, 4294901760
        %v2567 = vsub.f32 %v2565, %v2566
        %v2568 = vand.u32 %v2567, 4294901760
        %2569 = vmatpush1.msra.mxu0 %v2568
        %v2570 = vand.u32 %v571, 4294901760
        %v2571 = vsub.f32 %v571, %v2570
        %v2572 = vand.u32 %v2571, 4294901760
        %v2573 = vsub.f32 %v2571, %v2572
        %v2574 = vand.u32 %v2573, 4294901760
        %2575 = vmatprep.subr.mxu0 %v2574
        %v2576 = vand.u32 %v570, 4294901760
        %v2577 = vsub.f32 %v570, %v2576
        %v2578 = vand.u32 %v2577, 4294901760
        %v2579 = vsub.f32 %v2577, %v2578
        %v2580 = vand.u32 %v2579, 4294901760
        %2581 = vmatpush1.msra.mxu0 %v2580
        %2582 = vmatprep.subr.mxu0 0.0
        %2583 = vmatpush1.msra.mxu0 0.0
        %2584 = vmatprep.subr.mxu0 0.0
        %2585 = vmatpush1.msra.mxu0 0.0
        %2586 = vmatprep.subr.mxu0 0.0
        %2587 = vmatpush1.msra.mxu0 0.0
        %2588 = vmatprep.subr.mxu0 0.0
        %2589 = vmatpush1.msra.mxu0 0.0
        %2590 = vmatprep.subr.mxu0 0.0
        %2591 = vmatpush1.msra.mxu0 0.0
        %2592 = vmatprep.subr.mxu0 0.0
        %2593 = vmatpush1.msra.mxu0 0.0
        %2594 = vmatprep.subr.mxu0 0.0
        %2595 = vmatpush1.msra.mxu0 0.0
        %2596 = vmatprep.subr.mxu0 0.0
        %2597 = vmatpush1.msra.mxu0 0.0
        %2598 = vmatprep.subr.mxu0 0.0
        %2599 = vmatpush1.msra.mxu0 0.0
        %2600 = vmatprep.subr.mxu0 0.0
        %2601 = vmatpush1.msra.mxu0 0.0
        %2602 = vmatprep.subr.mxu0 0.0
        %2603 = vmatpush1.msra.mxu0 0.0
        %2604 = vmatprep.subr.mxu0 0.0
        %2605 = vmatpush1.msra.mxu0 0.0
        %2606 = vmatprep.subr.mxu0 0.0
        %2607 = vmatpush1.msra.mxu0 0.0
        %2608 = vmatprep.subr.mxu0 0.0
        %2609 = vmatpush1.msra.mxu0 0.0
        %2610 = vmatprep.subr.mxu0 0.0
        %2611 = vmatpush1.msra.mxu0 0.0
        %2612 = vmatprep.subr.mxu0 0.0
        %2613 = vmatpush1.msra.mxu0 0.0
        %2614 = vmatprep.mubr.f32.mxu0 0.0
        %v2615 = vand.u32 %v475, 4294901760
        %2616 = vmatmul.mubr.f32.gmra.mrb[0].mxu0 %v2615
        %v2617 = vpop.f32.mrb[0].mxu0
        %v2618 = vadd.f32 %v2386, %v2617
        %v2619 = vpop.f32.mrb[0].mxu0
        %v2620 = vadd.f32 %v2388, %v2619
        %2621 = vdwg.mxu0
        %v2622 = vand.u32 %v481, 4294901760
        %v2623 = vsub.f32 %v481, %v2622
        %2624 = vmatprep.subr.mxu0 %v2623
        %v2625 = vand.u32 %v480, 4294901760
        %v2626 = vsub.f32 %v480, %v2625
        %2627 = vmatpush1.msra.mxu0 %v2626
        %v2628 = vand.u32 %v487, 4294901760
        %v2629 = vsub.f32 %v487, %v2628
        %2630 = vmatprep.subr.mxu0 %v2629
        %v2631 = vand.u32 %v486, 4294901760
        %v2632 = vsub.f32 %v486, %v2631
        %2633 = vmatpush1.msra.mxu0 %v2632
        %v2634 = vand.u32 %v493, 4294901760
        %v2635 = vsub.f32 %v493, %v2634
        %2636 = vmatprep.subr.mxu0 %v2635
        %v2637 = vand.u32 %v492, 4294901760
        %v2638 = vsub.f32 %v492, %v2637
        %2639 = vmatpush1.msra.mxu0 %v2638
        %v2640 = vand.u32 %v499, 4294901760
        %v2641 = vsub.f32 %v499, %v2640
        %2642 = vmatprep.subr.mxu0 %v2641
        %v2643 = vand.u32 %v498, 4294901760
        %v2644 = vsub.f32 %v498, %v2643
        %2645 = vmatpush1.msra.mxu0 %v2644
        %v2646 = vand.u32 %v505, 4294901760
        %v2647 = vsub.f32 %v505, %v2646
        %2648 = vmatprep.subr.mxu0 %v2647
        %v2649 = vand.u32 %v504, 4294901760
        %v2650 = vsub.f32 %v504, %v2649
        %2651 = vmatpush1.msra.mxu0 %v2650
        %v2652 = vand.u32 %v511, 4294901760
        %v2653 = vsub.f32 %v511, %v2652
        %2654 = vmatprep.subr.mxu0 %v2653
        %v2655 = vand.u32 %v510, 4294901760
        %v2656 = vsub.f32 %v510, %v2655
        %2657 = vmatpush1.msra.mxu0 %v2656
        %v2658 = vand.u32 %v517, 4294901760
        %v2659 = vsub.f32 %v517, %v2658
        %2660 = vmatprep.subr.mxu0 %v2659
        %v2661 = vand.u32 %v516, 4294901760
        %v2662 = vsub.f32 %v516, %v2661
        %2663 = vmatpush1.msra.mxu0 %v2662
        %v2664 = vand.u32 %v523, 4294901760
        %v2665 = vsub.f32 %v523, %v2664
        %2666 = vmatprep.subr.mxu0 %v2665
        %v2667 = vand.u32 %v522, 4294901760
        %v2668 = vsub.f32 %v522, %v2667
        %2669 = vmatpush1.msra.mxu0 %v2668
        %v2670 = vand.u32 %v529, 4294901760
        %v2671 = vsub.f32 %v529, %v2670
        %2672 = vmatprep.subr.mxu0 %v2671
        %v2673 = vand.u32 %v528, 4294901760
        %v2674 = vsub.f32 %v528, %v2673
        %2675 = vmatpush1.msra.mxu0 %v2674
        %v2676 = vand.u32 %v535, 4294901760
        %v2677 = vsub.f32 %v535, %v2676
        %2678 = vmatprep.subr.mxu0 %v2677
        %v2679 = vand.u32 %v534, 4294901760
        %v2680 = vsub.f32 %v534, %v2679
        %2681 = vmatpush1.msra.mxu0 %v2680
        %v2682 = vand.u32 %v541, 4294901760
        %v2683 = vsub.f32 %v541, %v2682
        %2684 = vmatprep.subr.mxu0 %v2683
        %v2685 = vand.u32 %v540, 4294901760
        %v2686 = vsub.f32 %v540, %v2685
        %2687 = vmatpush1.msra.mxu0 %v2686
        %v2688 = vand.u32 %v547, 4294901760
        %v2689 = vsub.f32 %v547, %v2688
        %2690 = vmatprep.subr.mxu0 %v2689
        %v2691 = vand.u32 %v546, 4294901760
        %v2692 = vsub.f32 %v546, %v2691
        %2693 = vmatpush1.msra.mxu0 %v2692
        %v2694 = vand.u32 %v553, 4294901760
        %v2695 = vsub.f32 %v553, %v2694
        %2696 = vmatprep.subr.mxu0 %v2695
        %v2697 = vand.u32 %v552, 4294901760
        %v2698 = vsub.f32 %v552, %v2697
        %2699 = vmatpush1.msra.mxu0 %v2698
        %v2700 = vand.u32 %v559, 4294901760
        %v2701 = vsub.f32 %v559, %v2700
        %2702 = vmatprep.subr.mxu0 %v2701
        %v2703 = vand.u32 %v558, 4294901760
        %v2704 = vsub.f32 %v558, %v2703
        %2705 = vmatpush1.msra.mxu0 %v2704
        %v2706 = vand.u32 %v565, 4294901760
        %v2707 = vsub.f32 %v565, %v2706
        %2708 = vmatprep.subr.mxu0 %v2707
        %v2709 = vand.u32 %v564, 4294901760
        %v2710 = vsub.f32 %v564, %v2709
        %2711 = vmatpush1.msra.mxu0 %v2710
        %v2712 = vand.u32 %v571, 4294901760
        %v2713 = vsub.f32 %v571, %v2712
        %2714 = vmatprep.subr.mxu0 %v2713
        %v2715 = vand.u32 %v570, 4294901760
        %v2716 = vsub.f32 %v570, %v2715
        %2717 = vmatpush1.msra.mxu0 %v2716
        %2718 = vmatprep.subr.mxu0 0.0
        %2719 = vmatpush1.msra.mxu0 0.0
        %2720 = vmatprep.subr.mxu0 0.0
        %2721 = vmatpush1.msra.mxu0 0.0
        %2722 = vmatprep.subr.mxu0 0.0
        %2723 = vmatpush1.msra.mxu0 0.0
        %2724 = vmatprep.subr.mxu0 0.0
        %2725 = vmatpush1.msra.mxu0 0.0
        %2726 = vmatprep.subr.mxu0 0.0
        %2727 = vmatpush1.msra.mxu0 0.0
        %2728 = vmatprep.subr.mxu0 0.0
        %2729 = vmatpush1.msra.mxu0 0.0
        %2730 = vmatprep.subr.mxu0 0.0
        %2731 = vmatpush1.msra.mxu0 0.0
        %2732 = vmatprep.subr.mxu0 0.0
        %2733 = vmatpush1.msra.mxu0 0.0
        %2734 = vmatprep.subr.mxu0 0.0
        %2735 = vmatpush1.msra.mxu0 0.0
        %2736 = vmatprep.subr.mxu0 0.0
        %2737 = vmatpush1.msra.mxu0 0.0
        %2738 = vmatprep.subr.mxu0 0.0
        %2739 = vmatpush1.msra.mxu0 0.0
        %2740 = vmatprep.subr.mxu0 0.0
        %2741 = vmatpush1.msra.mxu0 0.0
        %2742 = vmatprep.subr.mxu0 0.0
        %2743 = vmatpush1.msra.mxu0 0.0
        %2744 = vmatprep.subr.mxu0 0.0
        %2745 = vmatpush1.msra.mxu0 0.0
        %2746 = vmatprep.subr.mxu0 0.0
        %2747 = vmatpush1.msra.mxu0 0.0
        %2748 = vmatprep.subr.mxu0 0.0
        %2749 = vmatpush1.msra.mxu0 0.0
        %2750 = vmatprep.mubr.f32.mxu0 0.0
        %v2751 = vand.u32 %v475, 4294901760
        %v2752 = vsub.f32 %v475, %v2751
        %2753 = vmatmul.mubr.f32.gmra.mrb[0].mxu0 %v2752
        %v2754 = vpop.f32.mrb[0].mxu0
        %v2755 = vadd.f32 %v2618, %v2754
        %v2756 = vpop.f32.mrb[0].mxu0
        %v2757 = vadd.f32 %v2620, %v2756
        %2758 = vdwg.mxu0
        %v2759 = vand.u32 %v481, 4294901760
        %2760 = vmatprep.subr.mxu0 %v2759
        %v2761 = vand.u32 %v480, 4294901760
        %2762 = vmatpush1.msra.mxu0 %v2761
        %v2763 = vand.u32 %v487, 4294901760
        %2764 = vmatprep.subr.mxu0 %v2763
        %v2765 = vand.u32 %v486, 4294901760
        %2766 = vmatpush1.msra.mxu0 %v2765
        %v2767 = vand.u32 %v493, 4294901760
        %2768 = vmatprep.subr.mxu0 %v2767
        %v2769 = vand.u32 %v492, 4294901760
        %2770 = vmatpush1.msra.mxu0 %v2769
        %v2771 = vand.u32 %v499, 4294901760
        %2772 = vmatprep.subr.mxu0 %v2771
        %v2773 = vand.u32 %v498, 4294901760
        %2774 = vmatpush1.msra.mxu0 %v2773
        %v2775 = vand.u32 %v505, 4294901760
        %2776 = vmatprep.subr.mxu0 %v2775
        %v2777 = vand.u32 %v504, 4294901760
        %2778 = vmatpush1.msra.mxu0 %v2777
        %v2779 = vand.u32 %v511, 4294901760
        %2780 = vmatprep.subr.mxu0 %v2779
        %v2781 = vand.u32 %v510, 4294901760
        %2782 = vmatpush1.msra.mxu0 %v2781
        %v2783 = vand.u32 %v517, 4294901760
        %2784 = vmatprep.subr.mxu0 %v2783
        %v2785 = vand.u32 %v516, 4294901760
        %2786 = vmatpush1.msra.mxu0 %v2785
        %v2787 = vand.u32 %v523, 4294901760
        %2788 = vmatprep.subr.mxu0 %v2787
        %v2789 = vand.u32 %v522, 4294901760
        %2790 = vmatpush1.msra.mxu0 %v2789
        %v2791 = vand.u32 %v529, 4294901760
        %2792 = vmatprep.subr.mxu0 %v2791
        %v2793 = vand.u32 %v528, 4294901760
        %2794 = vmatpush1.msra.mxu0 %v2793
        %v2795 = vand.u32 %v535, 4294901760
        %2796 = vmatprep.subr.mxu0 %v2795
        %v2797 = vand.u32 %v534, 4294901760
        %2798 = vmatpush1.msra.mxu0 %v2797
        %v2799 = vand.u32 %v541, 4294901760
        %2800 = vmatprep.subr.mxu0 %v2799
        %v2801 = vand.u32 %v540, 4294901760
        %2802 = vmatpush1.msra.mxu0 %v2801
        %v2803 = vand.u32 %v547, 4294901760
        %2804 = vmatprep.subr.mxu0 %v2803
        %v2805 = vand.u32 %v546, 4294901760
        %2806 = vmatpush1.msra.mxu0 %v2805
        %v2807 = vand.u32 %v553, 4294901760
        %2808 = vmatprep.subr.mxu0 %v2807
        %v2809 = vand.u32 %v552, 4294901760
        %2810 = vmatpush1.msra.mxu0 %v2809
        %v2811 = vand.u32 %v559, 4294901760
        %2812 = vmatprep.subr.mxu0 %v2811
        %v2813 = vand.u32 %v558, 4294901760
        %2814 = vmatpush1.msra.mxu0 %v2813
        %v2815 = vand.u32 %v565, 4294901760
        %2816 = vmatprep.subr.mxu0 %v2815
        %v2817 = vand.u32 %v564, 4294901760
        %2818 = vmatpush1.msra.mxu0 %v2817
        %v2819 = vand.u32 %v571, 4294901760
        %2820 = vmatprep.subr.mxu0 %v2819
        %v2821 = vand.u32 %v570, 4294901760
        %2822 = vmatpush1.msra.mxu0 %v2821
        %2823 = vmatprep.subr.mxu0 0.0
        %2824 = vmatpush1.msra.mxu0 0.0
        %2825 = vmatprep.subr.mxu0 0.0
        %2826 = vmatpush1.msra.mxu0 0.0
        %2827 = vmatprep.subr.mxu0 0.0
        %2828 = vmatpush1.msra.mxu0 0.0
        %2829 = vmatprep.subr.mxu0 0.0
        %2830 = vmatpush1.msra.mxu0 0.0
        %2831 = vmatprep.subr.mxu0 0.0
        %2832 = vmatpush1.msra.mxu0 0.0
        %2833 = vmatprep.subr.mxu0 0.0
        %2834 = vmatpush1.msra.mxu0 0.0
        %2835 = vmatprep.subr.mxu0 0.0
        %2836 = vmatpush1.msra.mxu0 0.0
        %2837 = vmatprep.subr.mxu0 0.0
        %2838 = vmatpush1.msra.mxu0 0.0
        %2839 = vmatprep.subr.mxu0 0.0
        %2840 = vmatpush1.msra.mxu0 0.0
        %2841 = vmatprep.subr.mxu0 0.0
        %2842 = vmatpush1.msra.mxu0 0.0
        %2843 = vmatprep.subr.mxu0 0.0
        %2844 = vmatpush1.msra.mxu0 0.0
        %2845 = vmatprep.subr.mxu0 0.0
        %2846 = vmatpush1.msra.mxu0 0.0
        %2847 = vmatprep.subr.mxu0 0.0
        %2848 = vmatpush1.msra.mxu0 0.0
        %2849 = vmatprep.subr.mxu0 0.0
        %2850 = vmatpush1.msra.mxu0 0.0
        %2851 = vmatprep.subr.mxu0 0.0
        %2852 = vmatpush1.msra.mxu0 0.0
        %2853 = vmatprep.subr.mxu0 0.0
        %2854 = vmatpush1.msra.mxu0 0.0
        %2855 = vmatprep.mubr.f32.mxu0 0.0
        %v2856 = vand.u32 %v475, 4294901760
        %v2857 = vsub.f32 %v475, %v2856
        %v2858 = vand.u32 %v2857, 4294901760
        %2859 = vmatmul.mubr.f32.gmra.mrb[0].mxu0 %v2858
        %v2860 = vpop.f32.mrb[0].mxu0
        %v2861 = vadd.f32 %v2755, %v2860
        %v2862 = vpop.f32.mrb[0].mxu0
        %v2863 = vadd.f32 %v2757, %v2862
        %2864 = vdwg.mxu0
        %v2865 = vand.u32 %v481, 4294901760
        %v2866 = vsub.f32 %v481, %v2865
        %v2867 = vand.u32 %v2866, 4294901760
        %2868 = vmatprep.subr.mxu0 %v2867
        %v2869 = vand.u32 %v480, 4294901760
        %v2870 = vsub.f32 %v480, %v2869
        %v2871 = vand.u32 %v2870, 4294901760
        %2872 = vmatpush1.msra.mxu0 %v2871
        %v2873 = vand.u32 %v487, 4294901760
        %v2874 = vsub.f32 %v487, %v2873
        %v2875 = vand.u32 %v2874, 4294901760
        %2876 = vmatprep.subr.mxu0 %v2875
        %v2877 = vand.u32 %v486, 4294901760
        %v2878 = vsub.f32 %v486, %v2877
        %v2879 = vand.u32 %v2878, 4294901760
        %2880 = vmatpush1.msra.mxu0 %v2879
        %v2881 = vand.u32 %v493, 4294901760
        %v2882 = vsub.f32 %v493, %v2881
        %v2883 = vand.u32 %v2882, 4294901760
        %2884 = vmatprep.subr.mxu0 %v2883
        %v2885 = vand.u32 %v492, 4294901760
        %v2886 = vsub.f32 %v492, %v2885
        %v2887 = vand.u32 %v2886, 4294901760
        %2888 = vmatpush1.msra.mxu0 %v2887
        %v2889 = vand.u32 %v499, 4294901760
        %v2890 = vsub.f32 %v499, %v2889
        %v2891 = vand.u32 %v2890, 4294901760
        %2892 = vmatprep.subr.mxu0 %v2891
        %v2893 = vand.u32 %v498, 4294901760
        %v2894 = vsub.f32 %v498, %v2893
        %v2895 = vand.u32 %v2894, 4294901760
        %2896 = vmatpush1.msra.mxu0 %v2895
        %v2897 = vand.u32 %v505, 4294901760
        %v2898 = vsub.f32 %v505, %v2897
        %v2899 = vand.u32 %v2898, 4294901760
        %2900 = vmatprep.subr.mxu0 %v2899
        %v2901 = vand.u32 %v504, 4294901760
        %v2902 = vsub.f32 %v504, %v2901
        %v2903 = vand.u32 %v2902, 4294901760
        %2904 = vmatpush1.msra.mxu0 %v2903
        %v2905 = vand.u32 %v511, 4294901760
        %v2906 = vsub.f32 %v511, %v2905
        %v2907 = vand.u32 %v2906, 4294901760
        %2908 = vmatprep.subr.mxu0 %v2907
        %v2909 = vand.u32 %v510, 4294901760
        %v2910 = vsub.f32 %v510, %v2909
        %v2911 = vand.u32 %v2910, 4294901760
        %2912 = vmatpush1.msra.mxu0 %v2911
        %v2913 = vand.u32 %v517, 4294901760
        %v2914 = vsub.f32 %v517, %v2913
        %v2915 = vand.u32 %v2914, 4294901760
        %2916 = vmatprep.subr.mxu0 %v2915
        %v2917 = vand.u32 %v516, 4294901760
        %v2918 = vsub.f32 %v516, %v2917
        %v2919 = vand.u32 %v2918, 4294901760
        %2920 = vmatpush1.msra.mxu0 %v2919
        %v2921 = vand.u32 %v523, 4294901760
        %v2922 = vsub.f32 %v523, %v2921
        %v2923 = vand.u32 %v2922, 4294901760
        %2924 = vmatprep.subr.mxu0 %v2923
        %v2925 = vand.u32 %v522, 4294901760
        %v2926 = vsub.f32 %v522, %v2925
        %v2927 = vand.u32 %v2926, 4294901760
        %2928 = vmatpush1.msra.mxu0 %v2927
        %v2929 = vand.u32 %v529, 4294901760
        %v2930 = vsub.f32 %v529, %v2929
        %v2931 = vand.u32 %v2930, 4294901760
        %2932 = vmatprep.subr.mxu0 %v2931
        %v2933 = vand.u32 %v528, 4294901760
        %v2934 = vsub.f32 %v528, %v2933
        %v2935 = vand.u32 %v2934, 4294901760
        %2936 = vmatpush1.msra.mxu0 %v2935
        %v2937 = vand.u32 %v535, 4294901760
        %v2938 = vsub.f32 %v535, %v2937
        %v2939 = vand.u32 %v2938, 4294901760
        %2940 = vmatprep.subr.mxu0 %v2939
        %v2941 = vand.u32 %v534, 4294901760
        %v2942 = vsub.f32 %v534, %v2941
        %v2943 = vand.u32 %v2942, 4294901760
        %2944 = vmatpush1.msra.mxu0 %v2943
        %v2945 = vand.u32 %v541, 4294901760
        %v2946 = vsub.f32 %v541, %v2945
        %v2947 = vand.u32 %v2946, 4294901760
        %2948 = vmatprep.subr.mxu0 %v2947
        %v2949 = vand.u32 %v540, 4294901760
        %v2950 = vsub.f32 %v540, %v2949
        %v2951 = vand.u32 %v2950, 4294901760
        %2952 = vmatpush1.msra.mxu0 %v2951
        %v2953 = vand.u32 %v547, 4294901760
        %v2954 = vsub.f32 %v547, %v2953
        %v2955 = vand.u32 %v2954, 4294901760
        %2956 = vmatprep.subr.mxu0 %v2955
        %v2957 = vand.u32 %v546, 4294901760
        %v2958 = vsub.f32 %v546, %v2957
        %v2959 = vand.u32 %v2958, 4294901760
        %2960 = vmatpush1.msra.mxu0 %v2959
        %v2961 = vand.u32 %v553, 4294901760
        %v2962 = vsub.f32 %v553, %v2961
        %v2963 = vand.u32 %v2962, 4294901760
        %2964 = vmatprep.subr.mxu0 %v2963
        %v2965 = vand.u32 %v552, 4294901760
        %v2966 = vsub.f32 %v552, %v2965
        %v2967 = vand.u32 %v2966, 4294901760
        %2968 = vmatpush1.msra.mxu0 %v2967
        %v2969 = vand.u32 %v559, 4294901760
        %v2970 = vsub.f32 %v559, %v2969
        %v2971 = vand.u32 %v2970, 4294901760
        %2972 = vmatprep.subr.mxu0 %v2971
        %v2973 = vand.u32 %v558, 4294901760
        %v2974 = vsub.f32 %v558, %v2973
        %v2975 = vand.u32 %v2974, 4294901760
        %2976 = vmatpush1.msra.mxu0 %v2975
        %v2977 = vand.u32 %v565, 4294901760
        %v2978 = vsub.f32 %v565, %v2977
        %v2979 = vand.u32 %v2978, 4294901760
        %2980 = vmatprep.subr.mxu0 %v2979
        %v2981 = vand.u32 %v564, 4294901760
        %v2982 = vsub.f32 %v564, %v2981
        %v2983 = vand.u32 %v2982, 4294901760
        %2984 = vmatpush1.msra.mxu0 %v2983
        %v2985 = vand.u32 %v571, 4294901760
        %v2986 = vsub.f32 %v571, %v2985
        %v2987 = vand.u32 %v2986, 4294901760
        %2988 = vmatprep.subr.mxu0 %v2987
        %v2989 = vand.u32 %v570, 4294901760
        %v2990 = vsub.f32 %v570, %v2989
        %v2991 = vand.u32 %v2990, 4294901760
        %2992 = vmatpush1.msra.mxu0 %v2991
        %2993 = vmatprep.subr.mxu0 0.0
        %2994 = vmatpush1.msra.mxu0 0.0
        %2995 = vmatprep.subr.mxu0 0.0
        %2996 = vmatpush1.msra.mxu0 0.0
        %2997 = vmatprep.subr.mxu0 0.0
        %2998 = vmatpush1.msra.mxu0 0.0
        %2999 = vmatprep.subr.mxu0 0.0
        %3000 = vmatpush1.msra.mxu0 0.0
        %3001 = vmatprep.subr.mxu0 0.0
        %3002 = vmatpush1.msra.mxu0 0.0
        %3003 = vmatprep.subr.mxu0 0.0
        %3004 = vmatpush1.msra.mxu0 0.0
        %3005 = vmatprep.subr.mxu0 0.0
        %3006 = vmatpush1.msra.mxu0 0.0
        %3007 = vmatprep.subr.mxu0 0.0
        %3008 = vmatpush1.msra.mxu0 0.0
        %3009 = vmatprep.subr.mxu0 0.0
        %3010 = vmatpush1.msra.mxu0 0.0
        %3011 = vmatprep.subr.mxu0 0.0
        %3012 = vmatpush1.msra.mxu0 0.0
        %3013 = vmatprep.subr.mxu0 0.0
        %3014 = vmatpush1.msra.mxu0 0.0
        %3015 = vmatprep.subr.mxu0 0.0
        %3016 = vmatpush1.msra.mxu0 0.0
        %3017 = vmatprep.subr.mxu0 0.0
        %3018 = vmatpush1.msra.mxu0 0.0
        %3019 = vmatprep.subr.mxu0 0.0
        %3020 = vmatpush1.msra.mxu0 0.0
        %3021 = vmatprep.subr.mxu0 0.0
        %3022 = vmatpush1.msra.mxu0 0.0
        %3023 = vmatprep.subr.mxu0 0.0
        %3024 = vmatpush1.msra.mxu0 0.0
        %3025 = vmatprep.mubr.f32.mxu0 0.0
        %v3026 = vand.u32 %v475, 4294901760
        %3027 = vmatmul.mubr.f32.gmra.mrb[0].mxu0 %v3026
        %v3028 = vpop.f32.mrb[0].mxu0
        %v3029 = vadd.f32 %v2861, %v3028
        %v3030 = vpop.f32.mrb[0].mxu0
        %v3031 = vadd.f32 %v2863, %v3030
        %3032 = vdwg.mxu0
        %v3033 = vand.u32 %v481, 4294901760
        %3034 = vmatprep.subr.mxu0 %v3033
        %v3035 = vand.u32 %v480, 4294901760
        %3036 = vmatpush1.msra.mxu0 %v3035
        %v3037 = vand.u32 %v487, 4294901760
        %3038 = vmatprep.subr.mxu0 %v3037
        %v3039 = vand.u32 %v486, 4294901760
        %3040 = vmatpush1.msra.mxu0 %v3039
        %v3041 = vand.u32 %v493, 4294901760
        %3042 = vmatprep.subr.mxu0 %v3041
        %v3043 = vand.u32 %v492, 4294901760
        %3044 = vmatpush1.msra.mxu0 %v3043
        %v3045 = vand.u32 %v499, 4294901760
        %3046 = vmatprep.subr.mxu0 %v3045
        %v3047 = vand.u32 %v498, 4294901760
        %3048 = vmatpush1.msra.mxu0 %v3047
        %v3049 = vand.u32 %v505, 4294901760
        %3050 = vmatprep.subr.mxu0 %v3049
        %v3051 = vand.u32 %v504, 4294901760
        %3052 = vmatpush1.msra.mxu0 %v3051
        %v3053 = vand.u32 %v511, 4294901760
        %3054 = vmatprep.subr.mxu0 %v3053
        %v3055 = vand.u32 %v510, 4294901760
        %3056 = vmatpush1.msra.mxu0 %v3055
        %v3057 = vand.u32 %v517, 4294901760
        %3058 = vmatprep.subr.mxu0 %v3057
        %v3059 = vand.u32 %v516, 4294901760
        %3060 = vmatpush1.msra.mxu0 %v3059
        %v3061 = vand.u32 %v523, 4294901760
        %3062 = vmatprep.subr.mxu0 %v3061
        %v3063 = vand.u32 %v522, 4294901760
        %3064 = vmatpush1.msra.mxu0 %v3063
        %v3065 = vand.u32 %v529, 4294901760
        %3066 = vmatprep.subr.mxu0 %v3065
        %v3067 = vand.u32 %v528, 4294901760
        %3068 = vmatpush1.msra.mxu0 %v3067
        %v3069 = vand.u32 %v535, 4294901760
        %3070 = vmatprep.subr.mxu0 %v3069
        %v3071 = vand.u32 %v534, 4294901760
        %3072 = vmatpush1.msra.mxu0 %v3071
        %v3073 = vand.u32 %v541, 4294901760
        %3074 = vmatprep.subr.mxu0 %v3073
        %v3075 = vand.u32 %v540, 4294901760
        %3076 = vmatpush1.msra.mxu0 %v3075
        %v3077 = vand.u32 %v547, 4294901760
        %3078 = vmatprep.subr.mxu0 %v3077
        %v3079 = vand.u32 %v546, 4294901760
        %3080 = vmatpush1.msra.mxu0 %v3079
        %v3081 = vand.u32 %v553, 4294901760
        %3082 = vmatprep.subr.mxu0 %v3081
        %v3083 = vand.u32 %v552, 4294901760
        %3084 = vmatpush1.msra.mxu0 %v3083
        %v3085 = vand.u32 %v559, 4294901760
        %3086 = vmatprep.subr.mxu0 %v3085
        %v3087 = vand.u32 %v558, 4294901760
        %3088 = vmatpush1.msra.mxu0 %v3087
        %v3089 = vand.u32 %v565, 4294901760
        %3090 = vmatprep.subr.mxu0 %v3089
        %v3091 = vand.u32 %v564, 4294901760
        %3092 = vmatpush1.msra.mxu0 %v3091
        %v3093 = vand.u32 %v571, 4294901760
        %3094 = vmatprep.subr.mxu0 %v3093
        %v3095 = vand.u32 %v570, 4294901760
        %3096 = vmatpush1.msra.mxu0 %v3095
        %3097 = vmatprep.subr.mxu0 0.0
        %3098 = vmatpush1.msra.mxu0 0.0
        %3099 = vmatprep.subr.mxu0 0.0
        %3100 = vmatpush1.msra.mxu0 0.0
        %3101 = vmatprep.subr.mxu0 0.0
        %3102 = vmatpush1.msra.mxu0 0.0
        %3103 = vmatprep.subr.mxu0 0.0
        %3104 = vmatpush1.msra.mxu0 0.0
        %3105 = vmatprep.subr.mxu0 0.0
        %3106 = vmatpush1.msra.mxu0 0.0
        %3107 = vmatprep.subr.mxu0 0.0
        %3108 = vmatpush1.msra.mxu0 0.0
        %3109 = vmatprep.subr.mxu0 0.0
        %3110 = vmatpush1.msra.mxu0 0.0
        %3111 = vmatprep.subr.mxu0 0.0
        %3112 = vmatpush1.msra.mxu0 0.0
        %3113 = vmatprep.subr.mxu0 0.0
        %3114 = vmatpush1.msra.mxu0 0.0
        %3115 = vmatprep.subr.mxu0 0.0
        %3116 = vmatpush1.msra.mxu0 0.0
        %3117 = vmatprep.subr.mxu0 0.0
        %3118 = vmatpush1.msra.mxu0 0.0
        %3119 = vmatprep.subr.mxu0 0.0
        %3120 = vmatpush1.msra.mxu0 0.0
        %3121 = vmatprep.subr.mxu0 0.0
        %3122 = vmatpush1.msra.mxu0 0.0
        %3123 = vmatprep.subr.mxu0 0.0
        %3124 = vmatpush1.msra.mxu0 0.0
        %3125 = vmatprep.subr.mxu0 0.0
        %3126 = vmatpush1.msra.mxu0 0.0
        %3127 = vmatprep.subr.mxu0 0.0
        %3128 = vmatpush1.msra.mxu0 0.0
        %3129 = vmatprep.mubr.f32.mxu0 0.0
        %v3130 = vand.u32 %v475, 4294901760
        %3131 = vmatmul.mubr.f32.gmra.mrb[0].mxu0 %v3130
        %v3132 = vpop.f32.mrb[0].mxu0
        %v3133 = vadd.f32 %v3029, %v3132
        %v3134 = vpop.f32.mrb[0].mxu0
        %v3135 = vadd.f32 %v3031, %v3134
        %3136 = vdwg.mxu0
        %v3137 = vld [vmem:[%s4] sm:$0x1]
        %v3139 = vlaneseq
        %v3140 = vshrl.u32 %v3139, 7
        %v3141 = vsub.s32 0, %v3140
        %v3142 = vrot.slane %v3137, %v3141
        %3144 = vxpose.xlu0.b32.start [1/16] %v1423, 128
        %3145 = vxpose.xlu0.b32.cont [2/16] 0.0, 128
        %3146 = vxpose.xlu0.b32.cont [3/16] 0.0, 128
        %3147 = vxpose.xlu0.b32.cont [4/16] 0.0, 128
        %3148 = vxpose.xlu0.b32.cont [5/16] 0.0, 128
        %3149 = vxpose.xlu0.b32.cont [6/16] 0.0, 128
        %3150 = vxpose.xlu0.b32.cont [7/16] 0.0, 128
        %3151 = vxpose.xlu0.b32.cont [8/16] 0.0, 128
        %3152 = vxpose.xlu0.b32.cont [9/16] 0.0, 128
        %3153 = vxpose.xlu0.b32.cont [10/16] 0.0, 128
        %3154 = vxpose.xlu0.b32.cont [11/16] 0.0, 128
        %3155 = vxpose.xlu0.b32.cont [12/16] 0.0, 128
        %3156 = vxpose.xlu0.b32.cont [13/16] 0.0, 128
        %3157 = vxpose.xlu0.b32.cont [14/16] 0.0, 128
        %3158 = vxpose.xlu0.b32.cont [15/16] 0.0, 128
        %3159 = vxpose.xlu0.b32.end [16/16] 0.0, 128
        %v3160 = vpop.trf.xlu0
        %v3161 = vpop.trf.xlu0
        %v3162 = vpop.trf.xlu0
        %v3163 = vpop.trf.xlu0
        %v3164 = vpop.trf.xlu0
        %v3165 = vpop.trf.xlu0
        %v3166 = vpop.trf.xlu0
        %v3167 = vpop.trf.xlu0
        %v3168 = vpop.trf.xlu0
        %v3169 = vpop.trf.xlu0
        %v3170 = vpop.trf.xlu0
        %v3171 = vpop.trf.xlu0
        %v3172 = vpop.trf.xlu0
        %v3173 = vpop.trf.xlu0
        %v3174 = vpop.trf.xlu0
        %v3175 = vpop.trf.xlu0
        %3177 = vset.pattern.permute.xlu0 0
        %3178 = vperm.xlu0 %3177, %v1425
        %v3179 = vpop.permute.xlu0 %3178
        %v3181 = vlaneseq
        %v3182 = vshrl.u32 %v3181, 7
        %v3183 = vsub.s32 0, %v3182
        %v3184 = vrot.slane %v3160, %v3183
        %v3185 = vadd.f32 %v3179, %v3184
        %v3186 = vtanh.pop %v3185
        %v3187 = vadd.f32 %v3186, 0.0
        %3188 = vset.pattern.permute.xlu0 1
        %3189 = vperm.xlu0 %3188, %v1425
        %v3190 = vpop.permute.xlu0 %3189
        %v3192 = vlaneseq
        %v3193 = vshrl.u32 %v3192, 7
        %v3194 = vsub.s32 1, %v3193
        %v3195 = vrot.slane %v3160, %v3194
        %v3196 = vadd.f32 %v3190, %v3195
        %v3197 = vtanh.pop %v3196
        %v3198 = vadd.f32 %v3187, %v3197
        %3199 = vset.pattern.permute.xlu0 2
        %3200 = vperm.xlu0 %3199, %v1425
        %v3201 = vpop.permute.xlu0 %3200
        %v3203 = vlaneseq
        %v3204 = vshrl.u32 %v3203, 7
        %v3205 = vsub.s32 2, %v3204
        %v3206 = vrot.slane %v3160, %v3205
        %v3207 = vadd.f32 %v3201, %v3206
        %v3208 = vtanh.pop %v3207
        %v3209 = vadd.f32 %v3198, %v3208
        %3210 = vset.pattern.permute.xlu0 3
        %3211 = vperm.xlu0 %3210, %v1425
        %v3212 = vpop.permute.xlu0 %3211
        %v3214 = vlaneseq
        %v3215 = vshrl.u32 %v3214, 7
        %v3216 = vsub.s32 3, %v3215
        %v3217 = vrot.slane %v3160, %v3216
        %v3218 = vadd.f32 %v3212, %v3217
        %v3219 = vtanh.pop %v3218
        %v3220 = vadd.f32 %v3209, %v3219
        %3221 = vset.pattern.permute.xlu0 4
        %3222 = vperm.xlu0 %3221, %v1425
        %v3223 = vpop.permute.xlu0 %3222
        %v3225 = vlaneseq
        %v3226 = vshrl.u32 %v3225, 7
        %v3227 = vsub.s32 4, %v3226
        %v3228 = vrot.slane %v3160, %v3227
        %v3229 = vadd.f32 %v3223, %v3228
        %v3230 = vtanh.pop %v3229
        %v3231 = vadd.f32 %v3220, %v3230
        %3232 = vset.pattern.permute.xlu0 5
        %3233 = vperm.xlu0 %3232, %v1425
        %v3234 = vpop.permute.xlu0 %3233
        %v3236 = vlaneseq
        %v3237 = vshrl.u32 %v3236, 7
        %v3238 = vsub.s32 5, %v3237
        %v3239 = vrot.slane %v3160, %v3238
        %v3240 = vadd.f32 %v3234, %v3239
        %v3241 = vtanh.pop %v3240
        %v3242 = vadd.f32 %v3231, %v3241
        %3243 = vset.pattern.permute.xlu0 6
        %3244 = vperm.xlu0 %3243, %v1425
        %v3245 = vpop.permute.xlu0 %3244
        %v3247 = vlaneseq
        %v3248 = vshrl.u32 %v3247, 7
        %v3249 = vsub.s32 6, %v3248
        %v3250 = vrot.slane %v3160, %v3249
        %v3251 = vadd.f32 %v3245, %v3250
        %v3252 = vtanh.pop %v3251
        %v3253 = vadd.f32 %v3242, %v3252
        %3254 = vset.pattern.permute.xlu0 7
        %3255 = vperm.xlu0 %3254, %v1425
        %v3256 = vpop.permute.xlu0 %3255
        %v3258 = vlaneseq
        %v3259 = vshrl.u32 %v3258, 7
        %v3260 = vsub.s32 7, %v3259
        %v3261 = vrot.slane %v3160, %v3260
        %v3262 = vadd.f32 %v3256, %v3261
        %v3263 = vtanh.pop %v3262
        %v3264 = vadd.f32 %v3253, %v3263
        %3265 = vset.pattern.permute.xlu0 8
        %3266 = vperm.xlu0 %3265, %v1425
        %v3267 = vpop.permute.xlu0 %3266
        %v3269 = vlaneseq
        %v3270 = vshrl.u32 %v3269, 7
        %v3271 = vsub.s32 0, %v3270
        %v3272 = vrot.slane %v3161, %v3271
        %v3273 = vadd.f32 %v3267, %v3272
        %v3274 = vtanh.pop %v3273
        %v3275 = vadd.f32 %v3264, %v3274
        %3276 = vset.pattern.permute.xlu0 9
        %3277 = vperm.xlu0 %3276, %v1425
        %v3278 = vpop.permute.xlu0 %3277
        %v3280 = vlaneseq
        %v3281 = vshrl.u32 %v3280, 7
        %v3282 = vsub.s32 1, %v3281
        %v3283 = vrot.slane %v3161, %v3282
        %v3284 = vadd.f32 %v3278, %v3283
        %v3285 = vtanh.pop %v3284
        %v3286 = vadd.f32 %v3275, %v3285
        %3287 = vset.pattern.permute.xlu0 10
        %3288 = vperm.xlu0 %3287, %v1425
        %v3289 = vpop.permute.xlu0 %3288
        %v3291 = vlaneseq
        %v3292 = vshrl.u32 %v3291, 7
        %v3293 = vsub.s32 2, %v3292
        %v3294 = vrot.slane %v3161, %v3293
        %v3295 = vadd.f32 %v3289, %v3294
        %v3296 = vtanh.pop %v3295
        %v3297 = vadd.f32 %v3286, %v3296
        %3298 = vset.pattern.permute.xlu0 11
        %3299 = vperm.xlu0 %3298, %v1425
        %v3300 = vpop.permute.xlu0 %3299
        %v3302 = vlaneseq
        %v3303 = vshrl.u32 %v3302, 7
        %v3304 = vsub.s32 3, %v3303
        %v3305 = vrot.slane %v3161, %v3304
        %v3306 = vadd.f32 %v3300, %v3305
        %v3307 = vtanh.pop %v3306
        %v3308 = vadd.f32 %v3297, %v3307
        %3309 = vset.pattern.permute.xlu0 12
        %3310 = vperm.xlu0 %3309, %v1425
        %v3311 = vpop.permute.xlu0 %3310
        %v3313 = vlaneseq
        %v3314 = vshrl.u32 %v3313, 7
        %v3315 = vsub.s32 4, %v3314
        %v3316 = vrot.slane %v3161, %v3315
        %v3317 = vadd.f32 %v3311, %v3316
        %v3318 = vtanh.pop %v3317
        %v3319 = vadd.f32 %v3308, %v3318
        %3320 = vset.pattern.permute.xlu0 13
        %3321 = vperm.xlu0 %3320, %v1425
        %v3322 = vpop.permute.xlu0 %3321
        %v3324 = vlaneseq
        %v3325 = vshrl.u32 %v3324, 7
        %v3326 = vsub.s32 5, %v3325
        %v3327 = vrot.slane %v3161, %v3326
        %v3328 = vadd.f32 %v3322, %v3327
        %v3329 = vtanh.pop %v3328
        %v3330 = vadd.f32 %v3319, %v3329
        %3331 = vset.pattern.permute.xlu0 14
        %3332 = vperm.xlu0 %3331, %v1425
        %v3333 = vpop.permute.xlu0 %3332
        %v3335 = vlaneseq
        %v3336 = vshrl.u32 %v3335, 7
        %v3337 = vsub.s32 6, %v3336
        %v3338 = vrot.slane %v3161, %v3337
        %v3339 = vadd.f32 %v3333, %v3338
        %v3340 = vtanh.pop %v3339
        %v3341 = vadd.f32 %v3330, %v3340
        %3342 = vset.pattern.permute.xlu0 15
        %3343 = vperm.xlu0 %3342, %v1425
        %v3344 = vpop.permute.xlu0 %3343
        %v3346 = vlaneseq
        %v3347 = vshrl.u32 %v3346, 7
        %v3348 = vsub.s32 7, %v3347
        %v3349 = vrot.slane %v3161, %v3348
        %v3350 = vadd.f32 %v3344, %v3349
        %v3351 = vtanh.pop %v3350
        %v3352 = vadd.f32 %v3341, %v3351
        %3353 = vset.pattern.permute.xlu0 16
        %3354 = vperm.xlu0 %3353, %v1425
        %v3355 = vpop.permute.xlu0 %3354
        %v3357 = vlaneseq
        %v3358 = vshrl.u32 %v3357, 7
        %v3359 = vsub.s32 0, %v3358
        %v3360 = vrot.slane %v3162, %v3359
        %v3361 = vadd.f32 %v3355, %v3360
        %v3362 = vtanh.pop %v3361
        %v3363 = vadd.f32 %v3352, %v3362
        %3364 = vset.pattern.permute.xlu0 17
        %3365 = vperm.xlu0 %3364, %v1425
        %v3366 = vpop.permute.xlu0 %3365
        %v3368 = vlaneseq
        %v3369 = vshrl.u32 %v3368, 7
        %v3370 = vsub.s32 1, %v3369
        %v3371 = vrot.slane %v3162, %v3370
        %v3372 = vadd.f32 %v3366, %v3371
        %v3373 = vtanh.pop %v3372
        %v3374 = vadd.f32 %v3363, %v3373
        %3375 = vset.pattern.permute.xlu0 18
        %3376 = vperm.xlu0 %3375, %v1425
        %v3377 = vpop.permute.xlu0 %3376
        %v3379 = vlaneseq
        %v3380 = vshrl.u32 %v3379, 7
        %v3381 = vsub.s32 2, %v3380
        %v3382 = vrot.slane %v3162, %v3381
        %v3383 = vadd.f32 %v3377, %v3382
        %v3384 = vtanh.pop %v3383
        %v3385 = vadd.f32 %v3374, %v3384
        %3386 = vset.pattern.permute.xlu0 19
        %3387 = vperm.xlu0 %3386, %v1425
        %v3388 = vpop.permute.xlu0 %3387
        %v3390 = vlaneseq
        %v3391 = vshrl.u32 %v3390, 7
        %v3392 = vsub.s32 3, %v3391
        %v3393 = vrot.slane %v3162, %v3392
        %v3394 = vadd.f32 %v3388, %v3393
        %v3395 = vtanh.pop %v3394
        %v3396 = vadd.f32 %v3385, %v3395
        %3397 = vset.pattern.permute.xlu0 20
        %3398 = vperm.xlu0 %3397, %v1425
        %v3399 = vpop.permute.xlu0 %3398
        %v3401 = vlaneseq
        %v3402 = vshrl.u32 %v3401, 7
        %v3403 = vsub.s32 4, %v3402
        %v3404 = vrot.slane %v3162, %v3403
        %v3405 = vadd.f32 %v3399, %v3404
        %v3406 = vtanh.pop %v3405
        %v3407 = vadd.f32 %v3396, %v3406
        %3408 = vset.pattern.permute.xlu0 21
        %3409 = vperm.xlu0 %3408, %v1425
        %v3410 = vpop.permute.xlu0 %3409
        %v3412 = vlaneseq
        %v3413 = vshrl.u32 %v3412, 7
        %v3414 = vsub.s32 5, %v3413
        %v3415 = vrot.slane %v3162, %v3414
        %v3416 = vadd.f32 %v3410, %v3415
        %v3417 = vtanh.pop %v3416
        %v3418 = vadd.f32 %v3407, %v3417
        %3419 = vset.pattern.permute.xlu0 22
        %3420 = vperm.xlu0 %3419, %v1425
        %v3421 = vpop.permute.xlu0 %3420
        %v3423 = vlaneseq
        %v3424 = vshrl.u32 %v3423, 7
        %v3425 = vsub.s32 6, %v3424
        %v3426 = vrot.slane %v3162, %v3425
        %v3427 = vadd.f32 %v3421, %v3426
        %v3428 = vtanh.pop %v3427
        %v3429 = vadd.f32 %v3418, %v3428
        %3430 = vset.pattern.permute.xlu0 23
        %3431 = vperm.xlu0 %3430, %v1425
        %v3432 = vpop.permute.xlu0 %3431
        %v3434 = vlaneseq
        %v3435 = vshrl.u32 %v3434, 7
        %v3436 = vsub.s32 7, %v3435
        %v3437 = vrot.slane %v3162, %v3436
        %v3438 = vadd.f32 %v3432, %v3437
        %v3439 = vtanh.pop %v3438
        %v3440 = vadd.f32 %v3429, %v3439
        %v3441 = vmul.f32 %v3440, 1.442695
        %v3442 = vpow.pop %v3441
        %vm3443 = vcmask 64512
        %v3444 = vsel %vm3443, %v3442, 0.0
        %3445 = vadd.xlane.f32.xlu0 %v3444
        %v3446 = vpop.xlane.xlu0 %3445
        %v3447 = vrcp.pop %v3446
        %v3448 = vmul.f32 %v3442, %v3447
        %v3450 = vsel %vm3443, %v3448, 0
        %3452 = vmatprep.subr.mxu0 0.0
        %v3453 = vand.u32 %v2278, 4294901760
        %3454 = vmatpush1.msra.mxu0 %v3453
        %3455 = vmatprep.subr.mxu0 0.0
        %3456 = vmatpush1.msra.mxu0 0.0
        %3457 = vmatprep.subr.mxu0 0.0
        %3458 = vmatpush1.msra.mxu0 0.0
        %3459 = vmatprep.subr.mxu0 0.0
        %3460 = vmatpush1.msra.mxu0 0.0
        %3461 = vmatprep.subr.mxu0 0.0
        %3462 = vmatpush1.msra.mxu0 0.0
        %3463 = vmatprep.subr.mxu0 0.0
        %3464 = vmatpush1.msra.mxu0 0.0
        %3465 = vmatprep.subr.mxu0 0.0
        %3466 = vmatpush1.msra.mxu0 0.0
        %3467 = vmatprep.subr.mxu0 0.0
        %3468 = vmatpush1.msra.mxu0 0.0
        %3469 = vmatprep.subr.mxu0 0.0
        %3470 = vmatpush1.msra.mxu0 0.0
        %3471 = vmatprep.subr.mxu0 0.0
        %3472 = vmatpush1.msra.mxu0 0.0
        %3473 = vmatprep.subr.mxu0 0.0
        %3474 = vmatpush1.msra.mxu0 0.0
        %3475 = vmatprep.subr.mxu0 0.0
        %3476 = vmatpush1.msra.mxu0 0.0
        %3477 = vmatprep.subr.mxu0 0.0
        %3478 = vmatpush1.msra.mxu0 0.0
        %3479 = vmatprep.subr.mxu0 0.0
        %3480 = vmatpush1.msra.mxu0 0.0
        %3481 = vmatprep.subr.mxu0 0.0
        %3482 = vmatpush1.msra.mxu0 0.0
        %3483 = vmatprep.subr.mxu0 0.0
        %3484 = vmatpush1.msra.mxu0 0.0
        %3485 = vmatprep.subr.mxu0 0.0
        %3486 = vmatpush1.msra.mxu0 0.0
        %3487 = vmatprep.subr.mxu0 0.0
        %3488 = vmatpush1.msra.mxu0 0.0
        %3489 = vmatprep.subr.mxu0 0.0
        %3490 = vmatpush1.msra.mxu0 0.0
        %3491 = vmatprep.subr.mxu0 0.0
        %3492 = vmatpush1.msra.mxu0 0.0
        %3493 = vmatprep.subr.mxu0 0.0
        %3494 = vmatpush1.msra.mxu0 0.0
        %3495 = vmatprep.subr.mxu0 0.0
        %3496 = vmatpush1.msra.mxu0 0.0
        %3497 = vmatprep.subr.mxu0 0.0
        %3498 = vmatpush1.msra.mxu0 0.0
        %3499 = vmatprep.subr.mxu0 0.0
        %3500 = vmatpush1.msra.mxu0 0.0
        %3501 = vmatprep.subr.mxu0 0.0
        %3502 = vmatpush1.msra.mxu0 0.0
        %3503 = vmatprep.subr.mxu0 0.0
        %3504 = vmatpush1.msra.mxu0 0.0
        %3505 = vmatprep.subr.mxu0 0.0
        %3506 = vmatpush1.msra.mxu0 0.0
        %3507 = vmatprep.subr.mxu0 0.0
        %3508 = vmatpush1.msra.mxu0 0.0
        %3509 = vmatprep.subr.mxu0 0.0
        %3510 = vmatpush1.msra.mxu0 0.0
        %3511 = vmatprep.subr.mxu0 0.0
        %3512 = vmatpush1.msra.mxu0 0.0
        %3513 = vmatprep.subr.mxu0 0.0
        %3514 = vmatpush1.msra.mxu0 0.0
        %3515 = vmatprep.subr.mxu0 0.0
        %3516 = vmatpush1.msra.mxu0 0.0
        %3517 = vmatprep.mubr.f32.mxu0 0.0
        %v3518 = vand.u32 %v3450, 4294901760
        %v3519 = vsub.f32 %v3450, %v3518
        %v3520 = vand.u32 %v3519, 4294901760
        %v3521 = vsub.f32 %v3519, %v3520
        %v3522 = vand.u32 %v3521, 4294901760
        %3523 = vmatmul.mubr.f32.gmra.mrb[0].mxu0 %v3522
        %v3524 = vpop.f32.mrb[0].mxu0
        %v3525 = vadd.f32 0.0, %v3524
        %v3526 = vpop.f32.mrb[0].mxu0
        %3527 = vdwg.mxu0
        %3528 = vmatprep.subr.mxu0 0.0
        %v3529 = vand.u32 %v2278, 4294901760
        %v3530 = vsub.f32 %v2278, %v3529
        %v3531 = vand.u32 %v3530, 4294901760
        %v3532 = vsub.f32 %v3530, %v3531
        %v3533 = vand.u32 %v3532, 4294901760
        %3534 = vmatpush1.msra.mxu0 %v3533
        %3535 = vmatprep.subr.mxu0 0.0
        %3536 = vmatpush1.msra.mxu0 0.0
        %3537 = vmatprep.subr.mxu0 0.0
        %3538 = vmatpush1.msra.mxu0 0.0
        %3539 = vmatprep.subr.mxu0 0.0
        %3540 = vmatpush1.msra.mxu0 0.0
        %3541 = vmatprep.subr.mxu0 0.0
        %3542 = vmatpush1.msra.mxu0 0.0
        %3543 = vmatprep.subr.mxu0 0.0
        %3544 = vmatpush1.msra.mxu0 0.0
        %3545 = vmatprep.subr.mxu0 0.0
        %3546 = vmatpush1.msra.mxu0 0.0
        %3547 = vmatprep.subr.mxu0 0.0
        %3548 = vmatpush1.msra.mxu0 0.0
        %3549 = vmatprep.subr.mxu0 0.0
        %3550 = vmatpush1.msra.mxu0 0.0
        %3551 = vmatprep.subr.mxu0 0.0
        %3552 = vmatpush1.msra.mxu0 0.0
        %3553 = vmatprep.subr.mxu0 0.0
        %3554 = vmatpush1.msra.mxu0 0.0
        %3555 = vmatprep.subr.mxu0 0.0
        %3556 = vmatpush1.msra.mxu0 0.0
        %3557 = vmatprep.subr.mxu0 0.0
        %3558 = vmatpush1.msra.mxu0 0.0
        %3559 = vmatprep.subr.mxu0 0.0
        %3560 = vmatpush1.msra.mxu0 0.0
        %3561 = vmatprep.subr.mxu0 0.0
        %3562 = vmatpush1.msra.mxu0 0.0
        %3563 = vmatprep.subr.mxu0 0.0
        %3564 = vmatpush1.msra.mxu0 0.0
        %3565 = vmatprep.subr.mxu0 0.0
        %3566 = vmatpush1.msra.mxu0 0.0
        %3567 = vmatprep.subr.mxu0 0.0
        %3568 = vmatpush1.msra.mxu0 0.0
        %3569 = vmatprep.subr.mxu0 0.0
        %3570 = vmatpush1.msra.mxu0 0.0
        %3571 = vmatprep.subr.mxu0 0.0
        %3572 = vmatpush1.msra.mxu0 0.0
        %3573 = vmatprep.subr.mxu0 0.0
        %3574 = vmatpush1.msra.mxu0 0.0
        %3575 = vmatprep.subr.mxu0 0.0
        %3576 = vmatpush1.msra.mxu0 0.0
        %3577 = vmatprep.subr.mxu0 0.0
        %3578 = vmatpush1.msra.mxu0 0.0
        %3579 = vmatprep.subr.mxu0 0.0
        %3580 = vmatpush1.msra.mxu0 0.0
        %3581 = vmatprep.subr.mxu0 0.0
        %3582 = vmatpush1.msra.mxu0 0.0
        %3583 = vmatprep.subr.mxu0 0.0
        %3584 = vmatpush1.msra.mxu0 0.0
        %3585 = vmatprep.subr.mxu0 0.0
        %3586 = vmatpush1.msra.mxu0 0.0
        %3587 = vmatprep.subr.mxu0 0.0
        %3588 = vmatpush1.msra.mxu0 0.0
        %3589 = vmatprep.subr.mxu0 0.0
        %3590 = vmatpush1.msra.mxu0 0.0
        %3591 = vmatprep.subr.mxu0 0.0
        %3592 = vmatpush1.msra.mxu0 0.0
        %3593 = vmatprep.subr.mxu0 0.0
        %3594 = vmatpush1.msra.mxu0 0.0
        %3595 = vmatprep.subr.mxu0 0.0
        %3596 = vmatpush1.msra.mxu0 0.0
        %3597 = vmatprep.mubr.f32.mxu0 0.0
        %v3598 = vand.u32 %v3450, 4294901760
        %3599 = vmatmul.mubr.f32.gmra.mrb[0].mxu0 %v3598
        %v3600 = vpop.f32.mrb[0].mxu0
        %v3601 = vadd.f32 %v3525, %v3600
        %v3602 = vpop.f32.mrb[0].mxu0
        %3603 = vdwg.mxu0
        %3604 = vmatprep.subr.mxu0 0.0
        %v3605 = vand.u32 %v2278, 4294901760
        %v3606 = vsub.f32 %v2278, %v3605
        %3607 = vmatpush1.msra.mxu0 %v3606
        %3608 = vmatprep.subr.mxu0 0.0
        %3609 = vmatpush1.msra.mxu0 0.0
        %3610 = vmatprep.subr.mxu0 0.0
        %3611 = vmatpush1.msra.mxu0 0.0
        %3612 = vmatprep.subr.mxu0 0.0
        %3613 = vmatpush1.msra.mxu0 0.0
        %3614 = vmatprep.subr.mxu0 0.0
        %3615 = vmatpush1.msra.mxu0 0.0
        %3616 = vmatprep.subr.mxu0 0.0
        %3617 = vmatpush1.msra.mxu0 0.0
        %3618 = vmatprep.subr.mxu0 0.0
        %3619 = vmatpush1.msra.mxu0 0.0
        %3620 = vmatprep.subr.mxu0 0.0
        %3621 = vmatpush1.msra.mxu0 0.0
        %3622 = vmatprep.subr.mxu0 0.0
        %3623 = vmatpush1.msra.mxu0 0.0
        %3624 = vmatprep.subr.mxu0 0.0
        %3625 = vmatpush1.msra.mxu0 0.0
        %3626 = vmatprep.subr.mxu0 0.0
        %3627 = vmatpush1.msra.mxu0 0.0
        %3628 = vmatprep.subr.mxu0 0.0
        %3629 = vmatpush1.msra.mxu0 0.0
        %3630 = vmatprep.subr.mxu0 0.0
        %3631 = vmatpush1.msra.mxu0 0.0
        %3632 = vmatprep.subr.mxu0 0.0
        %3633 = vmatpush1.msra.mxu0 0.0
        %3634 = vmatprep.subr.mxu0 0.0
        %3635 = vmatpush1.msra.mxu0 0.0
        %3636 = vmatprep.subr.mxu0 0.0
        %3637 = vmatpush1.msra.mxu0 0.0
        %3638 = vmatprep.subr.mxu0 0.0
        %3639 = vmatpush1.msra.mxu0 0.0
        %3640 = vmatprep.subr.mxu0 0.0
        %3641 = vmatpush1.msra.mxu0 0.0
        %3642 = vmatprep.subr.mxu0 0.0
        %3643 = vmatpush1.msra.mxu0 0.0
        %3644 = vmatprep.subr.mxu0 0.0
        %3645 = vmatpush1.msra.mxu0 0.0
        %3646 = vmatprep.subr.mxu0 0.0
        %3647 = vmatpush1.msra.mxu0 0.0
        %3648 = vmatprep.subr.mxu0 0.0
        %3649 = vmatpush1.msra.mxu0 0.0
        %3650 = vmatprep.subr.mxu0 0.0
        %3651 = vmatpush1.msra.mxu0 0.0
        %3652 = vmatprep.subr.mxu0 0.0
        %3653 = vmatpush1.msra.mxu0 0.0
        %3654 = vmatprep.subr.mxu0 0.0
        %3655 = vmatpush1.msra.mxu0 0.0
        %3656 = vmatprep.subr.mxu0 0.0
        %3657 = vmatpush1.msra.mxu0 0.0
        %3658 = vmatprep.subr.mxu0 0.0
        %3659 = vmatpush1.msra.mxu0 0.0
        %3660 = vmatprep.subr.mxu0 0.0
        %3661 = vmatpush1.msra.mxu0 0.0
        %3662 = vmatprep.subr.mxu0 0.0
        %3663 = vmatpush1.msra.mxu0 0.0
        %3664 = vmatprep.subr.mxu0 0.0
        %3665 = vmatpush1.msra.mxu0 0.0
        %3666 = vmatprep.subr.mxu0 0.0
        %3667 = vmatpush1.msra.mxu0 0.0
        %3668 = vmatprep.subr.mxu0 0.0
        %3669 = vmatpush1.msra.mxu0 0.0
        %3670 = vmatprep.mubr.f32.mxu0 0.0
        %v3671 = vand.u32 %v3450, 4294901760
        %v3672 = vsub.f32 %v3450, %v3671
        %3673 = vmatmul.mubr.f32.gmra.mrb[0].mxu0 %v3672
        %v3674 = vpop.f32.mrb[0].mxu0
        %v3675 = vadd.f32 %v3601, %v3674
        %v3676 = vpop.f32.mrb[0].mxu0
        %3677 = vdwg.mxu0
        %3678 = vmatprep.subr.mxu0 0.0
        %v3679 = vand.u32 %v2278, 4294901760
        %3680 = vmatpush1.msra.mxu0 %v3679
        %3681 = vmatprep.subr.mxu0 0.0
        %3682 = vmatpush1.msra.mxu0 0.0
        %3683 = vmatprep.subr.mxu0 0.0
        %3684 = vmatpush1.msra.mxu0 0.0
        %3685 = vmatprep.subr.mxu0 0.0
        %3686 = vmatpush1.msra.mxu0 0.0
        %3687 = vmatprep.subr.mxu0 0.0
        %3688 = vmatpush1.msra.mxu0 0.0
        %3689 = vmatprep.subr.mxu0 0.0
        %3690 = vmatpush1.msra.mxu0 0.0
        %3691 = vmatprep.subr.mxu0 0.0
        %3692 = vmatpush1.msra.mxu0 0.0
        %3693 = vmatprep.subr.mxu0 0.0
        %3694 = vmatpush1.msra.mxu0 0.0
        %3695 = vmatprep.subr.mxu0 0.0
        %3696 = vmatpush1.msra.mxu0 0.0
        %3697 = vmatprep.subr.mxu0 0.0
        %3698 = vmatpush1.msra.mxu0 0.0
        %3699 = vmatprep.subr.mxu0 0.0
        %3700 = vmatpush1.msra.mxu0 0.0
        %3701 = vmatprep.subr.mxu0 0.0
        %3702 = vmatpush1.msra.mxu0 0.0
        %3703 = vmatprep.subr.mxu0 0.0
        %3704 = vmatpush1.msra.mxu0 0.0
        %3705 = vmatprep.subr.mxu0 0.0
        %3706 = vmatpush1.msra.mxu0 0.0
        %3707 = vmatprep.subr.mxu0 0.0
        %3708 = vmatpush1.msra.mxu0 0.0
        %3709 = vmatprep.subr.mxu0 0.0
        %3710 = vmatpush1.msra.mxu0 0.0
        %3711 = vmatprep.subr.mxu0 0.0
        %3712 = vmatpush1.msra.mxu0 0.0
        %3713 = vmatprep.subr.mxu0 0.0
        %3714 = vmatpush1.msra.mxu0 0.0
        %3715 = vmatprep.subr.mxu0 0.0
        %3716 = vmatpush1.msra.mxu0 0.0
        %3717 = vmatprep.subr.mxu0 0.0
        %3718 = vmatpush1.msra.mxu0 0.0
        %3719 = vmatprep.subr.mxu0 0.0
        %3720 = vmatpush1.msra.mxu0 0.0
        %3721 = vmatprep.subr.mxu0 0.0
        %3722 = vmatpush1.msra.mxu0 0.0
        %3723 = vmatprep.subr.mxu0 0.0
        %3724 = vmatpush1.msra.mxu0 0.0
        %3725 = vmatprep.subr.mxu0 0.0
        %3726 = vmatpush1.msra.mxu0 0.0
        %3727 = vmatprep.subr.mxu0 0.0
        %3728 = vmatpush1.msra.mxu0 0.0
        %3729 = vmatprep.subr.mxu0 0.0
        %3730 = vmatpush1.msra.mxu0 0.0
        %3731 = vmatprep.subr.mxu0 0.0
        %3732 = vmatpush1.msra.mxu0 0.0
        %3733 = vmatprep.subr.mxu0 0.0
        %3734 = vmatpush1.msra.mxu0 0.0
        %3735 = vmatprep.subr.mxu0 0.0
        %3736 = vmatpush1.msra.mxu0 0.0
        %3737 = vmatprep.subr.mxu0 0.0
        %3738 = vmatpush1.msra.mxu0 0.0
        %3739 = vmatprep.subr.mxu0 0.0
        %3740 = vmatpush1.msra.mxu0 0.0
        %3741 = vmatprep.subr.mxu0 0.0
        %3742 = vmatpush1.msra.mxu0 0.0
        %3743 = vmatprep.mubr.f32.mxu0 0.0
        %v3744 = vand.u32 %v3450, 4294901760
        %v3745 = vsub.f32 %v3450, %v3744
        %v3746 = vand.u32 %v3745, 4294901760
        %3747 = vmatmul.mubr.f32.gmra.mrb[0].mxu0 %v3746
        %v3748 = vpop.f32.mrb[0].mxu0
        %v3749 = vadd.f32 %v3675, %v3748
        %v3750 = vpop.f32.mrb[0].mxu0
        %3751 = vdwg.mxu0
        %3752 = vmatprep.subr.mxu0 0.0
        %v3753 = vand.u32 %v2278, 4294901760
        %v3754 = vsub.f32 %v2278, %v3753
        %v3755 = vand.u32 %v3754, 4294901760
        %3756 = vmatpush1.msra.mxu0 %v3755
        %3757 = vmatprep.subr.mxu0 0.0
        %3758 = vmatpush1.msra.mxu0 0.0
        %3759 = vmatprep.subr.mxu0 0.0
        %3760 = vmatpush1.msra.mxu0 0.0
        %3761 = vmatprep.subr.mxu0 0.0
        %3762 = vmatpush1.msra.mxu0 0.0
        %3763 = vmatprep.subr.mxu0 0.0
        %3764 = vmatpush1.msra.mxu0 0.0
        %3765 = vmatprep.subr.mxu0 0.0
        %3766 = vmatpush1.msra.mxu0 0.0
        %3767 = vmatprep.subr.mxu0 0.0
        %3768 = vmatpush1.msra.mxu0 0.0
        %3769 = vmatprep.subr.mxu0 0.0
        %3770 = vmatpush1.msra.mxu0 0.0
        %3771 = vmatprep.subr.mxu0 0.0
        %3772 = vmatpush1.msra.mxu0 0.0
        %3773 = vmatprep.subr.mxu0 0.0
        %3774 = vmatpush1.msra.mxu0 0.0
        %3775 = vmatprep.subr.mxu0 0.0
        %3776 = vmatpush1.msra.mxu0 0.0
        %3777 = vmatprep.subr.mxu0 0.0
        %3778 = vmatpush1.msra.mxu0 0.0
        %3779 = vmatprep.subr.mxu0 0.0
        %3780 = vmatpush1.msra.mxu0 0.0
        %3781 = vmatprep.subr.mxu0 0.0
        %3782 = vmatpush1.msra.mxu0 0.0
        %3783 = vmatprep.subr.mxu0 0.0
        %3784 = vmatpush1.msra.mxu0 0.0
        %3785 = vmatprep.subr.mxu0 0.0
        %3786 = vmatpush1.msra.mxu0 0.0
        %3787 = vmatprep.subr.mxu0 0.0
        %3788 = vmatpush1.msra.mxu0 0.0
        %3789 = vmatprep.subr.mxu0 0.0
        %3790 = vmatpush1.msra.mxu0 0.0
        %3791 = vmatprep.subr.mxu0 0.0
        %3792 = vmatpush1.msra.mxu0 0.0
        %3793 = vmatprep.subr.mxu0 0.0
        %3794 = vmatpush1.msra.mxu0 0.0
        %3795 = vmatprep.subr.mxu0 0.0
        %3796 = vmatpush1.msra.mxu0 0.0
        %3797 = vmatprep.subr.mxu0 0.0
        %3798 = vmatpush1.msra.mxu0 0.0
        %3799 = vmatprep.subr.mxu0 0.0
        %3800 = vmatpush1.msra.mxu0 0.0
        %3801 = vmatprep.subr.mxu0 0.0
        %3802 = vmatpush1.msra.mxu0 0.0
        %3803 = vmatprep.subr.mxu0 0.0
        %3804 = vmatpush1.msra.mxu0 0.0
        %3805 = vmatprep.subr.mxu0 0.0
        %3806 = vmatpush1.msra.mxu0 0.0
        %3807 = vmatprep.subr.mxu0 0.0
        %3808 = vmatpush1.msra.mxu0 0.0
        %3809 = vmatprep.subr.mxu0 0.0
        %3810 = vmatpush1.msra.mxu0 0.0
        %3811 = vmatprep.subr.mxu0 0.0
        %3812 = vmatpush1.msra.mxu0 0.0
        %3813 = vmatprep.subr.mxu0 0.0
        %3814 = vmatpush1.msra.mxu0 0.0
        %3815 = vmatprep.subr.mxu0 0.0
        %3816 = vmatpush1.msra.mxu0 0.0
        %3817 = vmatprep.subr.mxu0 0.0
        %3818 = vmatpush1.msra.mxu0 0.0
        %3819 = vmatprep.mubr.f32.mxu0 0.0
        %v3820 = vand.u32 %v3450, 4294901760
        %3821 = vmatmul.mubr.f32.gmra.mrb[0].mxu0 %v3820
        %v3822 = vpop.f32.mrb[0].mxu0
        %v3823 = vadd.f32 %v3749, %v3822
        %v3824 = vpop.f32.mrb[0].mxu0
        %3825 = vdwg.mxu0
        %3826 = vmatprep.subr.mxu0 0.0
        %v3827 = vand.u32 %v2278, 4294901760
        %3828 = vmatpush1.msra.mxu0 %v3827
        %3829 = vmatprep.subr.mxu0 0.0
        %3830 = vmatpush1.msra.mxu0 0.0
        %3831 = vmatprep.subr.mxu0 0.0
        %3832 = vmatpush1.msra.mxu0 0.0
        %3833 = vmatprep.subr.mxu0 0.0
        %3834 = vmatpush1.msra.mxu0 0.0
        %3835 = vmatprep.subr.mxu0 0.0
        %3836 = vmatpush1.msra.mxu0 0.0
        %3837 = vmatprep.subr.mxu0 0.0
        %3838 = vmatpush1.msra.mxu0 0.0
        %3839 = vmatprep.subr.mxu0 0.0
        %3840 = vmatpush1.msra.mxu0 0.0
        %3841 = vmatprep.subr.mxu0 0.0
        %3842 = vmatpush1.msra.mxu0 0.0
        %3843 = vmatprep.subr.mxu0 0.0
        %3844 = vmatpush1.msra.mxu0 0.0
        %3845 = vmatprep.subr.mxu0 0.0
        %3846 = vmatpush1.msra.mxu0 0.0
        %3847 = vmatprep.subr.mxu0 0.0
        %3848 = vmatpush1.msra.mxu0 0.0
        %3849 = vmatprep.subr.mxu0 0.0
        %3850 = vmatpush1.msra.mxu0 0.0
        %3851 = vmatprep.subr.mxu0 0.0
        %3852 = vmatpush1.msra.mxu0 0.0
        %3853 = vmatprep.subr.mxu0 0.0
        %3854 = vmatpush1.msra.mxu0 0.0
        %3855 = vmatprep.subr.mxu0 0.0
        %3856 = vmatpush1.msra.mxu0 0.0
        %3857 = vmatprep.subr.mxu0 0.0
        %3858 = vmatpush1.msra.mxu0 0.0
        %3859 = vmatprep.subr.mxu0 0.0
        %3860 = vmatpush1.msra.mxu0 0.0
        %3861 = vmatprep.subr.mxu0 0.0
        %3862 = vmatpush1.msra.mxu0 0.0
        %3863 = vmatprep.subr.mxu0 0.0
        %3864 = vmatpush1.msra.mxu0 0.0
        %3865 = vmatprep.subr.mxu0 0.0
        %3866 = vmatpush1.msra.mxu0 0.0
        %3867 = vmatprep.subr.mxu0 0.0
        %3868 = vmatpush1.msra.mxu0 0.0
        %3869 = vmatprep.subr.mxu0 0.0
        %3870 = vmatpush1.msra.mxu0 0.0
        %3871 = vmatprep.subr.mxu0 0.0
        %3872 = vmatpush1.msra.mxu0 0.0
        %3873 = vmatprep.subr.mxu0 0.0
        %3874 = vmatpush1.msra.mxu0 0.0
        %3875 = vmatprep.subr.mxu0 0.0
        %3876 = vmatpush1.msra.mxu0 0.0
        %3877 = vmatprep.subr.mxu0 0.0
        %3878 = vmatpush1.msra.mxu0 0.0
        %3879 = vmatprep.subr.mxu0 0.0
        %3880 = vmatpush1.msra.mxu0 0.0
        %3881 = vmatprep.subr.mxu0 0.0
        %3882 = vmatpush1.msra.mxu0 0.0
        %3883 = vmatprep.subr.mxu0 0.0
        %3884 = vmatpush1.msra.mxu0 0.0
        %3885 = vmatprep.subr.mxu0 0.0
        %3886 = vmatpush1.msra.mxu0 0.0
        %3887 = vmatprep.subr.mxu0 0.0
        %3888 = vmatpush1.msra.mxu0 0.0
        %3889 = vmatprep.subr.mxu0 0.0
        %3890 = vmatpush1.msra.mxu0 0.0
        %3891 = vmatprep.mubr.f32.mxu0 0.0
        %v3892 = vand.u32 %v3450, 4294901760
        %3893 = vmatmul.mubr.f32.gmra.mrb[0].mxu0 %v3892
        %v3894 = vpop.f32.mrb[0].mxu0
        %v3895 = vadd.f32 %v3823, %v3894
        %v3896 = vpop.f32.mrb[0].mxu0
        %3897 = vdwg.mxu0
        %v3898 = vadd.f32 %v3142, %v3895
        %3899 = vset.pattern.permute.xlu0 24
        %3900 = vperm.xlu0 %3899, %v1425
        %v3901 = vpop.permute.xlu0 %3900
        %v3903 = vlaneseq
        %v3904 = vshrl.u32 %v3903, 7
        %v3905 = vsub.s32 0, %v3904
        %v3906 = vrot.slane %v3163, %v3905
        %v3907 = vadd.f32 %v3901, %v3906
        %v3908 = vtanh.pop %v3907
        %v3909 = vadd.f32 %v3908, 0.0
        %3910 = vset.pattern.permute.xlu0 25
        %3911 = vperm.xlu0 %3910, %v1425
        %v3912 = vpop.permute.xlu0 %3911
        %v3914 = vlaneseq
        %v3915 = vshrl.u32 %v3914, 7
        %v3916 = vsub.s32 1, %v3915
        %v3917 = vrot.slane %v3163, %v3916
        %v3918 = vadd.f32 %v3912, %v3917
        %v3919 = vtanh.pop %v3918
        %v3920 = vadd.f32 %v3909, %v3919
        %3921 = vset.pattern.permute.xlu0 26
        %3922 = vperm.xlu0 %3921, %v1425
        %v3923 = vpop.permute.xlu0 %3922
        %v3925 = vlaneseq
        %v3926 = vshrl.u32 %v3925, 7
        %v3927 = vsub.s32 2, %v3926
        %v3928 = vrot.slane %v3163, %v3927
        %v3929 = vadd.f32 %v3923, %v3928
        %v3930 = vtanh.pop %v3929
        %v3931 = vadd.f32 %v3920, %v3930
        %3932 = vset.pattern.permute.xlu0 27
        %3933 = vperm.xlu0 %3932, %v1425
        %v3934 = vpop.permute.xlu0 %3933
        %v3936 = vlaneseq
        %v3937 = vshrl.u32 %v3936, 7
        %v3938 = vsub.s32 3, %v3937
        %v3939 = vrot.slane %v3163, %v3938
        %v3940 = vadd.f32 %v3934, %v3939
        %v3941 = vtanh.pop %v3940
        %v3942 = vadd.f32 %v3931, %v3941
        %3943 = vset.pattern.permute.xlu0 28
        %3944 = vperm.xlu0 %3943, %v1425
        %v3945 = vpop.permute.xlu0 %3944
        %v3947 = vlaneseq
        %v3948 = vshrl.u32 %v3947, 7
        %v3949 = vsub.s32 4, %v3948
        %v3950 = vrot.slane %v3163, %v3949
        %v3951 = vadd.f32 %v3945, %v3950
        %v3952 = vtanh.pop %v3951
        %v3953 = vadd.f32 %v3942, %v3952
        %3954 = vset.pattern.permute.xlu0 29
        %3955 = vperm.xlu0 %3954, %v1425
        %v3956 = vpop.permute.xlu0 %3955
        %v3958 = vlaneseq
        %v3959 = vshrl.u32 %v3958, 7
        %v3960 = vsub.s32 5, %v3959
        %v3961 = vrot.slane %v3163, %v3960
        %v3962 = vadd.f32 %v3956, %v3961
        %v3963 = vtanh.pop %v3962
        %v3964 = vadd.f32 %v3953, %v3963
        %3965 = vset.pattern.permute.xlu0 30
        %3966 = vperm.xlu0 %3965, %v1425
        %v3967 = vpop.permute.xlu0 %3966
        %v3969 = vlaneseq
        %v3970 = vshrl.u32 %v3969, 7
        %v3971 = vsub.s32 6, %v3970
        %v3972 = vrot.slane %v3163, %v3971
        %v3973 = vadd.f32 %v3967, %v3972
        %v3974 = vtanh.pop %v3973
        %v3975 = vadd.f32 %v3964, %v3974
        %3976 = vset.pattern.permute.xlu0 31
        %3977 = vperm.xlu0 %3976, %v1425
        %v3978 = vpop.permute.xlu0 %3977
        %v3980 = vlaneseq
        %v3981 = vshrl.u32 %v3980, 7
        %v3982 = vsub.s32 7, %v3981
        %v3983 = vrot.slane %v3163, %v3982
        %v3984 = vadd.f32 %v3978, %v3983
        %v3985 = vtanh.pop %v3984
        %v3986 = vadd.f32 %v3975, %v3985
        %3987 = vset.pattern.permute.xlu0 32
        %3988 = vperm.xlu0 %3987, %v1425
        %v3989 = vpop.permute.xlu0 %3988
        %v3991 = vlaneseq
        %v3992 = vshrl.u32 %v3991, 7
        %v3993 = vsub.s32 0, %v3992
        %v3994 = vrot.slane %v3164, %v3993
        %v3995 = vadd.f32 %v3989, %v3994
        %v3996 = vtanh.pop %v3995
        %v3997 = vadd.f32 %v3986, %v3996
        %3998 = vset.pattern.permute.xlu0 33
        %3999 = vperm.xlu0 %3998, %v1425
        %v4000 = vpop.permute.xlu0 %3999
        %v4002 = vlaneseq
        %v4003 = vshrl.u32 %v4002, 7
        %v4004 = vsub.s32 1, %v4003
        %v4005 = vrot.slane %v3164, %v4004
        %v4006 = vadd.f32 %v4000, %v4005
        %v4007 = vtanh.pop %v4006
        %v4008 = vadd.f32 %v3997, %v4007
        %4009 = vset.pattern.permute.xlu0 34
        %4010 = vperm.xlu0 %4009, %v1425
        %v4011 = vpop.permute.xlu0 %4010
        %v4013 = vlaneseq
        %v4014 = vshrl.u32 %v4013, 7
        %v4015 = vsub.s32 2, %v4014
        %v4016 = vrot.slane %v3164, %v4015
        %v4017 = vadd.f32 %v4011, %v4016
        %v4018 = vtanh.pop %v4017
        %v4019 = vadd.f32 %v4008, %v4018
        %4020 = vset.pattern.permute.xlu0 35
        %4021 = vperm.xlu0 %4020, %v1425
        %v4022 = vpop.permute.xlu0 %4021
        %v4024 = vlaneseq
        %v4025 = vshrl.u32 %v4024, 7
        %v4026 = vsub.s32 3, %v4025
        %v4027 = vrot.slane %v3164, %v4026
        %v4028 = vadd.f32 %v4022, %v4027
        %v4029 = vtanh.pop %v4028
        %v4030 = vadd.f32 %v4019, %v4029
        %4031 = vset.pattern.permute.xlu0 36
        %4032 = vperm.xlu0 %4031, %v1425
        %v4033 = vpop.permute.xlu0 %4032
        %v4035 = vlaneseq
        %v4036 = vshrl.u32 %v4035, 7
        %v4037 = vsub.s32 4, %v4036
        %v4038 = vrot.slane %v3164, %v4037
        %v4039 = vadd.f32 %v4033, %v4038
        %v4040 = vtanh.pop %v4039
        %v4041 = vadd.f32 %v4030, %v4040
        %4042 = vset.pattern.permute.xlu0 37
        %4043 = vperm.xlu0 %4042, %v1425
        %v4044 = vpop.permute.xlu0 %4043
        %v4046 = vlaneseq
        %v4047 = vshrl.u32 %v4046, 7
        %v4048 = vsub.s32 5, %v4047
        %v4049 = vrot.slane %v3164, %v4048
        %v4050 = vadd.f32 %v4044, %v4049
        %v4051 = vtanh.pop %v4050
        %v4052 = vadd.f32 %v4041, %v4051
        %4053 = vset.pattern.permute.xlu0 38
        %4054 = vperm.xlu0 %4053, %v1425
        %v4055 = vpop.permute.xlu0 %4054
        %v4057 = vlaneseq
        %v4058 = vshrl.u32 %v4057, 7
        %v4059 = vsub.s32 6, %v4058
        %v4060 = vrot.slane %v3164, %v4059
        %v4061 = vadd.f32 %v4055, %v4060
        %v4062 = vtanh.pop %v4061
        %v4063 = vadd.f32 %v4052, %v4062
        %4064 = vset.pattern.permute.xlu0 39
        %4065 = vperm.xlu0 %4064, %v1425
        %v4066 = vpop.permute.xlu0 %4065
        %v4068 = vlaneseq
        %v4069 = vshrl.u32 %v4068, 7
        %v4070 = vsub.s32 7, %v4069
        %v4071 = vrot.slane %v3164, %v4070
        %v4072 = vadd.f32 %v4066, %v4071
        %v4073 = vtanh.pop %v4072
        %v4074 = vadd.f32 %v4063, %v4073
        %4075 = vset.pattern.permute.xlu0 40
        %4076 = vperm.xlu0 %4075, %v1425
        %v4077 = vpop.permute.xlu0 %4076
        %v4079 = vlaneseq
        %v4080 = vshrl.u32 %v4079, 7
        %v4081 = vsub.s32 0, %v4080
        %v4082 = vrot.slane %v3165, %v4081
        %v4083 = vadd.f32 %v4077, %v4082
        %v4084 = vtanh.pop %v4083
        %v4085 = vadd.f32 %v4074, %v4084
        %4086 = vset.pattern.permute.xlu0 41
        %4087 = vperm.xlu0 %4086, %v1425
        %v4088 = vpop.permute.xlu0 %4087
        %v4090 = vlaneseq
        %v4091 = vshrl.u32 %v4090, 7
        %v4092 = vsub.s32 1, %v4091
        %v4093 = vrot.slane %v3165, %v4092
        %v4094 = vadd.f32 %v4088, %v4093
        %v4095 = vtanh.pop %v4094
        %v4096 = vadd.f32 %v4085, %v4095
        %4097 = vset.pattern.permute.xlu0 42
        %4098 = vperm.xlu0 %4097, %v1425
        %v4099 = vpop.permute.xlu0 %4098
        %v4101 = vlaneseq
        %v4102 = vshrl.u32 %v4101, 7
        %v4103 = vsub.s32 2, %v4102
        %v4104 = vrot.slane %v3165, %v4103
        %v4105 = vadd.f32 %v4099, %v4104
        %v4106 = vtanh.pop %v4105
        %v4107 = vadd.f32 %v4096, %v4106
        %4108 = vset.pattern.permute.xlu0 43
        %4109 = vperm.xlu0 %4108, %v1425
        %v4110 = vpop.permute.xlu0 %4109
        %v4112 = vlaneseq
        %v4113 = vshrl.u32 %v4112, 7
        %v4114 = vsub.s32 3, %v4113
        %v4115 = vrot.slane %v3165, %v4114
        %v4116 = vadd.f32 %v4110, %v4115
        %v4117 = vtanh.pop %v4116
        %v4118 = vadd.f32 %v4107, %v4117
        %4119 = vset.pattern.permute.xlu0 44
        %4120 = vperm.xlu0 %4119, %v1425
        %v4121 = vpop.permute.xlu0 %4120
        %v4123 = vlaneseq
        %v4124 = vshrl.u32 %v4123, 7
        %v4125 = vsub.s32 4, %v4124
        %v4126 = vrot.slane %v3165, %v4125
        %v4127 = vadd.f32 %v4121, %v4126
        %v4128 = vtanh.pop %v4127
        %v4129 = vadd.f32 %v4118, %v4128
        %4130 = vset.pattern.permute.xlu0 45
        %4131 = vperm.xlu0 %4130, %v1425
        %v4132 = vpop.permute.xlu0 %4131
        %v4134 = vlaneseq
        %v4135 = vshrl.u32 %v4134, 7
        %v4136 = vsub.s32 5, %v4135
        %v4137 = vrot.slane %v3165, %v4136
        %v4138 = vadd.f32 %v4132, %v4137
        %v4139 = vtanh.pop %v4138
        %v4140 = vadd.f32 %v4129, %v4139
        %4141 = vset.pattern.permute.xlu0 46
        %4142 = vperm.xlu0 %4141, %v1425
        %v4143 = vpop.permute.xlu0 %4142
        %v4145 = vlaneseq
        %v4146 = vshrl.u32 %v4145, 7
        %v4147 = vsub.s32 6, %v4146
        %v4148 = vrot.slane %v3165, %v4147
        %v4149 = vadd.f32 %v4143, %v4148
        %v4150 = vtanh.pop %v4149
        %v4151 = vadd.f32 %v4140, %v4150
        %4152 = vset.pattern.permute.xlu0 47
        %4153 = vperm.xlu0 %4152, %v1425
        %v4154 = vpop.permute.xlu0 %4153
        %v4156 = vlaneseq
        %v4157 = vshrl.u32 %v4156, 7
        %v4158 = vsub.s32 7, %v4157
        %v4159 = vrot.slane %v3165, %v4158
        %v4160 = vadd.f32 %v4154, %v4159
        %v4161 = vtanh.pop %v4160
        %v4162 = vadd.f32 %v4151, %v4161
        %v4163 = vmul.f32 %v4162, 1.442695
        %v4164 = vpow.pop %v4163
        %v4165 = vsel %vm3443, %v4164, 0.0
        %4166 = vadd.xlane.f32.xlu0 %v4165
        %v4167 = vpop.xlane.xlu0 %4166
        %v4168 = vrcp.pop %v4167
        %v4169 = vmul.f32 %v4164, %v4168
        %v4171 = vsel %vm3443, %v4169, 0
        %4173 = vmatprep.subr.mxu0 0.0
        %v4174 = vand.u32 %v2280, 4294901760
        %4175 = vmatpush1.msra.mxu0 %v4174
        %4176 = vmatprep.subr.mxu0 0.0
        %4177 = vmatpush1.msra.mxu0 0.0
        %4178 = vmatprep.subr.mxu0 0.0
        %4179 = vmatpush1.msra.mxu0 0.0
        %4180 = vmatprep.subr.mxu0 0.0
        %4181 = vmatpush1.msra.mxu0 0.0
        %4182 = vmatprep.subr.mxu0 0.0
        %4183 = vmatpush1.msra.mxu0 0.0
        %4184 = vmatprep.subr.mxu0 0.0
        %4185 = vmatpush1.msra.mxu0 0.0
        %4186 = vmatprep.subr.mxu0 0.0
        %4187 = vmatpush1.msra.mxu0 0.0
        %4188 = vmatprep.subr.mxu0 0.0
        %4189 = vmatpush1.msra.mxu0 0.0
        %4190 = vmatprep.subr.mxu0 0.0
        %4191 = vmatpush1.msra.mxu0 0.0
        %4192 = vmatprep.subr.mxu0 0.0
        %4193 = vmatpush1.msra.mxu0 0.0
        %4194 = vmatprep.subr.mxu0 0.0
        %4195 = vmatpush1.msra.mxu0 0.0
        %4196 = vmatprep.subr.mxu0 0.0
        %4197 = vmatpush1.msra.mxu0 0.0
        %4198 = vmatprep.subr.mxu0 0.0
        %4199 = vmatpush1.msra.mxu0 0.0
        %4200 = vmatprep.subr.mxu0 0.0
        %4201 = vmatpush1.msra.mxu0 0.0
        %4202 = vmatprep.subr.mxu0 0.0
        %4203 = vmatpush1.msra.mxu0 0.0
        %4204 = vmatprep.subr.mxu0 0.0
        %4205 = vmatpush1.msra.mxu0 0.0
        %4206 = vmatprep.subr.mxu0 0.0
        %4207 = vmatpush1.msra.mxu0 0.0
        %4208 = vmatprep.subr.mxu0 0.0
        %4209 = vmatpush1.msra.mxu0 0.0
        %4210 = vmatprep.subr.mxu0 0.0
        %4211 = vmatpush1.msra.mxu0 0.0
        %4212 = vmatprep.subr.mxu0 0.0
        %4213 = vmatpush1.msra.mxu0 0.0
        %4214 = vmatprep.subr.mxu0 0.0
        %4215 = vmatpush1.msra.mxu0 0.0
        %4216 = vmatprep.subr.mxu0 0.0
        %4217 = vmatpush1.msra.mxu0 0.0
        %4218 = vmatprep.subr.mxu0 0.0
        %4219 = vmatpush1.msra.mxu0 0.0
        %4220 = vmatprep.subr.mxu0 0.0
        %4221 = vmatpush1.msra.mxu0 0.0
        %4222 = vmatprep.subr.mxu0 0.0
        %4223 = vmatpush1.msra.mxu0 0.0
        %4224 = vmatprep.subr.mxu0 0.0
        %4225 = vmatpush1.msra.mxu0 0.0
        %4226 = vmatprep.subr.mxu0 0.0
        %4227 = vmatpush1.msra.mxu0 0.0
        %4228 = vmatprep.subr.mxu0 0.0
        %4229 = vmatpush1.msra.mxu0 0.0
        %4230 = vmatprep.subr.mxu0 0.0
        %4231 = vmatpush1.msra.mxu0 0.0
        %4232 = vmatprep.subr.mxu0 0.0
        %4233 = vmatpush1.msra.mxu0 0.0
        %4234 = vmatprep.subr.mxu0 0.0
        %4235 = vmatpush1.msra.mxu0 0.0
        %4236 = vmatprep.subr.mxu0 0.0
        %4237 = vmatpush1.msra.mxu0 0.0
        %4238 = vmatprep.mubr.f32.mxu0 0.0
        %v4239 = vand.u32 %v4171, 4294901760
        %v4240 = vsub.f32 %v4171, %v4239
        %v4241 = vand.u32 %v4240, 4294901760
        %v4242 = vsub.f32 %v4240, %v4241
        %v4243 = vand.u32 %v4242, 4294901760
        %4244 = vmatmul.mubr.f32.gmra.mrb[0].mxu0 %v4243
        %v4245 = vpop.f32.mrb[0].mxu0
        %v4246 = vadd.f32 0.0, %v4245
        %v4247 = vpop.f32.mrb[0].mxu0
        %4248 = vdwg.mxu0
        %4249 = vmatprep.subr.mxu0 0.0
        %v4250 = vand.u32 %v2280, 4294901760
        %v4251 = vsub.f32 %v2280, %v4250
        %v4252 = vand.u32 %v4251, 4294901760
        %v4253 = vsub.f32 %v4251, %v4252
        %v4254 = vand.u32 %v4253, 4294901760
        %4255 = vmatpush1.msra.mxu0 %v4254
        %4256 = vmatprep.subr.mxu0 0.0
        %4257 = vmatpush1.msra.mxu0 0.0
        %4258 = vmatprep.subr.mxu0 0.0
        %4259 = vmatpush1.msra.mxu0 0.0
        %4260 = vmatprep.subr.mxu0 0.0
        %4261 = vmatpush1.msra.mxu0 0.0
        %4262 = vmatprep.subr.mxu0 0.0
        %4263 = vmatpush1.msra.mxu0 0.0
        %4264 = vmatprep.subr.mxu0 0.0
        %4265 = vmatpush1.msra.mxu0 0.0
        %4266 = vmatprep.subr.mxu0 0.0
        %4267 = vmatpush1.msra.mxu0 0.0
        %4268 = vmatprep.subr.mxu0 0.0
        %4269 = vmatpush1.msra.mxu0 0.0
        %4270 = vmatprep.subr.mxu0 0.0
        %4271 = vmatpush1.msra.mxu0 0.0
        %4272 = vmatprep.subr.mxu0 0.0
        %4273 = vmatpush1.msra.mxu0 0.0
        %4274 = vmatprep.subr.mxu0 0.0
        %4275 = vmatpush1.msra.mxu0 0.0
        %4276 = vmatprep.subr.mxu0 0.0
        %4277 = vmatpush1.msra.mxu0 0.0
        %4278 = vmatprep.subr.mxu0 0.0
        %4279 = vmatpush1.msra.mxu0 0.0
        %4280 = vmatprep.subr.mxu0 0.0
        %4281 = vmatpush1.msra.mxu0 0.0
        %4282 = vmatprep.subr.mxu0 0.0
        %4283 = vmatpush1.msra.mxu0 0.0
        %4284 = vmatprep.subr.mxu0 0.0
        %4285 = vmatpush1.msra.mxu0 0.0
        %4286 = vmatprep.subr.mxu0 0.0
        %4287 = vmatpush1.msra.mxu0 0.0
        %4288 = vmatprep.subr.mxu0 0.0
        %4289 = vmatpush1.msra.mxu0 0.0
        %4290 = vmatprep.subr.mxu0 0.0
        %4291 = vmatpush1.msra.mxu0 0.0
        %4292 = vmatprep.subr.mxu0 0.0
        %4293 = vmatpush1.msra.mxu0 0.0
        %4294 = vmatprep.subr.mxu0 0.0
        %4295 = vmatpush1.msra.mxu0 0.0
        %4296 = vmatprep.subr.mxu0 0.0
        %4297 = vmatpush1.msra.mxu0 0.0
        %4298 = vmatprep.subr.mxu0 0.0
        %4299 = vmatpush1.msra.mxu0 0.0
        %4300 = vmatprep.subr.mxu0 0.0
        %4301 = vmatpush1.msra.mxu0 0.0
        %4302 = vmatprep.subr.mxu0 0.0
        %4303 = vmatpush1.msra.mxu0 0.0
        %4304 = vmatprep.subr.mxu0 0.0
        %4305 = vmatpush1.msra.mxu0 0.0
        %4306 = vmatprep.subr.mxu0 0.0
        %4307 = vmatpush1.msra.mxu0 0.0
        %4308 = vmatprep.subr.mxu0 0.0
        %4309 = vmatpush1.msra.mxu0 0.0
        %4310 = vmatprep.subr.mxu0 0.0
        %4311 = vmatpush1.msra.mxu0 0.0
        %4312 = vmatprep.subr.mxu0 0.0
        %4313 = vmatpush1.msra.mxu0 0.0
        %4314 = vmatprep.subr.mxu0 0.0
        %4315 = vmatpush1.msra.mxu0 0.0
        %4316 = vmatprep.subr.mxu0 0.0
        %4317 = vmatpush1.msra.mxu0 0.0
        %4318 = vmatprep.mubr.f32.mxu0 0.0
        %v4319 = vand.u32 %v4171, 4294901760
        %4320 = vmatmul.mubr.f32.gmra.mrb[0].mxu0 %v4319
        %v4321 = vpop.f32.mrb[0].mxu0
        %v4322 = vadd.f32 %v4246, %v4321
        %v4323 = vpop.f32.mrb[0].mxu0
        %4324 = vdwg.mxu0
        %4325 = vmatprep.subr.mxu0 0.0
        %v4326 = vand.u32 %v2280, 4294901760
        %v4327 = vsub.f32 %v2280, %v4326
        %4328 = vmatpush1.msra.mxu0 %v4327
        %4329 = vmatprep.subr.mxu0 0.0
        %4330 = vmatpush1.msra.mxu0 0.0
        %4331 = vmatprep.subr.mxu0 0.0
        %4332 = vmatpush1.msra.mxu0 0.0
        %4333 = vmatprep.subr.mxu0 0.0
        %4334 = vmatpush1.msra.mxu0 0.0
        %4335 = vmatprep.subr.mxu0 0.0
        %4336 = vmatpush1.msra.mxu0 0.0
        %4337 = vmatprep.subr.mxu0 0.0
        %4338 = vmatpush1.msra.mxu0 0.0
        %4339 = vmatprep.subr.mxu0 0.0
        %4340 = vmatpush1.msra.mxu0 0.0
        %4341 = vmatprep.subr.mxu0 0.0
        %4342 = vmatpush1.msra.mxu0 0.0
        %4343 = vmatprep.subr.mxu0 0.0
        %4344 = vmatpush1.msra.mxu0 0.0
        %4345 = vmatprep.subr.mxu0 0.0
        %4346 = vmatpush1.msra.mxu0 0.0
        %4347 = vmatprep.subr.mxu0 0.0
        %4348 = vmatpush1.msra.mxu0 0.0
        %4349 = vmatprep.subr.mxu0 0.0
        %4350 = vmatpush1.msra.mxu0 0.0
        %4351 = vmatprep.subr.mxu0 0.0
        %4352 = vmatpush1.msra.mxu0 0.0
        %4353 = vmatprep.subr.mxu0 0.0
        %4354 = vmatpush1.msra.mxu0 0.0
        %4355 = vmatprep.subr.mxu0 0.0
        %4356 = vmatpush1.msra.mxu0 0.0
        %4357 = vmatprep.subr.mxu0 0.0
        %4358 = vmatpush1.msra.mxu0 0.0
        %4359 = vmatprep.subr.mxu0 0.0
        %4360 = vmatpush1.msra.mxu0 0.0
        %4361 = vmatprep.subr.mxu0 0.0
        %4362 = vmatpush1.msra.mxu0 0.0
        %4363 = vmatprep.subr.mxu0 0.0
        %4364 = vmatpush1.msra.mxu0 0.0
        %4365 = vmatprep.subr.mxu0 0.0
        %4366 = vmatpush1.msra.mxu0 0.0
        %4367 = vmatprep.subr.mxu0 0.0
        %4368 = vmatpush1.msra.mxu0 0.0
        %4369 = vmatprep.subr.mxu0 0.0
        %4370 = vmatpush1.msra.mxu0 0.0
        %4371 = vmatprep.subr.mxu0 0.0
        %4372 = vmatpush1.msra.mxu0 0.0
        %4373 = vmatprep.subr.mxu0 0.0
        %4374 = vmatpush1.msra.mxu0 0.0
        %4375 = vmatprep.subr.mxu0 0.0
        %4376 = vmatpush1.msra.mxu0 0.0
        %4377 = vmatprep.subr.mxu0 0.0
        %4378 = vmatpush1.msra.mxu0 0.0
        %4379 = vmatprep.subr.mxu0 0.0
        %4380 = vmatpush1.msra.mxu0 0.0
        %4381 = vmatprep.subr.mxu0 0.0
        %4382 = vmatpush1.msra.mxu0 0.0
        %4383 = vmatprep.subr.mxu0 0.0
        %4384 = vmatpush1.msra.mxu0 0.0
        %4385 = vmatprep.subr.mxu0 0.0
        %4386 = vmatpush1.msra.mxu0 0.0
        %4387 = vmatprep.subr.mxu0 0.0
        %4388 = vmatpush1.msra.mxu0 0.0
        %4389 = vmatprep.subr.mxu0 0.0
        %4390 = vmatpush1.msra.mxu0 0.0
        %4391 = vmatprep.mubr.f32.mxu0 0.0
        %v4392 = vand.u32 %v4171, 4294901760
        %v4393 = vsub.f32 %v4171, %v4392
        %4394 = vmatmul.mubr.f32.gmra.mrb[0].mxu0 %v4393
        %v4395 = vpop.f32.mrb[0].mxu0
        %v4396 = vadd.f32 %v4322, %v4395
        %v4397 = vpop.f32.mrb[0].mxu0
        %4398 = vdwg.mxu0
        %4399 = vmatprep.subr.mxu0 0.0
        %v4400 = vand.u32 %v2280, 4294901760
        %4401 = vmatpush1.msra.mxu0 %v4400
        %4402 = vmatprep.subr.mxu0 0.0
        %4403 = vmatpush1.msra.mxu0 0.0
        %4404 = vmatprep.subr.mxu0 0.0
        %4405 = vmatpush1.msra.mxu0 0.0
        %4406 = vmatprep.subr.mxu0 0.0
        %4407 = vmatpush1.msra.mxu0 0.0
        %4408 = vmatprep.subr.mxu0 0.0
        %4409 = vmatpush1.msra.mxu0 0.0
        %4410 = vmatprep.subr.mxu0 0.0
        %4411 = vmatpush1.msra.mxu0 0.0
        %4412 = vmatprep.subr.mxu0 0.0
        %4413 = vmatpush1.msra.mxu0 0.0
        %4414 = vmatprep.subr.mxu0 0.0
        %4415 = vmatpush1.msra.mxu0 0.0
        %4416 = vmatprep.subr.mxu0 0.0
        %4417 = vmatpush1.msra.mxu0 0.0
        %4418 = vmatprep.subr.mxu0 0.0
        %4419 = vmatpush1.msra.mxu0 0.0
        %4420 = vmatprep.subr.mxu0 0.0
        %4421 = vmatpush1.msra.mxu0 0.0
        %4422 = vmatprep.subr.mxu0 0.0
        %4423 = vmatpush1.msra.mxu0 0.0
        %4424 = vmatprep.subr.mxu0 0.0
        %4425 = vmatpush1.msra.mxu0 0.0
        %4426 = vmatprep.subr.mxu0 0.0
        %4427 = vmatpush1.msra.mxu0 0.0
        %4428 = vmatprep.subr.mxu0 0.0
        %4429 = vmatpush1.msra.mxu0 0.0
        %4430 = vmatprep.subr.mxu0 0.0
        %4431 = vmatpush1.msra.mxu0 0.0
        %4432 = vmatprep.subr.mxu0 0.0
        %4433 = vmatpush1.msra.mxu0 0.0
        %4434 = vmatprep.subr.mxu0 0.0
        %4435 = vmatpush1.msra.mxu0 0.0
        %4436 = vmatprep.subr.mxu0 0.0
        %4437 = vmatpush1.msra.mxu0 0.0
        %4438 = vmatprep.subr.mxu0 0.0
        %4439 = vmatpush1.msra.mxu0 0.0
        %4440 = vmatprep.subr.mxu0 0.0
        %4441 = vmatpush1.msra.mxu0 0.0
        %4442 = vmatprep.subr.mxu0 0.0
        %4443 = vmatpush1.msra.mxu0 0.0
        %4444 = vmatprep.subr.mxu0 0.0
        %4445 = vmatpush1.msra.mxu0 0.0
        %4446 = vmatprep.subr.mxu0 0.0
        %4447 = vmatpush1.msra.mxu0 0.0
        %4448 = vmatprep.subr.mxu0 0.0
        %4449 = vmatpush1.msra.mxu0 0.0
        %4450 = vmatprep.subr.mxu0 0.0
        %4451 = vmatpush1.msra.mxu0 0.0
        %4452 = vmatprep.subr.mxu0 0.0
        %4453 = vmatpush1.msra.mxu0 0.0
        %4454 = vmatprep.subr.mxu0 0.0
        %4455 = vmatpush1.msra.mxu0 0.0
        %4456 = vmatprep.subr.mxu0 0.0
        %4457 = vmatpush1.msra.mxu0 0.0
        %4458 = vmatprep.subr.mxu0 0.0
        %4459 = vmatpush1.msra.mxu0 0.0
        %4460 = vmatprep.subr.mxu0 0.0
        %4461 = vmatpush1.msra.mxu0 0.0
        %4462 = vmatprep.subr.mxu0 0.0
        %4463 = vmatpush1.msra.mxu0 0.0
        %4464 = vmatprep.mubr.f32.mxu0 0.0
        %v4465 = vand.u32 %v4171, 4294901760
        %v4466 = vsub.f32 %v4171, %v4465
        %v4467 = vand.u32 %v4466, 4294901760
        %4468 = vmatmul.mubr.f32.gmra.mrb[0].mxu0 %v4467
        %v4469 = vpop.f32.mrb[0].mxu0
        %v4470 = vadd.f32 %v4396, %v4469
        %v4471 = vpop.f32.mrb[0].mxu0
        %4472 = vdwg.mxu0
        %4473 = vmatprep.subr.mxu0 0.0
        %v4474 = vand.u32 %v2280, 4294901760
        %v4475 = vsub.f32 %v2280, %v4474
        %v4476 = vand.u32 %v4475, 4294901760
        %4477 = vmatpush1.msra.mxu0 %v4476
        %4478 = vmatprep.subr.mxu0 0.0
        %4479 = vmatpush1.msra.mxu0 0.0
        %4480 = vmatprep.subr.mxu0 0.0
        %4481 = vmatpush1.msra.mxu0 0.0
        %4482 = vmatprep.subr.mxu0 0.0
        %4483 = vmatpush1.msra.mxu0 0.0
        %4484 = vmatprep.subr.mxu0 0.0
        %4485 = vmatpush1.msra.mxu0 0.0
        %4486 = vmatprep.subr.mxu0 0.0
        %4487 = vmatpush1.msra.mxu0 0.0
        %4488 = vmatprep.subr.mxu0 0.0
        %4489 = vmatpush1.msra.mxu0 0.0
        %4490 = vmatprep.subr.mxu0 0.0
        %4491 = vmatpush1.msra.mxu0 0.0
        %4492 = vmatprep.subr.mxu0 0.0
        %4493 = vmatpush1.msra.mxu0 0.0
        %4494 = vmatprep.subr.mxu0 0.0
        %4495 = vmatpush1.msra.mxu0 0.0
        %4496 = vmatprep.subr.mxu0 0.0
        %4497 = vmatpush1.msra.mxu0 0.0
        %4498 = vmatprep.subr.mxu0 0.0
        %4499 = vmatpush1.msra.mxu0 0.0
        %4500 = vmatprep.subr.mxu0 0.0
        %4501 = vmatpush1.msra.mxu0 0.0
        %4502 = vmatprep.subr.mxu0 0.0
        %4503 = vmatpush1.msra.mxu0 0.0
        %4504 = vmatprep.subr.mxu0 0.0
        %4505 = vmatpush1.msra.mxu0 0.0
        %4506 = vmatprep.subr.mxu0 0.0
        %4507 = vmatpush1.msra.mxu0 0.0
        %4508 = vmatprep.subr.mxu0 0.0
        %4509 = vmatpush1.msra.mxu0 0.0
        %4510 = vmatprep.subr.mxu0 0.0
        %4511 = vmatpush1.msra.mxu0 0.0
        %4512 = vmatprep.subr.mxu0 0.0
        %4513 = vmatpush1.msra.mxu0 0.0
        %4514 = vmatprep.subr.mxu0 0.0
        %4515 = vmatpush1.msra.mxu0 0.0
        %4516 = vmatprep.subr.mxu0 0.0
        %4517 = vmatpush1.msra.mxu0 0.0
        %4518 = vmatprep.subr.mxu0 0.0
        %4519 = vmatpush1.msra.mxu0 0.0
        %4520 = vmatprep.subr.mxu0 0.0
        %4521 = vmatpush1.msra.mxu0 0.0
        %4522 = vmatprep.subr.mxu0 0.0
        %4523 = vmatpush1.msra.mxu0 0.0
        %4524 = vmatprep.subr.mxu0 0.0
        %4525 = vmatpush1.msra.mxu0 0.0
        %4526 = vmatprep.subr.mxu0 0.0
        %4527 = vmatpush1.msra.mxu0 0.0
        %4528 = vmatprep.subr.mxu0 0.0
        %4529 = vmatpush1.msra.mxu0 0.0
        %4530 = vmatprep.subr.mxu0 0.0
        %4531 = vmatpush1.msra.mxu0 0.0
        %4532 = vmatprep.subr.mxu0 0.0
        %4533 = vmatpush1.msra.mxu0 0.0
        %4534 = vmatprep.subr.mxu0 0.0
        %4535 = vmatpush1.msra.mxu0 0.0
        %4536 = vmatprep.subr.mxu0 0.0
        %4537 = vmatpush1.msra.mxu0 0.0
        %4538 = vmatprep.subr.mxu0 0.0
        %4539 = vmatpush1.msra.mxu0 0.0
        %4540 = vmatprep.mubr.f32.mxu0 0.0
        %v4541 = vand.u32 %v4171, 4294901760
        %4542 = vmatmul.mubr.f32.gmra.mrb[0].mxu0 %v4541
        %v4543 = vpop.f32.mrb[0].mxu0
        %v4544 = vadd.f32 %v4470, %v4543
        %v4545 = vpop.f32.mrb[0].mxu0
        %4546 = vdwg.mxu0
        %4547 = vmatprep.subr.mxu0 0.0
        %v4548 = vand.u32 %v2280, 4294901760
        %4549 = vmatpush1.msra.mxu0 %v4548
        %4550 = vmatprep.subr.mxu0 0.0
        %4551 = vmatpush1.msra.mxu0 0.0
        %4552 = vmatprep.subr.mxu0 0.0
        %4553 = vmatpush1.msra.mxu0 0.0
        %4554 = vmatprep.subr.mxu0 0.0
        %4555 = vmatpush1.msra.mxu0 0.0
        %4556 = vmatprep.subr.mxu0 0.0
        %4557 = vmatpush1.msra.mxu0 0.0
        %4558 = vmatprep.subr.mxu0 0.0
        %4559 = vmatpush1.msra.mxu0 0.0
        %4560 = vmatprep.subr.mxu0 0.0
        %4561 = vmatpush1.msra.mxu0 0.0
        %4562 = vmatprep.subr.mxu0 0.0
        %4563 = vmatpush1.msra.mxu0 0.0
        %4564 = vmatprep.subr.mxu0 0.0
        %4565 = vmatpush1.msra.mxu0 0.0
        %4566 = vmatprep.subr.mxu0 0.0
        %4567 = vmatpush1.msra.mxu0 0.0
        %4568 = vmatprep.subr.mxu0 0.0
        %4569 = vmatpush1.msra.mxu0 0.0
        %4570 = vmatprep.subr.mxu0 0.0
        %4571 = vmatpush1.msra.mxu0 0.0
        %4572 = vmatprep.subr.mxu0 0.0
        %4573 = vmatpush1.msra.mxu0 0.0
        %4574 = vmatprep.subr.mxu0 0.0
        %4575 = vmatpush1.msra.mxu0 0.0
        %4576 = vmatprep.subr.mxu0 0.0
        %4577 = vmatpush1.msra.mxu0 0.0
        %4578 = vmatprep.subr.mxu0 0.0
        %4579 = vmatpush1.msra.mxu0 0.0
        %4580 = vmatprep.subr.mxu0 0.0
        %4581 = vmatpush1.msra.mxu0 0.0
        %4582 = vmatprep.subr.mxu0 0.0
        %4583 = vmatpush1.msra.mxu0 0.0
        %4584 = vmatprep.subr.mxu0 0.0
        %4585 = vmatpush1.msra.mxu0 0.0
        %4586 = vmatprep.subr.mxu0 0.0
        %4587 = vmatpush1.msra.mxu0 0.0
        %4588 = vmatprep.subr.mxu0 0.0
        %4589 = vmatpush1.msra.mxu0 0.0
        %4590 = vmatprep.subr.mxu0 0.0
        %4591 = vmatpush1.msra.mxu0 0.0
        %4592 = vmatprep.subr.mxu0 0.0
        %4593 = vmatpush1.msra.mxu0 0.0
        %4594 = vmatprep.subr.mxu0 0.0
        %4595 = vmatpush1.msra.mxu0 0.0
        %4596 = vmatprep.subr.mxu0 0.0
        %4597 = vmatpush1.msra.mxu0 0.0
        %4598 = vmatprep.subr.mxu0 0.0
        %4599 = vmatpush1.msra.mxu0 0.0
        %4600 = vmatprep.subr.mxu0 0.0
        %4601 = vmatpush1.msra.mxu0 0.0
        %4602 = vmatprep.subr.mxu0 0.0
        %4603 = vmatpush1.msra.mxu0 0.0
        %4604 = vmatprep.subr.mxu0 0.0
        %4605 = vmatpush1.msra.mxu0 0.0
        %4606 = vmatprep.subr.mxu0 0.0
        %4607 = vmatpush1.msra.mxu0 0.0
        %4608 = vmatprep.subr.mxu0 0.0
        %4609 = vmatpush1.msra.mxu0 0.0
        %4610 = vmatprep.subr.mxu0 0.0
        %4611 = vmatpush1.msra.mxu0 0.0
        %4612 = vmatprep.mubr.f32.mxu0 0.0
        %v4613 = vand.u32 %v4171, 4294901760
        %4614 = vmatmul.mubr.f32.gmra.mrb[0].mxu0 %v4613
        %v4615 = vpop.f32.mrb[0].mxu0
        %v4616 = vadd.f32 %v4544, %v4615
        %v4617 = vpop.f32.mrb[0].mxu0
        %4618 = vdwg.mxu0
        %v4619 = vadd.f32 %v3898, %v4616
        %4620 = vset.pattern.permute.xlu0 48
        %4621 = vperm.xlu0 %4620, %v1425
        %v4622 = vpop.permute.xlu0 %4621
        %v4624 = vlaneseq
        %v4625 = vshrl.u32 %v4624, 7
        %v4626 = vsub.s32 0, %v4625
        %v4627 = vrot.slane %v3166, %v4626
        %v4628 = vadd.f32 %v4622, %v4627
        %v4629 = vtanh.pop %v4628
        %v4630 = vadd.f32 %v4629, 0.0
        %4631 = vset.pattern.permute.xlu0 49
        %4632 = vperm.xlu0 %4631, %v1425
        %v4633 = vpop.permute.xlu0 %4632
        %v4635 = vlaneseq
        %v4636 = vshrl.u32 %v4635, 7
        %v4637 = vsub.s32 1, %v4636
        %v4638 = vrot.slane %v3166, %v4637
        %v4639 = vadd.f32 %v4633, %v4638
        %v4640 = vtanh.pop %v4639
        %v4641 = vadd.f32 %v4630, %v4640
        %4642 = vset.pattern.permute.xlu0 50
        %4643 = vperm.xlu0 %4642, %v1425
        %v4644 = vpop.permute.xlu0 %4643
        %v4646 = vlaneseq
        %v4647 = vshrl.u32 %v4646, 7
        %v4648 = vsub.s32 2, %v4647
        %v4649 = vrot.slane %v3166, %v4648
        %v4650 = vadd.f32 %v4644, %v4649
        %v4651 = vtanh.pop %v4650
        %v4652 = vadd.f32 %v4641, %v4651
        %4653 = vset.pattern.permute.xlu0 51
        %4654 = vperm.xlu0 %4653, %v1425
        %v4655 = vpop.permute.xlu0 %4654
        %v4657 = vlaneseq
        %v4658 = vshrl.u32 %v4657, 7
        %v4659 = vsub.s32 3, %v4658
        %v4660 = vrot.slane %v3166, %v4659
        %v4661 = vadd.f32 %v4655, %v4660
        %v4662 = vtanh.pop %v4661
        %v4663 = vadd.f32 %v4652, %v4662
        %4664 = vset.pattern.permute.xlu0 52
        %4665 = vperm.xlu0 %4664, %v1425
        %v4666 = vpop.permute.xlu0 %4665
        %v4668 = vlaneseq
        %v4669 = vshrl.u32 %v4668, 7
        %v4670 = vsub.s32 4, %v4669
        %v4671 = vrot.slane %v3166, %v4670
        %v4672 = vadd.f32 %v4666, %v4671
        %v4673 = vtanh.pop %v4672
        %v4674 = vadd.f32 %v4663, %v4673
        %4675 = vset.pattern.permute.xlu0 53
        %4676 = vperm.xlu0 %4675, %v1425
        %v4677 = vpop.permute.xlu0 %4676
        %v4679 = vlaneseq
        %v4680 = vshrl.u32 %v4679, 7
        %v4681 = vsub.s32 5, %v4680
        %v4682 = vrot.slane %v3166, %v4681
        %v4683 = vadd.f32 %v4677, %v4682
        %v4684 = vtanh.pop %v4683
        %v4685 = vadd.f32 %v4674, %v4684
        %4686 = vset.pattern.permute.xlu0 54
        %4687 = vperm.xlu0 %4686, %v1425
        %v4688 = vpop.permute.xlu0 %4687
        %v4690 = vlaneseq
        %v4691 = vshrl.u32 %v4690, 7
        %v4692 = vsub.s32 6, %v4691
        %v4693 = vrot.slane %v3166, %v4692
        %v4694 = vadd.f32 %v4688, %v4693
        %v4695 = vtanh.pop %v4694
        %v4696 = vadd.f32 %v4685, %v4695
        %4697 = vset.pattern.permute.xlu0 55
        %4698 = vperm.xlu0 %4697, %v1425
        %v4699 = vpop.permute.xlu0 %4698
        %v4701 = vlaneseq
        %v4702 = vshrl.u32 %v4701, 7
        %v4703 = vsub.s32 7, %v4702
        %v4704 = vrot.slane %v3166, %v4703
        %v4705 = vadd.f32 %v4699, %v4704
        %v4706 = vtanh.pop %v4705
        %v4707 = vadd.f32 %v4696, %v4706
        %4708 = vset.pattern.permute.xlu0 56
        %4709 = vperm.xlu0 %4708, %v1425
        %v4710 = vpop.permute.xlu0 %4709
        %v4712 = vlaneseq
        %v4713 = vshrl.u32 %v4712, 7
        %v4714 = vsub.s32 0, %v4713
        %v4715 = vrot.slane %v3167, %v4714
        %v4716 = vadd.f32 %v4710, %v4715
        %v4717 = vtanh.pop %v4716
        %v4718 = vadd.f32 %v4707, %v4717
        %4719 = vset.pattern.permute.xlu0 57
        %4720 = vperm.xlu0 %4719, %v1425
        %v4721 = vpop.permute.xlu0 %4720
        %v4723 = vlaneseq
        %v4724 = vshrl.u32 %v4723, 7
        %v4725 = vsub.s32 1, %v4724
        %v4726 = vrot.slane %v3167, %v4725
        %v4727 = vadd.f32 %v4721, %v4726
        %v4728 = vtanh.pop %v4727
        %v4729 = vadd.f32 %v4718, %v4728
        %4730 = vset.pattern.permute.xlu0 58
        %4731 = vperm.xlu0 %4730, %v1425
        %v4732 = vpop.permute.xlu0 %4731
        %v4734 = vlaneseq
        %v4735 = vshrl.u32 %v4734, 7
        %v4736 = vsub.s32 2, %v4735
        %v4737 = vrot.slane %v3167, %v4736
        %v4738 = vadd.f32 %v4732, %v4737
        %v4739 = vtanh.pop %v4738
        %v4740 = vadd.f32 %v4729, %v4739
        %4741 = vset.pattern.permute.xlu0 59
        %4742 = vperm.xlu0 %4741, %v1425
        %v4743 = vpop.permute.xlu0 %4742
        %v4745 = vlaneseq
        %v4746 = vshrl.u32 %v4745, 7
        %v4747 = vsub.s32 3, %v4746
        %v4748 = vrot.slane %v3167, %v4747
        %v4749 = vadd.f32 %v4743, %v4748
        %v4750 = vtanh.pop %v4749
        %v4751 = vadd.f32 %v4740, %v4750
        %4752 = vset.pattern.permute.xlu0 60
        %4753 = vperm.xlu0 %4752, %v1425
        %v4754 = vpop.permute.xlu0 %4753
        %v4756 = vlaneseq
        %v4757 = vshrl.u32 %v4756, 7
        %v4758 = vsub.s32 4, %v4757
        %v4759 = vrot.slane %v3167, %v4758
        %v4760 = vadd.f32 %v4754, %v4759
        %v4761 = vtanh.pop %v4760
        %v4762 = vadd.f32 %v4751, %v4761
        %4763 = vset.pattern.permute.xlu0 61
        %4764 = vperm.xlu0 %4763, %v1425
        %v4765 = vpop.permute.xlu0 %4764
        %v4767 = vlaneseq
        %v4768 = vshrl.u32 %v4767, 7
        %v4769 = vsub.s32 5, %v4768
        %v4770 = vrot.slane %v3167, %v4769
        %v4771 = vadd.f32 %v4765, %v4770
        %v4772 = vtanh.pop %v4771
        %v4773 = vadd.f32 %v4762, %v4772
        %4774 = vset.pattern.permute.xlu0 62
        %4775 = vperm.xlu0 %4774, %v1425
        %v4776 = vpop.permute.xlu0 %4775
        %v4778 = vlaneseq
        %v4779 = vshrl.u32 %v4778, 7
        %v4780 = vsub.s32 6, %v4779
        %v4781 = vrot.slane %v3167, %v4780
        %v4782 = vadd.f32 %v4776, %v4781
        %v4783 = vtanh.pop %v4782
        %v4784 = vadd.f32 %v4773, %v4783
        %4785 = vset.pattern.permute.xlu0 63
        %4786 = vperm.xlu0 %4785, %v1425
        %v4787 = vpop.permute.xlu0 %4786
        %v4789 = vlaneseq
        %v4790 = vshrl.u32 %v4789, 7
        %v4791 = vsub.s32 7, %v4790
        %v4792 = vrot.slane %v3167, %v4791
        %v4793 = vadd.f32 %v4787, %v4792
        %v4794 = vtanh.pop %v4793
        %v4795 = vadd.f32 %v4784, %v4794
        %4796 = vset.pattern.permute.xlu0 64
        %4797 = vperm.xlu0 %4796, %v1425
        %v4798 = vpop.permute.xlu0 %4797
        %v4800 = vlaneseq
        %v4801 = vshrl.u32 %v4800, 7
        %v4802 = vsub.s32 0, %v4801
        %v4803 = vrot.slane %v3168, %v4802
        %v4804 = vadd.f32 %v4798, %v4803
        %v4805 = vtanh.pop %v4804
        %v4806 = vadd.f32 %v4795, %v4805
        %4807 = vset.pattern.permute.xlu0 65
        %4808 = vperm.xlu0 %4807, %v1425
        %v4809 = vpop.permute.xlu0 %4808
        %v4811 = vlaneseq
        %v4812 = vshrl.u32 %v4811, 7
        %v4813 = vsub.s32 1, %v4812
        %v4814 = vrot.slane %v3168, %v4813
        %v4815 = vadd.f32 %v4809, %v4814
        %v4816 = vtanh.pop %v4815
        %v4817 = vadd.f32 %v4806, %v4816
        %4818 = vset.pattern.permute.xlu0 66
        %4819 = vperm.xlu0 %4818, %v1425
        %v4820 = vpop.permute.xlu0 %4819
        %v4822 = vlaneseq
        %v4823 = vshrl.u32 %v4822, 7
        %v4824 = vsub.s32 2, %v4823
        %v4825 = vrot.slane %v3168, %v4824
        %v4826 = vadd.f32 %v4820, %v4825
        %v4827 = vtanh.pop %v4826
        %v4828 = vadd.f32 %v4817, %v4827
        %4829 = vset.pattern.permute.xlu0 67
        %4830 = vperm.xlu0 %4829, %v1425
        %v4831 = vpop.permute.xlu0 %4830
        %v4833 = vlaneseq
        %v4834 = vshrl.u32 %v4833, 7
        %v4835 = vsub.s32 3, %v4834
        %v4836 = vrot.slane %v3168, %v4835
        %v4837 = vadd.f32 %v4831, %v4836
        %v4838 = vtanh.pop %v4837
        %v4839 = vadd.f32 %v4828, %v4838
        %4840 = vset.pattern.permute.xlu0 68
        %4841 = vperm.xlu0 %4840, %v1425
        %v4842 = vpop.permute.xlu0 %4841
        %v4844 = vlaneseq
        %v4845 = vshrl.u32 %v4844, 7
        %v4846 = vsub.s32 4, %v4845
        %v4847 = vrot.slane %v3168, %v4846
        %v4848 = vadd.f32 %v4842, %v4847
        %v4849 = vtanh.pop %v4848
        %v4850 = vadd.f32 %v4839, %v4849
        %4851 = vset.pattern.permute.xlu0 69
        %4852 = vperm.xlu0 %4851, %v1425
        %v4853 = vpop.permute.xlu0 %4852
        %v4855 = vlaneseq
        %v4856 = vshrl.u32 %v4855, 7
        %v4857 = vsub.s32 5, %v4856
        %v4858 = vrot.slane %v3168, %v4857
        %v4859 = vadd.f32 %v4853, %v4858
        %v4860 = vtanh.pop %v4859
        %v4861 = vadd.f32 %v4850, %v4860
        %4862 = vset.pattern.permute.xlu0 70
        %4863 = vperm.xlu0 %4862, %v1425
        %v4864 = vpop.permute.xlu0 %4863
        %v4866 = vlaneseq
        %v4867 = vshrl.u32 %v4866, 7
        %v4868 = vsub.s32 6, %v4867
        %v4869 = vrot.slane %v3168, %v4868
        %v4870 = vadd.f32 %v4864, %v4869
        %v4871 = vtanh.pop %v4870
        %v4872 = vadd.f32 %v4861, %v4871
        %4873 = vset.pattern.permute.xlu0 71
        %4874 = vperm.xlu0 %4873, %v1425
        %v4875 = vpop.permute.xlu0 %4874
        %v4877 = vlaneseq
        %v4878 = vshrl.u32 %v4877, 7
        %v4879 = vsub.s32 7, %v4878
        %v4880 = vrot.slane %v3168, %v4879
        %v4881 = vadd.f32 %v4875, %v4880
        %v4882 = vtanh.pop %v4881
        %v4883 = vadd.f32 %v4872, %v4882
        %v4884 = vmul.f32 %v4883, 1.442695
        %v4885 = vpow.pop %v4884
        %v4886 = vsel %vm3443, %v4885, 0.0
        %4887 = vadd.xlane.f32.xlu0 %v4886
        %v4888 = vpop.xlane.xlu0 %4887
        %v4889 = vrcp.pop %v4888
        %v4890 = vmul.f32 %v4885, %v4889
        %v4892 = vsel %vm3443, %v4890, 0
        %4894 = vmatprep.subr.mxu0 0.0
        %v4895 = vand.u32 %v3133, 4294901760
        %4896 = vmatpush1.msra.mxu0 %v4895
        %4897 = vmatprep.subr.mxu0 0.0
        %4898 = vmatpush1.msra.mxu0 0.0
        %4899 = vmatprep.subr.mxu0 0.0
        %4900 = vmatpush1.msra.mxu0 0.0
        %4901 = vmatprep.subr.mxu0 0.0
        %4902 = vmatpush1.msra.mxu0 0.0
        %4903 = vmatprep.subr.mxu0 0.0
        %4904 = vmatpush1.msra.mxu0 0.0
        %4905 = vmatprep.subr.mxu0 0.0
        %4906 = vmatpush1.msra.mxu0 0.0
        %4907 = vmatprep.subr.mxu0 0.0
        %4908 = vmatpush1.msra.mxu0 0.0
        %4909 = vmatprep.subr.mxu0 0.0
        %4910 = vmatpush1.msra.mxu0 0.0
        %4911 = vmatprep.subr.mxu0 0.0
        %4912 = vmatpush1.msra.mxu0 0.0
        %4913 = vmatprep.subr.mxu0 0.0
        %4914 = vmatpush1.msra.mxu0 0.0
        %4915 = vmatprep.subr.mxu0 0.0
        %4916 = vmatpush1.msra.mxu0 0.0
        %4917 = vmatprep.subr.mxu0 0.0
        %4918 = vmatpush1.msra.mxu0 0.0
        %4919 = vmatprep.subr.mxu0 0.0
        %4920 = vmatpush1.msra.mxu0 0.0
        %4921 = vmatprep.subr.mxu0 0.0
        %4922 = vmatpush1.msra.mxu0 0.0
        %4923 = vmatprep.subr.mxu0 0.0
        %4924 = vmatpush1.msra.mxu0 0.0
        %4925 = vmatprep.subr.mxu0 0.0
        %4926 = vmatpush1.msra.mxu0 0.0
        %4927 = vmatprep.subr.mxu0 0.0
        %4928 = vmatpush1.msra.mxu0 0.0
        %4929 = vmatprep.subr.mxu0 0.0
        %4930 = vmatpush1.msra.mxu0 0.0
        %4931 = vmatprep.subr.mxu0 0.0
        %4932 = vmatpush1.msra.mxu0 0.0
        %4933 = vmatprep.subr.mxu0 0.0
        %4934 = vmatpush1.msra.mxu0 0.0
        %4935 = vmatprep.subr.mxu0 0.0
        %4936 = vmatpush1.msra.mxu0 0.0
        %4937 = vmatprep.subr.mxu0 0.0
        %4938 = vmatpush1.msra.mxu0 0.0
        %4939 = vmatprep.subr.mxu0 0.0
        %4940 = vmatpush1.msra.mxu0 0.0
        %4941 = vmatprep.subr.mxu0 0.0
        %4942 = vmatpush1.msra.mxu0 0.0
        %4943 = vmatprep.subr.mxu0 0.0
        %4944 = vmatpush1.msra.mxu0 0.0
        %4945 = vmatprep.subr.mxu0 0.0
        %4946 = vmatpush1.msra.mxu0 0.0
        %4947 = vmatprep.subr.mxu0 0.0
        %4948 = vmatpush1.msra.mxu0 0.0
        %4949 = vmatprep.subr.mxu0 0.0
        %4950 = vmatpush1.msra.mxu0 0.0
        %4951 = vmatprep.subr.mxu0 0.0
        %4952 = vmatpush1.msra.mxu0 0.0
        %4953 = vmatprep.subr.mxu0 0.0
        %4954 = vmatpush1.msra.mxu0 0.0
        %4955 = vmatprep.subr.mxu0 0.0
        %4956 = vmatpush1.msra.mxu0 0.0
        %4957 = vmatprep.subr.mxu0 0.0
        %4958 = vmatpush1.msra.mxu0 0.0
        %4959 = vmatprep.mubr.f32.mxu0 0.0
        %v4960 = vand.u32 %v4892, 4294901760
        %v4961 = vsub.f32 %v4892, %v4960
        %v4962 = vand.u32 %v4961, 4294901760
        %v4963 = vsub.f32 %v4961, %v4962
        %v4964 = vand.u32 %v4963, 4294901760
        %4965 = vmatmul.mubr.f32.gmra.mrb[0].mxu0 %v4964
        %v4966 = vpop.f32.mrb[0].mxu0
        %v4967 = vadd.f32 0.0, %v4966
        %v4968 = vpop.f32.mrb[0].mxu0
        %4969 = vdwg.mxu0
        %4970 = vmatprep.subr.mxu0 0.0
        %v4971 = vand.u32 %v3133, 4294901760
        %v4972 = vsub.f32 %v3133, %v4971
        %v4973 = vand.u32 %v4972, 4294901760
        %v4974 = vsub.f32 %v4972, %v4973
        %v4975 = vand.u32 %v4974, 4294901760
        %4976 = vmatpush1.msra.mxu0 %v4975
        %4977 = vmatprep.subr.mxu0 0.0
        %4978 = vmatpush1.msra.mxu0 0.0
        %4979 = vmatprep.subr.mxu0 0.0
        %4980 = vmatpush1.msra.mxu0 0.0
        %4981 = vmatprep.subr.mxu0 0.0
        %4982 = vmatpush1.msra.mxu0 0.0
        %4983 = vmatprep.subr.mxu0 0.0
        %4984 = vmatpush1.msra.mxu0 0.0
        %4985 = vmatprep.subr.mxu0 0.0
        %4986 = vmatpush1.msra.mxu0 0.0
        %4987 = vmatprep.subr.mxu0 0.0
        %4988 = vmatpush1.msra.mxu0 0.0
        %4989 = vmatprep.subr.mxu0 0.0
        %4990 = vmatpush1.msra.mxu0 0.0
        %4991 = vmatprep.subr.mxu0 0.0
        %4992 = vmatpush1.msra.mxu0 0.0
        %4993 = vmatprep.subr.mxu0 0.0
        %4994 = vmatpush1.msra.mxu0 0.0
        %4995 = vmatprep.subr.mxu0 0.0
        %4996 = vmatpush1.msra.mxu0 0.0
        %4997 = vmatprep.subr.mxu0 0.0
        %4998 = vmatpush1.msra.mxu0 0.0
        %4999 = vmatprep.subr.mxu0 0.0
        %5000 = vmatpush1.msra.mxu0 0.0
        %5001 = vmatprep.subr.mxu0 0.0
        %5002 = vmatpush1.msra.mxu0 0.0
        %5003 = vmatprep.subr.mxu0 0.0
        %5004 = vmatpush1.msra.mxu0 0.0
        %5005 = vmatprep.subr.mxu0 0.0
        %5006 = vmatpush1.msra.mxu0 0.0
        %5007 = vmatprep.subr.mxu0 0.0
        %5008 = vmatpush1.msra.mxu0 0.0
        %5009 = vmatprep.subr.mxu0 0.0
        %5010 = vmatpush1.msra.mxu0 0.0
        %5011 = vmatprep.subr.mxu0 0.0
        %5012 = vmatpush1.msra.mxu0 0.0
        %5013 = vmatprep.subr.mxu0 0.0
        %5014 = vmatpush1.msra.mxu0 0.0
        %5015 = vmatprep.subr.mxu0 0.0
        %5016 = vmatpush1.msra.mxu0 0.0
        %5017 = vmatprep.subr.mxu0 0.0
        %5018 = vmatpush1.msra.mxu0 0.0
        %5019 = vmatprep.subr.mxu0 0.0
        %5020 = vmatpush1.msra.mxu0 0.0
        %5021 = vmatprep.subr.mxu0 0.0
        %5022 = vmatpush1.msra.mxu0 0.0
        %5023 = vmatprep.subr.mxu0 0.0
        %5024 = vmatpush1.msra.mxu0 0.0
        %5025 = vmatprep.subr.mxu0 0.0
        %5026 = vmatpush1.msra.mxu0 0.0
        %5027 = vmatprep.subr.mxu0 0.0
        %5028 = vmatpush1.msra.mxu0 0.0
        %5029 = vmatprep.subr.mxu0 0.0
        %5030 = vmatpush1.msra.mxu0 0.0
        %5031 = vmatprep.subr.mxu0 0.0
        %5032 = vmatpush1.msra.mxu0 0.0
        %5033 = vmatprep.subr.mxu0 0.0
        %5034 = vmatpush1.msra.mxu0 0.0
        %5035 = vmatprep.subr.mxu0 0.0
        %5036 = vmatpush1.msra.mxu0 0.0
        %5037 = vmatprep.subr.mxu0 0.0
        %5038 = vmatpush1.msra.mxu0 0.0
        %5039 = vmatprep.mubr.f32.mxu0 0.0
        %v5040 = vand.u32 %v4892, 4294901760
        %5041 = vmatmul.mubr.f32.gmra.mrb[0].mxu0 %v5040
        %v5042 = vpop.f32.mrb[0].mxu0
        %v5043 = vadd.f32 %v4967, %v5042
        %v5044 = vpop.f32.mrb[0].mxu0
        %5045 = vdwg.mxu0
        %5046 = vmatprep.subr.mxu0 0.0
        %v5047 = vand.u32 %v3133, 4294901760
        %v5048 = vsub.f32 %v3133, %v5047
        %5049 = vmatpush1.msra.mxu0 %v5048
        %5050 = vmatprep.subr.mxu0 0.0
        %5051 = vmatpush1.msra.mxu0 0.0
        %5052 = vmatprep.subr.mxu0 0.0
        %5053 = vmatpush1.msra.mxu0 0.0
        %5054 = vmatprep.subr.mxu0 0.0
        %5055 = vmatpush1.msra.mxu0 0.0
        %5056 = vmatprep.subr.mxu0 0.0
        %5057 = vmatpush1.msra.mxu0 0.0
        %5058 = vmatprep.subr.mxu0 0.0
        %5059 = vmatpush1.msra.mxu0 0.0
        %5060 = vmatprep.subr.mxu0 0.0
        %5061 = vmatpush1.msra.mxu0 0.0
        %5062 = vmatprep.subr.mxu0 0.0
        %5063 = vmatpush1.msra.mxu0 0.0
        %5064 = vmatprep.subr.mxu0 0.0
        %5065 = vmatpush1.msra.mxu0 0.0
        %5066 = vmatprep.subr.mxu0 0.0
        %5067 = vmatpush1.msra.mxu0 0.0
        %5068 = vmatprep.subr.mxu0 0.0
        %5069 = vmatpush1.msra.mxu0 0.0
        %5070 = vmatprep.subr.mxu0 0.0
        %5071 = vmatpush1.msra.mxu0 0.0
        %5072 = vmatprep.subr.mxu0 0.0
        %5073 = vmatpush1.msra.mxu0 0.0
        %5074 = vmatprep.subr.mxu0 0.0
        %5075 = vmatpush1.msra.mxu0 0.0
        %5076 = vmatprep.subr.mxu0 0.0
        %5077 = vmatpush1.msra.mxu0 0.0
        %5078 = vmatprep.subr.mxu0 0.0
        %5079 = vmatpush1.msra.mxu0 0.0
        %5080 = vmatprep.subr.mxu0 0.0
        %5081 = vmatpush1.msra.mxu0 0.0
        %5082 = vmatprep.subr.mxu0 0.0
        %5083 = vmatpush1.msra.mxu0 0.0
        %5084 = vmatprep.subr.mxu0 0.0
        %5085 = vmatpush1.msra.mxu0 0.0
        %5086 = vmatprep.subr.mxu0 0.0
        %5087 = vmatpush1.msra.mxu0 0.0
        %5088 = vmatprep.subr.mxu0 0.0
        %5089 = vmatpush1.msra.mxu0 0.0
        %5090 = vmatprep.subr.mxu0 0.0
        %5091 = vmatpush1.msra.mxu0 0.0
        %5092 = vmatprep.subr.mxu0 0.0
        %5093 = vmatpush1.msra.mxu0 0.0
        %5094 = vmatprep.subr.mxu0 0.0
        %5095 = vmatpush1.msra.mxu0 0.0
        %5096 = vmatprep.subr.mxu0 0.0
        %5097 = vmatpush1.msra.mxu0 0.0
        %5098 = vmatprep.subr.mxu0 0.0
        %5099 = vmatpush1.msra.mxu0 0.0
        %5100 = vmatprep.subr.mxu0 0.0
        %5101 = vmatpush1.msra.mxu0 0.0
        %5102 = vmatprep.subr.mxu0 0.0
        %5103 = vmatpush1.msra.mxu0 0.0
        %5104 = vmatprep.subr.mxu0 0.0
        %5105 = vmatpush1.msra.mxu0 0.0
        %5106 = vmatprep.subr.mxu0 0.0
        %5107 = vmatpush1.msra.mxu0 0.0
        %5108 = vmatprep.subr.mxu0 0.0
        %5109 = vmatpush1.msra.mxu0 0.0
        %5110 = vmatprep.subr.mxu0 0.0
        %5111 = vmatpush1.msra.mxu0 0.0
        %5112 = vmatprep.mubr.f32.mxu0 0.0
        %v5113 = vand.u32 %v4892, 4294901760
        %v5114 = vsub.f32 %v4892, %v5113
        %5115 = vmatmul.mubr.f32.gmra.mrb[0].mxu0 %v5114
        %v5116 = vpop.f32.mrb[0].mxu0
        %v5117 = vadd.f32 %v5043, %v5116
        %v5118 = vpop.f32.mrb[0].mxu0
        %5119 = vdwg.mxu0
        %5120 = vmatprep.subr.mxu0 0.0
        %v5121 = vand.u32 %v3133, 4294901760
        %5122 = vmatpush1.msra.mxu0 %v5121
        %5123 = vmatprep.subr.mxu0 0.0
        %5124 = vmatpush1.msra.mxu0 0.0
        %5125 = vmatprep.subr.mxu0 0.0
        %5126 = vmatpush1.msra.mxu0 0.0
        %5127 = vmatprep.subr.mxu0 0.0
        %5128 = vmatpush1.msra.mxu0 0.0
        %5129 = vmatprep.subr.mxu0 0.0
        %5130 = vmatpush1.msra.mxu0 0.0
        %5131 = vmatprep.subr.mxu0 0.0
        %5132 = vmatpush1.msra.mxu0 0.0
        %5133 = vmatprep.subr.mxu0 0.0
        %5134 = vmatpush1.msra.mxu0 0.0
        %5135 = vmatprep.subr.mxu0 0.0
        %5136 = vmatpush1.msra.mxu0 0.0
        %5137 = vmatprep.subr.mxu0 0.0
        %5138 = vmatpush1.msra.mxu0 0.0
        %5139 = vmatprep.subr.mxu0 0.0
        %5140 = vmatpush1.msra.mxu0 0.0
        %5141 = vmatprep.subr.mxu0 0.0
        %5142 = vmatpush1.msra.mxu0 0.0
        %5143 = vmatprep.subr.mxu0 0.0
        %5144 = vmatpush1.msra.mxu0 0.0
        %5145 = vmatprep.subr.mxu0 0.0
        %5146 = vmatpush1.msra.mxu0 0.0
        %5147 = vmatprep.subr.mxu0 0.0
        %5148 = vmatpush1.msra.mxu0 0.0
        %5149 = vmatprep.subr.mxu0 0.0
        %5150 = vmatpush1.msra.mxu0 0.0
        %5151 = vmatprep.subr.mxu0 0.0
        %5152 = vmatpush1.msra.mxu0 0.0
        %5153 = vmatprep.subr.mxu0 0.0
        %5154 = vmatpush1.msra.mxu0 0.0
        %5155 = vmatprep.subr.mxu0 0.0
        %5156 = vmatpush1.msra.mxu0 0.0
        %5157 = vmatprep.subr.mxu0 0.0
        %5158 = vmatpush1.msra.mxu0 0.0
        %5159 = vmatprep.subr.mxu0 0.0
        %5160 = vmatpush1.msra.mxu0 0.0
        %5161 = vmatprep.subr.mxu0 0.0
        %5162 = vmatpush1.msra.mxu0 0.0
        %5163 = vmatprep.subr.mxu0 0.0
        %5164 = vmatpush1.msra.mxu0 0.0
        %5165 = vmatprep.subr.mxu0 0.0
        %5166 = vmatpush1.msra.mxu0 0.0
        %5167 = vmatprep.subr.mxu0 0.0
        %5168 = vmatpush1.msra.mxu0 0.0
        %5169 = vmatprep.subr.mxu0 0.0
        %5170 = vmatpush1.msra.mxu0 0.0
        %5171 = vmatprep.subr.mxu0 0.0
        %5172 = vmatpush1.msra.mxu0 0.0
        %5173 = vmatprep.subr.mxu0 0.0
        %5174 = vmatpush1.msra.mxu0 0.0
        %5175 = vmatprep.subr.mxu0 0.0
        %5176 = vmatpush1.msra.mxu0 0.0
        %5177 = vmatprep.subr.mxu0 0.0
        %5178 = vmatpush1.msra.mxu0 0.0
        %5179 = vmatprep.subr.mxu0 0.0
        %5180 = vmatpush1.msra.mxu0 0.0
        %5181 = vmatprep.subr.mxu0 0.0
        %5182 = vmatpush1.msra.mxu0 0.0
        %5183 = vmatprep.subr.mxu0 0.0
        %5184 = vmatpush1.msra.mxu0 0.0
        %5185 = vmatprep.mubr.f32.mxu0 0.0
        %v5186 = vand.u32 %v4892, 4294901760
        %v5187 = vsub.f32 %v4892, %v5186
        %v5188 = vand.u32 %v5187, 4294901760
        %5189 = vmatmul.mubr.f32.gmra.mrb[0].mxu0 %v5188
        %v5190 = vpop.f32.mrb[0].mxu0
        %v5191 = vadd.f32 %v5117, %v5190
        %v5192 = vpop.f32.mrb[0].mxu0
        %5193 = vdwg.mxu0
        %5194 = vmatprep.subr.mxu0 0.0
        %v5195 = vand.u32 %v3133, 4294901760
        %v5196 = vsub.f32 %v3133, %v5195
        %v5197 = vand.u32 %v5196, 4294901760
        %5198 = vmatpush1.msra.mxu0 %v5197
        %5199 = vmatprep.subr.mxu0 0.0
        %5200 = vmatpush1.msra.mxu0 0.0
        %5201 = vmatprep.subr.mxu0 0.0
        %5202 = vmatpush1.msra.mxu0 0.0
        %5203 = vmatprep.subr.mxu0 0.0
        %5204 = vmatpush1.msra.mxu0 0.0
        %5205 = vmatprep.subr.mxu0 0.0
        %5206 = vmatpush1.msra.mxu0 0.0
        %5207 = vmatprep.subr.mxu0 0.0
        %5208 = vmatpush1.msra.mxu0 0.0
        %5209 = vmatprep.subr.mxu0 0.0
        %5210 = vmatpush1.msra.mxu0 0.0
        %5211 = vmatprep.subr.mxu0 0.0
        %5212 = vmatpush1.msra.mxu0 0.0
        %5213 = vmatprep.subr.mxu0 0.0
        %5214 = vmatpush1.msra.mxu0 0.0
        %5215 = vmatprep.subr.mxu0 0.0
        %5216 = vmatpush1.msra.mxu0 0.0
        %5217 = vmatprep.subr.mxu0 0.0
        %5218 = vmatpush1.msra.mxu0 0.0
        %5219 = vmatprep.subr.mxu0 0.0
        %5220 = vmatpush1.msra.mxu0 0.0
        %5221 = vmatprep.subr.mxu0 0.0
        %5222 = vmatpush1.msra.mxu0 0.0
        %5223 = vmatprep.subr.mxu0 0.0
        %5224 = vmatpush1.msra.mxu0 0.0
        %5225 = vmatprep.subr.mxu0 0.0
        %5226 = vmatpush1.msra.mxu0 0.0
        %5227 = vmatprep.subr.mxu0 0.0
        %5228 = vmatpush1.msra.mxu0 0.0
        %5229 = vmatprep.subr.mxu0 0.0
        %5230 = vmatpush1.msra.mxu0 0.0
        %5231 = vmatprep.subr.mxu0 0.0
        %5232 = vmatpush1.msra.mxu0 0.0
        %5233 = vmatprep.subr.mxu0 0.0
        %5234 = vmatpush1.msra.mxu0 0.0
        %5235 = vmatprep.subr.mxu0 0.0
        %5236 = vmatpush1.msra.mxu0 0.0
        %5237 = vmatprep.subr.mxu0 0.0
        %5238 = vmatpush1.msra.mxu0 0.0
        %5239 = vmatprep.subr.mxu0 0.0
        %5240 = vmatpush1.msra.mxu0 0.0
        %5241 = vmatprep.subr.mxu0 0.0
        %5242 = vmatpush1.msra.mxu0 0.0
        %5243 = vmatprep.subr.mxu0 0.0
        %5244 = vmatpush1.msra.mxu0 0.0
        %5245 = vmatprep.subr.mxu0 0.0
        %5246 = vmatpush1.msra.mxu0 0.0
        %5247 = vmatprep.subr.mxu0 0.0
        %5248 = vmatpush1.msra.mxu0 0.0
        %5249 = vmatprep.subr.mxu0 0.0
        %5250 = vmatpush1.msra.mxu0 0.0
        %5251 = vmatprep.subr.mxu0 0.0
        %5252 = vmatpush1.msra.mxu0 0.0
        %5253 = vmatprep.subr.mxu0 0.0
        %5254 = vmatpush1.msra.mxu0 0.0
        %5255 = vmatprep.subr.mxu0 0.0
        %5256 = vmatpush1.msra.mxu0 0.0
        %5257 = vmatprep.subr.mxu0 0.0
        %5258 = vmatpush1.msra.mxu0 0.0
        %5259 = vmatprep.subr.mxu0 0.0
        %5260 = vmatpush1.msra.mxu0 0.0
        %5261 = vmatprep.mubr.f32.mxu0 0.0
        %v5262 = vand.u32 %v4892, 4294901760
        %5263 = vmatmul.mubr.f32.gmra.mrb[0].mxu0 %v5262
        %v5264 = vpop.f32.mrb[0].mxu0
        %v5265 = vadd.f32 %v5191, %v5264
        %v5266 = vpop.f32.mrb[0].mxu0
        %5267 = vdwg.mxu0
        %5268 = vmatprep.subr.mxu0 0.0
        %v5269 = vand.u32 %v3133, 4294901760
        %5270 = vmatpush1.msra.mxu0 %v5269
        %5271 = vmatprep.subr.mxu0 0.0
        %5272 = vmatpush1.msra.mxu0 0.0
        %5273 = vmatprep.subr.mxu0 0.0
        %5274 = vmatpush1.msra.mxu0 0.0
        %5275 = vmatprep.subr.mxu0 0.0
        %5276 = vmatpush1.msra.mxu0 0.0
        %5277 = vmatprep.subr.mxu0 0.0
        %5278 = vmatpush1.msra.mxu0 0.0
        %5279 = vmatprep.subr.mxu0 0.0
        %5280 = vmatpush1.msra.mxu0 0.0
        %5281 = vmatprep.subr.mxu0 0.0
        %5282 = vmatpush1.msra.mxu0 0.0
        %5283 = vmatprep.subr.mxu0 0.0
        %5284 = vmatpush1.msra.mxu0 0.0
        %5285 = vmatprep.subr.mxu0 0.0
        %5286 = vmatpush1.msra.mxu0 0.0
        %5287 = vmatprep.subr.mxu0 0.0
        %5288 = vmatpush1.msra.mxu0 0.0
        %5289 = vmatprep.subr.mxu0 0.0
        %5290 = vmatpush1.msra.mxu0 0.0
        %5291 = vmatprep.subr.mxu0 0.0
        %5292 = vmatpush1.msra.mxu0 0.0
        %5293 = vmatprep.subr.mxu0 0.0
        %5294 = vmatpush1.msra.mxu0 0.0
        %5295 = vmatprep.subr.mxu0 0.0
        %5296 = vmatpush1.msra.mxu0 0.0
        %5297 = vmatprep.subr.mxu0 0.0
        %5298 = vmatpush1.msra.mxu0 0.0
        %5299 = vmatprep.subr.mxu0 0.0
        %5300 = vmatpush1.msra.mxu0 0.0
        %5301 = vmatprep.subr.mxu0 0.0
        %5302 = vmatpush1.msra.mxu0 0.0
        %5303 = vmatprep.subr.mxu0 0.0
        %5304 = vmatpush1.msra.mxu0 0.0
        %5305 = vmatprep.subr.mxu0 0.0
        %5306 = vmatpush1.msra.mxu0 0.0
        %5307 = vmatprep.subr.mxu0 0.0
        %5308 = vmatpush1.msra.mxu0 0.0
        %5309 = vmatprep.subr.mxu0 0.0
        %5310 = vmatpush1.msra.mxu0 0.0
        %5311 = vmatprep.subr.mxu0 0.0
        %5312 = vmatpush1.msra.mxu0 0.0
        %5313 = vmatprep.subr.mxu0 0.0
        %5314 = vmatpush1.msra.mxu0 0.0
        %5315 = vmatprep.subr.mxu0 0.0
        %5316 = vmatpush1.msra.mxu0 0.0
        %5317 = vmatprep.subr.mxu0 0.0
        %5318 = vmatpush1.msra.mxu0 0.0
        %5319 = vmatprep.subr.mxu0 0.0
        %5320 = vmatpush1.msra.mxu0 0.0
        %5321 = vmatprep.subr.mxu0 0.0
        %5322 = vmatpush1.msra.mxu0 0.0
        %5323 = vmatprep.subr.mxu0 0.0
        %5324 = vmatpush1.msra.mxu0 0.0
        %5325 = vmatprep.subr.mxu0 0.0
        %5326 = vmatpush1.msra.mxu0 0.0
        %5327 = vmatprep.subr.mxu0 0.0
        %5328 = vmatpush1.msra.mxu0 0.0
        %5329 = vmatprep.subr.mxu0 0.0
        %5330 = vmatpush1.msra.mxu0 0.0
        %5331 = vmatprep.subr.mxu0 0.0
        %5332 = vmatpush1.msra.mxu0 0.0
        %5333 = vmatprep.mubr.f32.mxu0 0.0
        %v5334 = vand.u32 %v4892, 4294901760
        %5335 = vmatmul.mubr.f32.gmra.mrb[0].mxu0 %v5334
        %v5336 = vpop.f32.mrb[0].mxu0
        %v5337 = vadd.f32 %v5265, %v5336
        %v5338 = vpop.f32.mrb[0].mxu0
        %5339 = vdwg.mxu0
        %v5340 = vadd.f32 %v4619, %v5337
        %5341 = vset.pattern.permute.xlu0 72
        %5342 = vperm.xlu0 %5341, %v1425
        %v5343 = vpop.permute.xlu0 %5342
        %v5345 = vlaneseq
        %v5346 = vshrl.u32 %v5345, 7
        %v5347 = vsub.s32 0, %v5346
        %v5348 = vrot.slane %v3169, %v5347
        %v5349 = vadd.f32 %v5343, %v5348
        %v5350 = vtanh.pop %v5349
        %v5351 = vadd.f32 %v5350, 0.0
        %5352 = vset.pattern.permute.xlu0 73
        %5353 = vperm.xlu0 %5352, %v1425
        %v5354 = vpop.permute.xlu0 %5353
        %v5356 = vlaneseq
        %v5357 = vshrl.u32 %v5356, 7
        %v5358 = vsub.s32 1, %v5357
        %v5359 = vrot.slane %v3169, %v5358
        %v5360 = vadd.f32 %v5354, %v5359
        %v5361 = vtanh.pop %v5360
        %v5362 = vadd.f32 %v5351, %v5361
        %5363 = vset.pattern.permute.xlu0 74
        %5364 = vperm.xlu0 %5363, %v1425
        %v5365 = vpop.permute.xlu0 %5364
        %v5367 = vlaneseq
        %v5368 = vshrl.u32 %v5367, 7
        %v5369 = vsub.s32 2, %v5368
        %v5370 = vrot.slane %v3169, %v5369
        %v5371 = vadd.f32 %v5365, %v5370
        %v5372 = vtanh.pop %v5371
        %v5373 = vadd.f32 %v5362, %v5372
        %5374 = vset.pattern.permute.xlu0 75
        %5375 = vperm.xlu0 %5374, %v1425
        %v5376 = vpop.permute.xlu0 %5375
        %v5378 = vlaneseq
        %v5379 = vshrl.u32 %v5378, 7
        %v5380 = vsub.s32 3, %v5379
        %v5381 = vrot.slane %v3169, %v5380
        %v5382 = vadd.f32 %v5376, %v5381
        %v5383 = vtanh.pop %v5382
        %v5384 = vadd.f32 %v5373, %v5383
        %5385 = vset.pattern.permute.xlu0 76
        %5386 = vperm.xlu0 %5385, %v1425
        %v5387 = vpop.permute.xlu0 %5386
        %v5389 = vlaneseq
        %v5390 = vshrl.u32 %v5389, 7
        %v5391 = vsub.s32 4, %v5390
        %v5392 = vrot.slane %v3169, %v5391
        %v5393 = vadd.f32 %v5387, %v5392
        %v5394 = vtanh.pop %v5393
        %v5395 = vadd.f32 %v5384, %v5394
        %5396 = vset.pattern.permute.xlu0 77
        %5397 = vperm.xlu0 %5396, %v1425
        %v5398 = vpop.permute.xlu0 %5397
        %v5400 = vlaneseq
        %v5401 = vshrl.u32 %v5400, 7
        %v5402 = vsub.s32 5, %v5401
        %v5403 = vrot.slane %v3169, %v5402
        %v5404 = vadd.f32 %v5398, %v5403
        %v5405 = vtanh.pop %v5404
        %v5406 = vadd.f32 %v5395, %v5405
        %5407 = vset.pattern.permute.xlu0 78
        %5408 = vperm.xlu0 %5407, %v1425
        %v5409 = vpop.permute.xlu0 %5408
        %v5411 = vlaneseq
        %v5412 = vshrl.u32 %v5411, 7
        %v5413 = vsub.s32 6, %v5412
        %v5414 = vrot.slane %v3169, %v5413
        %v5415 = vadd.f32 %v5409, %v5414
        %v5416 = vtanh.pop %v5415
        %v5417 = vadd.f32 %v5406, %v5416
        %5418 = vset.pattern.permute.xlu0 79
        %5419 = vperm.xlu0 %5418, %v1425
        %v5420 = vpop.permute.xlu0 %5419
        %v5422 = vlaneseq
        %v5423 = vshrl.u32 %v5422, 7
        %v5424 = vsub.s32 7, %v5423
        %v5425 = vrot.slane %v3169, %v5424
        %v5426 = vadd.f32 %v5420, %v5425
        %v5427 = vtanh.pop %v5426
        %v5428 = vadd.f32 %v5417, %v5427
        %5429 = vset.pattern.permute.xlu0 80
        %5430 = vperm.xlu0 %5429, %v1425
        %v5431 = vpop.permute.xlu0 %5430
        %v5433 = vlaneseq
        %v5434 = vshrl.u32 %v5433, 7
        %v5435 = vsub.s32 0, %v5434
        %v5436 = vrot.slane %v3170, %v5435
        %v5437 = vadd.f32 %v5431, %v5436
        %v5438 = vtanh.pop %v5437
        %v5439 = vadd.f32 %v5428, %v5438
        %5440 = vset.pattern.permute.xlu0 81
        %5441 = vperm.xlu0 %5440, %v1425
        %v5442 = vpop.permute.xlu0 %5441
        %v5444 = vlaneseq
        %v5445 = vshrl.u32 %v5444, 7
        %v5446 = vsub.s32 1, %v5445
        %v5447 = vrot.slane %v3170, %v5446
        %v5448 = vadd.f32 %v5442, %v5447
        %v5449 = vtanh.pop %v5448
        %v5450 = vadd.f32 %v5439, %v5449
        %5451 = vset.pattern.permute.xlu0 82
        %5452 = vperm.xlu0 %5451, %v1425
        %v5453 = vpop.permute.xlu0 %5452
        %v5455 = vlaneseq
        %v5456 = vshrl.u32 %v5455, 7
        %v5457 = vsub.s32 2, %v5456
        %v5458 = vrot.slane %v3170, %v5457
        %v5459 = vadd.f32 %v5453, %v5458
        %v5460 = vtanh.pop %v5459
        %v5461 = vadd.f32 %v5450, %v5460
        %5462 = vset.pattern.permute.xlu0 83
        %5463 = vperm.xlu0 %5462, %v1425
        %v5464 = vpop.permute.xlu0 %5463
        %v5466 = vlaneseq
        %v5467 = vshrl.u32 %v5466, 7
        %v5468 = vsub.s32 3, %v5467
        %v5469 = vrot.slane %v3170, %v5468
        %v5470 = vadd.f32 %v5464, %v5469
        %v5471 = vtanh.pop %v5470
        %v5472 = vadd.f32 %v5461, %v5471
        %5473 = vset.pattern.permute.xlu0 84
        %5474 = vperm.xlu0 %5473, %v1425
        %v5475 = vpop.permute.xlu0 %5474
        %v5477 = vlaneseq
        %v5478 = vshrl.u32 %v5477, 7
        %v5479 = vsub.s32 4, %v5478
        %v5480 = vrot.slane %v3170, %v5479
        %v5481 = vadd.f32 %v5475, %v5480
        %v5482 = vtanh.pop %v5481
        %v5483 = vadd.f32 %v5472, %v5482
        %5484 = vset.pattern.permute.xlu0 85
        %5485 = vperm.xlu0 %5484, %v1425
        %v5486 = vpop.permute.xlu0 %5485
        %v5488 = vlaneseq
        %v5489 = vshrl.u32 %v5488, 7
        %v5490 = vsub.s32 5, %v5489
        %v5491 = vrot.slane %v3170, %v5490
        %v5492 = vadd.f32 %v5486, %v5491
        %v5493 = vtanh.pop %v5492
        %v5494 = vadd.f32 %v5483, %v5493
        %5495 = vset.pattern.permute.xlu0 86
        %5496 = vperm.xlu0 %5495, %v1425
        %v5497 = vpop.permute.xlu0 %5496
        %v5499 = vlaneseq
        %v5500 = vshrl.u32 %v5499, 7
        %v5501 = vsub.s32 6, %v5500
        %v5502 = vrot.slane %v3170, %v5501
        %v5503 = vadd.f32 %v5497, %v5502
        %v5504 = vtanh.pop %v5503
        %v5505 = vadd.f32 %v5494, %v5504
        %5506 = vset.pattern.permute.xlu0 87
        %5507 = vperm.xlu0 %5506, %v1425
        %v5508 = vpop.permute.xlu0 %5507
        %v5510 = vlaneseq
        %v5511 = vshrl.u32 %v5510, 7
        %v5512 = vsub.s32 7, %v5511
        %v5513 = vrot.slane %v3170, %v5512
        %v5514 = vadd.f32 %v5508, %v5513
        %v5515 = vtanh.pop %v5514
        %v5516 = vadd.f32 %v5505, %v5515
        %5517 = vset.pattern.permute.xlu0 88
        %5518 = vperm.xlu0 %5517, %v1425
        %v5519 = vpop.permute.xlu0 %5518
        %v5521 = vlaneseq
        %v5522 = vshrl.u32 %v5521, 7
        %v5523 = vsub.s32 0, %v5522
        %v5524 = vrot.slane %v3171, %v5523
        %v5525 = vadd.f32 %v5519, %v5524
        %v5526 = vtanh.pop %v5525
        %v5527 = vadd.f32 %v5516, %v5526
        %5528 = vset.pattern.permute.xlu0 89
        %5529 = vperm.xlu0 %5528, %v1425
        %v5530 = vpop.permute.xlu0 %5529
        %v5532 = vlaneseq
        %v5533 = vshrl.u32 %v5532, 7
        %v5534 = vsub.s32 1, %v5533
        %v5535 = vrot.slane %v3171, %v5534
        %v5536 = vadd.f32 %v5530, %v5535
        %v5537 = vtanh.pop %v5536
        %v5538 = vadd.f32 %v5527, %v5537
        %5539 = vset.pattern.permute.xlu0 90
        %5540 = vperm.xlu0 %5539, %v1425
        %v5541 = vpop.permute.xlu0 %5540
        %v5543 = vlaneseq
        %v5544 = vshrl.u32 %v5543, 7
        %v5545 = vsub.s32 2, %v5544
        %v5546 = vrot.slane %v3171, %v5545
        %v5547 = vadd.f32 %v5541, %v5546
        %v5548 = vtanh.pop %v5547
        %v5549 = vadd.f32 %v5538, %v5548
        %5550 = vset.pattern.permute.xlu0 91
        %5551 = vperm.xlu0 %5550, %v1425
        %v5552 = vpop.permute.xlu0 %5551
        %v5554 = vlaneseq
        %v5555 = vshrl.u32 %v5554, 7
        %v5556 = vsub.s32 3, %v5555
        %v5557 = vrot.slane %v3171, %v5556
        %v5558 = vadd.f32 %v5552, %v5557
        %v5559 = vtanh.pop %v5558
        %v5560 = vadd.f32 %v5549, %v5559
        %5561 = vset.pattern.permute.xlu0 92
        %5562 = vperm.xlu0 %5561, %v1425
        %v5563 = vpop.permute.xlu0 %5562
        %v5565 = vlaneseq
        %v5566 = vshrl.u32 %v5565, 7
        %v5567 = vsub.s32 4, %v5566
        %v5568 = vrot.slane %v3171, %v5567
        %v5569 = vadd.f32 %v5563, %v5568
        %v5570 = vtanh.pop %v5569
        %v5571 = vadd.f32 %v5560, %v5570
        %5572 = vset.pattern.permute.xlu0 93
        %5573 = vperm.xlu0 %5572, %v1425
        %v5574 = vpop.permute.xlu0 %5573
        %v5576 = vlaneseq
        %v5577 = vshrl.u32 %v5576, 7
        %v5578 = vsub.s32 5, %v5577
        %v5579 = vrot.slane %v3171, %v5578
        %v5580 = vadd.f32 %v5574, %v5579
        %v5581 = vtanh.pop %v5580
        %v5582 = vadd.f32 %v5571, %v5581
        %5583 = vset.pattern.permute.xlu0 94
        %5584 = vperm.xlu0 %5583, %v1425
        %v5585 = vpop.permute.xlu0 %5584
        %v5587 = vlaneseq
        %v5588 = vshrl.u32 %v5587, 7
        %v5589 = vsub.s32 6, %v5588
        %v5590 = vrot.slane %v3171, %v5589
        %v5591 = vadd.f32 %v5585, %v5590
        %v5592 = vtanh.pop %v5591
        %v5593 = vadd.f32 %v5582, %v5592
        %5594 = vset.pattern.permute.xlu0 95
        %5595 = vperm.xlu0 %5594, %v1425
        %v5596 = vpop.permute.xlu0 %5595
        %v5598 = vlaneseq
        %v5599 = vshrl.u32 %v5598, 7
        %v5600 = vsub.s32 7, %v5599
        %v5601 = vrot.slane %v3171, %v5600
        %v5602 = vadd.f32 %v5596, %v5601
        %v5603 = vtanh.pop %v5602
        %v5604 = vadd.f32 %v5593, %v5603
        %v5605 = vmul.f32 %v5604, 1.442695
        %v5606 = vpow.pop %v5605
        %v5607 = vsel %vm3443, %v5606, 0.0
        %5608 = vadd.xlane.f32.xlu0 %v5607
        %v5609 = vpop.xlane.xlu0 %5608
        %v5610 = vrcp.pop %v5609
        %v5611 = vmul.f32 %v5606, %v5610
        %v5613 = vsel %vm3443, %v5611, 0
        %5615 = vmatprep.subr.mxu0 0.0
        %v5616 = vand.u32 %v3135, 4294901760
        %5617 = vmatpush1.msra.mxu0 %v5616
        %5618 = vmatprep.subr.mxu0 0.0
        %5619 = vmatpush1.msra.mxu0 0.0
        %5620 = vmatprep.subr.mxu0 0.0
        %5621 = vmatpush1.msra.mxu0 0.0
        %5622 = vmatprep.subr.mxu0 0.0
        %5623 = vmatpush1.msra.mxu0 0.0
        %5624 = vmatprep.subr.mxu0 0.0
        %5625 = vmatpush1.msra.mxu0 0.0
        %5626 = vmatprep.subr.mxu0 0.0
        %5627 = vmatpush1.msra.mxu0 0.0
        %5628 = vmatprep.subr.mxu0 0.0
        %5629 = vmatpush1.msra.mxu0 0.0
        %5630 = vmatprep.subr.mxu0 0.0
        %5631 = vmatpush1.msra.mxu0 0.0
        %5632 = vmatprep.subr.mxu0 0.0
        %5633 = vmatpush1.msra.mxu0 0.0
        %5634 = vmatprep.subr.mxu0 0.0
        %5635 = vmatpush1.msra.mxu0 0.0
        %5636 = vmatprep.subr.mxu0 0.0
        %5637 = vmatpush1.msra.mxu0 0.0
        %5638 = vmatprep.subr.mxu0 0.0
        %5639 = vmatpush1.msra.mxu0 0.0
        %5640 = vmatprep.subr.mxu0 0.0
        %5641 = vmatpush1.msra.mxu0 0.0
        %5642 = vmatprep.subr.mxu0 0.0
        %5643 = vmatpush1.msra.mxu0 0.0
        %5644 = vmatprep.subr.mxu0 0.0
        %5645 = vmatpush1.msra.mxu0 0.0
        %5646 = vmatprep.subr.mxu0 0.0
        %5647 = vmatpush1.msra.mxu0 0.0
        %5648 = vmatprep.subr.mxu0 0.0
        %5649 = vmatpush1.msra.mxu0 0.0
        %5650 = vmatprep.subr.mxu0 0.0
        %5651 = vmatpush1.msra.mxu0 0.0
        %5652 = vmatprep.subr.mxu0 0.0
        %5653 = vmatpush1.msra.mxu0 0.0
        %5654 = vmatprep.subr.mxu0 0.0
        %5655 = vmatpush1.msra.mxu0 0.0
        %5656 = vmatprep.subr.mxu0 0.0
        %5657 = vmatpush1.msra.mxu0 0.0
        %5658 = vmatprep.subr.mxu0 0.0
        %5659 = vmatpush1.msra.mxu0 0.0
        %5660 = vmatprep.subr.mxu0 0.0
        %5661 = vmatpush1.msra.mxu0 0.0
        %5662 = vmatprep.subr.mxu0 0.0
        %5663 = vmatpush1.msra.mxu0 0.0
        %5664 = vmatprep.subr.mxu0 0.0
        %5665 = vmatpush1.msra.mxu0 0.0
        %5666 = vmatprep.subr.mxu0 0.0
        %5667 = vmatpush1.msra.mxu0 0.0
        %5668 = vmatprep.subr.mxu0 0.0
        %5669 = vmatpush1.msra.mxu0 0.0
        %5670 = vmatprep.subr.mxu0 0.0
        %5671 = vmatpush1.msra.mxu0 0.0
        %5672 = vmatprep.subr.mxu0 0.0
        %5673 = vmatpush1.msra.mxu0 0.0
        %5674 = vmatprep.subr.mxu0 0.0
        %5675 = vmatpush1.msra.mxu0 0.0
        %5676 = vmatprep.subr.mxu0 0.0
        %5677 = vmatpush1.msra.mxu0 0.0
        %5678 = vmatprep.subr.mxu0 0.0
        %5679 = vmatpush1.msra.mxu0 0.0
        %5680 = vmatprep.mubr.f32.mxu0 0.0
        %v5681 = vand.u32 %v5613, 4294901760
        %v5682 = vsub.f32 %v5613, %v5681
        %v5683 = vand.u32 %v5682, 4294901760
        %v5684 = vsub.f32 %v5682, %v5683
        %v5685 = vand.u32 %v5684, 4294901760
        %5686 = vmatmul.mubr.f32.gmra.mrb[0].mxu0 %v5685
        %v5687 = vpop.f32.mrb[0].mxu0
        %v5688 = vadd.f32 0.0, %v5687
        %v5689 = vpop.f32.mrb[0].mxu0
        %5690 = vdwg.mxu0
        %5691 = vmatprep.subr.mxu0 0.0
        %v5692 = vand.u32 %v3135, 4294901760
        %v5693 = vsub.f32 %v3135, %v5692
        %v5694 = vand.u32 %v5693, 4294901760
        %v5695 = vsub.f32 %v5693, %v5694
        %v5696 = vand.u32 %v5695, 4294901760
        %5697 = vmatpush1.msra.mxu0 %v5696
        %5698 = vmatprep.subr.mxu0 0.0
        %5699 = vmatpush1.msra.mxu0 0.0
        %5700 = vmatprep.subr.mxu0 0.0
        %5701 = vmatpush1.msra.mxu0 0.0
        %5702 = vmatprep.subr.mxu0 0.0
        %5703 = vmatpush1.msra.mxu0 0.0
        %5704 = vmatprep.subr.mxu0 0.0
        %5705 = vmatpush1.msra.mxu0 0.0
        %5706 = vmatprep.subr.mxu0 0.0
        %5707 = vmatpush1.msra.mxu0 0.0
        %5708 = vmatprep.subr.mxu0 0.0
        %5709 = vmatpush1.msra.mxu0 0.0
        %5710 = vmatprep.subr.mxu0 0.0
        %5711 = vmatpush1.msra.mxu0 0.0
        %5712 = vmatprep.subr.mxu0 0.0
        %5713 = vmatpush1.msra.mxu0 0.0
        %5714 = vmatprep.subr.mxu0 0.0
        %5715 = vmatpush1.msra.mxu0 0.0
        %5716 = vmatprep.subr.mxu0 0.0
        %5717 = vmatpush1.msra.mxu0 0.0
        %5718 = vmatprep.subr.mxu0 0.0
        %5719 = vmatpush1.msra.mxu0 0.0
        %5720 = vmatprep.subr.mxu0 0.0
        %5721 = vmatpush1.msra.mxu0 0.0
        %5722 = vmatprep.subr.mxu0 0.0
        %5723 = vmatpush1.msra.mxu0 0.0
        %5724 = vmatprep.subr.mxu0 0.0
        %5725 = vmatpush1.msra.mxu0 0.0
        %5726 = vmatprep.subr.mxu0 0.0
        %5727 = vmatpush1.msra.mxu0 0.0
        %5728 = vmatprep.subr.mxu0 0.0
        %5729 = vmatpush1.msra.mxu0 0.0
        %5730 = vmatprep.subr.mxu0 0.0
        %5731 = vmatpush1.msra.mxu0 0.0
        %5732 = vmatprep.subr.mxu0 0.0
        %5733 = vmatpush1.msra.mxu0 0.0
        %5734 = vmatprep.subr.mxu0 0.0
        %5735 = vmatpush1.msra.mxu0 0.0
        %5736 = vmatprep.subr.mxu0 0.0
        %5737 = vmatpush1.msra.mxu0 0.0
        %5738 = vmatprep.subr.mxu0 0.0
        %5739 = vmatpush1.msra.mxu0 0.0
        %5740 = vmatprep.subr.mxu0 0.0
        %5741 = vmatpush1.msra.mxu0 0.0
        %5742 = vmatprep.subr.mxu0 0.0
        %5743 = vmatpush1.msra.mxu0 0.0
        %5744 = vmatprep.subr.mxu0 0.0
        %5745 = vmatpush1.msra.mxu0 0.0
        %5746 = vmatprep.subr.mxu0 0.0
        %5747 = vmatpush1.msra.mxu0 0.0
        %5748 = vmatprep.subr.mxu0 0.0
        %5749 = vmatpush1.msra.mxu0 0.0
        %5750 = vmatprep.subr.mxu0 0.0
        %5751 = vmatpush1.msra.mxu0 0.0
        %5752 = vmatprep.subr.mxu0 0.0
        %5753 = vmatpush1.msra.mxu0 0.0
        %5754 = vmatprep.subr.mxu0 0.0
        %5755 = vmatpush1.msra.mxu0 0.0
        %5756 = vmatprep.subr.mxu0 0.0
        %5757 = vmatpush1.msra.mxu0 0.0
        %5758 = vmatprep.subr.mxu0 0.0
        %5759 = vmatpush1.msra.mxu0 0.0
        %5760 = vmatprep.mubr.f32.mxu0 0.0
        %v5761 = vand.u32 %v5613, 4294901760
        %5762 = vmatmul.mubr.f32.gmra.mrb[0].mxu0 %v5761
        %v5763 = vpop.f32.mrb[0].mxu0
        %v5764 = vadd.f32 %v5688, %v5763
        %v5765 = vpop.f32.mrb[0].mxu0
        %5766 = vdwg.mxu0
        %5767 = vmatprep.subr.mxu0 0.0
        %v5768 = vand.u32 %v3135, 4294901760
        %v5769 = vsub.f32 %v3135, %v5768
        %5770 = vmatpush1.msra.mxu0 %v5769
        %5771 = vmatprep.subr.mxu0 0.0
        %5772 = vmatpush1.msra.mxu0 0.0
        %5773 = vmatprep.subr.mxu0 0.0
        %5774 = vmatpush1.msra.mxu0 0.0
        %5775 = vmatprep.subr.mxu0 0.0
        %5776 = vmatpush1.msra.mxu0 0.0
        %5777 = vmatprep.subr.mxu0 0.0
        %5778 = vmatpush1.msra.mxu0 0.0
        %5779 = vmatprep.subr.mxu0 0.0
        %5780 = vmatpush1.msra.mxu0 0.0
        %5781 = vmatprep.subr.mxu0 0.0
        %5782 = vmatpush1.msra.mxu0 0.0
        %5783 = vmatprep.subr.mxu0 0.0
        %5784 = vmatpush1.msra.mxu0 0.0
        %5785 = vmatprep.subr.mxu0 0.0
        %5786 = vmatpush1.msra.mxu0 0.0
        %5787 = vmatprep.subr.mxu0 0.0
        %5788 = vmatpush1.msra.mxu0 0.0
        %5789 = vmatprep.subr.mxu0 0.0
        %5790 = vmatpush1.msra.mxu0 0.0
        %5791 = vmatprep.subr.mxu0 0.0
        %5792 = vmatpush1.msra.mxu0 0.0
        %5793 = vmatprep.subr.mxu0 0.0
        %5794 = vmatpush1.msra.mxu0 0.0
        %5795 = vmatprep.subr.mxu0 0.0
        %5796 = vmatpush1.msra.mxu0 0.0
        %5797 = vmatprep.subr.mxu0 0.0
        %5798 = vmatpush1.msra.mxu0 0.0
        %5799 = vmatprep.subr.mxu0 0.0
        %5800 = vmatpush1.msra.mxu0 0.0
        %5801 = vmatprep.subr.mxu0 0.0
        %5802 = vmatpush1.msra.mxu0 0.0
        %5803 = vmatprep.subr.mxu0 0.0
        %5804 = vmatpush1.msra.mxu0 0.0
        %5805 = vmatprep.subr.mxu0 0.0
        %5806 = vmatpush1.msra.mxu0 0.0
        %5807 = vmatprep.subr.mxu0 0.0
        %5808 = vmatpush1.msra.mxu0 0.0
        %5809 = vmatprep.subr.mxu0 0.0
        %5810 = vmatpush1.msra.mxu0 0.0
        %5811 = vmatprep.subr.mxu0 0.0
        %5812 = vmatpush1.msra.mxu0 0.0
        %5813 = vmatprep.subr.mxu0 0.0
        %5814 = vmatpush1.msra.mxu0 0.0
        %5815 = vmatprep.subr.mxu0 0.0
        %5816 = vmatpush1.msra.mxu0 0.0
        %5817 = vmatprep.subr.mxu0 0.0
        %5818 = vmatpush1.msra.mxu0 0.0
        %5819 = vmatprep.subr.mxu0 0.0
        %5820 = vmatpush1.msra.mxu0 0.0
        %5821 = vmatprep.subr.mxu0 0.0
        %5822 = vmatpush1.msra.mxu0 0.0
        %5823 = vmatprep.subr.mxu0 0.0
        %5824 = vmatpush1.msra.mxu0 0.0
        %5825 = vmatprep.subr.mxu0 0.0
        %5826 = vmatpush1.msra.mxu0 0.0
        %5827 = vmatprep.subr.mxu0 0.0
        %5828 = vmatpush1.msra.mxu0 0.0
        %5829 = vmatprep.subr.mxu0 0.0
        %5830 = vmatpush1.msra.mxu0 0.0
        %5831 = vmatprep.subr.mxu0 0.0
        %5832 = vmatpush1.msra.mxu0 0.0
        %5833 = vmatprep.mubr.f32.mxu0 0.0
        %v5834 = vand.u32 %v5613, 4294901760
        %v5835 = vsub.f32 %v5613, %v5834
        %5836 = vmatmul.mubr.f32.gmra.mrb[0].mxu0 %v5835
        %v5837 = vpop.f32.mrb[0].mxu0
        %v5838 = vadd.f32 %v5764, %v5837
        %v5839 = vpop.f32.mrb[0].mxu0
        %5840 = vdwg.mxu0
        %5841 = vmatprep.subr.mxu0 0.0
        %v5842 = vand.u32 %v3135, 4294901760
        %5843 = vmatpush1.msra.mxu0 %v5842
        %5844 = vmatprep.subr.mxu0 0.0
        %5845 = vmatpush1.msra.mxu0 0.0
        %5846 = vmatprep.subr.mxu0 0.0
        %5847 = vmatpush1.msra.mxu0 0.0
        %5848 = vmatprep.subr.mxu0 0.0
        %5849 = vmatpush1.msra.mxu0 0.0
        %5850 = vmatprep.subr.mxu0 0.0
        %5851 = vmatpush1.msra.mxu0 0.0
        %5852 = vmatprep.subr.mxu0 0.0
        %5853 = vmatpush1.msra.mxu0 0.0
        %5854 = vmatprep.subr.mxu0 0.0
        %5855 = vmatpush1.msra.mxu0 0.0
        %5856 = vmatprep.subr.mxu0 0.0
        %5857 = vmatpush1.msra.mxu0 0.0
        %5858 = vmatprep.subr.mxu0 0.0
        %5859 = vmatpush1.msra.mxu0 0.0
        %5860 = vmatprep.subr.mxu0 0.0
        %5861 = vmatpush1.msra.mxu0 0.0
        %5862 = vmatprep.subr.mxu0 0.0
        %5863 = vmatpush1.msra.mxu0 0.0
        %5864 = vmatprep.subr.mxu0 0.0
        %5865 = vmatpush1.msra.mxu0 0.0
        %5866 = vmatprep.subr.mxu0 0.0
        %5867 = vmatpush1.msra.mxu0 0.0
        %5868 = vmatprep.subr.mxu0 0.0
        %5869 = vmatpush1.msra.mxu0 0.0
        %5870 = vmatprep.subr.mxu0 0.0
        %5871 = vmatpush1.msra.mxu0 0.0
        %5872 = vmatprep.subr.mxu0 0.0
        %5873 = vmatpush1.msra.mxu0 0.0
        %5874 = vmatprep.subr.mxu0 0.0
        %5875 = vmatpush1.msra.mxu0 0.0
        %5876 = vmatprep.subr.mxu0 0.0
        %5877 = vmatpush1.msra.mxu0 0.0
        %5878 = vmatprep.subr.mxu0 0.0
        %5879 = vmatpush1.msra.mxu0 0.0
        %5880 = vmatprep.subr.mxu0 0.0
        %5881 = vmatpush1.msra.mxu0 0.0
        %5882 = vmatprep.subr.mxu0 0.0
        %5883 = vmatpush1.msra.mxu0 0.0
        %5884 = vmatprep.subr.mxu0 0.0
        %5885 = vmatpush1.msra.mxu0 0.0
        %5886 = vmatprep.subr.mxu0 0.0
        %5887 = vmatpush1.msra.mxu0 0.0
        %5888 = vmatprep.subr.mxu0 0.0
        %5889 = vmatpush1.msra.mxu0 0.0
        %5890 = vmatprep.subr.mxu0 0.0
        %5891 = vmatpush1.msra.mxu0 0.0
        %5892 = vmatprep.subr.mxu0 0.0
        %5893 = vmatpush1.msra.mxu0 0.0
        %5894 = vmatprep.subr.mxu0 0.0
        %5895 = vmatpush1.msra.mxu0 0.0
        %5896 = vmatprep.subr.mxu0 0.0
        %5897 = vmatpush1.msra.mxu0 0.0
        %5898 = vmatprep.subr.mxu0 0.0
        %5899 = vmatpush1.msra.mxu0 0.0
        %5900 = vmatprep.subr.mxu0 0.0
        %5901 = vmatpush1.msra.mxu0 0.0
        %5902 = vmatprep.subr.mxu0 0.0
        %5903 = vmatpush1.msra.mxu0 0.0
        %5904 = vmatprep.subr.mxu0 0.0
        %5905 = vmatpush1.msra.mxu0 0.0
        %5906 = vmatprep.mubr.f32.mxu0 0.0
        %v5907 = vand.u32 %v5613, 4294901760
        %v5908 = vsub.f32 %v5613, %v5907
        %v5909 = vand.u32 %v5908, 4294901760
        %5910 = vmatmul.mubr.f32.gmra.mrb[0].mxu0 %v5909
        %v5911 = vpop.f32.mrb[0].mxu0
        %v5912 = vadd.f32 %v5838, %v5911
        %v5913 = vpop.f32.mrb[0].mxu0
        %5914 = vdwg.mxu0
        %5915 = vmatprep.subr.mxu0 0.0
        %v5916 = vand.u32 %v3135, 4294901760
        %v5917 = vsub.f32 %v3135, %v5916
        %v5918 = vand.u32 %v5917, 4294901760
        %5919 = vmatpush1.msra.mxu0 %v5918
        %5920 = vmatprep.subr.mxu0 0.0
        %5921 = vmatpush1.msra.mxu0 0.0
        %5922 = vmatprep.subr.mxu0 0.0
        %5923 = vmatpush1.msra.mxu0 0.0
        %5924 = vmatprep.subr.mxu0 0.0
        %5925 = vmatpush1.msra.mxu0 0.0
        %5926 = vmatprep.subr.mxu0 0.0
        %5927 = vmatpush1.msra.mxu0 0.0
        %5928 = vmatprep.subr.mxu0 0.0
        %5929 = vmatpush1.msra.mxu0 0.0
        %5930 = vmatprep.subr.mxu0 0.0
        %5931 = vmatpush1.msra.mxu0 0.0
        %5932 = vmatprep.subr.mxu0 0.0
        %5933 = vmatpush1.msra.mxu0 0.0
        %5934 = vmatprep.subr.mxu0 0.0
        %5935 = vmatpush1.msra.mxu0 0.0
        %5936 = vmatprep.subr.mxu0 0.0
        %5937 = vmatpush1.msra.mxu0 0.0
        %5938 = vmatprep.subr.mxu0 0.0
        %5939 = vmatpush1.msra.mxu0 0.0
        %5940 = vmatprep.subr.mxu0 0.0
        %5941 = vmatpush1.msra.mxu0 0.0
        %5942 = vmatprep.subr.mxu0 0.0
        %5943 = vmatpush1.msra.mxu0 0.0
        %5944 = vmatprep.subr.mxu0 0.0
        %5945 = vmatpush1.msra.mxu0 0.0
        %5946 = vmatprep.subr.mxu0 0.0
        %5947 = vmatpush1.msra.mxu0 0.0
        %5948 = vmatprep.subr.mxu0 0.0
        %5949 = vmatpush1.msra.mxu0 0.0
        %5950 = vmatprep.subr.mxu0 0.0
        %5951 = vmatpush1.msra.mxu0 0.0
        %5952 = vmatprep.subr.mxu0 0.0
        %5953 = vmatpush1.msra.mxu0 0.0
        %5954 = vmatprep.subr.mxu0 0.0
        %5955 = vmatpush1.msra.mxu0 0.0
        %5956 = vmatprep.subr.mxu0 0.0
        %5957 = vmatpush1.msra.mxu0 0.0
        %5958 = vmatprep.subr.mxu0 0.0
        %5959 = vmatpush1.msra.mxu0 0.0
        %5960 = vmatprep.subr.mxu0 0.0
        %5961 = vmatpush1.msra.mxu0 0.0
        %5962 = vmatprep.subr.mxu0 0.0
        %5963 = vmatpush1.msra.mxu0 0.0
        %5964 = vmatprep.subr.mxu0 0.0
        %5965 = vmatpush1.msra.mxu0 0.0
        %5966 = vmatprep.subr.mxu0 0.0
        %5967 = vmatpush1.msra.mxu0 0.0
        %5968 = vmatprep.subr.mxu0 0.0
        %5969 = vmatpush1.msra.mxu0 0.0
        %5970 = vmatprep.subr.mxu0 0.0
        %5971 = vmatpush1.msra.mxu0 0.0
        %5972 = vmatprep.subr.mxu0 0.0
        %5973 = vmatpush1.msra.mxu0 0.0
        %5974 = vmatprep.subr.mxu0 0.0
        %5975 = vmatpush1.msra.mxu0 0.0
        %5976 = vmatprep.subr.mxu0 0.0
        %5977 = vmatpush1.msra.mxu0 0.0
        %5978 = vmatprep.subr.mxu0 0.0
        %5979 = vmatpush1.msra.mxu0 0.0
        %5980 = vmatprep.subr.mxu0 0.0
        %5981 = vmatpush1.msra.mxu0 0.0
        %5982 = vmatprep.mubr.f32.mxu0 0.0
        %v5983 = vand.u32 %v5613, 4294901760
        %5984 = vmatmul.mubr.f32.gmra.mrb[0].mxu0 %v5983
        %v5985 = vpop.f32.mrb[0].mxu0
        %v5986 = vadd.f32 %v5912, %v5985
        %v5987 = vpop.f32.mrb[0].mxu0
        %5988 = vdwg.mxu0
        %5989 = vmatprep.subr.mxu0 0.0
        %v5990 = vand.u32 %v3135, 4294901760
        %5991 = vmatpush1.msra.mxu0 %v5990
        %5992 = vmatprep.subr.mxu0 0.0
        %5993 = vmatpush1.msra.mxu0 0.0
        %5994 = vmatprep.subr.mxu0 0.0
        %5995 = vmatpush1.msra.mxu0 0.0
        %5996 = vmatprep.subr.mxu0 0.0
        %5997 = vmatpush1.msra.mxu0 0.0
        %5998 = vmatprep.subr.mxu0 0.0
        %5999 = vmatpush1.msra.mxu0 0.0
        %6000 = vmatprep.subr.mxu0 0.0
        %6001 = vmatpush1.msra.mxu0 0.0
        %6002 = vmatprep.subr.mxu0 0.0
        %6003 = vmatpush1.msra.mxu0 0.0
        %6004 = vmatprep.subr.mxu0 0.0
        %6005 = vmatpush1.msra.mxu0 0.0
        %6006 = vmatprep.subr.mxu0 0.0
        %6007 = vmatpush1.msra.mxu0 0.0
        %6008 = vmatprep.subr.mxu0 0.0
        %6009 = vmatpush1.msra.mxu0 0.0
        %6010 = vmatprep.subr.mxu0 0.0
        %6011 = vmatpush1.msra.mxu0 0.0
        %6012 = vmatprep.subr.mxu0 0.0
        %6013 = vmatpush1.msra.mxu0 0.0
        %6014 = vmatprep.subr.mxu0 0.0
        %6015 = vmatpush1.msra.mxu0 0.0
        %6016 = vmatprep.subr.mxu0 0.0
        %6017 = vmatpush1.msra.mxu0 0.0
        %6018 = vmatprep.subr.mxu0 0.0
        %6019 = vmatpush1.msra.mxu0 0.0
        %6020 = vmatprep.subr.mxu0 0.0
        %6021 = vmatpush1.msra.mxu0 0.0
        %6022 = vmatprep.subr.mxu0 0.0
        %6023 = vmatpush1.msra.mxu0 0.0
        %6024 = vmatprep.subr.mxu0 0.0
        %6025 = vmatpush1.msra.mxu0 0.0
        %6026 = vmatprep.subr.mxu0 0.0
        %6027 = vmatpush1.msra.mxu0 0.0
        %6028 = vmatprep.subr.mxu0 0.0
        %6029 = vmatpush1.msra.mxu0 0.0
        %6030 = vmatprep.subr.mxu0 0.0
        %6031 = vmatpush1.msra.mxu0 0.0
        %6032 = vmatprep.subr.mxu0 0.0
        %6033 = vmatpush1.msra.mxu0 0.0
        %6034 = vmatprep.subr.mxu0 0.0
        %6035 = vmatpush1.msra.mxu0 0.0
        %6036 = vmatprep.subr.mxu0 0.0
        %6037 = vmatpush1.msra.mxu0 0.0
        %6038 = vmatprep.subr.mxu0 0.0
        %6039 = vmatpush1.msra.mxu0 0.0
        %6040 = vmatprep.subr.mxu0 0.0
        %6041 = vmatpush1.msra.mxu0 0.0
        %6042 = vmatprep.subr.mxu0 0.0
        %6043 = vmatpush1.msra.mxu0 0.0
        %6044 = vmatprep.subr.mxu0 0.0
        %6045 = vmatpush1.msra.mxu0 0.0
        %6046 = vmatprep.subr.mxu0 0.0
        %6047 = vmatpush1.msra.mxu0 0.0
        %6048 = vmatprep.subr.mxu0 0.0
        %6049 = vmatpush1.msra.mxu0 0.0
        %6050 = vmatprep.subr.mxu0 0.0
        %6051 = vmatpush1.msra.mxu0 0.0
        %6052 = vmatprep.subr.mxu0 0.0
        %6053 = vmatpush1.msra.mxu0 0.0
        %6054 = vmatprep.mubr.f32.mxu0 0.0
        %v6055 = vand.u32 %v5613, 4294901760
        %6056 = vmatmul.mubr.f32.gmra.mrb[0].mxu0 %v6055
        %v6057 = vpop.f32.mrb[0].mxu0
        %v6058 = vadd.f32 %v5986, %v6057
        %v6059 = vpop.f32.mrb[0].mxu0
        %6060 = vdwg.mxu0
        %v6061 = vadd.f32 %v5340, %v6058
        %v6062 = vadd.f32 %v446, %v6061
        %v6063 = vld [vmem:[%s5] sm:$0x1]
        %v6064 = vld [vmem:[%s6] sm:$0x1]
        %6065 = vadd.xlane.f32.xlu0 %v6062
        %v6066 = vpop.xlane.xlu0 %6065
        %v6067 = vmul.f32 %v6062, %v6062
        %6068 = vadd.xlane.f32.xlu0 %v6067
        %v6069 = vpop.xlane.xlu0 %6068
        %v6070 = vmul.f32 %v6066, 0.010416667
        %v6071 = vmul.f32 %v6069, 0.010416667
        %v6072 = vmul.f32 %v6070, %v6070
        %v6073 = vsub.f32 %v6071, %v6072
        %v6074 = vadd.f32 %v6073, 1e-05
        %v6075 = vrsqrt.pop %v6074
        %v6076 = vsub.f32 %v6062, %v6070
        %v6077 = vmul.f32 %v6076, %v6075
        %v6079 = vlaneseq
        %v6080 = vshrl.u32 %v6079, 7
        %v6081 = vsub.s32 0, %v6080
        %v6082 = vrot.slane %v6063, %v6081
        %v6084 = vmul.f32 %v6077, %v6082
        %v6086 = vlaneseq
        %v6087 = vshrl.u32 %v6086, 7
        %v6088 = vsub.s32 0, %v6087
        %v6089 = vrot.slane %v6064, %v6088
        %v6091 = vadd.f32 %v6084, %v6089
        %v6092 = vld [vmem:[#allocation7] sm:$0xff]
        %v6093 = vld [vmem:[#allocation7 + $0x8] sm:$0xff]
        %v6094 = vld [vmem:[#allocation7 + $0x10] sm:$0xff]
        %v6095 = vld [vmem:[#allocation7 + $0x18] sm:$0xff]
        %v6096 = vld [vmem:[#allocation7 + $0x20] sm:$0xff]
        %v6097 = vld [vmem:[#allocation7 + $0x28] sm:$0xff]
        %v6098 = vld [vmem:[#allocation7 + $0x30] sm:$0xff]
        %v6099 = vld [vmem:[#allocation7 + $0x38] sm:$0xff]
        %v6100 = vld [vmem:[#allocation7 + $0x40] sm:$0xff]
        %v6101 = vld [vmem:[#allocation7 + $0x48] sm:$0xff]
        %v6102 = vld [vmem:[#allocation7 + $0x50] sm:$0xff]
        %v6103 = vld [vmem:[#allocation7 + $0x58] sm:$0xff]
        %v6104 = vld [vmem:[#allocation7 + $0x60] sm:$0xff]
        %v6105 = vld [vmem:[#allocation7 + $0x68] sm:$0xff]
        %v6106 = vld [vmem:[#allocation7 + $0x70] sm:$0xff]
        %v6107 = vld [vmem:[#allocation7 + $0x78] sm:$0xff]
        %v6108 = vld [vmem:[#allocation7 + $0x80] sm:$0xff]
        %v6109 = vld [vmem:[#allocation7 + $0x88] sm:$0xff]
        %v6110 = vld [vmem:[#allocation7 + $0x90] sm:$0xff]
        %v6111 = vld [vmem:[#allocation7 + $0x98] sm:$0xff]
        %v6112 = vld [vmem:[#allocation7 + $0xa0] sm:$0xff]
        %v6113 = vld [vmem:[#allocation7 + $0xa8] sm:$0xff]
        %v6114 = vld [vmem:[#allocation7 + $0xb0] sm:$0xff]
        %v6115 = vld [vmem:[#allocation7 + $0xb8] sm:$0xff]
        %v6116 = vld [vmem:[#allocation7 + $0xc0] sm:$0xff]
        %v6117 = vld [vmem:[#allocation7 + $0xc8] sm:$0xff]
        %v6118 = vld [vmem:[#allocation7 + $0xd0] sm:$0xff]
        %v6119 = vld [vmem:[#allocation7 + $0xd8] sm:$0xff]
        %v6120 = vld [vmem:[#allocation7 + $0xe0] sm:$0xff]
        %v6121 = vld [vmem:[#allocation7 + $0xe8] sm:$0xff]
        %v6122 = vld [vmem:[#allocation7 + $0xf0] sm:$0xff]
        %v6123 = vld [vmem:[#allocation7 + $0xf8] sm:$0xff]
        %v6124 = vld [vmem:[#allocation7 + $0x100] sm:$0xff]
        %v6125 = vld [vmem:[#allocation7 + $0x108] sm:$0xff]
        %v6126 = vld [vmem:[#allocation7 + $0x110] sm:$0xff]
        %v6127 = vld [vmem:[#allocation7 + $0x118] sm:$0xff]
        %v6128 = vld [vmem:[#allocation7 + $0x120] sm:$0xff]
        %v6129 = vld [vmem:[#allocation7 + $0x128] sm:$0xff]
        %v6130 = vld [vmem:[#allocation7 + $0x130] sm:$0xff]
        %v6131 = vld [vmem:[#allocation7 + $0x138] sm:$0xff]
        %v6132 = vld [vmem:[#allocation7 + $0x140] sm:$0xff]
        %v6133 = vld [vmem:[#allocation7 + $0x148] sm:$0xff]
        %v6134 = vld [vmem:[#allocation7 + $0x150] sm:$0xff]
        %v6135 = vld [vmem:[#allocation7 + $0x158] sm:$0xff]
        %v6136 = vld [vmem:[#allocation7 + $0x160] sm:$0xff]
        %v6137 = vld [vmem:[#allocation7 + $0x168] sm:$0xff]
        %v6138 = vld [vmem:[#allocation7 + $0x170] sm:$0xff]
        %v6139 = vld [vmem:[#allocation7 + $0x178] sm:$0xff]
        %v6140 = vld [vmem:[%s8] sm:$0x7]
        %v6142 = vlaneseq
        %v6143 = vshrl.u32 %v6142, 7
        %v6144 = vsub.s32 0, %v6143
        %v6145 = vrot.slane %v6140, %v6144
        %v6146 = vlaneseq
        %v6147 = vshrl.u32 %v6146, 7
        %v6148 = vsub.s32 1, %v6147
        %v6149 = vrot.slane %v6140, %v6148
        %v6150 = vlaneseq
        %v6151 = vshrl.u32 %v6150, 7
        %v6152 = vsub.s32 2, %v6151
        %v6153 = vrot.slane %v6140, %v6152
        %v6157 = vand.u32 %v6093, 4294901760
        %6158 = vmatprep.subr.mxu0 %v6157
        %v6159 = vand.u32 %v6092, 4294901760
        %6160 = vmatpush1.msra.mxu0 %v6159
        %v6161 = vand.u32 %v6096, 4294901760
        %6162 = vmatprep.subr.mxu0 %v6161
        %v6163 = vand.u32 %v6095, 4294901760
        %6164 = vmatpush1.msra.mxu0 %v6163
        %v6165 = vand.u32 %v6099, 4294901760
        %6166 = vmatprep.subr.mxu0 %v6165
        %v6167 = vand.u32 %v6098, 4294901760
        %6168 = vmatpush1.msra.mxu0 %v6167
        %v6169 = vand.u32 %v6102, 4294901760
        %6170 = vmatprep.subr.mxu0 %v6169
        %v6171 = vand.u32 %v6101, 4294901760
        %6172 = vmatpush1.msra.mxu0 %v6171
        %v6173 = vand.u32 %v6105, 4294901760
        %6174 = vmatprep.subr.mxu0 %v6173
        %v6175 = vand.u32 %v6104, 4294901760
        %6176 = vmatpush1.msra.mxu0 %v6175
        %v6177 = vand.u32 %v6108, 4294901760
        %6178 = vmatprep.subr.mxu0 %v6177
        %v6179 = vand.u32 %v6107, 4294901760
        %6180 = vmatpush1.msra.mxu0 %v6179
        %v6181 = vand.u32 %v6111, 4294901760
        %6182 = vmatprep.subr.mxu0 %v6181
        %v6183 = vand.u32 %v6110, 4294901760
        %6184 = vmatpush1.msra.mxu0 %v6183
        %v6185 = vand.u32 %v6114, 4294901760
        %6186 = vmatprep.subr.mxu0 %v6185
        %v6187 = vand.u32 %v6113, 4294901760
        %6188 = vmatpush1.msra.mxu0 %v6187
        %v6189 = vand.u32 %v6117, 4294901760
        %6190 = vmatprep.subr.mxu0 %v6189
        %v6191 = vand.u32 %v6116, 4294901760
        %6192 = vmatpush1.msra.mxu0 %v6191
        %v6193 = vand.u32 %v6120, 4294901760
        %6194 = vmatprep.subr.mxu0 %v6193
        %v6195 = vand.u32 %v6119, 4294901760
        %6196 = vmatpush1.msra.mxu0 %v6195
        %v6197 = vand.u32 %v6123, 4294901760
        %6198 = vmatprep.subr.mxu0 %v6197
        %v6199 = vand.u32 %v6122, 4294901760
        %6200 = vmatpush1.msra.mxu0 %v6199
        %v6201 = vand.u32 %v6126, 4294901760
        %6202 = vmatprep.subr.mxu0 %v6201
        %v6203 = vand.u32 %v6125, 4294901760
        %6204 = vmatpush1.msra.mxu0 %v6203
        %v6205 = vand.u32 %v6129, 4294901760
        %6206 = vmatprep.subr.mxu0 %v6205
        %v6207 = vand.u32 %v6128, 4294901760
        %6208 = vmatpush1.msra.mxu0 %v6207
        %v6209 = vand.u32 %v6132, 4294901760
        %6210 = vmatprep.subr.mxu0 %v6209
        %v6211 = vand.u32 %v6131, 4294901760
        %6212 = vmatpush1.msra.mxu0 %v6211
        %v6213 = vand.u32 %v6135, 4294901760
        %6214 = vmatprep.subr.mxu0 %v6213
        %v6215 = vand.u32 %v6134, 4294901760
        %6216 = vmatpush1.msra.mxu0 %v6215
        %v6217 = vand.u32 %v6138, 4294901760
        %6218 = vmatprep.subr.mxu0 %v6217
        %v6219 = vand.u32 %v6137, 4294901760
        %6220 = vmatpush1.msra.mxu0 %v6219
        %6221 = vmatprep.subr.mxu0 0.0
        %6222 = vmatpush1.msra.mxu0 0.0
        %6223 = vmatprep.subr.mxu0 0.0
        %6224 = vmatpush1.msra.mxu0 0.0
        %6225 = vmatprep.subr.mxu0 0.0
        %6226 = vmatpush1.msra.mxu0 0.0
        %6227 = vmatprep.subr.mxu0 0.0
        %6228 = vmatpush1.msra.mxu0 0.0
        %6229 = vmatprep.subr.mxu0 0.0
        %6230 = vmatpush1.msra.mxu0 0.0
        %6231 = vmatprep.subr.mxu0 0.0
        %6232 = vmatpush1.msra.mxu0 0.0
        %6233 = vmatprep.subr.mxu0 0.0
        %6234 = vmatpush1.msra.mxu0 0.0
        %6235 = vmatprep.subr.mxu0 0.0
        %6236 = vmatpush1.msra.mxu0 0.0
        %6237 = vmatprep.subr.mxu0 0.0
        %6238 = vmatpush1.msra.mxu0 0.0
        %6239 = vmatprep.subr.mxu0 0.0
        %6240 = vmatpush1.msra.mxu0 0.0
        %6241 = vmatprep.subr.mxu0 0.0
        %6242 = vmatpush1.msra.mxu0 0.0
        %6243 = vmatprep.subr.mxu0 0.0
        %6244 = vmatpush1.msra.mxu0 0.0
        %6245 = vmatprep.subr.mxu0 0.0
        %6246 = vmatpush1.msra.mxu0 0.0
        %6247 = vmatprep.subr.mxu0 0.0
        %6248 = vmatpush1.msra.mxu0 0.0
        %6249 = vmatprep.subr.mxu0 0.0
        %6250 = vmatpush1.msra.mxu0 0.0
        %6251 = vmatprep.subr.mxu0 0.0
        %6252 = vmatpush1.msra.mxu0 0.0
        %6253 = vmatprep.mubr.f32.mxu0 0.0
        %v6254 = vand.u32 %v6091, 4294901760
        %v6255 = vsub.f32 %v6091, %v6254
        %v6256 = vand.u32 %v6255, 4294901760
        %v6257 = vsub.f32 %v6255, %v6256
        %v6258 = vand.u32 %v6257, 4294901760
        %6259 = vmatmul.mubr.f32.gmra.mrb[0].mxu0 %v6258
        %v6260 = vpop.f32.mrb[0].mxu0
        %v6261 = vadd.f32 %v6145, %v6260
        %v6262 = vpop.f32.mrb[0].mxu0
        %v6263 = vadd.f32 %v6149, %v6262
        %6264 = vdwg.mxu0
        %v6265 = vand.u32 %v6093, 4294901760
        %v6266 = vsub.f32 %v6093, %v6265
        %v6267 = vand.u32 %v6266, 4294901760
        %v6268 = vsub.f32 %v6266, %v6267
        %v6269 = vand.u32 %v6268, 4294901760
        %6270 = vmatprep.subr.mxu0 %v6269
        %v6271 = vand.u32 %v6092, 4294901760
        %v6272 = vsub.f32 %v6092, %v6271
        %v6273 = vand.u32 %v6272, 4294901760
        %v6274 = vsub.f32 %v6272, %v6273
        %v6275 = vand.u32 %v6274, 4294901760
        %6276 = vmatpush1.msra.mxu0 %v6275
        %v6277 = vand.u32 %v6096, 4294901760
        %v6278 = vsub.f32 %v6096, %v6277
        %v6279 = vand.u32 %v6278, 4294901760
        %v6280 = vsub.f32 %v6278, %v6279
        %v6281 = vand.u32 %v6280, 4294901760
        %6282 = vmatprep.subr.mxu0 %v6281
        %v6283 = vand.u32 %v6095, 4294901760
        %v6284 = vsub.f32 %v6095, %v6283
        %v6285 = vand.u32 %v6284, 4294901760
        %v6286 = vsub.f32 %v6284, %v6285
        %v6287 = vand.u32 %v6286, 4294901760
        %6288 = vmatpush1.msra.mxu0 %v6287
        %v6289 = vand.u32 %v6099, 4294901760
        %v6290 = vsub.f32 %v6099, %v6289
        %v6291 = vand.u32 %v6290, 4294901760
        %v6292 = vsub.f32 %v6290, %v6291
        %v6293 = vand.u32 %v6292, 4294901760
        %6294 = vmatprep.subr.mxu0 %v6293
        %v6295 = vand.u32 %v6098, 4294901760
        %v6296 = vsub.f32 %v6098, %v6295
        %v6297 = vand.u32 %v6296, 4294901760
        %v6298 = vsub.f32 %v6296, %v6297
        %v6299 = vand.u32 %v6298, 4294901760
        %6300 = vmatpush1.msra.mxu0 %v6299
        %v6301 = vand.u32 %v6102, 4294901760
        %v6302 = vsub.f32 %v6102, %v6301
        %v6303 = vand.u32 %v6302, 4294901760
        %v6304 = vsub.f32 %v6302, %v6303
        %v6305 = vand.u32 %v6304, 4294901760
        %6306 = vmatprep.subr.mxu0 %v6305
        %v6307 = vand.u32 %v6101, 4294901760
        %v6308 = vsub.f32 %v6101, %v6307
        %v6309 = vand.u32 %v6308, 4294901760
        %v6310 = vsub.f32 %v6308, %v6309
        %v6311 = vand.u32 %v6310, 4294901760
        %6312 = vmatpush1.msra.mxu0 %v6311
        %v6313 = vand.u32 %v6105, 4294901760
        %v6314 = vsub.f32 %v6105, %v6313
        %v6315 = vand.u32 %v6314, 4294901760
        %v6316 = vsub.f32 %v6314, %v6315
        %v6317 = vand.u32 %v6316, 4294901760
        %6318 = vmatprep.subr.mxu0 %v6317
        %v6319 = vand.u32 %v6104, 4294901760
        %v6320 = vsub.f32 %v6104, %v6319
        %v6321 = vand.u32 %v6320, 4294901760
        %v6322 = vsub.f32 %v6320, %v6321
        %v6323 = vand.u32 %v6322, 4294901760
        %6324 = vmatpush1.msra.mxu0 %v6323
        %v6325 = vand.u32 %v6108, 4294901760
        %v6326 = vsub.f32 %v6108, %v6325
        %v6327 = vand.u32 %v6326, 4294901760
        %v6328 = vsub.f32 %v6326, %v6327
        %v6329 = vand.u32 %v6328, 4294901760
        %6330 = vmatprep.subr.mxu0 %v6329
        %v6331 = vand.u32 %v6107, 4294901760
        %v6332 = vsub.f32 %v6107, %v6331
        %v6333 = vand.u32 %v6332, 4294901760
        %v6334 = vsub.f32 %v6332, %v6333
        %v6335 = vand.u32 %v6334, 4294901760
        %6336 = vmatpush1.msra.mxu0 %v6335
        %v6337 = vand.u32 %v6111, 4294901760
        %v6338 = vsub.f32 %v6111, %v6337
        %v6339 = vand.u32 %v6338, 4294901760
        %v6340 = vsub.f32 %v6338, %v6339
        %v6341 = vand.u32 %v6340, 4294901760
        %6342 = vmatprep.subr.mxu0 %v6341
        %v6343 = vand.u32 %v6110, 4294901760
        %v6344 = vsub.f32 %v6110, %v6343
        %v6345 = vand.u32 %v6344, 4294901760
        %v6346 = vsub.f32 %v6344, %v6345
        %v6347 = vand.u32 %v6346, 4294901760
        %6348 = vmatpush1.msra.mxu0 %v6347
        %v6349 = vand.u32 %v6114, 4294901760
        %v6350 = vsub.f32 %v6114, %v6349
        %v6351 = vand.u32 %v6350, 4294901760
        %v6352 = vsub.f32 %v6350, %v6351
        %v6353 = vand.u32 %v6352, 4294901760
        %6354 = vmatprep.subr.mxu0 %v6353
        %v6355 = vand.u32 %v6113, 4294901760
        %v6356 = vsub.f32 %v6113, %v6355
        %v6357 = vand.u32 %v6356, 4294901760
        %v6358 = vsub.f32 %v6356, %v6357
        %v6359 = vand.u32 %v6358, 4294901760
        %6360 = vmatpush1.msra.mxu0 %v6359
        %v6361 = vand.u32 %v6117, 4294901760
        %v6362 = vsub.f32 %v6117, %v6361
        %v6363 = vand.u32 %v6362, 4294901760
        %v6364 = vsub.f32 %v6362, %v6363
        %v6365 = vand.u32 %v6364, 4294901760
        %6366 = vmatprep.subr.mxu0 %v6365
        %v6367 = vand.u32 %v6116, 4294901760
        %v6368 = vsub.f32 %v6116, %v6367
        %v6369 = vand.u32 %v6368, 4294901760
        %v6370 = vsub.f32 %v6368, %v6369
        %v6371 = vand.u32 %v6370, 4294901760
        %6372 = vmatpush1.msra.mxu0 %v6371
        %v6373 = vand.u32 %v6120, 4294901760
        %v6374 = vsub.f32 %v6120, %v6373
        %v6375 = vand.u32 %v6374, 4294901760
        %v6376 = vsub.f32 %v6374, %v6375
        %v6377 = vand.u32 %v6376, 4294901760
        %6378 = vmatprep.subr.mxu0 %v6377
        %v6379 = vand.u32 %v6119, 4294901760
        %v6380 = vsub.f32 %v6119, %v6379
        %v6381 = vand.u32 %v6380, 4294901760
        %v6382 = vsub.f32 %v6380, %v6381
        %v6383 = vand.u32 %v6382, 4294901760
        %6384 = vmatpush1.msra.mxu0 %v6383
        %v6385 = vand.u32 %v6123, 4294901760
        %v6386 = vsub.f32 %v6123, %v6385
        %v6387 = vand.u32 %v6386, 4294901760
        %v6388 = vsub.f32 %v6386, %v6387
        %v6389 = vand.u32 %v6388, 4294901760
        %6390 = vmatprep.subr.mxu0 %v6389
        %v6391 = vand.u32 %v6122, 4294901760
        %v6392 = vsub.f32 %v6122, %v6391
        %v6393 = vand.u32 %v6392, 4294901760
        %v6394 = vsub.f32 %v6392, %v6393
        %v6395 = vand.u32 %v6394, 4294901760
        %6396 = vmatpush1.msra.mxu0 %v6395
        %v6397 = vand.u32 %v6126, 4294901760
        %v6398 = vsub.f32 %v6126, %v6397
        %v6399 = vand.u32 %v6398, 4294901760
        %v6400 = vsub.f32 %v6398, %v6399
        %v6401 = vand.u32 %v6400, 4294901760
        %6402 = vmatprep.subr.mxu0 %v6401
        %v6403 = vand.u32 %v6125, 4294901760
        %v6404 = vsub.f32 %v6125, %v6403
        %v6405 = vand.u32 %v6404, 4294901760
        %v6406 = vsub.f32 %v6404, %v6405
        %v6407 = vand.u32 %v6406, 4294901760
        %6408 = vmatpush1.msra.mxu0 %v6407
        %v6409 = vand.u32 %v6129, 4294901760
        %v6410 = vsub.f32 %v6129, %v6409
        %v6411 = vand.u32 %v6410, 4294901760
        %v6412 = vsub.f32 %v6410, %v6411
        %v6413 = vand.u32 %v6412, 4294901760
        %6414 = vmatprep.subr.mxu0 %v6413
        %v6415 = vand.u32 %v6128, 4294901760
        %v6416 = vsub.f32 %v6128, %v6415
        %v6417 = vand.u32 %v6416, 4294901760
        %v6418 = vsub.f32 %v6416, %v6417
        %v6419 = vand.u32 %v6418, 4294901760
        %6420 = vmatpush1.msra.mxu0 %v6419
        %v6421 = vand.u32 %v6132, 4294901760
        %v6422 = vsub.f32 %v6132, %v6421
        %v6423 = vand.u32 %v6422, 4294901760
        %v6424 = vsub.f32 %v6422, %v6423
        %v6425 = vand.u32 %v6424, 4294901760
        %6426 = vmatprep.subr.mxu0 %v6425
        %v6427 = vand.u32 %v6131, 4294901760
        %v6428 = vsub.f32 %v6131, %v6427
        %v6429 = vand.u32 %v6428, 4294901760
        %v6430 = vsub.f32 %v6428, %v6429
        %v6431 = vand.u32 %v6430, 4294901760
        %6432 = vmatpush1.msra.mxu0 %v6431
        %v6433 = vand.u32 %v6135, 4294901760
        %v6434 = vsub.f32 %v6135, %v6433
        %v6435 = vand.u32 %v6434, 4294901760
        %v6436 = vsub.f32 %v6434, %v6435
        %v6437 = vand.u32 %v6436, 4294901760
        %6438 = vmatprep.subr.mxu0 %v6437
        %v6439 = vand.u32 %v6134, 4294901760
        %v6440 = vsub.f32 %v6134, %v6439
        %v6441 = vand.u32 %v6440, 4294901760
        %v6442 = vsub.f32 %v6440, %v6441
        %v6443 = vand.u32 %v6442, 4294901760
        %6444 = vmatpush1.msra.mxu0 %v6443
        %v6445 = vand.u32 %v6138, 4294901760
        %v6446 = vsub.f32 %v6138, %v6445
        %v6447 = vand.u32 %v6446, 4294901760
        %v6448 = vsub.f32 %v6446, %v6447
        %v6449 = vand.u32 %v6448, 4294901760
        %6450 = vmatprep.subr.mxu0 %v6449
        %v6451 = vand.u32 %v6137, 4294901760
        %v6452 = vsub.f32 %v6137, %v6451
        %v6453 = vand.u32 %v6452, 4294901760
        %v6454 = vsub.f32 %v6452, %v6453
        %v6455 = vand.u32 %v6454, 4294901760
        %6456 = vmatpush1.msra.mxu0 %v6455
        %6457 = vmatprep.subr.mxu0 0.0
        %6458 = vmatpush1.msra.mxu0 0.0
        %6459 = vmatprep.subr.mxu0 0.0
        %6460 = vmatpush1.msra.mxu0 0.0
        %6461 = vmatprep.subr.mxu0 0.0
        %6462 = vmatpush1.msra.mxu0 0.0
        %6463 = vmatprep.subr.mxu0 0.0
        %6464 = vmatpush1.msra.mxu0 0.0
        %6465 = vmatprep.subr.mxu0 0.0
        %6466 = vmatpush1.msra.mxu0 0.0
        %6467 = vmatprep.subr.mxu0 0.0
        %6468 = vmatpush1.msra.mxu0 0.0
        %6469 = vmatprep.subr.mxu0 0.0
        %6470 = vmatpush1.msra.mxu0 0.0
        %6471 = vmatprep.subr.mxu0 0.0
        %6472 = vmatpush1.msra.mxu0 0.0
        %6473 = vmatprep.subr.mxu0 0.0
        %6474 = vmatpush1.msra.mxu0 0.0
        %6475 = vmatprep.subr.mxu0 0.0
        %6476 = vmatpush1.msra.mxu0 0.0
        %6477 = vmatprep.subr.mxu0 0.0
        %6478 = vmatpush1.msra.mxu0 0.0
        %6479 = vmatprep.subr.mxu0 0.0
        %6480 = vmatpush1.msra.mxu0 0.0
        %6481 = vmatprep.subr.mxu0 0.0
        %6482 = vmatpush1.msra.mxu0 0.0
        %6483 = vmatprep.subr.mxu0 0.0
        %6484 = vmatpush1.msra.mxu0 0.0
        %6485 = vmatprep.subr.mxu0 0.0
        %6486 = vmatpush1.msra.mxu0 0.0
        %6487 = vmatprep.subr.mxu0 0.0
        %6488 = vmatpush1.msra.mxu0 0.0
        %6489 = vmatprep.mubr.f32.mxu0 0.0
        %v6490 = vand.u32 %v6091, 4294901760
        %6491 = vmatmul.mubr.f32.gmra.mrb[0].mxu0 %v6490
        %v6492 = vpop.f32.mrb[0].mxu0
        %v6493 = vadd.f32 %v6261, %v6492
        %v6494 = vpop.f32.mrb[0].mxu0
        %v6495 = vadd.f32 %v6263, %v6494
        %6496 = vdwg.mxu0
        %v6497 = vand.u32 %v6093, 4294901760
        %v6498 = vsub.f32 %v6093, %v6497
        %6499 = vmatprep.subr.mxu0 %v6498
        %v6500 = vand.u32 %v6092, 4294901760
        %v6501 = vsub.f32 %v6092, %v6500
        %6502 = vmatpush1.msra.mxu0 %v6501
        %v6503 = vand.u32 %v6096, 4294901760
        %v6504 = vsub.f32 %v6096, %v6503
        %6505 = vmatprep.subr.mxu0 %v6504
        %v6506 = vand.u32 %v6095, 4294901760
        %v6507 = vsub.f32 %v6095, %v6506
        %6508 = vmatpush1.msra.mxu0 %v6507
        %v6509 = vand.u32 %v6099, 4294901760
        %v6510 = vsub.f32 %v6099, %v6509
        %6511 = vmatprep.subr.mxu0 %v6510
        %v6512 = vand.u32 %v6098, 4294901760
        %v6513 = vsub.f32 %v6098, %v6512
        %6514 = vmatpush1.msra.mxu0 %v6513
        %v6515 = vand.u32 %v6102, 4294901760
        %v6516 = vsub.f32 %v6102, %v6515
        %6517 = vmatprep.subr.mxu0 %v6516
        %v6518 = vand.u32 %v6101, 4294901760
        %v6519 = vsub.f32 %v6101, %v6518
        %6520 = vmatpush1.msra.mxu0 %v6519
        %v6521 = vand.u32 %v6105, 4294901760
        %v6522 = vsub.f32 %v6105, %v6521
        %6523 = vmatprep.subr.mxu0 %v6522
        %v6524 = vand.u32 %v6104, 4294901760
        %v6525 = vsub.f32 %v6104, %v6524
        %6526 = vmatpush1.msra.mxu0 %v6525
        %v6527 = vand.u32 %v6108, 4294901760
        %v6528 = vsub.f32 %v6108, %v6527
        %6529 = vmatprep.subr.mxu0 %v6528
        %v6530 = vand.u32 %v6107, 4294901760
        %v6531 = vsub.f32 %v6107, %v6530
        %6532 = vmatpush1.msra.mxu0 %v6531
        %v6533 = vand.u32 %v6111, 4294901760
        %v6534 = vsub.f32 %v6111, %v6533
        %6535 = vmatprep.subr.mxu0 %v6534
        %v6536 = vand.u32 %v6110, 4294901760
        %v6537 = vsub.f32 %v6110, %v6536
        %6538 = vmatpush1.msra.mxu0 %v6537
        %v6539 = vand.u32 %v6114, 4294901760
        %v6540 = vsub.f32 %v6114, %v6539
        %6541 = vmatprep.subr.mxu0 %v6540
        %v6542 = vand.u32 %v6113, 4294901760
        %v6543 = vsub.f32 %v6113, %v6542
        %6544 = vmatpush1.msra.mxu0 %v6543
        %v6545 = vand.u32 %v6117, 4294901760
        %v6546 = vsub.f32 %v6117, %v6545
        %6547 = vmatprep.subr.mxu0 %v6546
        %v6548 = vand.u32 %v6116, 4294901760
        %v6549 = vsub.f32 %v6116, %v6548
        %6550 = vmatpush1.msra.mxu0 %v6549
        %v6551 = vand.u32 %v6120, 4294901760
        %v6552 = vsub.f32 %v6120, %v6551
        %6553 = vmatprep.subr.mxu0 %v6552
        %v6554 = vand.u32 %v6119, 4294901760
        %v6555 = vsub.f32 %v6119, %v6554
        %6556 = vmatpush1.msra.mxu0 %v6555
        %v6557 = vand.u32 %v6123, 4294901760
        %v6558 = vsub.f32 %v6123, %v6557
        %6559 = vmatprep.subr.mxu0 %v6558
        %v6560 = vand.u32 %v6122, 4294901760
        %v6561 = vsub.f32 %v6122, %v6560
        %6562 = vmatpush1.msra.mxu0 %v6561
        %v6563 = vand.u32 %v6126, 4294901760
        %v6564 = vsub.f32 %v6126, %v6563
        %6565 = vmatprep.subr.mxu0 %v6564
        %v6566 = vand.u32 %v6125, 4294901760
        %v6567 = vsub.f32 %v6125, %v6566
        %6568 = vmatpush1.msra.mxu0 %v6567
        %v6569 = vand.u32 %v6129, 4294901760
        %v6570 = vsub.f32 %v6129, %v6569
        %6571 = vmatprep.subr.mxu0 %v6570
        %v6572 = vand.u32 %v6128, 4294901760
        %v6573 = vsub.f32 %v6128, %v6572
        %6574 = vmatpush1.msra.mxu0 %v6573
        %v6575 = vand.u32 %v6132, 4294901760
        %v6576 = vsub.f32 %v6132, %v6575
        %6577 = vmatprep.subr.mxu0 %v6576
        %v6578 = vand.u32 %v6131, 4294901760
        %v6579 = vsub.f32 %v6131, %v6578
        %6580 = vmatpush1.msra.mxu0 %v6579
        %v6581 = vand.u32 %v6135, 4294901760
        %v6582 = vsub.f32 %v6135, %v6581
        %6583 = vmatprep.subr.mxu0 %v6582
        %v6584 = vand.u32 %v6134, 4294901760
        %v6585 = vsub.f32 %v6134, %v6584
        %6586 = vmatpush1.msra.mxu0 %v6585
        %v6587 = vand.u32 %v6138, 4294901760
        %v6588 = vsub.f32 %v6138, %v6587
        %6589 = vmatprep.subr.mxu0 %v6588
        %v6590 = vand.u32 %v6137, 4294901760
        %v6591 = vsub.f32 %v6137, %v6590
        %6592 = vmatpush1.msra.mxu0 %v6591
        %6593 = vmatprep.subr.mxu0 0.0
        %6594 = vmatpush1.msra.mxu0 0.0
        %6595 = vmatprep.subr.mxu0 0.0
        %6596 = vmatpush1.msra.mxu0 0.0
        %6597 = vmatprep.subr.mxu0 0.0
        %6598 = vmatpush1.msra.mxu0 0.0
        %6599 = vmatprep.subr.mxu0 0.0
        %6600 = vmatpush1.msra.mxu0 0.0
        %6601 = vmatprep.subr.mxu0 0.0
        %6602 = vmatpush1.msra.mxu0 0.0
        %6603 = vmatprep.subr.mxu0 0.0
        %6604 = vmatpush1.msra.mxu0 0.0
        %6605 = vmatprep.subr.mxu0 0.0
        %6606 = vmatpush1.msra.mxu0 0.0
        %6607 = vmatprep.subr.mxu0 0.0
        %6608 = vmatpush1.msra.mxu0 0.0
        %6609 = vmatprep.subr.mxu0 0.0
        %6610 = vmatpush1.msra.mxu0 0.0
        %6611 = vmatprep.subr.mxu0 0.0
        %6612 = vmatpush1.msra.mxu0 0.0
        %6613 = vmatprep.subr.mxu0 0.0
        %6614 = vmatpush1.msra.mxu0 0.0
        %6615 = vmatprep.subr.mxu0 0.0
        %6616 = vmatpush1.msra.mxu0 0.0
        %6617 = vmatprep.subr.mxu0 0.0
        %6618 = vmatpush1.msra.mxu0 0.0
        %6619 = vmatprep.subr.mxu0 0.0
        %6620 = vmatpush1.msra.mxu0 0.0
        %6621 = vmatprep.subr.mxu0 0.0
        %6622 = vmatpush1.msra.mxu0 0.0
        %6623 = vmatprep.subr.mxu0 0.0
        %6624 = vmatpush1.msra.mxu0 0.0
        %6625 = vmatprep.mubr.f32.mxu0 0.0
        %v6626 = vand.u32 %v6091, 4294901760
        %v6627 = vsub.f32 %v6091, %v6626
        %6628 = vmatmul.mubr.f32.gmra.mrb[0].mxu0 %v6627
        %v6629 = vpop.f32.mrb[0].mxu0
        %v6630 = vadd.f32 %v6493, %v6629
        %v6631 = vpop.f32.mrb[0].mxu0
        %v6632 = vadd.f32 %v6495, %v6631
        %6633 = vdwg.mxu0
        %v6634 = vand.u32 %v6093, 4294901760
        %6635 = vmatprep.subr.mxu0 %v6634
        %v6636 = vand.u32 %v6092, 4294901760
        %6637 = vmatpush1.msra.mxu0 %v6636
        %v6638 = vand.u32 %v6096, 4294901760
        %6639 = vmatprep.subr.mxu0 %v6638
        %v6640 = vand.u32 %v6095, 4294901760
        %6641 = vmatpush1.msra.mxu0 %v6640
        %v6642 = vand.u32 %v6099, 4294901760
        %6643 = vmatprep.subr.mxu0 %v6642
        %v6644 = vand.u32 %v6098, 4294901760
        %6645 = vmatpush1.msra.mxu0 %v6644
        %v6646 = vand.u32 %v6102, 4294901760
        %6647 = vmatprep.subr.mxu0 %v6646
        %v6648 = vand.u32 %v6101, 4294901760
        %6649 = vmatpush1.msra.mxu0 %v6648
        %v6650 = vand.u32 %v6105, 4294901760
        %6651 = vmatprep.subr.mxu0 %v6650
        %v6652 = vand.u32 %v6104, 4294901760
        %6653 = vmatpush1.msra.mxu0 %v6652
        %v6654 = vand.u32 %v6108, 4294901760
        %6655 = vmatprep.subr.mxu0 %v6654
        %v6656 = vand.u32 %v6107, 4294901760
        %6657 = vmatpush1.msra.mxu0 %v6656
        %v6658 = vand.u32 %v6111, 4294901760
        %6659 = vmatprep.subr.mxu0 %v6658
        %v6660 = vand.u32 %v6110, 4294901760
        %6661 = vmatpush1.msra.mxu0 %v6660
        %v6662 = vand.u32 %v6114, 4294901760
        %6663 = vmatprep.subr.mxu0 %v6662
        %v6664 = vand.u32 %v6113, 4294901760
        %6665 = vmatpush1.msra.mxu0 %v6664
        %v6666 = vand.u32 %v6117, 4294901760
        %6667 = vmatprep.subr.mxu0 %v6666
        %v6668 = vand.u32 %v6116, 4294901760
        %6669 = vmatpush1.msra.mxu0 %v6668
        %v6670 = vand.u32 %v6120, 4294901760
        %6671 = vmatprep.subr.mxu0 %v6670
        %v6672 = vand.u32 %v6119, 4294901760
        %6673 = vmatpush1.msra.mxu0 %v6672
        %v6674 = vand.u32 %v6123, 4294901760
        %6675 = vmatprep.subr.mxu0 %v6674
        %v6676 = vand.u32 %v6122, 4294901760
        %6677 = vmatpush1.msra.mxu0 %v6676
        %v6678 = vand.u32 %v6126, 4294901760
        %6679 = vmatprep.subr.mxu0 %v6678
        %v6680 = vand.u32 %v6125, 4294901760
        %6681 = vmatpush1.msra.mxu0 %v6680
        %v6682 = vand.u32 %v6129, 4294901760
        %6683 = vmatprep.subr.mxu0 %v6682
        %v6684 = vand.u32 %v6128, 4294901760
        %6685 = vmatpush1.msra.mxu0 %v6684
        %v6686 = vand.u32 %v6132, 4294901760
        %6687 = vmatprep.subr.mxu0 %v6686
        %v6688 = vand.u32 %v6131, 4294901760
        %6689 = vmatpush1.msra.mxu0 %v6688
        %v6690 = vand.u32 %v6135, 4294901760
        %6691 = vmatprep.subr.mxu0 %v6690
        %v6692 = vand.u32 %v6134, 4294901760
        %6693 = vmatpush1.msra.mxu0 %v6692
        %v6694 = vand.u32 %v6138, 4294901760
        %6695 = vmatprep.subr.mxu0 %v6694
        %v6696 = vand.u32 %v6137, 4294901760
        %6697 = vmatpush1.msra.mxu0 %v6696
        %6698 = vmatprep.subr.mxu0 0.0
        %6699 = vmatpush1.msra.mxu0 0.0
        %6700 = vmatprep.subr.mxu0 0.0
        %6701 = vmatpush1.msra.mxu0 0.0
        %6702 = vmatprep.subr.mxu0 0.0
        %6703 = vmatpush1.msra.mxu0 0.0
        %6704 = vmatprep.subr.mxu0 0.0
        %6705 = vmatpush1.msra.mxu0 0.0
        %6706 = vmatprep.subr.mxu0 0.0
        %6707 = vmatpush1.msra.mxu0 0.0
        %6708 = vmatprep.subr.mxu0 0.0
        %6709 = vmatpush1.msra.mxu0 0.0
        %6710 = vmatprep.subr.mxu0 0.0
        %6711 = vmatpush1.msra.mxu0 0.0
        %6712 = vmatprep.subr.mxu0 0.0
        %6713 = vmatpush1.msra.mxu0 0.0
        %6714 = vmatprep.subr.mxu0 0.0
        %6715 = vmatpush1.msra.mxu0 0.0
        %6716 = vmatprep.subr.mxu0 0.0
        %6717 = vmatpush1.msra.mxu0 0.0
        %6718 = vmatprep.subr.mxu0 0.0
        %6719 = vmatpush1.msra.mxu0 0.0
        %6720 = vmatprep.subr.mxu0 0.0
        %6721 = vmatpush1.msra.mxu0 0.0
        %6722 = vmatprep.subr.mxu0 0.0
        %6723 = vmatpush1.msra.mxu0 0.0
        %6724 = vmatprep.subr.mxu0 0.0
        %6725 = vmatpush1.msra.mxu0 0.0
        %6726 = vmatprep.subr.mxu0 0.0
        %6727 = vmatpush1.msra.mxu0 0.0
        %6728 = vmatprep.subr.mxu0 0.0
        %6729 = vmatpush1.msra.mxu0 0.0
        %6730 = vmatprep.mubr.f32.mxu0 0.0
        %v6731 = vand.u32 %v6091, 4294901760
        %v6732 = vsub.f32 %v6091, %v6731
        %v6733 = vand.u32 %v6732, 4294901760
        %6734 = vmatmul.mubr.f32.gmra.mrb[0].mxu0 %v6733
        %v6735 = vpop.f32.mrb[0].mxu0
        %v6736 = vadd.f32 %v6630, %v6735
        %v6737 = vpop.f32.mrb[0].mxu0
        %v6738 = vadd.f32 %v6632, %v6737
        %6739 = vdwg.mxu0
        %v6740 = vand.u32 %v6093, 4294901760
        %v6741 = vsub.f32 %v6093, %v6740
        %v6742 = vand.u32 %v6741, 4294901760
        %6743 = vmatprep.subr.mxu0 %v6742
        %v6744 = vand.u32 %v6092, 4294901760
        %v6745 = vsub.f32 %v6092, %v6744
        %v6746 = vand.u32 %v6745, 4294901760
        %6747 = vmatpush1.msra.mxu0 %v6746
        %v6748 = vand.u32 %v6096, 4294901760
        %v6749 = vsub.f32 %v6096, %v6748
        %v6750 = vand.u32 %v6749, 4294901760
        %6751 = vmatprep.subr.mxu0 %v6750
        %v6752 = vand.u32 %v6095, 4294901760
        %v6753 = vsub.f32 %v6095, %v6752
        %v6754 = vand.u32 %v6753, 4294901760
        %6755 = vmatpush1.msra.mxu0 %v6754
        %v6756 = vand.u32 %v6099, 4294901760
        %v6757 = vsub.f32 %v6099, %v6756
        %v6758 = vand.u32 %v6757, 4294901760
        %6759 = vmatprep.subr.mxu0 %v6758
        %v6760 = vand.u32 %v6098, 4294901760
        %v6761 = vsub.f32 %v6098, %v6760
        %v6762 = vand.u32 %v6761, 4294901760
        %6763 = vmatpush1.msra.mxu0 %v6762
        %v6764 = vand.u32 %v6102, 4294901760
        %v6765 = vsub.f32 %v6102, %v6764
        %v6766 = vand.u32 %v6765, 4294901760
        %6767 = vmatprep.subr.mxu0 %v6766
        %v6768 = vand.u32 %v6101, 4294901760
        %v6769 = vsub.f32 %v6101, %v6768
        %v6770 = vand.u32 %v6769, 4294901760
        %6771 = vmatpush1.msra.mxu0 %v6770
        %v6772 = vand.u32 %v6105, 4294901760
        %v6773 = vsub.f32 %v6105, %v6772
        %v6774 = vand.u32 %v6773, 4294901760
        %6775 = vmatprep.subr.mxu0 %v6774
        %v6776 = vand.u32 %v6104, 4294901760
        %v6777 = vsub.f32 %v6104, %v6776
        %v6778 = vand.u32 %v6777, 4294901760
        %6779 = vmatpush1.msra.mxu0 %v6778
        %v6780 = vand.u32 %v6108, 4294901760
        %v6781 = vsub.f32 %v6108, %v6780
        %v6782 = vand.u32 %v6781, 4294901760
        %6783 = vmatprep.subr.mxu0 %v6782
        %v6784 = vand.u32 %v6107, 4294901760
        %v6785 = vsub.f32 %v6107, %v6784
        %v6786 = vand.u32 %v6785, 4294901760
        %6787 = vmatpush1.msra.mxu0 %v6786
        %v6788 = vand.u32 %v6111, 4294901760
        %v6789 = vsub.f32 %v6111, %v6788
        %v6790 = vand.u32 %v6789, 4294901760
        %6791 = vmatprep.subr.mxu0 %v6790
        %v6792 = vand.u32 %v6110, 4294901760
        %v6793 = vsub.f32 %v6110, %v6792
        %v6794 = vand.u32 %v6793, 4294901760
        %6795 = vmatpush1.msra.mxu0 %v6794
        %v6796 = vand.u32 %v6114, 4294901760
        %v6797 = vsub.f32 %v6114, %v6796
        %v6798 = vand.u32 %v6797, 4294901760
        %6799 = vmatprep.subr.mxu0 %v6798
        %v6800 = vand.u32 %v6113, 4294901760
        %v6801 = vsub.f32 %v6113, %v6800
        %v6802 = vand.u32 %v6801, 4294901760
        %6803 = vmatpush1.msra.mxu0 %v6802
        %v6804 = vand.u32 %v6117, 4294901760
        %v6805 = vsub.f32 %v6117, %v6804
        %v6806 = vand.u32 %v6805, 4294901760
        %6807 = vmatprep.subr.mxu0 %v6806
        %v6808 = vand.u32 %v6116, 4294901760
        %v6809 = vsub.f32 %v6116, %v6808
        %v6810 = vand.u32 %v6809, 4294901760
        %6811 = vmatpush1.msra.mxu0 %v6810
        %v6812 = vand.u32 %v6120, 4294901760
        %v6813 = vsub.f32 %v6120, %v6812
        %v6814 = vand.u32 %v6813, 4294901760
        %6815 = vmatprep.subr.mxu0 %v6814
        %v6816 = vand.u32 %v6119, 4294901760
        %v6817 = vsub.f32 %v6119, %v6816
        %v6818 = vand.u32 %v6817, 4294901760
        %6819 = vmatpush1.msra.mxu0 %v6818
        %v6820 = vand.u32 %v6123, 4294901760
        %v6821 = vsub.f32 %v6123, %v6820
        %v6822 = vand.u32 %v6821, 4294901760
        %6823 = vmatprep.subr.mxu0 %v6822
        %v6824 = vand.u32 %v6122, 4294901760
        %v6825 = vsub.f32 %v6122, %v6824
        %v6826 = vand.u32 %v6825, 4294901760
        %6827 = vmatpush1.msra.mxu0 %v6826
        %v6828 = vand.u32 %v6126, 4294901760
        %v6829 = vsub.f32 %v6126, %v6828
        %v6830 = vand.u32 %v6829, 4294901760
        %6831 = vmatprep.subr.mxu0 %v6830
        %v6832 = vand.u32 %v6125, 4294901760
        %v6833 = vsub.f32 %v6125, %v6832
        %v6834 = vand.u32 %v6833, 4294901760
        %6835 = vmatpush1.msra.mxu0 %v6834
        %v6836 = vand.u32 %v6129, 4294901760
        %v6837 = vsub.f32 %v6129, %v6836
        %v6838 = vand.u32 %v6837, 4294901760
        %6839 = vmatprep.subr.mxu0 %v6838
        %v6840 = vand.u32 %v6128, 4294901760
        %v6841 = vsub.f32 %v6128, %v6840
        %v6842 = vand.u32 %v6841, 4294901760
        %6843 = vmatpush1.msra.mxu0 %v6842
        %v6844 = vand.u32 %v6132, 4294901760
        %v6845 = vsub.f32 %v6132, %v6844
        %v6846 = vand.u32 %v6845, 4294901760
        %6847 = vmatprep.subr.mxu0 %v6846
        %v6848 = vand.u32 %v6131, 4294901760
        %v6849 = vsub.f32 %v6131, %v6848
        %v6850 = vand.u32 %v6849, 4294901760
        %6851 = vmatpush1.msra.mxu0 %v6850
        %v6852 = vand.u32 %v6135, 4294901760
        %v6853 = vsub.f32 %v6135, %v6852
        %v6854 = vand.u32 %v6853, 4294901760
        %6855 = vmatprep.subr.mxu0 %v6854
        %v6856 = vand.u32 %v6134, 4294901760
        %v6857 = vsub.f32 %v6134, %v6856
        %v6858 = vand.u32 %v6857, 4294901760
        %6859 = vmatpush1.msra.mxu0 %v6858
        %v6860 = vand.u32 %v6138, 4294901760
        %v6861 = vsub.f32 %v6138, %v6860
        %v6862 = vand.u32 %v6861, 4294901760
        %6863 = vmatprep.subr.mxu0 %v6862
        %v6864 = vand.u32 %v6137, 4294901760
        %v6865 = vsub.f32 %v6137, %v6864
        %v6866 = vand.u32 %v6865, 4294901760
        %6867 = vmatpush1.msra.mxu0 %v6866
        %6868 = vmatprep.subr.mxu0 0.0
        %6869 = vmatpush1.msra.mxu0 0.0
        %6870 = vmatprep.subr.mxu0 0.0
        %6871 = vmatpush1.msra.mxu0 0.0
        %6872 = vmatprep.subr.mxu0 0.0
        %6873 = vmatpush1.msra.mxu0 0.0
        %6874 = vmatprep.subr.mxu0 0.0
        %6875 = vmatpush1.msra.mxu0 0.0
        %6876 = vmatprep.subr.mxu0 0.0
        %6877 = vmatpush1.msra.mxu0 0.0
        %6878 = vmatprep.subr.mxu0 0.0
        %6879 = vmatpush1.msra.mxu0 0.0
        %6880 = vmatprep.subr.mxu0 0.0
        %6881 = vmatpush1.msra.mxu0 0.0
        %6882 = vmatprep.subr.mxu0 0.0
        %6883 = vmatpush1.msra.mxu0 0.0
        %6884 = vmatprep.subr.mxu0 0.0
        %6885 = vmatpush1.msra.mxu0 0.0
        %6886 = vmatprep.subr.mxu0 0.0
        %6887 = vmatpush1.msra.mxu0 0.0
        %6888 = vmatprep.subr.mxu0 0.0
        %6889 = vmatpush1.msra.mxu0 0.0
        %6890 = vmatprep.subr.mxu0 0.0
        %6891 = vmatpush1.msra.mxu0 0.0
        %6892 = vmatprep.subr.mxu0 0.0
        %6893 = vmatpush1.msra.mxu0 0.0
        %6894 = vmatprep.subr.mxu0 0.0
        %6895 = vmatpush1.msra.mxu0 0.0
        %6896 = vmatprep.subr.mxu0 0.0
        %6897 = vmatpush1.msra.mxu0 0.0
        %6898 = vmatprep.subr.mxu0 0.0
        %6899 = vmatpush1.msra.mxu0 0.0
        %6900 = vmatprep.mubr.f32.mxu0 0.0
        %v6901 = vand.u32 %v6091, 4294901760
        %6902 = vmatmul.mubr.f32.gmra.mrb[0].mxu0 %v6901
        %v6903 = vpop.f32.mrb[0].mxu0
        %v6904 = vadd.f32 %v6736, %v6903
        %v6905 = vpop.f32.mrb[0].mxu0
        %v6906 = vadd.f32 %v6738, %v6905
        %6907 = vdwg.mxu0
        %v6908 = vand.u32 %v6093, 4294901760
        %6909 = vmatprep.subr.mxu0 %v6908
        %v6910 = vand.u32 %v6092, 4294901760
        %6911 = vmatpush1.msra.mxu0 %v6910
        %v6912 = vand.u32 %v6096, 4294901760
        %6913 = vmatprep.subr.mxu0 %v6912
        %v6914 = vand.u32 %v6095, 4294901760
        %6915 = vmatpush1.msra.mxu0 %v6914
        %v6916 = vand.u32 %v6099, 4294901760
        %6917 = vmatprep.subr.mxu0 %v6916
        %v6918 = vand.u32 %v6098, 4294901760
        %6919 = vmatpush1.msra.mxu0 %v6918
        %v6920 = vand.u32 %v6102, 4294901760
        %6921 = vmatprep.subr.mxu0 %v6920
        %v6922 = vand.u32 %v6101, 4294901760
        %6923 = vmatpush1.msra.mxu0 %v6922
        %v6924 = vand.u32 %v6105, 4294901760
        %6925 = vmatprep.subr.mxu0 %v6924
        %v6926 = vand.u32 %v6104, 4294901760
        %6927 = vmatpush1.msra.mxu0 %v6926
        %v6928 = vand.u32 %v6108, 4294901760
        %6929 = vmatprep.subr.mxu0 %v6928
        %v6930 = vand.u32 %v6107, 4294901760
        %6931 = vmatpush1.msra.mxu0 %v6930
        %v6932 = vand.u32 %v6111, 4294901760
        %6933 = vmatprep.subr.mxu0 %v6932
        %v6934 = vand.u32 %v6110, 4294901760
        %6935 = vmatpush1.msra.mxu0 %v6934
        %v6936 = vand.u32 %v6114, 4294901760
        %6937 = vmatprep.subr.mxu0 %v6936
        %v6938 = vand.u32 %v6113, 4294901760
        %6939 = vmatpush1.msra.mxu0 %v6938
        %v6940 = vand.u32 %v6117, 4294901760
        %6941 = vmatprep.subr.mxu0 %v6940
        %v6942 = vand.u32 %v6116, 4294901760
        %6943 = vmatpush1.msra.mxu0 %v6942
        %v6944 = vand.u32 %v6120, 4294901760
        %6945 = vmatprep.subr.mxu0 %v6944
        %v6946 = vand.u32 %v6119, 4294901760
        %6947 = vmatpush1.msra.mxu0 %v6946
        %v6948 = vand.u32 %v6123, 4294901760
        %6949 = vmatprep.subr.mxu0 %v6948
        %v6950 = vand.u32 %v6122, 4294901760
        %6951 = vmatpush1.msra.mxu0 %v6950
        %v6952 = vand.u32 %v6126, 4294901760
        %6953 = vmatprep.subr.mxu0 %v6952
        %v6954 = vand.u32 %v6125, 4294901760
        %6955 = vmatpush1.msra.mxu0 %v6954
        %v6956 = vand.u32 %v6129, 4294901760
        %6957 = vmatprep.subr.mxu0 %v6956
        %v6958 = vand.u32 %v6128, 4294901760
        %6959 = vmatpush1.msra.mxu0 %v6958
        %v6960 = vand.u32 %v6132, 4294901760
        %6961 = vmatprep.subr.mxu0 %v6960
        %v6962 = vand.u32 %v6131, 4294901760
        %6963 = vmatpush1.msra.mxu0 %v6962
        %v6964 = vand.u32 %v6135, 4294901760
        %6965 = vmatprep.subr.mxu0 %v6964
        %v6966 = vand.u32 %v6134, 4294901760
        %6967 = vmatpush1.msra.mxu0 %v6966
        %v6968 = vand.u32 %v6138, 4294901760
        %6969 = vmatprep.subr.mxu0 %v6968
        %v6970 = vand.u32 %v6137, 4294901760
        %6971 = vmatpush1.msra.mxu0 %v6970
        %6972 = vmatprep.subr.mxu0 0.0
        %6973 = vmatpush1.msra.mxu0 0.0
        %6974 = vmatprep.subr.mxu0 0.0
        %6975 = vmatpush1.msra.mxu0 0.0
        %6976 = vmatprep.subr.mxu0 0.0
        %6977 = vmatpush1.msra.mxu0 0.0
        %6978 = vmatprep.subr.mxu0 0.0
        %6979 = vmatpush1.msra.mxu0 0.0
        %6980 = vmatprep.subr.mxu0 0.0
        %6981 = vmatpush1.msra.mxu0 0.0
        %6982 = vmatprep.subr.mxu0 0.0
        %6983 = vmatpush1.msra.mxu0 0.0
        %6984 = vmatprep.subr.mxu0 0.0
        %6985 = vmatpush1.msra.mxu0 0.0
        %6986 = vmatprep.subr.mxu0 0.0
        %6987 = vmatpush1.msra.mxu0 0.0
        %6988 = vmatprep.subr.mxu0 0.0
        %6989 = vmatpush1.msra.mxu0 0.0
        %6990 = vmatprep.subr.mxu0 0.0
        %6991 = vmatpush1.msra.mxu0 0.0
        %6992 = vmatprep.subr.mxu0 0.0
        %6993 = vmatpush1.msra.mxu0 0.0
        %6994 = vmatprep.subr.mxu0 0.0
        %6995 = vmatpush1.msra.mxu0 0.0
        %6996 = vmatprep.subr.mxu0 0.0
        %6997 = vmatpush1.msra.mxu0 0.0
        %6998 = vmatprep.subr.mxu0 0.0
        %6999 = vmatpush1.msra.mxu0 0.0
        %7000 = vmatprep.subr.mxu0 0.0
        %7001 = vmatpush1.msra.mxu0 0.0
        %7002 = vmatprep.subr.mxu0 0.0
        %7003 = vmatpush1.msra.mxu0 0.0
        %7004 = vmatprep.mubr.f32.mxu0 0.0
        %v7005 = vand.u32 %v6091, 4294901760
        %7006 = vmatmul.mubr.f32.gmra.mrb[0].mxu0 %v7005
        %v7007 = vpop.f32.mrb[0].mxu0
        %v7008 = vadd.f32 %v6904, %v7007
        %v7009 = vpop.f32.mrb[0].mxu0
        %v7010 = vadd.f32 %v6906, %v7009
        %7011 = vdwg.mxu0
        %7012 = vmatprep.subr.mxu0 0.0
        %v7013 = vand.u32 %v6094, 4294901760
        %7014 = vmatpush1.msra.mxu0 %v7013
        %7015 = vmatprep.subr.mxu0 0.0
        %v7016 = vand.u32 %v6097, 4294901760
        %7017 = vmatpush1.msra.mxu0 %v7016
        %7018 = vmatprep.subr.mxu0 0.0
        %v7019 = vand.u32 %v6100, 4294901760
        %7020 = vmatpush1.msra.mxu0 %v7019
        %7021 = vmatprep.subr.mxu0 0.0
        %v7022 = vand.u32 %v6103, 4294901760
        %7023 = vmatpush1.msra.mxu0 %v7022
        %7024 = vmatprep.subr.mxu0 0.0
        %v7025 = vand.u32 %v6106, 4294901760
        %7026 = vmatpush1.msra.mxu0 %v7025
        %7027 = vmatprep.subr.mxu0 0.0
        %v7028 = vand.u32 %v6109, 4294901760
        %7029 = vmatpush1.msra.mxu0 %v7028
        %7030 = vmatprep.subr.mxu0 0.0
        %v7031 = vand.u32 %v6112, 4294901760
        %7032 = vmatpush1.msra.mxu0 %v7031
        %7033 = vmatprep.subr.mxu0 0.0
        %v7034 = vand.u32 %v6115, 4294901760
        %7035 = vmatpush1.msra.mxu0 %v7034
        %7036 = vmatprep.subr.mxu0 0.0
        %v7037 = vand.u32 %v6118, 4294901760
        %7038 = vmatpush1.msra.mxu0 %v7037
        %7039 = vmatprep.subr.mxu0 0.0
        %v7040 = vand.u32 %v6121, 4294901760
        %7041 = vmatpush1.msra.mxu0 %v7040
        %7042 = vmatprep.subr.mxu0 0.0
        %v7043 = vand.u32 %v6124, 4294901760
        %7044 = vmatpush1.msra.mxu0 %v7043
        %7045 = vmatprep.subr.mxu0 0.0
        %v7046 = vand.u32 %v6127, 4294901760
        %7047 = vmatpush1.msra.mxu0 %v7046
        %7048 = vmatprep.subr.mxu0 0.0
        %v7049 = vand.u32 %v6130, 4294901760
        %7050 = vmatpush1.msra.mxu0 %v7049
        %7051 = vmatprep.subr.mxu0 0.0
        %v7052 = vand.u32 %v6133, 4294901760
        %7053 = vmatpush1.msra.mxu0 %v7052
        %7054 = vmatprep.subr.mxu0 0.0
        %v7055 = vand.u32 %v6136, 4294901760
        %7056 = vmatpush1.msra.mxu0 %v7055
        %7057 = vmatprep.subr.mxu0 0.0
        %v7058 = vand.u32 %v6139, 4294901760
        %7059 = vmatpush1.msra.mxu0 %v7058
        %7060 = vmatprep.subr.mxu0 0.0
        %7061 = vmatpush1.msra.mxu0 0.0
        %7062 = vmatprep.subr.mxu0 0.0
        %7063 = vmatpush1.msra.mxu0 0.0
        %7064 = vmatprep.subr.mxu0 0.0
        %7065 = vmatpush1.msra.mxu0 0.0
        %7066 = vmatprep.subr.mxu0 0.0
        %7067 = vmatpush1.msra.mxu0 0.0
        %7068 = vmatprep.subr.mxu0 0.0
        %7069 = vmatpush1.msra.mxu0 0.0
        %7070 = vmatprep.subr.mxu0 0.0
        %7071 = vmatpush1.msra.mxu0 0.0
        %7072 = vmatprep.subr.mxu0 0.0
        %7073 = vmatpush1.msra.mxu0 0.0
        %7074 = vmatprep.subr.mxu0 0.0
        %7075 = vmatpush1.msra.mxu0 0.0
        %7076 = vmatprep.subr.mxu0 0.0
        %7077 = vmatpush1.msra.mxu0 0.0
        %7078 = vmatprep.subr.mxu0 0.0
        %7079 = vmatpush1.msra.mxu0 0.0
        %7080 = vmatprep.subr.mxu0 0.0
        %7081 = vmatpush1.msra.mxu0 0.0
        %7082 = vmatprep.subr.mxu0 0.0
        %7083 = vmatpush1.msra.mxu0 0.0
        %7084 = vmatprep.subr.mxu0 0.0
        %7085 = vmatpush1.msra.mxu0 0.0
        %7086 = vmatprep.subr.mxu0 0.0
        %7087 = vmatpush1.msra.mxu0 0.0
        %7088 = vmatprep.subr.mxu0 0.0
        %7089 = vmatpush1.msra.mxu0 0.0
        %7090 = vmatprep.subr.mxu0 0.0
        %7091 = vmatpush1.msra.mxu0 0.0
        %7092 = vmatprep.mubr.f32.mxu0 0.0
        %v7093 = vand.u32 %v6091, 4294901760
        %v7094 = vsub.f32 %v6091, %v7093
        %v7095 = vand.u32 %v7094, 4294901760
        %v7096 = vsub.f32 %v7094, %v7095
        %v7097 = vand.u32 %v7096, 4294901760
        %7098 = vmatmul.mubr.f32.gmra.mrb[0].mxu0 %v7097
        %v7099 = vpop.f32.mrb[0].mxu0
        %v7100 = vadd.f32 %v6153, %v7099
        %v7101 = vpop.f32.mrb[0].mxu0
        %7102 = vdwg.mxu0
        %7103 = vmatprep.subr.mxu0 0.0
        %v7104 = vand.u32 %v6094, 4294901760
        %v7105 = vsub.f32 %v6094, %v7104
        %v7106 = vand.u32 %v7105, 4294901760
        %v7107 = vsub.f32 %v7105, %v7106
        %v7108 = vand.u32 %v7107, 4294901760
        %7109 = vmatpush1.msra.mxu0 %v7108
        %7110 = vmatprep.subr.mxu0 0.0
        %v7111 = vand.u32 %v6097, 4294901760
        %v7112 = vsub.f32 %v6097, %v7111
        %v7113 = vand.u32 %v7112, 4294901760
        %v7114 = vsub.f32 %v7112, %v7113
        %v7115 = vand.u32 %v7114, 4294901760
        %7116 = vmatpush1.msra.mxu0 %v7115
        %7117 = vmatprep.subr.mxu0 0.0
        %v7118 = vand.u32 %v6100, 4294901760
        %v7119 = vsub.f32 %v6100, %v7118
        %v7120 = vand.u32 %v7119, 4294901760
        %v7121 = vsub.f32 %v7119, %v7120
        %v7122 = vand.u32 %v7121, 4294901760
        %7123 = vmatpush1.msra.mxu0 %v7122
        %7124 = vmatprep.subr.mxu0 0.0
        %v7125 = vand.u32 %v6103, 4294901760
        %v7126 = vsub.f32 %v6103, %v7125
        %v7127 = vand.u32 %v7126, 4294901760
        %v7128 = vsub.f32 %v7126, %v7127
        %v7129 = vand.u32 %v7128, 4294901760
        %7130 = vmatpush1.msra.mxu0 %v7129
        %7131 = vmatprep.subr.mxu0 0.0
        %v7132 = vand.u32 %v6106, 4294901760
        %v7133 = vsub.f32 %v6106, %v7132
        %v7134 = vand.u32 %v7133, 4294901760
        %v7135 = vsub.f32 %v7133, %v7134
        %v7136 = vand.u32 %v7135, 4294901760
        %7137 = vmatpush1.msra.mxu0 %v7136
        %7138 = vmatprep.subr.mxu0 0.0
        %v7139 = vand.u32 %v6109, 4294901760
        %v7140 = vsub.f32 %v6109, %v7139
        %v7141 = vand.u32 %v7140, 4294901760
        %v7142 = vsub.f32 %v7140, %v7141
        %v7143 = vand.u32 %v7142, 4294901760
        %7144 = vmatpush1.msra.mxu0 %v7143
        %7145 = vmatprep.subr.mxu0 0.0
        %v7146 = vand.u32 %v6112, 4294901760
        %v7147 = vsub.f32 %v6112, %v7146
        %v7148 = vand.u32 %v7147, 4294901760
        %v7149 = vsub.f32 %v7147, %v7148
        %v7150 = vand.u32 %v7149, 4294901760
        %7151 = vmatpush1.msra.mxu0 %v7150
        %7152 = vmatprep.subr.mxu0 0.0
        %v7153 = vand.u32 %v6115, 4294901760
        %v7154 = vsub.f32 %v6115, %v7153
        %v7155 = vand.u32 %v7154, 4294901760
        %v7156 = vsub.f32 %v7154, %v7155
        %v7157 = vand.u32 %v7156, 4294901760
        %7158 = vmatpush1.msra.mxu0 %v7157
        %7159 = vmatprep.subr.mxu0 0.0
        %v7160 = vand.u32 %v6118, 4294901760
        %v7161 = vsub.f32 %v6118, %v7160
        %v7162 = vand.u32 %v7161, 4294901760
        %v7163 = vsub.f32 %v7161, %v7162
        %v7164 = vand.u32 %v7163, 4294901760
        %7165 = vmatpush1.msra.mxu0 %v7164
        %7166 = vmatprep.subr.mxu0 0.0
        %v7167 = vand.u32 %v6121, 4294901760
        %v7168 = vsub.f32 %v6121, %v7167
        %v7169 = vand.u32 %v7168, 4294901760
        %v7170 = vsub.f32 %v7168, %v7169
        %v7171 = vand.u32 %v7170, 4294901760
        %7172 = vmatpush1.msra.mxu0 %v7171
        %7173 = vmatprep.subr.mxu0 0.0
        %v7174 = vand.u32 %v6124, 4294901760
        %v7175 = vsub.f32 %v6124, %v7174
        %v7176 = vand.u32 %v7175, 4294901760
        %v7177 = vsub.f32 %v7175, %v7176
        %v7178 = vand.u32 %v7177, 4294901760
        %7179 = vmatpush1.msra.mxu0 %v7178
        %7180 = vmatprep.subr.mxu0 0.0
        %v7181 = vand.u32 %v6127, 4294901760
        %v7182 = vsub.f32 %v6127, %v7181
        %v7183 = vand.u32 %v7182, 4294901760
        %v7184 = vsub.f32 %v7182, %v7183
        %v7185 = vand.u32 %v7184, 4294901760
        %7186 = vmatpush1.msra.mxu0 %v7185
        %7187 = vmatprep.subr.mxu0 0.0
        %v7188 = vand.u32 %v6130, 4294901760
        %v7189 = vsub.f32 %v6130, %v7188
        %v7190 = vand.u32 %v7189, 4294901760
        %v7191 = vsub.f32 %v7189, %v7190
        %v7192 = vand.u32 %v7191, 4294901760
        %7193 = vmatpush1.msra.mxu0 %v7192
        %7194 = vmatprep.subr.mxu0 0.0
        %v7195 = vand.u32 %v6133, 4294901760
        %v7196 = vsub.f32 %v6133, %v7195
        %v7197 = vand.u32 %v7196, 4294901760
        %v7198 = vsub.f32 %v7196, %v7197
        %v7199 = vand.u32 %v7198, 4294901760
        %7200 = vmatpush1.msra.mxu0 %v7199
        %7201 = vmatprep.subr.mxu0 0.0
        %v7202 = vand.u32 %v6136, 4294901760
        %v7203 = vsub.f32 %v6136, %v7202
        %v7204 = vand.u32 %v7203, 4294901760
        %v7205 = vsub.f32 %v7203, %v7204
        %v7206 = vand.u32 %v7205, 4294901760
        %7207 = vmatpush1.msra.mxu0 %v7206
        %7208 = vmatprep.subr.mxu0 0.0
        %v7209 = vand.u32 %v6139, 4294901760
        %v7210 = vsub.f32 %v6139, %v7209
        %v7211 = vand.u32 %v7210, 4294901760
        %v7212 = vsub.f32 %v7210, %v7211
        %v7213 = vand.u32 %v7212, 4294901760
        %7214 = vmatpush1.msra.mxu0 %v7213
        %7215 = vmatprep.subr.mxu0 0.0
        %7216 = vmatpush1.msra.mxu0 0.0
        %7217 = vmatprep.subr.mxu0 0.0
        %7218 = vmatpush1.msra.mxu0 0.0
        %7219 = vmatprep.subr.mxu0 0.0
        %7220 = vmatpush1.msra.mxu0 0.0
        %7221 = vmatprep.subr.mxu0 0.0
        %7222 = vmatpush1.msra.mxu0 0.0
        %7223 = vmatprep.subr.mxu0 0.0
        %7224 = vmatpush1.msra.mxu0 0.0
        %7225 = vmatprep.subr.mxu0 0.0
        %7226 = vmatpush1.msra.mxu0 0.0
        %7227 = vmatprep.subr.mxu0 0.0
        %7228 = vmatpush1.msra.mxu0 0.0
        %7229 = vmatprep.subr.mxu0 0.0
        %7230 = vmatpush1.msra.mxu0 0.0
        %7231 = vmatprep.subr.mxu0 0.0
        %7232 = vmatpush1.msra.mxu0 0.0
        %7233 = vmatprep.subr.mxu0 0.0
        %7234 = vmatpush1.msra.mxu0 0.0
        %7235 = vmatprep.subr.mxu0 0.0
        %7236 = vmatpush1.msra.mxu0 0.0
        %7237 = vmatprep.subr.mxu0 0.0
        %7238 = vmatpush1.msra.mxu0 0.0
        %7239 = vmatprep.subr.mxu0 0.0
        %7240 = vmatpush1.msra.mxu0 0.0
        %7241 = vmatprep.subr.mxu0 0.0
        %7242 = vmatpush1.msra.mxu0 0.0
        %7243 = vmatprep.subr.mxu0 0.0
        %7244 = vmatpush1.msra.mxu0 0.0
        %7245 = vmatprep.subr.mxu0 0.0
        %7246 = vmatpush1.msra.mxu0 0.0
        %7247 = vmatprep.mubr.f32.mxu0 0.0
        %v7248 = vand.u32 %v6091, 4294901760
        %7249 = vmatmul.mubr.f32.gmra.mrb[0].mxu0 %v7248
        %v7250 = vpop.f32.mrb[0].mxu0
        %v7251 = vadd.f32 %v7100, %v7250
        %v7252 = vpop.f32.mrb[0].mxu0
        %7253 = vdwg.mxu0
        %7254 = vmatprep.subr.mxu0 0.0
        %v7255 = vand.u32 %v6094, 4294901760
        %v7256 = vsub.f32 %v6094, %v7255
        %7257 = vmatpush1.msra.mxu0 %v7256
        %7258 = vmatprep.subr.mxu0 0.0
        %v7259 = vand.u32 %v6097, 4294901760
        %v7260 = vsub.f32 %v6097, %v7259
        %7261 = vmatpush1.msra.mxu0 %v7260
        %7262 = vmatprep.subr.mxu0 0.0
        %v7263 = vand.u32 %v6100, 4294901760
        %v7264 = vsub.f32 %v6100, %v7263
        %7265 = vmatpush1.msra.mxu0 %v7264
        %7266 = vmatprep.subr.mxu0 0.0
        %v7267 = vand.u32 %v6103, 4294901760
        %v7268 = vsub.f32 %v6103, %v7267
        %7269 = vmatpush1.msra.mxu0 %v7268
        %7270 = vmatprep.subr.mxu0 0.0
        %v7271 = vand.u32 %v6106, 4294901760
        %v7272 = vsub.f32 %v6106, %v7271
        %7273 = vmatpush1.msra.mxu0 %v7272
        %7274 = vmatprep.subr.mxu0 0.0
        %v7275 = vand.u32 %v6109, 4294901760
        %v7276 = vsub.f32 %v6109, %v7275
        %7277 = vmatpush1.msra.mxu0 %v7276
        %7278 = vmatprep.subr.mxu0 0.0
        %v7279 = vand.u32 %v6112, 4294901760
        %v7280 = vsub.f32 %v6112, %v7279
        %7281 = vmatpush1.msra.mxu0 %v7280
        %7282 = vmatprep.subr.mxu0 0.0
        %v7283 = vand.u32 %v6115, 4294901760
        %v7284 = vsub.f32 %v6115, %v7283
        %7285 = vmatpush1.msra.mxu0 %v7284
        %7286 = vmatprep.subr.mxu0 0.0
        %v7287 = vand.u32 %v6118, 4294901760
        %v7288 = vsub.f32 %v6118, %v7287
        %7289 = vmatpush1.msra.mxu0 %v7288
        %7290 = vmatprep.subr.mxu0 0.0
        %v7291 = vand.u32 %v6121, 4294901760
        %v7292 = vsub.f32 %v6121, %v7291
        %7293 = vmatpush1.msra.mxu0 %v7292
        %7294 = vmatprep.subr.mxu0 0.0
        %v7295 = vand.u32 %v6124, 4294901760
        %v7296 = vsub.f32 %v6124, %v7295
        %7297 = vmatpush1.msra.mxu0 %v7296
        %7298 = vmatprep.subr.mxu0 0.0
        %v7299 = vand.u32 %v6127, 4294901760
        %v7300 = vsub.f32 %v6127, %v7299
        %7301 = vmatpush1.msra.mxu0 %v7300
        %7302 = vmatprep.subr.mxu0 0.0
        %v7303 = vand.u32 %v6130, 4294901760
        %v7304 = vsub.f32 %v6130, %v7303
        %7305 = vmatpush1.msra.mxu0 %v7304
        %7306 = vmatprep.subr.mxu0 0.0
        %v7307 = vand.u32 %v6133, 4294901760
        %v7308 = vsub.f32 %v6133, %v7307
        %7309 = vmatpush1.msra.mxu0 %v7308
        %7310 = vmatprep.subr.mxu0 0.0
        %v7311 = vand.u32 %v6136, 4294901760
        %v7312 = vsub.f32 %v6136, %v7311
        %7313 = vmatpush1.msra.mxu0 %v7312
        %7314 = vmatprep.subr.mxu0 0.0
        %v7315 = vand.u32 %v6139, 4294901760
        %v7316 = vsub.f32 %v6139, %v7315
        %7317 = vmatpush1.msra.mxu0 %v7316
        %7318 = vmatprep.subr.mxu0 0.0
        %7319 = vmatpush1.msra.mxu0 0.0
        %7320 = vmatprep.subr.mxu0 0.0
        %7321 = vmatpush1.msra.mxu0 0.0
        %7322 = vmatprep.subr.mxu0 0.0
        %7323 = vmatpush1.msra.mxu0 0.0
        %7324 = vmatprep.subr.mxu0 0.0
        %7325 = vmatpush1.msra.mxu0 0.0
        %7326 = vmatprep.subr.mxu0 0.0
        %7327 = vmatpush1.msra.mxu0 0.0
        %7328 = vmatprep.subr.mxu0 0.0
        %7329 = vmatpush1.msra.mxu0 0.0
        %7330 = vmatprep.subr.mxu0 0.0
        %7331 = vmatpush1.msra.mxu0 0.0
        %7332 = vmatprep.subr.mxu0 0.0
        %7333 = vmatpush1.msra.mxu0 0.0
        %7334 = vmatprep.subr.mxu0 0.0
        %7335 = vmatpush1.msra.mxu0 0.0
        %7336 = vmatprep.subr.mxu0 0.0
        %7337 = vmatpush1.msra.mxu0 0.0
        %7338 = vmatprep.subr.mxu0 0.0
        %7339 = vmatpush1.msra.mxu0 0.0
        %7340 = vmatprep.subr.mxu0 0.0
        %7341 = vmatpush1.msra.mxu0 0.0
        %7342 = vmatprep.subr.mxu0 0.0
        %7343 = vmatpush1.msra.mxu0 0.0
        %7344 = vmatprep.subr.mxu0 0.0
        %7345 = vmatpush1.msra.mxu0 0.0
        %7346 = vmatprep.subr.mxu0 0.0
        %7347 = vmatpush1.msra.mxu0 0.0
        %7348 = vmatprep.subr.mxu0 0.0
        %7349 = vmatpush1.msra.mxu0 0.0
        %7350 = vmatprep.mubr.f32.mxu0 0.0
        %v7351 = vand.u32 %v6091, 4294901760
        %v7352 = vsub.f32 %v6091, %v7351
        %7353 = vmatmul.mubr.f32.gmra.mrb[0].mxu0 %v7352
        %v7354 = vpop.f32.mrb[0].mxu0
        %v7355 = vadd.f32 %v7251, %v7354
        %v7356 = vpop.f32.mrb[0].mxu0
        %7357 = vdwg.mxu0
        %7358 = vmatprep.subr.mxu0 0.0
        %v7359 = vand.u32 %v6094, 4294901760
        %7360 = vmatpush1.msra.mxu0 %v7359
        %7361 = vmatprep.subr.mxu0 0.0
        %v7362 = vand.u32 %v6097, 4294901760
        %7363 = vmatpush1.msra.mxu0 %v7362
        %7364 = vmatprep.subr.mxu0 0.0
        %v7365 = vand.u32 %v6100, 4294901760
        %7366 = vmatpush1.msra.mxu0 %v7365
        %7367 = vmatprep.subr.mxu0 0.0
        %v7368 = vand.u32 %v6103, 4294901760
        %7369 = vmatpush1.msra.mxu0 %v7368
        %7370 = vmatprep.subr.mxu0 0.0
        %v7371 = vand.u32 %v6106, 4294901760
        %7372 = vmatpush1.msra.mxu0 %v7371
        %7373 = vmatprep.subr.mxu0 0.0
        %v7374 = vand.u32 %v6109, 4294901760
        %7375 = vmatpush1.msra.mxu0 %v7374
        %7376 = vmatprep.subr.mxu0 0.0
        %v7377 = vand.u32 %v6112, 4294901760
        %7378 = vmatpush1.msra.mxu0 %v7377
        %7379 = vmatprep.subr.mxu0 0.0
        %v7380 = vand.u32 %v6115, 4294901760
        %7381 = vmatpush1.msra.mxu0 %v7380
        %7382 = vmatprep.subr.mxu0 0.0
        %v7383 = vand.u32 %v6118, 4294901760
        %7384 = vmatpush1.msra.mxu0 %v7383
        %7385 = vmatprep.subr.mxu0 0.0
        %v7386 = vand.u32 %v6121, 4294901760
        %7387 = vmatpush1.msra.mxu0 %v7386
        %7388 = vmatprep.subr.mxu0 0.0
        %v7389 = vand.u32 %v6124, 4294901760
        %7390 = vmatpush1.msra.mxu0 %v7389
        %7391 = vmatprep.subr.mxu0 0.0
        %v7392 = vand.u32 %v6127, 4294901760
        %7393 = vmatpush1.msra.mxu0 %v7392
        %7394 = vmatprep.subr.mxu0 0.0
        %v7395 = vand.u32 %v6130, 4294901760
        %7396 = vmatpush1.msra.mxu0 %v7395
        %7397 = vmatprep.subr.mxu0 0.0
        %v7398 = vand.u32 %v6133, 4294901760
        %7399 = vmatpush1.msra.mxu0 %v7398
        %7400 = vmatprep.subr.mxu0 0.0
        %v7401 = vand.u32 %v6136, 4294901760
        %7402 = vmatpush1.msra.mxu0 %v7401
        %7403 = vmatprep.subr.mxu0 0.0
        %v7404 = vand.u32 %v6139, 4294901760
        %7405 = vmatpush1.msra.mxu0 %v7404
        %7406 = vmatprep.subr.mxu0 0.0
        %7407 = vmatpush1.msra.mxu0 0.0
        %7408 = vmatprep.subr.mxu0 0.0
        %7409 = vmatpush1.msra.mxu0 0.0
        %7410 = vmatprep.subr.mxu0 0.0
        %7411 = vmatpush1.msra.mxu0 0.0
        %7412 = vmatprep.subr.mxu0 0.0
        %7413 = vmatpush1.msra.mxu0 0.0
        %7414 = vmatprep.subr.mxu0 0.0
        %7415 = vmatpush1.msra.mxu0 0.0
        %7416 = vmatprep.subr.mxu0 0.0
        %7417 = vmatpush1.msra.mxu0 0.0
        %7418 = vmatprep.subr.mxu0 0.0
        %7419 = vmatpush1.msra.mxu0 0.0
        %7420 = vmatprep.subr.mxu0 0.0
        %7421 = vmatpush1.msra.mxu0 0.0
        %7422 = vmatprep.subr.mxu0 0.0
        %7423 = vmatpush1.msra.mxu0 0.0
        %7424 = vmatprep.subr.mxu0 0.0
        %7425 = vmatpush1.msra.mxu0 0.0
        %7426 = vmatprep.subr.mxu0 0.0
        %7427 = vmatpush1.msra.mxu0 0.0
        %7428 = vmatprep.subr.mxu0 0.0
        %7429 = vmatpush1.msra.mxu0 0.0
        %7430 = vmatprep.subr.mxu0 0.0
        %7431 = vmatpush1.msra.mxu0 0.0
        %7432 = vmatprep.subr.mxu0 0.0
        %7433 = vmatpush1.msra.mxu0 0.0
        %7434 = vmatprep.subr.mxu0 0.0
        %7435 = vmatpush1.msra.mxu0 0.0
        %7436 = vmatprep.subr.mxu0 0.0
        %7437 = vmatpush1.msra.mxu0 0.0
        %7438 = vmatprep.mubr.f32.mxu0 0.0
        %v7439 = vand.u32 %v6091, 4294901760
        %v7440 = vsub.f32 %v6091, %v7439
        %v7441 = vand.u32 %v7440, 4294901760
        %7442 = vmatmul.mubr.f32.gmra.mrb[0].mxu0 %v7441
        %v7443 = vpop.f32.mrb[0].mxu0
        %v7444 = vadd.f32 %v7355, %v7443
        %v7445 = vpop.f32.mrb[0].mxu0
        %7446 = vdwg.mxu0
        %7447 = vmatprep.subr.mxu0 0.0
        %v7448 = vand.u32 %v6094, 4294901760
        %v7449 = vsub.f32 %v6094, %v7448
        %v7450 = vand.u32 %v7449, 4294901760
        %7451 = vmatpush1.msra.mxu0 %v7450
        %7452 = vmatprep.subr.mxu0 0.0
        %v7453 = vand.u32 %v6097, 4294901760
        %v7454 = vsub.f32 %v6097, %v7453
        %v7455 = vand.u32 %v7454, 4294901760
        %7456 = vmatpush1.msra.mxu0 %v7455
        %7457 = vmatprep.subr.mxu0 0.0
        %v7458 = vand.u32 %v6100, 4294901760
        %v7459 = vsub.f32 %v6100, %v7458
        %v7460 = vand.u32 %v7459, 4294901760
        %7461 = vmatpush1.msra.mxu0 %v7460
        %7462 = vmatprep.subr.mxu0 0.0
        %v7463 = vand.u32 %v6103, 4294901760
        %v7464 = vsub.f32 %v6103, %v7463
        %v7465 = vand.u32 %v7464, 4294901760
        %7466 = vmatpush1.msra.mxu0 %v7465
        %7467 = vmatprep.subr.mxu0 0.0
        %v7468 = vand.u32 %v6106, 4294901760
        %v7469 = vsub.f32 %v6106, %v7468
        %v7470 = vand.u32 %v7469, 4294901760
        %7471 = vmatpush1.msra.mxu0 %v7470
        %7472 = vmatprep.subr.mxu0 0.0
        %v7473 = vand.u32 %v6109, 4294901760
        %v7474 = vsub.f32 %v6109, %v7473
        %v7475 = vand.u32 %v7474, 4294901760
        %7476 = vmatpush1.msra.mxu0 %v7475
        %7477 = vmatprep.subr.mxu0 0.0
        %v7478 = vand.u32 %v6112, 4294901760
        %v7479 = vsub.f32 %v6112, %v7478
        %v7480 = vand.u32 %v7479, 4294901760
        %7481 = vmatpush1.msra.mxu0 %v7480
        %7482 = vmatprep.subr.mxu0 0.0
        %v7483 = vand.u32 %v6115, 4294901760
        %v7484 = vsub.f32 %v6115, %v7483
        %v7485 = vand.u32 %v7484, 4294901760
        %7486 = vmatpush1.msra.mxu0 %v7485
        %7487 = vmatprep.subr.mxu0 0.0
        %v7488 = vand.u32 %v6118, 4294901760
        %v7489 = vsub.f32 %v6118, %v7488
        %v7490 = vand.u32 %v7489, 4294901760
        %7491 = vmatpush1.msra.mxu0 %v7490
        %7492 = vmatprep.subr.mxu0 0.0
        %v7493 = vand.u32 %v6121, 4294901760
        %v7494 = vsub.f32 %v6121, %v7493
        %v7495 = vand.u32 %v7494, 4294901760
        %7496 = vmatpush1.msra.mxu0 %v7495
        %7497 = vmatprep.subr.mxu0 0.0
        %v7498 = vand.u32 %v6124, 4294901760
        %v7499 = vsub.f32 %v6124, %v7498
        %v7500 = vand.u32 %v7499, 4294901760
        %7501 = vmatpush1.msra.mxu0 %v7500
        %7502 = vmatprep.subr.mxu0 0.0
        %v7503 = vand.u32 %v6127, 4294901760
        %v7504 = vsub.f32 %v6127, %v7503
        %v7505 = vand.u32 %v7504, 4294901760
        %7506 = vmatpush1.msra.mxu0 %v7505
        %7507 = vmatprep.subr.mxu0 0.0
        %v7508 = vand.u32 %v6130, 4294901760
        %v7509 = vsub.f32 %v6130, %v7508
        %v7510 = vand.u32 %v7509, 4294901760
        %7511 = vmatpush1.msra.mxu0 %v7510
        %7512 = vmatprep.subr.mxu0 0.0
        %v7513 = vand.u32 %v6133, 4294901760
        %v7514 = vsub.f32 %v6133, %v7513
        %v7515 = vand.u32 %v7514, 4294901760
        %7516 = vmatpush1.msra.mxu0 %v7515
        %7517 = vmatprep.subr.mxu0 0.0
        %v7518 = vand.u32 %v6136, 4294901760
        %v7519 = vsub.f32 %v6136, %v7518
        %v7520 = vand.u32 %v7519, 4294901760
        %7521 = vmatpush1.msra.mxu0 %v7520
        %7522 = vmatprep.subr.mxu0 0.0
        %v7523 = vand.u32 %v6139, 4294901760
        %v7524 = vsub.f32 %v6139, %v7523
        %v7525 = vand.u32 %v7524, 4294901760
        %7526 = vmatpush1.msra.mxu0 %v7525
        %7527 = vmatprep.subr.mxu0 0.0
        %7528 = vmatpush1.msra.mxu0 0.0
        %7529 = vmatprep.subr.mxu0 0.0
        %7530 = vmatpush1.msra.mxu0 0.0
        %7531 = vmatprep.subr.mxu0 0.0
        %7532 = vmatpush1.msra.mxu0 0.0
        %7533 = vmatprep.subr.mxu0 0.0
        %7534 = vmatpush1.msra.mxu0 0.0
        %7535 = vmatprep.subr.mxu0 0.0
        %7536 = vmatpush1.msra.mxu0 0.0
        %7537 = vmatprep.subr.mxu0 0.0
        %7538 = vmatpush1.msra.mxu0 0.0
        %7539 = vmatprep.subr.mxu0 0.0
        %7540 = vmatpush1.msra.mxu0 0.0
        %7541 = vmatprep.subr.mxu0 0.0
        %7542 = vmatpush1.msra.mxu0 0.0
        %7543 = vmatprep.subr.mxu0 0.0
        %7544 = vmatpush1.msra.mxu0 0.0
        %7545 = vmatprep.subr.mxu0 0.0
        %7546 = vmatpush1.msra.mxu0 0.0
        %7547 = vmatprep.subr.mxu0 0.0
        %7548 = vmatpush1.msra.mxu0 0.0
        %7549 = vmatprep.subr.mxu0 0.0
        %7550 = vmatpush1.msra.mxu0 0.0
        %7551 = vmatprep.subr.mxu0 0.0
        %7552 = vmatpush1.msra.mxu0 0.0
        %7553 = vmatprep.subr.mxu0 0.0
        %7554 = vmatpush1.msra.mxu0 0.0
        %7555 = vmatprep.subr.mxu0 0.0
        %7556 = vmatpush1.msra.mxu0 0.0
        %7557 = vmatprep.subr.mxu0 0.0
        %7558 = vmatpush1.msra.mxu0 0.0
        %7559 = vmatprep.mubr.f32.mxu0 0.0
        %v7560 = vand.u32 %v6091, 4294901760
        %7561 = vmatmul.mubr.f32.gmra.mrb[0].mxu0 %v7560
        %v7562 = vpop.f32.mrb[0].mxu0
        %v7563 = vadd.f32 %v7444, %v7562
        %v7564 = vpop.f32.mrb[0].mxu0
        %7565 = vdwg.mxu0
        %7566 = vmatprep.subr.mxu0 0.0
        %v7567 = vand.u32 %v6094, 4294901760
        %7568 = vmatpush1.msra.mxu0 %v7567
        %7569 = vmatprep.subr.mxu0 0.0
        %v7570 = vand.u32 %v6097, 4294901760
        %7571 = vmatpush1.msra.mxu0 %v7570
        %7572 = vmatprep.subr.mxu0 0.0
        %v7573 = vand.u32 %v6100, 4294901760
        %7574 = vmatpush1.msra.mxu0 %v7573
        %7575 = vmatprep.subr.mxu0 0.0
        %v7576 = vand.u32 %v6103, 4294901760
        %7577 = vmatpush1.msra.mxu0 %v7576
        %7578 = vmatprep.subr.mxu0 0.0
        %v7579 = vand.u32 %v6106, 4294901760
        %7580 = vmatpush1.msra.mxu0 %v7579
        %7581 = vmatprep.subr.mxu0 0.0
        %v7582 = vand.u32 %v6109, 4294901760
        %7583 = vmatpush1.msra.mxu0 %v7582
        %7584 = vmatprep.subr.mxu0 0.0
        %v7585 = vand.u32 %v6112, 4294901760
        %7586 = vmatpush1.msra.mxu0 %v7585
        %7587 = vmatprep.subr.mxu0 0.0
        %v7588 = vand.u32 %v6115, 4294901760
        %7589 = vmatpush1.msra.mxu0 %v7588
        %7590 = vmatprep.subr.mxu0 0.0
        %v7591 = vand.u32 %v6118, 4294901760
        %7592 = vmatpush1.msra.mxu0 %v7591
        %7593 = vmatprep.subr.mxu0 0.0
        %v7594 = vand.u32 %v6121, 4294901760
        %7595 = vmatpush1.msra.mxu0 %v7594
        %7596 = vmatprep.subr.mxu0 0.0
        %v7597 = vand.u32 %v6124, 4294901760
        %7598 = vmatpush1.msra.mxu0 %v7597
        %7599 = vmatprep.subr.mxu0 0.0
        %v7600 = vand.u32 %v6127, 4294901760
        %7601 = vmatpush1.msra.mxu0 %v7600
        %7602 = vmatprep.subr.mxu0 0.0
        %v7603 = vand.u32 %v6130, 4294901760
        %7604 = vmatpush1.msra.mxu0 %v7603
        %7605 = vmatprep.subr.mxu0 0.0
        %v7606 = vand.u32 %v6133, 4294901760
        %7607 = vmatpush1.msra.mxu0 %v7606
        %7608 = vmatprep.subr.mxu0 0.0
        %v7609 = vand.u32 %v6136, 4294901760
        %7610 = vmatpush1.msra.mxu0 %v7609
        %7611 = vmatprep.subr.mxu0 0.0
        %v7612 = vand.u32 %v6139, 4294901760
        %7613 = vmatpush1.msra.mxu0 %v7612
        %7614 = vmatprep.subr.mxu0 0.0
        %7615 = vmatpush1.msra.mxu0 0.0
        %7616 = vmatprep.subr.mxu0 0.0
        %7617 = vmatpush1.msra.mxu0 0.0
        %7618 = vmatprep.subr.mxu0 0.0
        %7619 = vmatpush1.msra.mxu0 0.0
        %7620 = vmatprep.subr.mxu0 0.0
        %7621 = vmatpush1.msra.mxu0 0.0
        %7622 = vmatprep.subr.mxu0 0.0
        %7623 = vmatpush1.msra.mxu0 0.0
        %7624 = vmatprep.subr.mxu0 0.0
        %7625 = vmatpush1.msra.mxu0 0.0
        %7626 = vmatprep.subr.mxu0 0.0
        %7627 = vmatpush1.msra.mxu0 0.0
        %7628 = vmatprep.subr.mxu0 0.0
        %7629 = vmatpush1.msra.mxu0 0.0
        %7630 = vmatprep.subr.mxu0 0.0
        %7631 = vmatpush1.msra.mxu0 0.0
        %7632 = vmatprep.subr.mxu0 0.0
        %7633 = vmatpush1.msra.mxu0 0.0
        %7634 = vmatprep.subr.mxu0 0.0
        %7635 = vmatpush1.msra.mxu0 0.0
        %7636 = vmatprep.subr.mxu0 0.0
        %7637 = vmatpush1.msra.mxu0 0.0
        %7638 = vmatprep.subr.mxu0 0.0
        %7639 = vmatpush1.msra.mxu0 0.0
        %7640 = vmatprep.subr.mxu0 0.0
        %7641 = vmatpush1.msra.mxu0 0.0
        %7642 = vmatprep.subr.mxu0 0.0
        %7643 = vmatpush1.msra.mxu0 0.0
        %7644 = vmatprep.subr.mxu0 0.0
        %7645 = vmatpush1.msra.mxu0 0.0
        %7646 = vmatprep.mubr.f32.mxu0 0.0
        %v7647 = vand.u32 %v6091, 4294901760
        %7648 = vmatmul.mubr.f32.gmra.mrb[0].mxu0 %v7647
        %v7649 = vpop.f32.mrb[0].mxu0
        %v7650 = vadd.f32 %v7563, %v7649
        %v7651 = vpop.f32.mrb[0].mxu0
        %7652 = vdwg.mxu0
        %v7653 = vmax.f32 %v7008, 0.0
        %v7654 = vmax.f32 %v7010, 0.0
        %v7655 = vmax.f32 %v7650, 0.0
        %v7656 = vld [vmem:[#allocation8] sm:$0xff]
        %v7657 = vld [vmem:[#allocation8 + $0x8] sm:$0xff]
        %v7658 = vld [vmem:[#allocation8 + $0x10] sm:$0xff]
        %v7659 = vld [vmem:[#allocation8 + $0x18] sm:$0xff]
        %v7660 = vld [vmem:[#allocation8 + $0x20] sm:$0xff]
        %v7661 = vld [vmem:[#allocation8 + $0x28] sm:$0xff]
        %v7662 = vld [vmem:[#allocation8 + $0x30] sm:$0xff]
        %v7663 = vld [vmem:[#allocation8 + $0x38] sm:$0xff]
        %v7664 = vld [vmem:[#allocation8 + $0x40] sm:$0xff]
        %v7665 = vld [vmem:[#allocation8 + $0x48] sm:$0xff]
        %v7666 = vld [vmem:[#allocation8 + $0x50] sm:$0xff]
        %v7667 = vld [vmem:[#allocation8 + $0x58] sm:$0xff]
        %v7668 = vld [vmem:[#allocation8 + $0x60] sm:$0xff]
        %v7669 = vld [vmem:[#allocation8 + $0x68] sm:$0xff]
        %v7670 = vld [vmem:[#allocation8 + $0x70] sm:$0xff]
        %v7671 = vld [vmem:[#allocation8 + $0x78] sm:$0xff]
        %v7672 = vld [vmem:[#allocation8 + $0x80] sm:$0xff]
        %v7673 = vld [vmem:[#allocation8 + $0x88] sm:$0xff]
        %v7674 = vld [vmem:[#allocation8 + $0x90] sm:$0xff]
        %v7675 = vld [vmem:[#allocation8 + $0x98] sm:$0xff]
        %v7676 = vld [vmem:[#allocation8 + $0xa0] sm:$0xff]
        %v7677 = vld [vmem:[#allocation8 + $0xa8] sm:$0xff]
        %v7678 = vld [vmem:[#allocation8 + $0xb0] sm:$0xff]
        %v7679 = vld [vmem:[#allocation8 + $0xb8] sm:$0xff]
        %v7680 = vld [vmem:[#allocation8 + $0xc0] sm:$0xff]
        %v7681 = vld [vmem:[#allocation8 + $0xc8] sm:$0xff]
        %v7682 = vld [vmem:[#allocation8 + $0xd0] sm:$0xff]
        %v7683 = vld [vmem:[#allocation8 + $0xd8] sm:$0xff]
        %v7684 = vld [vmem:[#allocation8 + $0xe0] sm:$0xff]
        %v7685 = vld [vmem:[#allocation8 + $0xe8] sm:$0xff]
        %v7686 = vld [vmem:[#allocation8 + $0xf0] sm:$0xff]
        %v7687 = vld [vmem:[#allocation8 + $0xf8] sm:$0xff]
        %v7688 = vld [vmem:[#allocation8 + $0x100] sm:$0xff]
        %v7689 = vld [vmem:[#allocation8 + $0x108] sm:$0xff]
        %v7690 = vld [vmem:[#allocation8 + $0x110] sm:$0xff]
        %v7691 = vld [vmem:[#allocation8 + $0x118] sm:$0xff]
        %v7692 = vld [vmem:[#allocation8 + $0x120] sm:$0xff]
        %v7693 = vld [vmem:[#allocation8 + $0x128] sm:$0xff]
        %v7694 = vld [vmem:[#allocation8 + $0x130] sm:$0xff]
        %v7695 = vld [vmem:[#allocation8 + $0x138] sm:$0xff]
        %v7696 = vld [vmem:[#allocation8 + $0x140] sm:$0xff]
        %v7697 = vld [vmem:[#allocation8 + $0x148] sm:$0xff]
        %v7698 = vld [vmem:[#allocation8 + $0x150] sm:$0xff]
        %v7699 = vld [vmem:[#allocation8 + $0x158] sm:$0xff]
        %v7700 = vld [vmem:[#allocation8 + $0x160] sm:$0xff]
        %v7701 = vld [vmem:[#allocation8 + $0x168] sm:$0xff]
        %v7702 = vld [vmem:[#allocation8 + $0x170] sm:$0xff]
        %v7703 = vld [vmem:[#allocation8 + $0x178] sm:$0xff]
        %v7704 = vld [vmem:[%s10] sm:$0x1]
        %v7706 = vlaneseq
        %v7707 = vshrl.u32 %v7706, 7
        %v7708 = vsub.s32 0, %v7707
        %v7709 = vrot.slane %v7704, %v7708
        %7711 = vmatprep.subr.mxu0 0.0
        %v7712 = vand.u32 %v7656, 4294901760
        %7713 = vmatpush1.msra.mxu0 %v7712
        %7714 = vmatprep.subr.mxu0 0.0
        %v7715 = vand.u32 %v7657, 4294901760
        %7716 = vmatpush1.msra.mxu0 %v7715
        %7717 = vmatprep.subr.mxu0 0.0
        %v7718 = vand.u32 %v7658, 4294901760
        %7719 = vmatpush1.msra.mxu0 %v7718
        %7720 = vmatprep.subr.mxu0 0.0
        %v7721 = vand.u32 %v7659, 4294901760
        %7722 = vmatpush1.msra.mxu0 %v7721
        %7723 = vmatprep.subr.mxu0 0.0
        %v7724 = vand.u32 %v7660, 4294901760
        %7725 = vmatpush1.msra.mxu0 %v7724
        %7726 = vmatprep.subr.mxu0 0.0
        %v7727 = vand.u32 %v7661, 4294901760
        %7728 = vmatpush1.msra.mxu0 %v7727
        %7729 = vmatprep.subr.mxu0 0.0
        %v7730 = vand.u32 %v7662, 4294901760
        %7731 = vmatpush1.msra.mxu0 %v7730
        %7732 = vmatprep.subr.mxu0 0.0
        %v7733 = vand.u32 %v7663, 4294901760
        %7734 = vmatpush1.msra.mxu0 %v7733
        %7735 = vmatprep.subr.mxu0 0.0
        %v7736 = vand.u32 %v7664, 4294901760
        %7737 = vmatpush1.msra.mxu0 %v7736
        %7738 = vmatprep.subr.mxu0 0.0
        %v7739 = vand.u32 %v7665, 4294901760
        %7740 = vmatpush1.msra.mxu0 %v7739
        %7741 = vmatprep.subr.mxu0 0.0
        %v7742 = vand.u32 %v7666, 4294901760
        %7743 = vmatpush1.msra.mxu0 %v7742
        %7744 = vmatprep.subr.mxu0 0.0
        %v7745 = vand.u32 %v7667, 4294901760
        %7746 = vmatpush1.msra.mxu0 %v7745
        %7747 = vmatprep.subr.mxu0 0.0
        %v7748 = vand.u32 %v7668, 4294901760
        %7749 = vmatpush1.msra.mxu0 %v7748
        %7750 = vmatprep.subr.mxu0 0.0
        %v7751 = vand.u32 %v7669, 4294901760
        %7752 = vmatpush1.msra.mxu0 %v7751
        %7753 = vmatprep.subr.mxu0 0.0
        %v7754 = vand.u32 %v7670, 4294901760
        %7755 = vmatpush1.msra.mxu0 %v7754
        %7756 = vmatprep.subr.mxu0 0.0
        %v7757 = vand.u32 %v7671, 4294901760
        %7758 = vmatpush1.msra.mxu0 %v7757
        %7759 = vmatprep.subr.mxu0 0.0
        %v7760 = vand.u32 %v7672, 4294901760
        %7761 = vmatpush1.msra.mxu0 %v7760
        %7762 = vmatprep.subr.mxu0 0.0
        %v7763 = vand.u32 %v7673, 4294901760
        %7764 = vmatpush1.msra.mxu0 %v7763
        %7765 = vmatprep.subr.mxu0 0.0
        %v7766 = vand.u32 %v7674, 4294901760
        %7767 = vmatpush1.msra.mxu0 %v7766
        %7768 = vmatprep.subr.mxu0 0.0
        %v7769 = vand.u32 %v7675, 4294901760
        %7770 = vmatpush1.msra.mxu0 %v7769
        %7771 = vmatprep.subr.mxu0 0.0
        %v7772 = vand.u32 %v7676, 4294901760
        %7773 = vmatpush1.msra.mxu0 %v7772
        %7774 = vmatprep.subr.mxu0 0.0
        %v7775 = vand.u32 %v7677, 4294901760
        %7776 = vmatpush1.msra.mxu0 %v7775
        %7777 = vmatprep.subr.mxu0 0.0
        %v7778 = vand.u32 %v7678, 4294901760
        %7779 = vmatpush1.msra.mxu0 %v7778
        %7780 = vmatprep.subr.mxu0 0.0
        %v7781 = vand.u32 %v7679, 4294901760
        %7782 = vmatpush1.msra.mxu0 %v7781
        %7783 = vmatprep.subr.mxu0 0.0
        %v7784 = vand.u32 %v7680, 4294901760
        %7785 = vmatpush1.msra.mxu0 %v7784
        %7786 = vmatprep.subr.mxu0 0.0
        %v7787 = vand.u32 %v7681, 4294901760
        %7788 = vmatpush1.msra.mxu0 %v7787
        %7789 = vmatprep.subr.mxu0 0.0
        %v7790 = vand.u32 %v7682, 4294901760
        %7791 = vmatpush1.msra.mxu0 %v7790
        %7792 = vmatprep.subr.mxu0 0.0
        %v7793 = vand.u32 %v7683, 4294901760
        %7794 = vmatpush1.msra.mxu0 %v7793
        %7795 = vmatprep.subr.mxu0 0.0
        %v7796 = vand.u32 %v7684, 4294901760
        %7797 = vmatpush1.msra.mxu0 %v7796
        %7798 = vmatprep.subr.mxu0 0.0
        %v7799 = vand.u32 %v7685, 4294901760
        %7800 = vmatpush1.msra.mxu0 %v7799
        %7801 = vmatprep.subr.mxu0 0.0
        %v7802 = vand.u32 %v7686, 4294901760
        %7803 = vmatpush1.msra.mxu0 %v7802
        %7804 = vmatprep.subr.mxu0 0.0
        %v7805 = vand.u32 %v7687, 4294901760
        %7806 = vmatpush1.msra.mxu0 %v7805
        %v7807 = vand.u32 %v7654, 4294901760
        %v7808 = vsub.f32 %v7654, %v7807
        %v7809 = vand.u32 %v7808, 4294901760
        %v7810 = vsub.f32 %v7808, %v7809
        %v7811 = vand.u32 %v7810, 4294901760
        %7812 = vmatprep.mubr.f32.mxu0 %v7811
        %v7813 = vand.u32 %v7653, 4294901760
        %v7814 = vsub.f32 %v7653, %v7813
        %v7815 = vand.u32 %v7814, 4294901760
        %v7816 = vsub.f32 %v7814, %v7815
        %v7817 = vand.u32 %v7816, 4294901760
        %7818 = vmatmul.mubr.f32.gmra.mrb[0].mxu0 %v7817
        %v7819 = vpop.f32.mrb[0].mxu0
        %v7820 = vadd.f32 %v7709, %v7819
        %v7821 = vpop.f32.mrb[0].mxu0
        %7822 = vdwg.mxu0
        %7823 = vmatprep.subr.mxu0 0.0
        %v7824 = vand.u32 %v7656, 4294901760
        %v7825 = vsub.f32 %v7656, %v7824
        %v7826 = vand.u32 %v7825, 4294901760
        %v7827 = vsub.f32 %v7825, %v7826
        %v7828 = vand.u32 %v7827, 4294901760
        %7829 = vmatpush1.msra.mxu0 %v7828
        %7830 = vmatprep.subr.mxu0 0.0
        %v7831 = vand.u32 %v7657, 4294901760
        %v7832 = vsub.f32 %v7657, %v7831
        %v7833 = vand.u32 %v7832, 4294901760
        %v7834 = vsub.f32 %v7832, %v7833
        %v7835 = vand.u32 %v7834, 4294901760
        %7836 = vmatpush1.msra.mxu0 %v7835
        %7837 = vmatprep.subr.mxu0 0.0
        %v7838 = vand.u32 %v7658, 4294901760
        %v7839 = vsub.f32 %v7658, %v7838
        %v7840 = vand.u32 %v7839, 4294901760
        %v7841 = vsub.f32 %v7839, %v7840
        %v7842 = vand.u32 %v7841, 4294901760
        %7843 = vmatpush1.msra.mxu0 %v7842
        %7844 = vmatprep.subr.mxu0 0.0
        %v7845 = vand.u32 %v7659, 4294901760
        %v7846 = vsub.f32 %v7659, %v7845
        %v7847 = vand.u32 %v7846, 4294901760
        %v7848 = vsub.f32 %v7846, %v7847
        %v7849 = vand.u32 %v7848, 4294901760
        %7850 = vmatpush1.msra.mxu0 %v7849
        %7851 = vmatprep.subr.mxu0 0.0
        %v7852 = vand.u32 %v7660, 4294901760
        %v7853 = vsub.f32 %v7660, %v7852
        %v7854 = vand.u32 %v7853, 4294901760
        %v7855 = vsub.f32 %v7853, %v7854
        %v7856 = vand.u32 %v7855, 4294901760
        %7857 = vmatpush1.msra.mxu0 %v7856
        %7858 = vmatprep.subr.mxu0 0.0
        %v7859 = vand.u32 %v7661, 4294901760
        %v7860 = vsub.f32 %v7661, %v7859
        %v7861 = vand.u32 %v7860, 4294901760
        %v7862 = vsub.f32 %v7860, %v7861
        %v7863 = vand.u32 %v7862, 4294901760
        %7864 = vmatpush1.msra.mxu0 %v7863
        %7865 = vmatprep.subr.mxu0 0.0
        %v7866 = vand.u32 %v7662, 4294901760
        %v7867 = vsub.f32 %v7662, %v7866
        %v7868 = vand.u32 %v7867, 4294901760
        %v7869 = vsub.f32 %v7867, %v7868
        %v7870 = vand.u32 %v7869, 4294901760
        %7871 = vmatpush1.msra.mxu0 %v7870
        %7872 = vmatprep.subr.mxu0 0.0
        %v7873 = vand.u32 %v7663, 4294901760
        %v7874 = vsub.f32 %v7663, %v7873
        %v7875 = vand.u32 %v7874, 4294901760
        %v7876 = vsub.f32 %v7874, %v7875
        %v7877 = vand.u32 %v7876, 4294901760
        %7878 = vmatpush1.msra.mxu0 %v7877
        %7879 = vmatprep.subr.mxu0 0.0
        %v7880 = vand.u32 %v7664, 4294901760
        %v7881 = vsub.f32 %v7664, %v7880
        %v7882 = vand.u32 %v7881, 4294901760
        %v7883 = vsub.f32 %v7881, %v7882
        %v7884 = vand.u32 %v7883, 4294901760
        %7885 = vmatpush1.msra.mxu0 %v7884
        %7886 = vmatprep.subr.mxu0 0.0
        %v7887 = vand.u32 %v7665, 4294901760
        %v7888 = vsub.f32 %v7665, %v7887
        %v7889 = vand.u32 %v7888, 4294901760
        %v7890 = vsub.f32 %v7888, %v7889
        %v7891 = vand.u32 %v7890, 4294901760
        %7892 = vmatpush1.msra.mxu0 %v7891
        %7893 = vmatprep.subr.mxu0 0.0
        %v7894 = vand.u32 %v7666, 4294901760
        %v7895 = vsub.f32 %v7666, %v7894
        %v7896 = vand.u32 %v7895, 4294901760
        %v7897 = vsub.f32 %v7895, %v7896
        %v7898 = vand.u32 %v7897, 4294901760
        %7899 = vmatpush1.msra.mxu0 %v7898
        %7900 = vmatprep.subr.mxu0 0.0
        %v7901 = vand.u32 %v7667, 4294901760
        %v7902 = vsub.f32 %v7667, %v7901
        %v7903 = vand.u32 %v7902, 4294901760
        %v7904 = vsub.f32 %v7902, %v7903
        %v7905 = vand.u32 %v7904, 4294901760
        %7906 = vmatpush1.msra.mxu0 %v7905
        %7907 = vmatprep.subr.mxu0 0.0
        %v7908 = vand.u32 %v7668, 4294901760
        %v7909 = vsub.f32 %v7668, %v7908
        %v7910 = vand.u32 %v7909, 4294901760
        %v7911 = vsub.f32 %v7909, %v7910
        %v7912 = vand.u32 %v7911, 4294901760
        %7913 = vmatpush1.msra.mxu0 %v7912
        %7914 = vmatprep.subr.mxu0 0.0
        %v7915 = vand.u32 %v7669, 4294901760
        %v7916 = vsub.f32 %v7669, %v7915
        %v7917 = vand.u32 %v7916, 4294901760
        %v7918 = vsub.f32 %v7916, %v7917
        %v7919 = vand.u32 %v7918, 4294901760
        %7920 = vmatpush1.msra.mxu0 %v7919
        %7921 = vmatprep.subr.mxu0 0.0
        %v7922 = vand.u32 %v7670, 4294901760
        %v7923 = vsub.f32 %v7670, %v7922
        %v7924 = vand.u32 %v7923, 4294901760
        %v7925 = vsub.f32 %v7923, %v7924
        %v7926 = vand.u32 %v7925, 4294901760
        %7927 = vmatpush1.msra.mxu0 %v7926
        %7928 = vmatprep.subr.mxu0 0.0
        %v7929 = vand.u32 %v7671, 4294901760
        %v7930 = vsub.f32 %v7671, %v7929
        %v7931 = vand.u32 %v7930, 4294901760
        %v7932 = vsub.f32 %v7930, %v7931
        %v7933 = vand.u32 %v7932, 4294901760
        %7934 = vmatpush1.msra.mxu0 %v7933
        %7935 = vmatprep.subr.mxu0 0.0
        %v7936 = vand.u32 %v7672, 4294901760
        %v7937 = vsub.f32 %v7672, %v7936
        %v7938 = vand.u32 %v7937, 4294901760
        %v7939 = vsub.f32 %v7937, %v7938
        %v7940 = vand.u32 %v7939, 4294901760
        %7941 = vmatpush1.msra.mxu0 %v7940
        %7942 = vmatprep.subr.mxu0 0.0
        %v7943 = vand.u32 %v7673, 4294901760
        %v7944 = vsub.f32 %v7673, %v7943
        %v7945 = vand.u32 %v7944, 4294901760
        %v7946 = vsub.f32 %v7944, %v7945
        %v7947 = vand.u32 %v7946, 4294901760
        %7948 = vmatpush1.msra.mxu0 %v7947
        %7949 = vmatprep.subr.mxu0 0.0
        %v7950 = vand.u32 %v7674, 4294901760
        %v7951 = vsub.f32 %v7674, %v7950
        %v7952 = vand.u32 %v7951, 4294901760
        %v7953 = vsub.f32 %v7951, %v7952
        %v7954 = vand.u32 %v7953, 4294901760
        %7955 = vmatpush1.msra.mxu0 %v7954
        %7956 = vmatprep.subr.mxu0 0.0
        %v7957 = vand.u32 %v7675, 4294901760
        %v7958 = vsub.f32 %v7675, %v7957
        %v7959 = vand.u32 %v7958, 4294901760
        %v7960 = vsub.f32 %v7958, %v7959
        %v7961 = vand.u32 %v7960, 4294901760
        %7962 = vmatpush1.msra.mxu0 %v7961
        %7963 = vmatprep.subr.mxu0 0.0
        %v7964 = vand.u32 %v7676, 4294901760
        %v7965 = vsub.f32 %v7676, %v7964
        %v7966 = vand.u32 %v7965, 4294901760
        %v7967 = vsub.f32 %v7965, %v7966
        %v7968 = vand.u32 %v7967, 4294901760
        %7969 = vmatpush1.msra.mxu0 %v7968
        %7970 = vmatprep.subr.mxu0 0.0
        %v7971 = vand.u32 %v7677, 4294901760
        %v7972 = vsub.f32 %v7677, %v7971
        %v7973 = vand.u32 %v7972, 4294901760
        %v7974 = vsub.f32 %v7972, %v7973
        %v7975 = vand.u32 %v7974, 4294901760
        %7976 = vmatpush1.msra.mxu0 %v7975
        %7977 = vmatprep.subr.mxu0 0.0
        %v7978 = vand.u32 %v7678, 4294901760
        %v7979 = vsub.f32 %v7678, %v7978
        %v7980 = vand.u32 %v7979, 4294901760
        %v7981 = vsub.f32 %v7979, %v7980
        %v7982 = vand.u32 %v7981, 4294901760
        %7983 = vmatpush1.msra.mxu0 %v7982
        %7984 = vmatprep.subr.mxu0 0.0
        %v7985 = vand.u32 %v7679, 4294901760
        %v7986 = vsub.f32 %v7679, %v7985
        %v7987 = vand.u32 %v7986, 4294901760
        %v7988 = vsub.f32 %v7986, %v7987
        %v7989 = vand.u32 %v7988, 4294901760
        %7990 = vmatpush1.msra.mxu0 %v7989
        %7991 = vmatprep.subr.mxu0 0.0
        %v7992 = vand.u32 %v7680, 4294901760
        %v7993 = vsub.f32 %v7680, %v7992
        %v7994 = vand.u32 %v7993, 4294901760
        %v7995 = vsub.f32 %v7993, %v7994
        %v7996 = vand.u32 %v7995, 4294901760
        %7997 = vmatpush1.msra.mxu0 %v7996
        %7998 = vmatprep.subr.mxu0 0.0
        %v7999 = vand.u32 %v7681, 4294901760
        %v8000 = vsub.f32 %v7681, %v7999
        %v8001 = vand.u32 %v8000, 4294901760
        %v8002 = vsub.f32 %v8000, %v8001
        %v8003 = vand.u32 %v8002, 4294901760
        %8004 = vmatpush1.msra.mxu0 %v8003
        %8005 = vmatprep.subr.mxu0 0.0
        %v8006 = vand.u32 %v7682, 4294901760
        %v8007 = vsub.f32 %v7682, %v8006
        %v8008 = vand.u32 %v8007, 4294901760
        %v8009 = vsub.f32 %v8007, %v8008
        %v8010 = vand.u32 %v8009, 4294901760
        %8011 = vmatpush1.msra.mxu0 %v8010
        %8012 = vmatprep.subr.mxu0 0.0
        %v8013 = vand.u32 %v7683, 4294901760
        %v8014 = vsub.f32 %v7683, %v8013
        %v8015 = vand.u32 %v8014, 4294901760
        %v8016 = vsub.f32 %v8014, %v8015
        %v8017 = vand.u32 %v8016, 4294901760
        %8018 = vmatpush1.msra.mxu0 %v8017
        %8019 = vmatprep.subr.mxu0 0.0
        %v8020 = vand.u32 %v7684, 4294901760
        %v8021 = vsub.f32 %v7684, %v8020
        %v8022 = vand.u32 %v8021, 4294901760
        %v8023 = vsub.f32 %v8021, %v8022
        %v8024 = vand.u32 %v8023, 4294901760
        %8025 = vmatpush1.msra.mxu0 %v8024
        %8026 = vmatprep.subr.mxu0 0.0
        %v8027 = vand.u32 %v7685, 4294901760
        %v8028 = vsub.f32 %v7685, %v8027
        %v8029 = vand.u32 %v8028, 4294901760
        %v8030 = vsub.f32 %v8028, %v8029
        %v8031 = vand.u32 %v8030, 4294901760
        %8032 = vmatpush1.msra.mxu0 %v8031
        %8033 = vmatprep.subr.mxu0 0.0
        %v8034 = vand.u32 %v7686, 4294901760
        %v8035 = vsub.f32 %v7686, %v8034
        %v8036 = vand.u32 %v8035, 4294901760
        %v8037 = vsub.f32 %v8035, %v8036
        %v8038 = vand.u32 %v8037, 4294901760
        %8039 = vmatpush1.msra.mxu0 %v8038
        %8040 = vmatprep.subr.mxu0 0.0
        %v8041 = vand.u32 %v7687, 4294901760
        %v8042 = vsub.f32 %v7687, %v8041
        %v8043 = vand.u32 %v8042, 4294901760
        %v8044 = vsub.f32 %v8042, %v8043
        %v8045 = vand.u32 %v8044, 4294901760
        %8046 = vmatpush1.msra.mxu0 %v8045
        %v8047 = vand.u32 %v7654, 4294901760
        %8048 = vmatprep.mubr.f32.mxu0 %v8047
        %v8049 = vand.u32 %v7653, 4294901760
        %8050 = vmatmul.mubr.f32.gmra.mrb[0].mxu0 %v8049
        %v8051 = vpop.f32.mrb[0].mxu0
        %v8052 = vadd.f32 %v7820, %v8051
        %v8053 = vpop.f32.mrb[0].mxu0
        %8054 = vdwg.mxu0
        %8055 = vmatprep.subr.mxu0 0.0
        %v8056 = vand.u32 %v7656, 4294901760
        %v8057 = vsub.f32 %v7656, %v8056
        %8058 = vmatpush1.msra.mxu0 %v8057
        %8059 = vmatprep.subr.mxu0 0.0
        %v8060 = vand.u32 %v7657, 4294901760
        %v8061 = vsub.f32 %v7657, %v8060
        %8062 = vmatpush1.msra.mxu0 %v8061
        %8063 = vmatprep.subr.mxu0 0.0
        %v8064 = vand.u32 %v7658, 4294901760
        %v8065 = vsub.f32 %v7658, %v8064
        %8066 = vmatpush1.msra.mxu0 %v8065
        %8067 = vmatprep.subr.mxu0 0.0
        %v8068 = vand.u32 %v7659, 4294901760
        %v8069 = vsub.f32 %v7659, %v8068
        %8070 = vmatpush1.msra.mxu0 %v8069
        %8071 = vmatprep.subr.mxu0 0.0
        %v8072 = vand.u32 %v7660, 4294901760
        %v8073 = vsub.f32 %v7660, %v8072
        %8074 = vmatpush1.msra.mxu0 %v8073
        %8075 = vmatprep.subr.mxu0 0.0
        %v8076 = vand.u32 %v7661, 4294901760
        %v8077 = vsub.f32 %v7661, %v8076
        %8078 = vmatpush1.msra.mxu0 %v8077
        %8079 = vmatprep.subr.mxu0 0.0
        %v8080 = vand.u32 %v7662, 4294901760
        %v8081 = vsub.f32 %v7662, %v8080
        %8082 = vmatpush1.msra.mxu0 %v8081
        %8083 = vmatprep.subr.mxu0 0.0
        %v8084 = vand.u32 %v7663, 4294901760
        %v8085 = vsub.f32 %v7663, %v8084
        %8086 = vmatpush1.msra.mxu0 %v8085
        %8087 = vmatprep.subr.mxu0 0.0
        %v8088 = vand.u32 %v7664, 4294901760
        %v8089 = vsub.f32 %v7664, %v8088
        %8090 = vmatpush1.msra.mxu0 %v8089
        %8091 = vmatprep.subr.mxu0 0.0
        %v8092 = vand.u32 %v7665, 4294901760
        %v8093 = vsub.f32 %v7665, %v8092
        %8094 = vmatpush1.msra.mxu0 %v8093
        %8095 = vmatprep.subr.mxu0 0.0
        %v8096 = vand.u32 %v7666, 4294901760
        %v8097 = vsub.f32 %v7666, %v8096
        %8098 = vmatpush1.msra.mxu0 %v8097
        %8099 = vmatprep.subr.mxu0 0.0
        %v8100 = vand.u32 %v7667, 4294901760
        %v8101 = vsub.f32 %v7667, %v8100
        %8102 = vmatpush1.msra.mxu0 %v8101
        %8103 = vmatprep.subr.mxu0 0.0
        %v8104 = vand.u32 %v7668, 4294901760
        %v8105 = vsub.f32 %v7668, %v8104
        %8106 = vmatpush1.msra.mxu0 %v8105
        %8107 = vmatprep.subr.mxu0 0.0
        %v8108 = vand.u32 %v7669, 4294901760
        %v8109 = vsub.f32 %v7669, %v8108
        %8110 = vmatpush1.msra.mxu0 %v8109
        %8111 = vmatprep.subr.mxu0 0.0
        %v8112 = vand.u32 %v7670, 4294901760
        %v8113 = vsub.f32 %v7670, %v8112
        %8114 = vmatpush1.msra.mxu0 %v8113
        %8115 = vmatprep.subr.mxu0 0.0
        %v8116 = vand.u32 %v7671, 4294901760
        %v8117 = vsub.f32 %v7671, %v8116
        %8118 = vmatpush1.msra.mxu0 %v8117
        %8119 = vmatprep.subr.mxu0 0.0
        %v8120 = vand.u32 %v7672, 4294901760
        %v8121 = vsub.f32 %v7672, %v8120
        %8122 = vmatpush1.msra.mxu0 %v8121
        %8123 = vmatprep.subr.mxu0 0.0
        %v8124 = vand.u32 %v7673, 4294901760
        %v8125 = vsub.f32 %v7673, %v8124
        %8126 = vmatpush1.msra.mxu0 %v8125
        %8127 = vmatprep.subr.mxu0 0.0
        %v8128 = vand.u32 %v7674, 4294901760
        %v8129 = vsub.f32 %v7674, %v8128
        %8130 = vmatpush1.msra.mxu0 %v8129
        %8131 = vmatprep.subr.mxu0 0.0
        %v8132 = vand.u32 %v7675, 4294901760
        %v8133 = vsub.f32 %v7675, %v8132
        %8134 = vmatpush1.msra.mxu0 %v8133
        %8135 = vmatprep.subr.mxu0 0.0
        %v8136 = vand.u32 %v7676, 4294901760
        %v8137 = vsub.f32 %v7676, %v8136
        %8138 = vmatpush1.msra.mxu0 %v8137
        %8139 = vmatprep.subr.mxu0 0.0
        %v8140 = vand.u32 %v7677, 4294901760
        %v8141 = vsub.f32 %v7677, %v8140
        %8142 = vmatpush1.msra.mxu0 %v8141
        %8143 = vmatprep.subr.mxu0 0.0
        %v8144 = vand.u32 %v7678, 4294901760
        %v8145 = vsub.f32 %v7678, %v8144
        %8146 = vmatpush1.msra.mxu0 %v8145
        %8147 = vmatprep.subr.mxu0 0.0
        %v8148 = vand.u32 %v7679, 4294901760
        %v8149 = vsub.f32 %v7679, %v8148
        %8150 = vmatpush1.msra.mxu0 %v8149
        %8151 = vmatprep.subr.mxu0 0.0
        %v8152 = vand.u32 %v7680, 4294901760
        %v8153 = vsub.f32 %v7680, %v8152
        %8154 = vmatpush1.msra.mxu0 %v8153
        %8155 = vmatprep.subr.mxu0 0.0
        %v8156 = vand.u32 %v7681, 4294901760
        %v8157 = vsub.f32 %v7681, %v8156
        %8158 = vmatpush1.msra.mxu0 %v8157
        %8159 = vmatprep.subr.mxu0 0.0
        %v8160 = vand.u32 %v7682, 4294901760
        %v8161 = vsub.f32 %v7682, %v8160
        %8162 = vmatpush1.msra.mxu0 %v8161
        %8163 = vmatprep.subr.mxu0 0.0
        %v8164 = vand.u32 %v7683, 4294901760
        %v8165 = vsub.f32 %v7683, %v8164
        %8166 = vmatpush1.msra.mxu0 %v8165
        %8167 = vmatprep.subr.mxu0 0.0
        %v8168 = vand.u32 %v7684, 4294901760
        %v8169 = vsub.f32 %v7684, %v8168
        %8170 = vmatpush1.msra.mxu0 %v8169
        %8171 = vmatprep.subr.mxu0 0.0
        %v8172 = vand.u32 %v7685, 4294901760
        %v8173 = vsub.f32 %v7685, %v8172
        %8174 = vmatpush1.msra.mxu0 %v8173
        %8175 = vmatprep.subr.mxu0 0.0
        %v8176 = vand.u32 %v7686, 4294901760
        %v8177 = vsub.f32 %v7686, %v8176
        %8178 = vmatpush1.msra.mxu0 %v8177
        %8179 = vmatprep.subr.mxu0 0.0
        %v8180 = vand.u32 %v7687, 4294901760
        %v8181 = vsub.f32 %v7687, %v8180
        %8182 = vmatpush1.msra.mxu0 %v8181
        %v8183 = vand.u32 %v7654, 4294901760
        %v8184 = vsub.f32 %v7654, %v8183
        %8185 = vmatprep.mubr.f32.mxu0 %v8184
        %v8186 = vand.u32 %v7653, 4294901760
        %v8187 = vsub.f32 %v7653, %v8186
        %8188 = vmatmul.mubr.f32.gmra.mrb[0].mxu0 %v8187
        %v8189 = vpop.f32.mrb[0].mxu0
        %v8190 = vadd.f32 %v8052, %v8189
        %v8191 = vpop.f32.mrb[0].mxu0
        %8192 = vdwg.mxu0
        %8193 = vmatprep.subr.mxu0 0.0
        %v8194 = vand.u32 %v7656, 4294901760
        %8195 = vmatpush1.msra.mxu0 %v8194
        %8196 = vmatprep.subr.mxu0 0.0
        %v8197 = vand.u32 %v7657, 4294901760
        %8198 = vmatpush1.msra.mxu0 %v8197
        %8199 = vmatprep.subr.mxu0 0.0
        %v8200 = vand.u32 %v7658, 4294901760
        %8201 = vmatpush1.msra.mxu0 %v8200
        %8202 = vmatprep.subr.mxu0 0.0
        %v8203 = vand.u32 %v7659, 4294901760
        %8204 = vmatpush1.msra.mxu0 %v8203
        %8205 = vmatprep.subr.mxu0 0.0
        %v8206 = vand.u32 %v7660, 4294901760
        %8207 = vmatpush1.msra.mxu0 %v8206
        %8208 = vmatprep.subr.mxu0 0.0
        %v8209 = vand.u32 %v7661, 4294901760
        %8210 = vmatpush1.msra.mxu0 %v8209
        %8211 = vmatprep.subr.mxu0 0.0
        %v8212 = vand.u32 %v7662, 4294901760
        %8213 = vmatpush1.msra.mxu0 %v8212
        %8214 = vmatprep.subr.mxu0 0.0
        %v8215 = vand.u32 %v7663, 4294901760
        %8216 = vmatpush1.msra.mxu0 %v8215
        %8217 = vmatprep.subr.mxu0 0.0
        %v8218 = vand.u32 %v7664, 4294901760
        %8219 = vmatpush1.msra.mxu0 %v8218
        %8220 = vmatprep.subr.mxu0 0.0
        %v8221 = vand.u32 %v7665, 4294901760
        %8222 = vmatpush1.msra.mxu0 %v8221
        %8223 = vmatprep.subr.mxu0 0.0
        %v8224 = vand.u32 %v7666, 4294901760
        %8225 = vmatpush1.msra.mxu0 %v8224
        %8226 = vmatprep.subr.mxu0 0.0
        %v8227 = vand.u32 %v7667, 4294901760
        %8228 = vmatpush1.msra.mxu0 %v8227
        %8229 = vmatprep.subr.mxu0 0.0
        %v8230 = vand.u32 %v7668, 4294901760
        %8231 = vmatpush1.msra.mxu0 %v8230
        %8232 = vmatprep.subr.mxu0 0.0
        %v8233 = vand.u32 %v7669, 4294901760
        %8234 = vmatpush1.msra.mxu0 %v8233
        %8235 = vmatprep.subr.mxu0 0.0
        %v8236 = vand.u32 %v7670, 4294901760
        %8237 = vmatpush1.msra.mxu0 %v8236
        %8238 = vmatprep.subr.mxu0 0.0
        %v8239 = vand.u32 %v7671, 4294901760
        %8240 = vmatpush1.msra.mxu0 %v8239
        %8241 = vmatprep.subr.mxu0 0.0
        %v8242 = vand.u32 %v7672, 4294901760
        %8243 = vmatpush1.msra.mxu0 %v8242
        %8244 = vmatprep.subr.mxu0 0.0
        %v8245 = vand.u32 %v7673, 4294901760
        %8246 = vmatpush1.msra.mxu0 %v8245
        %8247 = vmatprep.subr.mxu0 0.0
        %v8248 = vand.u32 %v7674, 4294901760
        %8249 = vmatpush1.msra.mxu0 %v8248
        %8250 = vmatprep.subr.mxu0 0.0
        %v8251 = vand.u32 %v7675, 4294901760
        %8252 = vmatpush1.msra.mxu0 %v8251
        %8253 = vmatprep.subr.mxu0 0.0
        %v8254 = vand.u32 %v7676, 4294901760
        %8255 = vmatpush1.msra.mxu0 %v8254
        %8256 = vmatprep.subr.mxu0 0.0
        %v8257 = vand.u32 %v7677, 4294901760
        %8258 = vmatpush1.msra.mxu0 %v8257
        %8259 = vmatprep.subr.mxu0 0.0
        %v8260 = vand.u32 %v7678, 4294901760
        %8261 = vmatpush1.msra.mxu0 %v8260
        %8262 = vmatprep.subr.mxu0 0.0
        %v8263 = vand.u32 %v7679, 4294901760
        %8264 = vmatpush1.msra.mxu0 %v8263
        %8265 = vmatprep.subr.mxu0 0.0
        %v8266 = vand.u32 %v7680, 4294901760
        %8267 = vmatpush1.msra.mxu0 %v8266
        %8268 = vmatprep.subr.mxu0 0.0
        %v8269 = vand.u32 %v7681, 4294901760
        %8270 = vmatpush1.msra.mxu0 %v8269
        %8271 = vmatprep.subr.mxu0 0.0
        %v8272 = vand.u32 %v7682, 4294901760
        %8273 = vmatpush1.msra.mxu0 %v8272
        %8274 = vmatprep.subr.mxu0 0.0
        %v8275 = vand.u32 %v7683, 4294901760
        %8276 = vmatpush1.msra.mxu0 %v8275
        %8277 = vmatprep.subr.mxu0 0.0
        %v8278 = vand.u32 %v7684, 4294901760
        %8279 = vmatpush1.msra.mxu0 %v8278
        %8280 = vmatprep.subr.mxu0 0.0
        %v8281 = vand.u32 %v7685, 4294901760
        %8282 = vmatpush1.msra.mxu0 %v8281
        %8283 = vmatprep.subr.mxu0 0.0
        %v8284 = vand.u32 %v7686, 4294901760
        %8285 = vmatpush1.msra.mxu0 %v8284
        %8286 = vmatprep.subr.mxu0 0.0
        %v8287 = vand.u32 %v7687, 4294901760
        %8288 = vmatpush1.msra.mxu0 %v8287
        %v8289 = vand.u32 %v7654, 4294901760
        %v8290 = vsub.f32 %v7654, %v8289
        %v8291 = vand.u32 %v8290, 4294901760
        %8292 = vmatprep.mubr.f32.mxu0 %v8291
        %v8293 = vand.u32 %v7653, 4294901760
        %v8294 = vsub.f32 %v7653, %v8293
        %v8295 = vand.u32 %v8294, 4294901760
        %8296 = vmatmul.mubr.f32.gmra.mrb[0].mxu0 %v8295
        %v8297 = vpop.f32.mrb[0].mxu0
        %v8298 = vadd.f32 %v8190, %v8297
        %v8299 = vpop.f32.mrb[0].mxu0
        %8300 = vdwg.mxu0
        %8301 = vmatprep.subr.mxu0 0.0
        %v8302 = vand.u32 %v7656, 4294901760
        %v8303 = vsub.f32 %v7656, %v8302
        %v8304 = vand.u32 %v8303, 4294901760
        %8305 = vmatpush1.msra.mxu0 %v8304
        %8306 = vmatprep.subr.mxu0 0.0
        %v8307 = vand.u32 %v7657, 4294901760
        %v8308 = vsub.f32 %v7657, %v8307
        %v8309 = vand.u32 %v8308, 4294901760
        %8310 = vmatpush1.msra.mxu0 %v8309
        %8311 = vmatprep.subr.mxu0 0.0
        %v8312 = vand.u32 %v7658, 4294901760
        %v8313 = vsub.f32 %v7658, %v8312
        %v8314 = vand.u32 %v8313, 4294901760
        %8315 = vmatpush1.msra.mxu0 %v8314
        %8316 = vmatprep.subr.mxu0 0.0
        %v8317 = vand.u32 %v7659, 4294901760
        %v8318 = vsub.f32 %v7659, %v8317
        %v8319 = vand.u32 %v8318, 4294901760
        %8320 = vmatpush1.msra.mxu0 %v8319
        %8321 = vmatprep.subr.mxu0 0.0
        %v8322 = vand.u32 %v7660, 4294901760
        %v8323 = vsub.f32 %v7660, %v8322
        %v8324 = vand.u32 %v8323, 4294901760
        %8325 = vmatpush1.msra.mxu0 %v8324
        %8326 = vmatprep.subr.mxu0 0.0
        %v8327 = vand.u32 %v7661, 4294901760
        %v8328 = vsub.f32 %v7661, %v8327
        %v8329 = vand.u32 %v8328, 4294901760
        %8330 = vmatpush1.msra.mxu0 %v8329
        %8331 = vmatprep.subr.mxu0 0.0
        %v8332 = vand.u32 %v7662, 4294901760
        %v8333 = vsub.f32 %v7662, %v8332
        %v8334 = vand.u32 %v8333, 4294901760
        %8335 = vmatpush1.msra.mxu0 %v8334
        %8336 = vmatprep.subr.mxu0 0.0
        %v8337 = vand.u32 %v7663, 4294901760
        %v8338 = vsub.f32 %v7663, %v8337
        %v8339 = vand.u32 %v8338, 4294901760
        %8340 = vmatpush1.msra.mxu0 %v8339
        %8341 = vmatprep.subr.mxu0 0.0
        %v8342 = vand.u32 %v7664, 4294901760
        %v8343 = vsub.f32 %v7664, %v8342
        %v8344 = vand.u32 %v8343, 4294901760
        %8345 = vmatpush1.msra.mxu0 %v8344
        %8346 = vmatprep.subr.mxu0 0.0
        %v8347 = vand.u32 %v7665, 4294901760
        %v8348 = vsub.f32 %v7665, %v8347
        %v8349 = vand.u32 %v8348, 4294901760
        %8350 = vmatpush1.msra.mxu0 %v8349
        %8351 = vmatprep.subr.mxu0 0.0
        %v8352 = vand.u32 %v7666, 4294901760
        %v8353 = vsub.f32 %v7666, %v8352
        %v8354 = vand.u32 %v8353, 4294901760
        %8355 = vmatpush1.msra.mxu0 %v8354
        %8356 = vmatprep.subr.mxu0 0.0
        %v8357 = vand.u32 %v7667, 4294901760
        %v8358 = vsub.f32 %v7667, %v8357
        %v8359 = vand.u32 %v8358, 4294901760
        %8360 = vmatpush1.msra.mxu0 %v8359
        %8361 = vmatprep.subr.mxu0 0.0
        %v8362 = vand.u32 %v7668, 4294901760
        %v8363 = vsub.f32 %v7668, %v8362
        %v8364 = vand.u32 %v8363, 4294901760
        %8365 = vmatpush1.msra.mxu0 %v8364
        %8366 = vmatprep.subr.mxu0 0.0
        %v8367 = vand.u32 %v7669, 4294901760
        %v8368 = vsub.f32 %v7669, %v8367
        %v8369 = vand.u32 %v8368, 4294901760
        %8370 = vmatpush1.msra.mxu0 %v8369
        %8371 = vmatprep.subr.mxu0 0.0
        %v8372 = vand.u32 %v7670, 4294901760
        %v8373 = vsub.f32 %v7670, %v8372
        %v8374 = vand.u32 %v8373, 4294901760
        %8375 = vmatpush1.msra.mxu0 %v8374
        %8376 = vmatprep.subr.mxu0 0.0
        %v8377 = vand.u32 %v7671, 4294901760
        %v8378 = vsub.f32 %v7671, %v8377
        %v8379 = vand.u32 %v8378, 4294901760
        %8380 = vmatpush1.msra.mxu0 %v8379
        %8381 = vmatprep.subr.mxu0 0.0
        %v8382 = vand.u32 %v7672, 4294901760
        %v8383 = vsub.f32 %v7672, %v8382
        %v8384 = vand.u32 %v8383, 4294901760
        %8385 = vmatpush1.msra.mxu0 %v8384
        %8386 = vmatprep.subr.mxu0 0.0
        %v8387 = vand.u32 %v7673, 4294901760
        %v8388 = vsub.f32 %v7673, %v8387
        %v8389 = vand.u32 %v8388, 4294901760
        %8390 = vmatpush1.msra.mxu0 %v8389
        %8391 = vmatprep.subr.mxu0 0.0
        %v8392 = vand.u32 %v7674, 4294901760
        %v8393 = vsub.f32 %v7674, %v8392
        %v8394 = vand.u32 %v8393, 4294901760
        %8395 = vmatpush1.msra.mxu0 %v8394
        %8396 = vmatprep.subr.mxu0 0.0
        %v8397 = vand.u32 %v7675, 4294901760
        %v8398 = vsub.f32 %v7675, %v8397
        %v8399 = vand.u32 %v8398, 4294901760
        %8400 = vmatpush1.msra.mxu0 %v8399
        %8401 = vmatprep.subr.mxu0 0.0
        %v8402 = vand.u32 %v7676, 4294901760
        %v8403 = vsub.f32 %v7676, %v8402
        %v8404 = vand.u32 %v8403, 4294901760
        %8405 = vmatpush1.msra.mxu0 %v8404
        %8406 = vmatprep.subr.mxu0 0.0
        %v8407 = vand.u32 %v7677, 4294901760
        %v8408 = vsub.f32 %v7677, %v8407
        %v8409 = vand.u32 %v8408, 4294901760
        %8410 = vmatpush1.msra.mxu0 %v8409
        %8411 = vmatprep.subr.mxu0 0.0
        %v8412 = vand.u32 %v7678, 4294901760
        %v8413 = vsub.f32 %v7678, %v8412
        %v8414 = vand.u32 %v8413, 4294901760
        %8415 = vmatpush1.msra.mxu0 %v8414
        %8416 = vmatprep.subr.mxu0 0.0
        %v8417 = vand.u32 %v7679, 4294901760
        %v8418 = vsub.f32 %v7679, %v8417
        %v8419 = vand.u32 %v8418, 4294901760
        %8420 = vmatpush1.msra.mxu0 %v8419
        %8421 = vmatprep.subr.mxu0 0.0
        %v8422 = vand.u32 %v7680, 4294901760
        %v8423 = vsub.f32 %v7680, %v8422
        %v8424 = vand.u32 %v8423, 4294901760
        %8425 = vmatpush1.msra.mxu0 %v8424
        %8426 = vmatprep.subr.mxu0 0.0
        %v8427 = vand.u32 %v7681, 4294901760
        %v8428 = vsub.f32 %v7681, %v8427
        %v8429 = vand.u32 %v8428, 4294901760
        %8430 = vmatpush1.msra.mxu0 %v8429
        %8431 = vmatprep.subr.mxu0 0.0
        %v8432 = vand.u32 %v7682, 4294901760
        %v8433 = vsub.f32 %v7682, %v8432
        %v8434 = vand.u32 %v8433, 4294901760
        %8435 = vmatpush1.msra.mxu0 %v8434
        %8436 = vmatprep.subr.mxu0 0.0
        %v8437 = vand.u32 %v7683, 4294901760
        %v8438 = vsub.f32 %v7683, %v8437
        %v8439 = vand.u32 %v8438, 4294901760
        %8440 = vmatpush1.msra.mxu0 %v8439
        %8441 = vmatprep.subr.mxu0 0.0
        %v8442 = vand.u32 %v7684, 4294901760
        %v8443 = vsub.f32 %v7684, %v8442
        %v8444 = vand.u32 %v8443, 4294901760
        %8445 = vmatpush1.msra.mxu0 %v8444
        %8446 = vmatprep.subr.mxu0 0.0
        %v8447 = vand.u32 %v7685, 4294901760
        %v8448 = vsub.f32 %v7685, %v8447
        %v8449 = vand.u32 %v8448, 4294901760
        %8450 = vmatpush1.msra.mxu0 %v8449
        %8451 = vmatprep.subr.mxu0 0.0
        %v8452 = vand.u32 %v7686, 4294901760
        %v8453 = vsub.f32 %v7686, %v8452
        %v8454 = vand.u32 %v8453, 4294901760
        %8455 = vmatpush1.msra.mxu0 %v8454
        %8456 = vmatprep.subr.mxu0 0.0
        %v8457 = vand.u32 %v7687, 4294901760
        %v8458 = vsub.f32 %v7687, %v8457
        %v8459 = vand.u32 %v8458, 4294901760
        %8460 = vmatpush1.msra.mxu0 %v8459
        %v8461 = vand.u32 %v7654, 4294901760
        %8462 = vmatprep.mubr.f32.mxu0 %v8461
        %v8463 = vand.u32 %v7653, 4294901760
        %8464 = vmatmul.mubr.f32.gmra.mrb[0].mxu0 %v8463
        %v8465 = vpop.f32.mrb[0].mxu0
        %v8466 = vadd.f32 %v8298, %v8465
        %v8467 = vpop.f32.mrb[0].mxu0
        %8468 = vdwg.mxu0
        %8469 = vmatprep.subr.mxu0 0.0
        %v8470 = vand.u32 %v7656, 4294901760
        %8471 = vmatpush1.msra.mxu0 %v8470
        %8472 = vmatprep.subr.mxu0 0.0
        %v8473 = vand.u32 %v7657, 4294901760
        %8474 = vmatpush1.msra.mxu0 %v8473
        %8475 = vmatprep.subr.mxu0 0.0
        %v8476 = vand.u32 %v7658, 4294901760
        %8477 = vmatpush1.msra.mxu0 %v8476
        %8478 = vmatprep.subr.mxu0 0.0
        %v8479 = vand.u32 %v7659, 4294901760
        %8480 = vmatpush1.msra.mxu0 %v8479
        %8481 = vmatprep.subr.mxu0 0.0
        %v8482 = vand.u32 %v7660, 4294901760
        %8483 = vmatpush1.msra.mxu0 %v8482
        %8484 = vmatprep.subr.mxu0 0.0
        %v8485 = vand.u32 %v7661, 4294901760
        %8486 = vmatpush1.msra.mxu0 %v8485
        %8487 = vmatprep.subr.mxu0 0.0
        %v8488 = vand.u32 %v7662, 4294901760
        %8489 = vmatpush1.msra.mxu0 %v8488
        %8490 = vmatprep.subr.mxu0 0.0
        %v8491 = vand.u32 %v7663, 4294901760
        %8492 = vmatpush1.msra.mxu0 %v8491
        %8493 = vmatprep.subr.mxu0 0.0
        %v8494 = vand.u32 %v7664, 4294901760
        %8495 = vmatpush1.msra.mxu0 %v8494
        %8496 = vmatprep.subr.mxu0 0.0
        %v8497 = vand.u32 %v7665, 4294901760
        %8498 = vmatpush1.msra.mxu0 %v8497
        %8499 = vmatprep.subr.mxu0 0.0
        %v8500 = vand.u32 %v7666, 4294901760
        %8501 = vmatpush1.msra.mxu0 %v8500
        %8502 = vmatprep.subr.mxu0 0.0
        %v8503 = vand.u32 %v7667, 4294901760
        %8504 = vmatpush1.msra.mxu0 %v8503
        %8505 = vmatprep.subr.mxu0 0.0
        %v8506 = vand.u32 %v7668, 4294901760
        %8507 = vmatpush1.msra.mxu0 %v8506
        %8508 = vmatprep.subr.mxu0 0.0
        %v8509 = vand.u32 %v7669, 4294901760
        %8510 = vmatpush1.msra.mxu0 %v8509
        %8511 = vmatprep.subr.mxu0 0.0
        %v8512 = vand.u32 %v7670, 4294901760
        %8513 = vmatpush1.msra.mxu0 %v8512
        %8514 = vmatprep.subr.mxu0 0.0
        %v8515 = vand.u32 %v7671, 4294901760
        %8516 = vmatpush1.msra.mxu0 %v8515
        %8517 = vmatprep.subr.mxu0 0.0
        %v8518 = vand.u32 %v7672, 4294901760
        %8519 = vmatpush1.msra.mxu0 %v8518
        %8520 = vmatprep.subr.mxu0 0.0
        %v8521 = vand.u32 %v7673, 4294901760
        %8522 = vmatpush1.msra.mxu0 %v8521
        %8523 = vmatprep.subr.mxu0 0.0
        %v8524 = vand.u32 %v7674, 4294901760
        %8525 = vmatpush1.msra.mxu0 %v8524
        %8526 = vmatprep.subr.mxu0 0.0
        %v8527 = vand.u32 %v7675, 4294901760
        %8528 = vmatpush1.msra.mxu0 %v8527
        %8529 = vmatprep.subr.mxu0 0.0
        %v8530 = vand.u32 %v7676, 4294901760
        %8531 = vmatpush1.msra.mxu0 %v8530
        %8532 = vmatprep.subr.mxu0 0.0
        %v8533 = vand.u32 %v7677, 4294901760
        %8534 = vmatpush1.msra.mxu0 %v8533
        %8535 = vmatprep.subr.mxu0 0.0
        %v8536 = vand.u32 %v7678, 4294901760
        %8537 = vmatpush1.msra.mxu0 %v8536
        %8538 = vmatprep.subr.mxu0 0.0
        %v8539 = vand.u32 %v7679, 4294901760
        %8540 = vmatpush1.msra.mxu0 %v8539
        %8541 = vmatprep.subr.mxu0 0.0
        %v8542 = vand.u32 %v7680, 4294901760
        %8543 = vmatpush1.msra.mxu0 %v8542
        %8544 = vmatprep.subr.mxu0 0.0
        %v8545 = vand.u32 %v7681, 4294901760
        %8546 = vmatpush1.msra.mxu0 %v8545
        %8547 = vmatprep.subr.mxu0 0.0
        %v8548 = vand.u32 %v7682, 4294901760
        %8549 = vmatpush1.msra.mxu0 %v8548
        %8550 = vmatprep.subr.mxu0 0.0
        %v8551 = vand.u32 %v7683, 4294901760
        %8552 = vmatpush1.msra.mxu0 %v8551
        %8553 = vmatprep.subr.mxu0 0.0
        %v8554 = vand.u32 %v7684, 4294901760
        %8555 = vmatpush1.msra.mxu0 %v8554
        %8556 = vmatprep.subr.mxu0 0.0
        %v8557 = vand.u32 %v7685, 4294901760
        %8558 = vmatpush1.msra.mxu0 %v8557
        %8559 = vmatprep.subr.mxu0 0.0
        %v8560 = vand.u32 %v7686, 4294901760
        %8561 = vmatpush1.msra.mxu0 %v8560
        %8562 = vmatprep.subr.mxu0 0.0
        %v8563 = vand.u32 %v7687, 4294901760
        %8564 = vmatpush1.msra.mxu0 %v8563
        %v8565 = vand.u32 %v7654, 4294901760
        %8566 = vmatprep.mubr.f32.mxu0 %v8565
        %v8567 = vand.u32 %v7653, 4294901760
        %8568 = vmatmul.mubr.f32.gmra.mrb[0].mxu0 %v8567
        %v8569 = vpop.f32.mrb[0].mxu0
        %v8570 = vadd.f32 %v8466, %v8569
        %v8571 = vpop.f32.mrb[0].mxu0
        %8572 = vdwg.mxu0
        %8573 = vmatprep.subr.mxu0 0.0
        %v8574 = vand.u32 %v7688, 4294901760
        %8575 = vmatpush1.msra.mxu0 %v8574
        %8576 = vmatprep.subr.mxu0 0.0
        %v8577 = vand.u32 %v7689, 4294901760
        %8578 = vmatpush1.msra.mxu0 %v8577
        %8579 = vmatprep.subr.mxu0 0.0
        %v8580 = vand.u32 %v7690, 4294901760
        %8581 = vmatpush1.msra.mxu0 %v8580
        %8582 = vmatprep.subr.mxu0 0.0
        %v8583 = vand.u32 %v7691, 4294901760
        %8584 = vmatpush1.msra.mxu0 %v8583
        %8585 = vmatprep.subr.mxu0 0.0
        %v8586 = vand.u32 %v7692, 4294901760
        %8587 = vmatpush1.msra.mxu0 %v8586
        %8588 = vmatprep.subr.mxu0 0.0
        %v8589 = vand.u32 %v7693, 4294901760
        %8590 = vmatpush1.msra.mxu0 %v8589
        %8591 = vmatprep.subr.mxu0 0.0
        %v8592 = vand.u32 %v7694, 4294901760
        %8593 = vmatpush1.msra.mxu0 %v8592
        %8594 = vmatprep.subr.mxu0 0.0
        %v8595 = vand.u32 %v7695, 4294901760
        %8596 = vmatpush1.msra.mxu0 %v8595
        %8597 = vmatprep.subr.mxu0 0.0
        %v8598 = vand.u32 %v7696, 4294901760
        %8599 = vmatpush1.msra.mxu0 %v8598
        %8600 = vmatprep.subr.mxu0 0.0
        %v8601 = vand.u32 %v7697, 4294901760
        %8602 = vmatpush1.msra.mxu0 %v8601
        %8603 = vmatprep.subr.mxu0 0.0
        %v8604 = vand.u32 %v7698, 4294901760
        %8605 = vmatpush1.msra.mxu0 %v8604
        %8606 = vmatprep.subr.mxu0 0.0
        %v8607 = vand.u32 %v7699, 4294901760
        %8608 = vmatpush1.msra.mxu0 %v8607
        %8609 = vmatprep.subr.mxu0 0.0
        %v8610 = vand.u32 %v7700, 4294901760
        %8611 = vmatpush1.msra.mxu0 %v8610
        %8612 = vmatprep.subr.mxu0 0.0
        %v8613 = vand.u32 %v7701, 4294901760
        %8614 = vmatpush1.msra.mxu0 %v8613
        %8615 = vmatprep.subr.mxu0 0.0
        %v8616 = vand.u32 %v7702, 4294901760
        %8617 = vmatpush1.msra.mxu0 %v8616
        %8618 = vmatprep.subr.mxu0 0.0
        %v8619 = vand.u32 %v7703, 4294901760
        %8620 = vmatpush1.msra.mxu0 %v8619
        %8621 = vmatprep.subr.mxu0 0.0
        %8622 = vmatpush1.msra.mxu0 0.0
        %8623 = vmatprep.subr.mxu0 0.0
        %8624 = vmatpush1.msra.mxu0 0.0
        %8625 = vmatprep.subr.mxu0 0.0
        %8626 = vmatpush1.msra.mxu0 0.0
        %8627 = vmatprep.subr.mxu0 0.0
        %8628 = vmatpush1.msra.mxu0 0.0
        %8629 = vmatprep.subr.mxu0 0.0
        %8630 = vmatpush1.msra.mxu0 0.0
        %8631 = vmatprep.subr.mxu0 0.0
        %8632 = vmatpush1.msra.mxu0 0.0
        %8633 = vmatprep.subr.mxu0 0.0
        %8634 = vmatpush1.msra.mxu0 0.0
        %8635 = vmatprep.subr.mxu0 0.0
        %8636 = vmatpush1.msra.mxu0 0.0
        %8637 = vmatprep.subr.mxu0 0.0
        %8638 = vmatpush1.msra.mxu0 0.0
        %8639 = vmatprep.subr.mxu0 0.0
        %8640 = vmatpush1.msra.mxu0 0.0
        %8641 = vmatprep.subr.mxu0 0.0
        %8642 = vmatpush1.msra.mxu0 0.0
        %8643 = vmatprep.subr.mxu0 0.0
        %8644 = vmatpush1.msra.mxu0 0.0
        %8645 = vmatprep.subr.mxu0 0.0
        %8646 = vmatpush1.msra.mxu0 0.0
        %8647 = vmatprep.subr.mxu0 0.0
        %8648 = vmatpush1.msra.mxu0 0.0
        %8649 = vmatprep.subr.mxu0 0.0
        %8650 = vmatpush1.msra.mxu0 0.0
        %8651 = vmatprep.subr.mxu0 0.0
        %8652 = vmatpush1.msra.mxu0 0.0
        %8653 = vmatprep.mubr.f32.mxu0 0.0
        %v8654 = vand.u32 %v7655, 4294901760
        %v8655 = vsub.f32 %v7655, %v8654
        %v8656 = vand.u32 %v8655, 4294901760
        %v8657 = vsub.f32 %v8655, %v8656
        %v8658 = vand.u32 %v8657, 4294901760
        %8659 = vmatmul.mubr.f32.gmra.mrb[0].mxu0 %v8658
        %v8660 = vpop.f32.mrb[0].mxu0
        %v8661 = vadd.f32 %v8570, %v8660
        %v8662 = vpop.f32.mrb[0].mxu0
        %8663 = vdwg.mxu0
        %8664 = vmatprep.subr.mxu0 0.0
        %v8665 = vand.u32 %v7688, 4294901760
        %v8666 = vsub.f32 %v7688, %v8665
        %v8667 = vand.u32 %v8666, 4294901760
        %v8668 = vsub.f32 %v8666, %v8667
        %v8669 = vand.u32 %v8668, 4294901760
        %8670 = vmatpush1.msra.mxu0 %v8669
        %8671 = vmatprep.subr.mxu0 0.0
        %v8672 = vand.u32 %v7689, 4294901760
        %v8673 = vsub.f32 %v7689, %v8672
        %v8674 = vand.u32 %v8673, 4294901760
        %v8675 = vsub.f32 %v8673, %v8674
        %v8676 = vand.u32 %v8675, 4294901760
        %8677 = vmatpush1.msra.mxu0 %v8676
        %8678 = vmatprep.subr.mxu0 0.0
        %v8679 = vand.u32 %v7690, 4294901760
        %v8680 = vsub.f32 %v7690, %v8679
        %v8681 = vand.u32 %v8680, 4294901760
        %v8682 = vsub.f32 %v8680, %v8681
        %v8683 = vand.u32 %v8682, 4294901760
        %8684 = vmatpush1.msra.mxu0 %v8683
        %8685 = vmatprep.subr.mxu0 0.0
        %v8686 = vand.u32 %v7691, 4294901760
        %v8687 = vsub.f32 %v7691, %v8686
        %v8688 = vand.u32 %v8687, 4294901760
        %v8689 = vsub.f32 %v8687, %v8688
        %v8690 = vand.u32 %v8689, 4294901760
        %8691 = vmatpush1.msra.mxu0 %v8690
        %8692 = vmatprep.subr.mxu0 0.0
        %v8693 = vand.u32 %v7692, 4294901760
        %v8694 = vsub.f32 %v7692, %v8693
        %v8695 = vand.u32 %v8694, 4294901760
        %v8696 = vsub.f32 %v8694, %v8695
        %v8697 = vand.u32 %v8696, 4294901760
        %8698 = vmatpush1.msra.mxu0 %v8697
        %8699 = vmatprep.subr.mxu0 0.0
        %v8700 = vand.u32 %v7693, 4294901760
        %v8701 = vsub.f32 %v7693, %v8700
        %v8702 = vand.u32 %v8701, 4294901760
        %v8703 = vsub.f32 %v8701, %v8702
        %v8704 = vand.u32 %v8703, 4294901760
        %8705 = vmatpush1.msra.mxu0 %v8704
        %8706 = vmatprep.subr.mxu0 0.0
        %v8707 = vand.u32 %v7694, 4294901760
        %v8708 = vsub.f32 %v7694, %v8707
        %v8709 = vand.u32 %v8708, 4294901760
        %v8710 = vsub.f32 %v8708, %v8709
        %v8711 = vand.u32 %v8710, 4294901760
        %8712 = vmatpush1.msra.mxu0 %v8711
        %8713 = vmatprep.subr.mxu0 0.0
        %v8714 = vand.u32 %v7695, 4294901760
        %v8715 = vsub.f32 %v7695, %v8714
        %v8716 = vand.u32 %v8715, 4294901760
        %v8717 = vsub.f32 %v8715, %v8716
        %v8718 = vand.u32 %v8717, 4294901760
        %8719 = vmatpush1.msra.mxu0 %v8718
        %8720 = vmatprep.subr.mxu0 0.0
        %v8721 = vand.u32 %v7696, 4294901760
        %v8722 = vsub.f32 %v7696, %v8721
        %v8723 = vand.u32 %v8722, 4294901760
        %v8724 = vsub.f32 %v8722, %v8723
        %v8725 = vand.u32 %v8724, 4294901760
        %8726 = vmatpush1.msra.mxu0 %v8725
        %8727 = vmatprep.subr.mxu0 0.0
        %v8728 = vand.u32 %v7697, 4294901760
        %v8729 = vsub.f32 %v7697, %v8728
        %v8730 = vand.u32 %v8729, 4294901760
        %v8731 = vsub.f32 %v8729, %v8730
        %v8732 = vand.u32 %v8731, 4294901760
        %8733 = vmatpush1.msra.mxu0 %v8732
        %8734 = vmatprep.subr.mxu0 0.0
        %v8735 = vand.u32 %v7698, 4294901760
        %v8736 = vsub.f32 %v7698, %v8735
        %v8737 = vand.u32 %v8736, 4294901760
        %v8738 = vsub.f32 %v8736, %v8737
        %v8739 = vand.u32 %v8738, 4294901760
        %8740 = vmatpush1.msra.mxu0 %v8739
        %8741 = vmatprep.subr.mxu0 0.0
        %v8742 = vand.u32 %v7699, 4294901760
        %v8743 = vsub.f32 %v7699, %v8742
        %v8744 = vand.u32 %v8743, 4294901760
        %v8745 = vsub.f32 %v8743, %v8744
        %v8746 = vand.u32 %v8745, 4294901760
        %8747 = vmatpush1.msra.mxu0 %v8746
        %8748 = vmatprep.subr.mxu0 0.0
        %v8749 = vand.u32 %v7700, 4294901760
        %v8750 = vsub.f32 %v7700, %v8749
        %v8751 = vand.u32 %v8750, 4294901760
        %v8752 = vsub.f32 %v8750, %v8751
        %v8753 = vand.u32 %v8752, 4294901760
        %8754 = vmatpush1.msra.mxu0 %v8753
        %8755 = vmatprep.subr.mxu0 0.0
        %v8756 = vand.u32 %v7701, 4294901760
        %v8757 = vsub.f32 %v7701, %v8756
        %v8758 = vand.u32 %v8757, 4294901760
        %v8759 = vsub.f32 %v8757, %v8758
        %v8760 = vand.u32 %v8759, 4294901760
        %8761 = vmatpush1.msra.mxu0 %v8760
        %8762 = vmatprep.subr.mxu0 0.0
        %v8763 = vand.u32 %v7702, 4294901760
        %v8764 = vsub.f32 %v7702, %v8763
        %v8765 = vand.u32 %v8764, 4294901760
        %v8766 = vsub.f32 %v8764, %v8765
        %v8767 = vand.u32 %v8766, 4294901760
        %8768 = vmatpush1.msra.mxu0 %v8767
        %8769 = vmatprep.subr.mxu0 0.0
        %v8770 = vand.u32 %v7703, 4294901760
        %v8771 = vsub.f32 %v7703, %v8770
        %v8772 = vand.u32 %v8771, 4294901760
        %v8773 = vsub.f32 %v8771, %v8772
        %v8774 = vand.u32 %v8773, 4294901760
        %8775 = vmatpush1.msra.mxu0 %v8774
        %8776 = vmatprep.subr.mxu0 0.0
        %8777 = vmatpush1.msra.mxu0 0.0
        %8778 = vmatprep.subr.mxu0 0.0
        %8779 = vmatpush1.msra.mxu0 0.0
        %8780 = vmatprep.subr.mxu0 0.0
        %8781 = vmatpush1.msra.mxu0 0.0
        %8782 = vmatprep.subr.mxu0 0.0
        %8783 = vmatpush1.msra.mxu0 0.0
        %8784 = vmatprep.subr.mxu0 0.0
        %8785 = vmatpush1.msra.mxu0 0.0
        %8786 = vmatprep.subr.mxu0 0.0
        %8787 = vmatpush1.msra.mxu0 0.0
        %8788 = vmatprep.subr.mxu0 0.0
        %8789 = vmatpush1.msra.mxu0 0.0
        %8790 = vmatprep.subr.mxu0 0.0
        %8791 = vmatpush1.msra.mxu0 0.0
        %8792 = vmatprep.subr.mxu0 0.0
        %8793 = vmatpush1.msra.mxu0 0.0
        %8794 = vmatprep.subr.mxu0 0.0
        %8795 = vmatpush1.msra.mxu0 0.0
        %8796 = vmatprep.subr.mxu0 0.0
        %8797 = vmatpush1.msra.mxu0 0.0
        %8798 = vmatprep.subr.mxu0 0.0
        %8799 = vmatpush1.msra.mxu0 0.0
        %8800 = vmatprep.subr.mxu0 0.0
        %8801 = vmatpush1.msra.mxu0 0.0
        %8802 = vmatprep.subr.mxu0 0.0
        %8803 = vmatpush1.msra.mxu0 0.0
        %8804 = vmatprep.subr.mxu0 0.0
        %8805 = vmatpush1.msra.mxu0 0.0
        %8806 = vmatprep.subr.mxu0 0.0
        %8807 = vmatpush1.msra.mxu0 0.0
        %8808 = vmatprep.mubr.f32.mxu0 0.0
        %v8809 = vand.u32 %v7655, 4294901760
        %8810 = vmatmul.mubr.f32.gmra.mrb[0].mxu0 %v8809
        %v8811 = vpop.f32.mrb[0].mxu0
        %v8812 = vadd.f32 %v8661, %v8811
        %v8813 = vpop.f32.mrb[0].mxu0
        %8814 = vdwg.mxu0
        %8815 = vmatprep.subr.mxu0 0.0
        %v8816 = vand.u32 %v7688, 4294901760
        %v8817 = vsub.f32 %v7688, %v8816
        %8818 = vmatpush1.msra.mxu0 %v8817
        %8819 = vmatprep.subr.mxu0 0.0
        %v8820 = vand.u32 %v7689, 4294901760
        %v8821 = vsub.f32 %v7689, %v8820
        %8822 = vmatpush1.msra.mxu0 %v8821
        %8823 = vmatprep.subr.mxu0 0.0
        %v8824 = vand.u32 %v7690, 4294901760
        %v8825 = vsub.f32 %v7690, %v8824
        %8826 = vmatpush1.msra.mxu0 %v8825
        %8827 = vmatprep.subr.mxu0 0.0
        %v8828 = vand.u32 %v7691, 4294901760
        %v8829 = vsub.f32 %v7691, %v8828
        %8830 = vmatpush1.msra.mxu0 %v8829
        %8831 = vmatprep.subr.mxu0 0.0
        %v8832 = vand.u32 %v7692, 4294901760
        %v8833 = vsub.f32 %v7692, %v8832
        %8834 = vmatpush1.msra.mxu0 %v8833
        %8835 = vmatprep.subr.mxu0 0.0
        %v8836 = vand.u32 %v7693, 4294901760
        %v8837 = vsub.f32 %v7693, %v8836
        %8838 = vmatpush1.msra.mxu0 %v8837
        %8839 = vmatprep.subr.mxu0 0.0
        %v8840 = vand.u32 %v7694, 4294901760
        %v8841 = vsub.f32 %v7694, %v8840
        %8842 = vmatpush1.msra.mxu0 %v8841
        %8843 = vmatprep.subr.mxu0 0.0
        %v8844 = vand.u32 %v7695, 4294901760
        %v8845 = vsub.f32 %v7695, %v8844
        %8846 = vmatpush1.msra.mxu0 %v8845
        %8847 = vmatprep.subr.mxu0 0.0
        %v8848 = vand.u32 %v7696, 4294901760
        %v8849 = vsub.f32 %v7696, %v8848
        %8850 = vmatpush1.msra.mxu0 %v8849
        %8851 = vmatprep.subr.mxu0 0.0
        %v8852 = vand.u32 %v7697, 4294901760
        %v8853 = vsub.f32 %v7697, %v8852
        %8854 = vmatpush1.msra.mxu0 %v8853
        %8855 = vmatprep.subr.mxu0 0.0
        %v8856 = vand.u32 %v7698, 4294901760
        %v8857 = vsub.f32 %v7698, %v8856
        %8858 = vmatpush1.msra.mxu0 %v8857
        %8859 = vmatprep.subr.mxu0 0.0
        %v8860 = vand.u32 %v7699, 4294901760
        %v8861 = vsub.f32 %v7699, %v8860
        %8862 = vmatpush1.msra.mxu0 %v8861
        %8863 = vmatprep.subr.mxu0 0.0
        %v8864 = vand.u32 %v7700, 4294901760
        %v8865 = vsub.f32 %v7700, %v8864
        %8866 = vmatpush1.msra.mxu0 %v8865
        %8867 = vmatprep.subr.mxu0 0.0
        %v8868 = vand.u32 %v7701, 4294901760
        %v8869 = vsub.f32 %v7701, %v8868
        %8870 = vmatpush1.msra.mxu0 %v8869
        %8871 = vmatprep.subr.mxu0 0.0
        %v8872 = vand.u32 %v7702, 4294901760
        %v8873 = vsub.f32 %v7702, %v8872
        %8874 = vmatpush1.msra.mxu0 %v8873
        %8875 = vmatprep.subr.mxu0 0.0
        %v8876 = vand.u32 %v7703, 4294901760
        %v8877 = vsub.f32 %v7703, %v8876
        %8878 = vmatpush1.msra.mxu0 %v8877
        %8879 = vmatprep.subr.mxu0 0.0
        %8880 = vmatpush1.msra.mxu0 0.0
        %8881 = vmatprep.subr.mxu0 0.0
        %8882 = vmatpush1.msra.mxu0 0.0
        %8883 = vmatprep.subr.mxu0 0.0
        %8884 = vmatpush1.msra.mxu0 0.0
        %8885 = vmatprep.subr.mxu0 0.0
        %8886 = vmatpush1.msra.mxu0 0.0
        %8887 = vmatprep.subr.mxu0 0.0
        %8888 = vmatpush1.msra.mxu0 0.0
        %8889 = vmatprep.subr.mxu0 0.0
        %8890 = vmatpush1.msra.mxu0 0.0
        %8891 = vmatprep.subr.mxu0 0.0
        %8892 = vmatpush1.msra.mxu0 0.0
        %8893 = vmatprep.subr.mxu0 0.0
        %8894 = vmatpush1.msra.mxu0 0.0
        %8895 = vmatprep.subr.mxu0 0.0
        %8896 = vmatpush1.msra.mxu0 0.0
        %8897 = vmatprep.subr.mxu0 0.0
        %8898 = vmatpush1.msra.mxu0 0.0
        %8899 = vmatprep.subr.mxu0 0.0
        %8900 = vmatpush1.msra.mxu0 0.0
        %8901 = vmatprep.subr.mxu0 0.0
        %8902 = vmatpush1.msra.mxu0 0.0
        %8903 = vmatprep.subr.mxu0 0.0
        %8904 = vmatpush1.msra.mxu0 0.0
        %8905 = vmatprep.subr.mxu0 0.0
        %8906 = vmatpush1.msra.mxu0 0.0
        %8907 = vmatprep.subr.mxu0 0.0
        %8908 = vmatpush1.msra.mxu0 0.0
        %8909 = vmatprep.subr.mxu0 0.0
        %8910 = vmatpush1.msra.mxu0 0.0
        %8911 = vmatprep.mubr.f32.mxu0 0.0
        %v8912 = vand.u32 %v7655, 4294901760
        %v8913 = vsub.f32 %v7655, %v8912
        %8914 = vmatmul.mubr.f32.gmra.mrb[0].mxu0 %v8913
        %v8915 = vpop.f32.mrb[0].mxu0
        %v8916 = vadd.f32 %v8812, %v8915
        %v8917 = vpop.f32.mrb[0].mxu0
        %8918 = vdwg.mxu0
        %8919 = vmatprep.subr.mxu0 0.0
        %v8920 = vand.u32 %v7688, 4294901760
        %8921 = vmatpush1.msra.mxu0 %v8920
        %8922 = vmatprep.subr.mxu0 0.0
        %v8923 = vand.u32 %v7689, 4294901760
        %8924 = vmatpush1.msra.mxu0 %v8923
        %8925 = vmatprep.subr.mxu0 0.0
        %v8926 = vand.u32 %v7690, 4294901760
        %8927 = vmatpush1.msra.mxu0 %v8926
        %8928 = vmatprep.subr.mxu0 0.0
        %v8929 = vand.u32 %v7691, 4294901760
        %8930 = vmatpush1.msra.mxu0 %v8929
        %8931 = vmatprep.subr.mxu0 0.0
        %v8932 = vand.u32 %v7692, 4294901760
        %8933 = vmatpush1.msra.mxu0 %v8932
        %8934 = vmatprep.subr.mxu0 0.0
        %v8935 = vand.u32 %v7693, 4294901760
        %8936 = vmatpush1.msra.mxu0 %v8935
        %8937 = vmatprep.subr.mxu0 0.0
        %v8938 = vand.u32 %v7694, 4294901760
        %8939 = vmatpush1.msra.mxu0 %v8938
        %8940 = vmatprep.subr.mxu0 0.0
        %v8941 = vand.u32 %v7695, 4294901760
        %8942 = vmatpush1.msra.mxu0 %v8941
        %8943 = vmatprep.subr.mxu0 0.0
        %v8944 = vand.u32 %v7696, 4294901760
        %8945 = vmatpush1.msra.mxu0 %v8944
        %8946 = vmatprep.subr.mxu0 0.0
        %v8947 = vand.u32 %v7697, 4294901760
        %8948 = vmatpush1.msra.mxu0 %v8947
        %8949 = vmatprep.subr.mxu0 0.0
        %v8950 = vand.u32 %v7698, 4294901760
        %8951 = vmatpush1.msra.mxu0 %v8950
        %8952 = vmatprep.subr.mxu0 0.0
        %v8953 = vand.u32 %v7699, 4294901760
        %8954 = vmatpush1.msra.mxu0 %v8953
        %8955 = vmatprep.subr.mxu0 0.0
        %v8956 = vand.u32 %v7700, 4294901760
        %8957 = vmatpush1.msra.mxu0 %v8956
        %8958 = vmatprep.subr.mxu0 0.0
        %v8959 = vand.u32 %v7701, 4294901760
        %8960 = vmatpush1.msra.mxu0 %v8959
        %8961 = vmatprep.subr.mxu0 0.0
        %v8962 = vand.u32 %v7702, 4294901760
        %8963 = vmatpush1.msra.mxu0 %v8962
        %8964 = vmatprep.subr.mxu0 0.0
        %v8965 = vand.u32 %v7703, 4294901760
        %8966 = vmatpush1.msra.mxu0 %v8965
        %8967 = vmatprep.subr.mxu0 0.0
        %8968 = vmatpush1.msra.mxu0 0.0
        %8969 = vmatprep.subr.mxu0 0.0
        %8970 = vmatpush1.msra.mxu0 0.0
        %8971 = vmatprep.subr.mxu0 0.0
        %8972 = vmatpush1.msra.mxu0 0.0
        %8973 = vmatprep.subr.mxu0 0.0
        %8974 = vmatpush1.msra.mxu0 0.0
        %8975 = vmatprep.subr.mxu0 0.0
        %8976 = vmatpush1.msra.mxu0 0.0
        %8977 = vmatprep.subr.mxu0 0.0
        %8978 = vmatpush1.msra.mxu0 0.0
        %8979 = vmatprep.subr.mxu0 0.0
        %8980 = vmatpush1.msra.mxu0 0.0
        %8981 = vmatprep.subr.mxu0 0.0
        %8982 = vmatpush1.msra.mxu0 0.0
        %8983 = vmatprep.subr.mxu0 0.0
        %8984 = vmatpush1.msra.mxu0 0.0
        %8985 = vmatprep.subr.mxu0 0.0
        %8986 = vmatpush1.msra.mxu0 0.0
        %8987 = vmatprep.subr.mxu0 0.0
        %8988 = vmatpush1.msra.mxu0 0.0
        %8989 = vmatprep.subr.mxu0 0.0
        %8990 = vmatpush1.msra.mxu0 0.0
        %8991 = vmatprep.subr.mxu0 0.0
        %8992 = vmatpush1.msra.mxu0 0.0
        %8993 = vmatprep.subr.mxu0 0.0
        %8994 = vmatpush1.msra.mxu0 0.0
        %8995 = vmatprep.subr.mxu0 0.0
        %8996 = vmatpush1.msra.mxu0 0.0
        %8997 = vmatprep.subr.mxu0 0.0
        %8998 = vmatpush1.msra.mxu0 0.0
        %8999 = vmatprep.mubr.f32.mxu0 0.0
        %v9000 = vand.u32 %v7655, 4294901760
        %v9001 = vsub.f32 %v7655, %v9000
        %v9002 = vand.u32 %v9001, 4294901760
        %9003 = vmatmul.mubr.f32.gmra.mrb[0].mxu0 %v9002
        %v9004 = vpop.f32.mrb[0].mxu0
        %v9005 = vadd.f32 %v8916, %v9004
        %v9006 = vpop.f32.mrb[0].mxu0
        %9007 = vdwg.mxu0
        %9008 = vmatprep.subr.mxu0 0.0
        %v9009 = vand.u32 %v7688, 4294901760
        %v9010 = vsub.f32 %v7688, %v9009
        %v9011 = vand.u32 %v9010, 4294901760
        %9012 = vmatpush1.msra.mxu0 %v9011
        %9013 = vmatprep.subr.mxu0 0.0
        %v9014 = vand.u32 %v7689, 4294901760
        %v9015 = vsub.f32 %v7689, %v9014
        %v9016 = vand.u32 %v9015, 4294901760
        %9017 = vmatpush1.msra.mxu0 %v9016
        %9018 = vmatprep.subr.mxu0 0.0
        %v9019 = vand.u32 %v7690, 4294901760
        %v9020 = vsub.f32 %v7690, %v9019
        %v9021 = vand.u32 %v9020, 4294901760
        %9022 = vmatpush1.msra.mxu0 %v9021
        %9023 = vmatprep.subr.mxu0 0.0
        %v9024 = vand.u32 %v7691, 4294901760
        %v9025 = vsub.f32 %v7691, %v9024
        %v9026 = vand.u32 %v9025, 4294901760
        %9027 = vmatpush1.msra.mxu0 %v9026
        %9028 = vmatprep.subr.mxu0 0.0
        %v9029 = vand.u32 %v7692, 4294901760
        %v9030 = vsub.f32 %v7692, %v9029
        %v9031 = vand.u32 %v9030, 4294901760
        %9032 = vmatpush1.msra.mxu0 %v9031
        %9033 = vmatprep.subr.mxu0 0.0
        %v9034 = vand.u32 %v7693, 4294901760
        %v9035 = vsub.f32 %v7693, %v9034
        %v9036 = vand.u32 %v9035, 4294901760
        %9037 = vmatpush1.msra.mxu0 %v9036
        %9038 = vmatprep.subr.mxu0 0.0
        %v9039 = vand.u32 %v7694, 4294901760
        %v9040 = vsub.f32 %v7694, %v9039
        %v9041 = vand.u32 %v9040, 4294901760
        %9042 = vmatpush1.msra.mxu0 %v9041
        %9043 = vmatprep.subr.mxu0 0.0
        %v9044 = vand.u32 %v7695, 4294901760
        %v9045 = vsub.f32 %v7695, %v9044
        %v9046 = vand.u32 %v9045, 4294901760
        %9047 = vmatpush1.msra.mxu0 %v9046
        %9048 = vmatprep.subr.mxu0 0.0
        %v9049 = vand.u32 %v7696, 4294901760
        %v9050 = vsub.f32 %v7696, %v9049
        %v9051 = vand.u32 %v9050, 4294901760
        %9052 = vmatpush1.msra.mxu0 %v9051
        %9053 = vmatprep.subr.mxu0 0.0
        %v9054 = vand.u32 %v7697, 4294901760
        %v9055 = vsub.f32 %v7697, %v9054
        %v9056 = vand.u32 %v9055, 4294901760
        %9057 = vmatpush1.msra.mxu0 %v9056
        %9058 = vmatprep.subr.mxu0 0.0
        %v9059 = vand.u32 %v7698, 4294901760
        %v9060 = vsub.f32 %v7698, %v9059
        %v9061 = vand.u32 %v9060, 4294901760
        %9062 = vmatpush1.msra.mxu0 %v9061
        %9063 = vmatprep.subr.mxu0 0.0
        %v9064 = vand.u32 %v7699, 4294901760
        %v9065 = vsub.f32 %v7699, %v9064
        %v9066 = vand.u32 %v9065, 4294901760
        %9067 = vmatpush1.msra.mxu0 %v9066
        %9068 = vmatprep.subr.mxu0 0.0
        %v9069 = vand.u32 %v7700, 4294901760
        %v9070 = vsub.f32 %v7700, %v9069
        %v9071 = vand.u32 %v9070, 4294901760
        %9072 = vmatpush1.msra.mxu0 %v9071
        %9073 = vmatprep.subr.mxu0 0.0
        %v9074 = vand.u32 %v7701, 4294901760
        %v9075 = vsub.f32 %v7701, %v9074
        %v9076 = vand.u32 %v9075, 4294901760
        %9077 = vmatpush1.msra.mxu0 %v9076
        %9078 = vmatprep.subr.mxu0 0.0
        %v9079 = vand.u32 %v7702, 4294901760
        %v9080 = vsub.f32 %v7702, %v9079
        %v9081 = vand.u32 %v9080, 4294901760
        %9082 = vmatpush1.msra.mxu0 %v9081
        %9083 = vmatprep.subr.mxu0 0.0
        %v9084 = vand.u32 %v7703, 4294901760
        %v9085 = vsub.f32 %v7703, %v9084
        %v9086 = vand.u32 %v9085, 4294901760
        %9087 = vmatpush1.msra.mxu0 %v9086
        %9088 = vmatprep.subr.mxu0 0.0
        %9089 = vmatpush1.msra.mxu0 0.0
        %9090 = vmatprep.subr.mxu0 0.0
        %9091 = vmatpush1.msra.mxu0 0.0
        %9092 = vmatprep.subr.mxu0 0.0
        %9093 = vmatpush1.msra.mxu0 0.0
        %9094 = vmatprep.subr.mxu0 0.0
        %9095 = vmatpush1.msra.mxu0 0.0
        %9096 = vmatprep.subr.mxu0 0.0
        %9097 = vmatpush1.msra.mxu0 0.0
        %9098 = vmatprep.subr.mxu0 0.0
        %9099 = vmatpush1.msra.mxu0 0.0
        %9100 = vmatprep.subr.mxu0 0.0
        %9101 = vmatpush1.msra.mxu0 0.0
        %9102 = vmatprep.subr.mxu0 0.0
        %9103 = vmatpush1.msra.mxu0 0.0
        %9104 = vmatprep.subr.mxu0 0.0
        %9105 = vmatpush1.msra.mxu0 0.0
        %9106 = vmatprep.subr.mxu0 0.0
        %9107 = vmatpush1.msra.mxu0 0.0
        %9108 = vmatprep.subr.mxu0 0.0
        %9109 = vmatpush1.msra.mxu0 0.0
        %9110 = vmatprep.subr.mxu0 0.0
        %9111 = vmatpush1.msra.mxu0 0.0
        %9112 = vmatprep.subr.mxu0 0.0
        %9113 = vmatpush1.msra.mxu0 0.0
        %9114 = vmatprep.subr.mxu0 0.0
        %9115 = vmatpush1.msra.mxu0 0.0
        %9116 = vmatprep.subr.mxu0 0.0
        %9117 = vmatpush1.msra.mxu0 0.0
        %9118 = vmatprep.subr.mxu0 0.0
        %9119 = vmatpush1.msra.mxu0 0.0
        %9120 = vmatprep.mubr.f32.mxu0 0.0
        %v9121 = vand.u32 %v7655, 4294901760
        %9122 = vmatmul.mubr.f32.gmra.mrb[0].mxu0 %v9121
        %v9123 = vpop.f32.mrb[0].mxu0
        %v9124 = vadd.f32 %v9005, %v9123
        %v9125 = vpop.f32.mrb[0].mxu0
        %9126 = vdwg.mxu0
        %9127 = vmatprep.subr.mxu0 0.0
        %v9128 = vand.u32 %v7688, 4294901760
        %9129 = vmatpush1.msra.mxu0 %v9128
        %9130 = vmatprep.subr.mxu0 0.0
        %v9131 = vand.u32 %v7689, 4294901760
        %9132 = vmatpush1.msra.mxu0 %v9131
        %9133 = vmatprep.subr.mxu0 0.0
        %v9134 = vand.u32 %v7690, 4294901760
        %9135 = vmatpush1.msra.mxu0 %v9134
        %9136 = vmatprep.subr.mxu0 0.0
        %v9137 = vand.u32 %v7691, 4294901760
        %9138 = vmatpush1.msra.mxu0 %v9137
        %9139 = vmatprep.subr.mxu0 0.0
        %v9140 = vand.u32 %v7692, 4294901760
        %9141 = vmatpush1.msra.mxu0 %v9140
        %9142 = vmatprep.subr.mxu0 0.0
        %v9143 = vand.u32 %v7693, 4294901760
        %9144 = vmatpush1.msra.mxu0 %v9143
        %9145 = vmatprep.subr.mxu0 0.0
        %v9146 = vand.u32 %v7694, 4294901760
        %9147 = vmatpush1.msra.mxu0 %v9146
        %9148 = vmatprep.subr.mxu0 0.0
        %v9149 = vand.u32 %v7695, 4294901760
        %9150 = vmatpush1.msra.mxu0 %v9149
        %9151 = vmatprep.subr.mxu0 0.0
        %v9152 = vand.u32 %v7696, 4294901760
        %9153 = vmatpush1.msra.mxu0 %v9152
        %9154 = vmatprep.subr.mxu0 0.0
        %v9155 = vand.u32 %v7697, 4294901760
        %9156 = vmatpush1.msra.mxu0 %v9155
        %9157 = vmatprep.subr.mxu0 0.0
        %v9158 = vand.u32 %v7698, 4294901760
        %9159 = vmatpush1.msra.mxu0 %v9158
        %9160 = vmatprep.subr.mxu0 0.0
        %v9161 = vand.u32 %v7699, 4294901760
        %9162 = vmatpush1.msra.mxu0 %v9161
        %9163 = vmatprep.subr.mxu0 0.0
        %v9164 = vand.u32 %v7700, 4294901760
        %9165 = vmatpush1.msra.mxu0 %v9164
        %9166 = vmatprep.subr.mxu0 0.0
        %v9167 = vand.u32 %v7701, 4294901760
        %9168 = vmatpush1.msra.mxu0 %v9167
        %9169 = vmatprep.subr.mxu0 0.0
        %v9170 = vand.u32 %v7702, 4294901760
        %9171 = vmatpush1.msra.mxu0 %v9170
        %9172 = vmatprep.subr.mxu0 0.0
        %v9173 = vand.u32 %v7703, 4294901760
        %9174 = vmatpush1.msra.mxu0 %v9173
        %9175 = vmatprep.subr.mxu0 0.0
        %9176 = vmatpush1.msra.mxu0 0.0
        %9177 = vmatprep.subr.mxu0 0.0
        %9178 = vmatpush1.msra.mxu0 0.0
        %9179 = vmatprep.subr.mxu0 0.0
        %9180 = vmatpush1.msra.mxu0 0.0
        %9181 = vmatprep.subr.mxu0 0.0
        %9182 = vmatpush1.msra.mxu0 0.0
        %9183 = vmatprep.subr.mxu0 0.0
        %9184 = vmatpush1.msra.mxu0 0.0
        %9185 = vmatprep.subr.mxu0 0.0
        %9186 = vmatpush1.msra.mxu0 0.0
        %9187 = vmatprep.subr.mxu0 0.0
        %9188 = vmatpush1.msra.mxu0 0.0
        %9189 = vmatprep.subr.mxu0 0.0
        %9190 = vmatpush1.msra.mxu0 0.0
        %9191 = vmatprep.subr.mxu0 0.0
        %9192 = vmatpush1.msra.mxu0 0.0
        %9193 = vmatprep.subr.mxu0 0.0
        %9194 = vmatpush1.msra.mxu0 0.0
        %9195 = vmatprep.subr.mxu0 0.0
        %9196 = vmatpush1.msra.mxu0 0.0
        %9197 = vmatprep.subr.mxu0 0.0
        %9198 = vmatpush1.msra.mxu0 0.0
        %9199 = vmatprep.subr.mxu0 0.0
        %9200 = vmatpush1.msra.mxu0 0.0
        %9201 = vmatprep.subr.mxu0 0.0
        %9202 = vmatpush1.msra.mxu0 0.0
        %9203 = vmatprep.subr.mxu0 0.0
        %9204 = vmatpush1.msra.mxu0 0.0
        %9205 = vmatprep.subr.mxu0 0.0
        %9206 = vmatpush1.msra.mxu0 0.0
        %9207 = vmatprep.mubr.f32.mxu0 0.0
        %v9208 = vand.u32 %v7655, 4294901760
        %9209 = vmatmul.mubr.f32.gmra.mrb[0].mxu0 %v9208
        %v9210 = vpop.f32.mrb[0].mxu0
        %v9211 = vadd.f32 %v9124, %v9210
        %v9212 = vpop.f32.mrb[0].mxu0
        %9213 = vdwg.mxu0
        %v9214 = vadd.f32 %v6062, %v9211
        %9215 = vst [vmem:[%s445] sm:$0xff] %v9214
        %s9216 = sand.u32 %s274, 1
        %s9217 = scalar_lea.sflag [#allocation4], %s9216
        %s9218 = sand.u32 %s274, 1
        %s9219 = smul.addr %s9218, 8
        %s9220 = scalar_lea.vmem [#allocation10], %s9219
        // Predicated region
        $region81: #{tpu_custom_call.1} parent=63 // pred_check
          %p9221 = pneg %p284
        $region82: #{tpu_custom_call.1} parent=63 // pred_check_branch
          %9223 = sbr.rel (%p9221) target = $region84
        $region83: #{tpu_custom_call.1} parent=63 // pred_region
          %s9225 = ssub.s32 128, 128
          %9226 = vsyncadd %s9217, %s9225
          %s9227 = smul.addr %s30, 128
          %s9228 = scalar_lea.hbm %s11, %s9227
          %s9230 = sshll.u32 %s9220, 4
          %s9231 = int_to_ptr.vmem [resolvable:$true] %s9230
          %9233 = dma.vmem_to_hbm [thread:$0]  %s9231, 128, %s9228, %s9217
        $region84: #{tpu_custom_call.1} parent=63 // pred_fallthru
          _
      $region64: #{tpu_custom_call.1} parent=5 // pred_fallthru
        _
      %p9234 = scmp.le.s32.totalorder 2, %s25
      // Predicated region
      $region85: #{tpu_custom_call.1} parent=5 // pred_check
        %p9235 = pneg %p9234
      $region86: #{tpu_custom_call.1} parent=5 // pred_check_branch
        %9237 = sbr.rel (%p9235) target = $region88
      $region87: #{tpu_custom_call.1} parent=5 // pred_region
        %s9238 = ssub.s32 %s25, 2
        // Predicated region
        $region89: #{tpu_custom_call.1} parent=87 // pred_check
          %p9239 = pneg %p290
        $region90: #{tpu_custom_call.1} parent=87 // pred_check_branch
          %9241 = sbr.rel (%p9239) target = $region92
        $region91: #{tpu_custom_call.1} parent=87 // pred_region
          %s9242 = sand.u32 %s275, 1
          %s9243 = scalar_lea.sflag [#allocation4], %s9242
          %s9244 = sand.u32 %s275, 1
          %s9245 = smul.addr %s9244, 8
          %s9246 = scalar_lea.vmem [#allocation10], %s9245
          %9247 = dma.done %s9243, 128
        $region92: #{tpu_custom_call.1} parent=87 // pred_fallthru
          _
      $region88: #{tpu_custom_call.1} parent=5 // pred_fallthru
        _
    $region6: #{tpu_custom_call.1} parent=1 // loop_footer
      %s29 = sadd.s32 1, %s25
    $region7: #{tpu_custom_call.1} parent=1 // loop_footer_branch
      %24 = sbr.rel target = $region3
    $region8: #{tpu_custom_call.1} parent=1 // loop_exit
      _
    %9248 = vsyncpa [#allocation3], 1
    %s9249 = scalar_lea.sflag [#allocation3], 1
    %9250 = vsyncpa %s9249, 1
    %9251 = vsyncpa [#allocation6], 1
    %9252 = vsyncpa [#allocation9], 1
    %9253 = vsyncpa [#allocation4], 1
    %s9254 = scalar_lea.sflag [#allocation4], 1
    %9255 = vsyncpa %s9254, 1

</llo_original>
